<compile_context>
chip_gen: v5e
topology: v5e:2x2
jax: 0.10.0
libtpu: 0.0.40
codegen_flags: <defaults>
</compile_context>

<pallas_src>
import math

import numpy as np
import jax
import jax.numpy as jnp
from jax.experimental import pallas as pl
from jax.experimental.pallas import tpu as pltpu

BN_EPS = 1e-5          # torch.nn.BatchNorm2d default eps
LRELU_SLOPE = 0.01     # torch.nn.LeakyReLU default negative_slope

# num_vars == 2 branch of GaussianConvEncoderClf.__init__
IN_CH = 3
HIDDEN = [16, 32, 64, 128]
IMG = 32               # 4 stride-2 convs: 32 -> 2, so fc in_features = 128 * 4
N_BATCH = 2


# ---------------------------------------------------------------------------
# Static per-layer geometry
# ---------------------------------------------------------------------------
def layer_dims():
    dims = []
    cin, hi = IN_CH, IMG
    for li, cout in enumerate(HIDDEN):
        ho = hi // 2                      # output spatial (square)
        r = hi // 2 + 1                   # super-rows of the padded input  (= (hi+2)//2)
        s = hi // 2 + 1                   # super-cols of the padded input
        lin = 2 * s * cin                 # lane width of the input buffer  (j, s, c)
        if li < len(HIDDEN) - 1:
            lout = 2 * (ho // 2 + 1) * cout   # next buffer's lane width
        else:
            lout = ho * cout                  # last layer: plain (x, o) lanes
        dims.append(dict(cin=cin, cout=cout, hi=hi, ho=ho, r=r, s=s, lin=lin, lout=lout))
        cin, hi = cout, ho
    return dims


# ---------------------------------------------------------------------------
# Deterministic PyTorch-style parameter init (synthetic; no checkpoint load)
# ---------------------------------------------------------------------------
def init_torch_like_params(key):
    params = {"convs": [], "bns": []}
    cin = IN_CH
    for li, cout in enumerate(HIDDEN):
        k = jax.random.fold_in(key, li)
        fan_in = cin * 9
        bound = 1.0 / math.sqrt(fan_in)
        w = jax.random.uniform(jax.random.fold_in(k, 0), (cout, cin, 3, 3),
                               minval=-bound, maxval=bound, dtype=jnp.float32)
        b = jax.random.uniform(jax.random.fold_in(k, 1), (cout,),
                               minval=-bound, maxval=bound, dtype=jnp.float32)
        params["convs"].append((w, b))
        params["bns"].append((jnp.ones((cout,), jnp.float32),
                              jnp.zeros((cout,), jnp.float32)))
        cin = cout
    feat = HIDDEN[-1] * 4
    bound = 1.0 / math.sqrt(feat)
    kf = jax.random.fold_in(key, 1000)
    params["fc_w"] = jax.random.uniform(jax.random.fold_in(kf, 0), (feat,),
                                        minval=-bound, maxval=bound, dtype=jnp.float32)
    params["fc_b"] = jax.random.uniform(jax.random.fold_in(kf, 1), (1,),
                                        minval=-bound, maxval=bound, dtype=jnp.float32)
    return params


# ---------------------------------------------------------------------------
# Host-side construction of the structured kernel operands (one-time)
# ---------------------------------------------------------------------------
def _col_start(x, cout, last, wo):
    """Output-lane start for output column x in the (next-buffer) lane layout."""
    if last:
        return x * cout
    jp = (x + 1) % 2                      # column parity in the padded next input
    sp = (x + 1) // 2                     # super-column in the padded next input
    s_next = wo // 2 + 1
    return (jp * s_next + sp) * cout


def build_operands(params):
    dims = layer_dims()
    ops = dict(w=[], rmat=[], rmatT=[], gb=[], sel=[])
    tapmap = {0: (0, 0), 1: (1, 0), 2: (0, 1)}           # dj -> (col parity j, super offset q)

    for li, d in enumerate(dims):
        K = np.asarray(params["convs"][li][0])           # [cout, cin, 3, 3]
        cin, cout, wo, s = d["cin"], d["cout"], d["ho"], d["s"]
        lin, lout = d["lin"], d["lout"]
        last = li == len(dims) - 1

        # Structured conv weight: one [lin, lout] matrix per kernel row di.
        wstk = np.zeros((3, lin, lout), np.float32)
        for di in range(3):
            for dj in range(3):
                jj, qj = tapmap[dj]
                for x in range(wo):
                    r0 = (jj * s + (x + qj)) * cin
                    c0 = _col_start(x, cout, last, wo)
                    wstk[di, r0:r0 + cin, c0:c0 + cout] = K[:, :, di, dj].T
        ops["w"].append(jnp.asarray(wstk))

        # Lane -> channel reduction matrix for BN stats (zero rows on padding lanes).
        rmat = np.zeros((lout, cout), np.float32)
        for x in range(wo):
            c0 = _col_start(x, cout, last, wo)
            rmat[c0:c0 + cout, :] = np.eye(cout, dtype=np.float32)
        ops["rmat"].append(jnp.asarray(rmat))
        ops["rmatT"].append(jnp.asarray(rmat.T))

        gamma, beta = params["bns"][li]
        ops["gb"].append(jnp.stack([gamma, beta]).astype(jnp.float32))    # [2, cout]

        # Even/odd output-row selection matrices for the parity-split writeback.
        if not last:
            ho = d["ho"]
            sel = np.zeros((2, ho // 2, ho), np.float32)
            sel[0, np.arange(ho // 2), 2 * np.arange(ho // 2)] = 1.0      # even rows
            sel[1, np.arange(ho // 2), 2 * np.arange(ho // 2) + 1] = 1.0  # odd rows
            ops["sel"].append(jnp.asarray(sel))

    # fc weight permuted into the last layer's (row y, lane = x*C + o) layout, matching
    # torch.flatten(NCHW, start_dim=1) order  (feature index = o*4 + y*2 + x for 2x2 maps).
    fcw = np.asarray(params["fc_w"])
    ho_l, wo_l, cout_l = dims[-1]["ho"], dims[-1]["ho"], dims[-1]["cout"]
    wfc2 = np.zeros((ho_l, wo_l * cout_l), np.float32)
    o_idx = np.arange(cout_l)
    for y in range(ho_l):
        for x in range(wo_l):
            wfc2[y, x * cout_l + o_idx] = fcw[o_idx * (ho_l * wo_l) + y * wo_l + x]
    ops["wfc2"] = jnp.asarray(wfc2)
    ops["fcb"] = jnp.reshape(params["fc_b"], (1, 1))
    return ops


def pack_input(x_nchw):
    """NCHW -> padded, parity-folded buffer  [N, 2, R, 2*S*C]  (one-time host prep)."""
    x = jnp.transpose(x_nchw, (0, 2, 3, 1)).astype(jnp.float32)       # NHWC
    n, h, w, c = x.shape
    xp = jnp.pad(x, ((0, 0), (1, 1), (1, 1), (0, 0)))
    r, s = (h + 2) // 2, (w + 2) // 2
    b0 = xp.reshape(n, r, 2, s, 2, c).transpose(0, 2, 1, 4, 3, 5).reshape(n, 2, r, 2 * s * c)
    return b0


# ---------------------------------------------------------------------------
# The fused Pallas kernel
# ---------------------------------------------------------------------------
def make_kernel(dims, n_batch):
    n_layers = len(dims)

    def kernel(*refs):
        idx = 0
        b0_ref = refs[idx]; idx += 1
        w_refs = refs[idx:idx + n_layers]; idx += n_layers
        rmat_refs = refs[idx:idx + n_layers]; idx += n_layers
        rmatT_refs = refs[idx:idx + n_layers]; idx += n_layers
        gb_refs = refs[idx:idx + n_layers]; idx += n_layers
        sel_refs = refs[idx:idx + n_layers - 1]; idx += n_layers - 1
        wfc2_ref = refs[idx]; idx += 1
        fcb_ref = refs[idx]; idx += 1
        out_ref = refs[idx]; idx += 1
        buf_refs = refs[idx:]                        # n_layers - 1 VMEM activation buffers

        # Zero the intermediate buffers once (their untouched rows/lanes are the zero pad).
        for br in buf_refs:
            br[...] = jnp.zeros(br.shape, br.dtype)

        # Hoisted constant loads used by the final layer.
        wfc2 = wfc2_ref[...]
        fcb = fcb_ref[...]

        cur = b0_ref
        for li, d in enumerate(dims):
            ho, wo, lout, cout = d["ho"], d["ho"], d["lout"], d["cout"]
            last = li == n_layers - 1

            # Hoist the three structured-weight planes out of the per-image loop.
            w0 = w_refs[li][0]
            w1 = w_refs[li][1]
            w2 = w_refs[li][2]

            # ---- conv: 3 block-structured MXU matmuls per image (all 9 taps folded) ----
            ys = []
            for n in range(n_batch):
                sl0 = cur[n, 0, 0:ho, :]             # kernel row 0: padded rows 2y
                sl1 = cur[n, 1, 0:ho, :]             # kernel row 1: padded rows 2y+1
                sl2 = cur[n, 0, 1:ho + 1, :]         # kernel row 2: padded rows 2y+2
                y = jnp.dot(sl0, w0, preferred_element_type=jnp.float32)
                y = y + jnp.dot(sl1, w1, preferred_element_type=jnp.float32)
                y = y + jnp.dot(sl2, w2, preferred_element_type=jnp.float32)
                ys.append(y)                         # [ho, lout]

            # ---- BatchNorm2d (training-mode batch stats), single pass E[y^2]-E[y]^2 ----
            s_lane = ys[0].sum(axis=0, keepdims=True)
            q_lane = (ys[0] * ys[0]).sum(axis=0, keepdims=True)
            for n in range(1, n_batch):
                s_lane = s_lane + ys[n].sum(axis=0, keepdims=True)
                q_lane = q_lane + (ys[n] * ys[n]).sum(axis=0, keepdims=True)
            inv_cnt = 1.0 / float(n_batch * ho * wo)
            # One stacked [2, lout] x [lout, cout] matmul gives mean and E[y^2] together.
            mom = jnp.dot(jnp.concatenate([s_lane, q_lane], axis=0),
                          rmat_refs[li][...],
                          preferred_element_type=jnp.float32) * inv_cnt          # [2, cout]
            mean = mom[0:1, :]
            var = mom[1:2, :] - mean * mean

            gb = gb_refs[li][...]
            gamma = gb[0:1, :]
            beta = gb[1:2, :]
            inv = gamma * jax.lax.rsqrt(var + BN_EPS)                            # [1, cout]
            # One stacked [2, cout] x [cout, lout] matmul expands scale and shift to lanes.
            ss = jnp.dot(jnp.concatenate([inv, beta - mean * inv], axis=0),
                         rmatT_refs[li][...],
                         preferred_element_type=jnp.float32)                     # [2, lout]
            scale = ss[0:1, :]
            shift = ss[1:2, :]

            if not last:
                sel0 = sel_refs[li][0]               # hoisted out of the image loop
                sel1 = sel_refs[li][1]
                nb = buf_refs[li]

            # ---- normalise + LeakyReLU, then write / fc ----
            for n in range(n_batch):
                yn = ys[n] * scale + shift
                yn = jnp.where(yn >= 0.0, yn, LRELU_SLOPE * yn)
                if not last:
                    # even output rows -> (h'=1, r'=a); odd output rows -> (h'=0, r'=a+1)
                    nb[n, 1, 0:ho // 2, :] = jnp.dot(
                        sel0, yn, preferred_element_type=jnp.float32)
                    nb[n, 0, 1:ho // 2 + 1, :] = jnp.dot(
                        sel1, yn, preferred_element_type=jnp.float32)
                else:
                    # fused Linear: torch.flatten(NCHW) @ fc_w == sum(yn * permuted fc_w)
                    prod = yn * wfc2
                    t = jnp.sum(prod, axis=1, keepdims=True)
                    t = jnp.sum(t, axis=0, keepdims=True)                        # [1, 1]
                    out_ref[pl.ds(n, 1), :] = t + fcb
            if not last:
                cur = buf_refs[li]

    return kernel


def forward(x_nchw, operands):
    dims = layer_dims()
    n = x_nchw.shape[0]
    b0 = pack_input(x_nchw)

    inputs = ([b0] + operands["w"] + operands["rmat"] + operands["rmatT"]
              + operands["gb"] + operands["sel"] + [operands["wfc2"], operands["fcb"]])

    # VMEM scratch: the (padded, parity-folded) input buffers of layers 1..L-1.
    scratch = [pltpu.VMEM((n, 2, dims[li + 1]["r"], dims[li + 1]["lin"]), jnp.float32)
               for li in range(len(dims) - 1)]

    vmem_spec = pl.BlockSpec(memory_space=pltpu.MemorySpace.VMEM)
    return pl.pallas_call(
        make_kernel(dims, n),
        out_shape=jax.ShapeDtypeStruct((n, 1), jnp.float32),
        in_specs=[vmem_spec] * len(inputs),
        out_specs=vmem_spec,
        scratch_shapes=scratch,
        compiler_params=pltpu.CompilerParams(vmem_limit_bytes=32 * 1024 * 1024),
    )(*inputs)


# ---------------------------------------------------------------------------
# Pure-JAX reference (mirrors the PyTorch module exactly, including conv bias)
# ---------------------------------------------------------------------------
def reference_forward(x_nchw, params):
    hp = jax.lax.Precision.HIGHEST
    x = jnp.transpose(x_nchw, (0, 2, 3, 1)).astype(jnp.float32)
    for li in range(len(HIDDEN)):
        K, b = params["convs"][li]
        gamma, beta = params["bns"][li]
        n, h, w, _ = x.shape
        ho, wo = h // 2, w // 2
        xp = jnp.pad(x, ((0, 0), (1, 1), (1, 1), (0, 0)))
        y = jnp.zeros((n, ho, wo, K.shape[0]), jnp.float32)
        for di in range(3):
            for dj in range(3):
                tap = xp[:, di:di + 2 * ho:2, dj:dj + 2 * wo:2, :]
                y = y + jnp.einsum('nhwc,oc->nhwo', tap, K[:, :, di, dj], precision=hp)
        y = y + b
        mean = jnp.mean(y, axis=(0, 1, 2), keepdims=True)
        var = jnp.mean((y - mean) ** 2, axis=(0, 1, 2), keepdims=True)   # biased (PyTorch)
        y = (y - mean) * jax.lax.rsqrt(var + BN_EPS) * gamma + beta
        x = jnp.where(y >= 0, y, LRELU_SLOPE * y)
    feat = jnp.transpose(x, (0, 3, 1, 2)).reshape(x.shape[0], -1)        # NCHW flatten
    return jnp.dot(feat, params["fc_w"][:, None], precision=hp) + params["fc_b"][None, :]


if __name__ == "__main__":
    assert (IMG >> len(HIDDEN)) == 2, "fc expects a 2x2 final feature map"

    key = jax.random.PRNGKey(0)
    x = jax.random.normal(jax.random.fold_in(key, 7),
                          (N_BATCH, IN_CH, IMG, IMG), jnp.float32)
    params = init_torch_like_params(jax.random.fold_in(key, 11))
    operands = build_operands(params)

    fwd = jax.jit(forward)
    out = jax.block_until_ready(fwd(x, operands))
    assert out.shape == (N_BATCH, 1) and out.dtype == jnp.float32

    ref = jax.block_until_ready(reference_forward(x, params))
    np.testing.assert_allclose(np.asarray(out), np.asarray(ref), rtol=5e-2, atol=5e-2)

    print("KERNEL_OK")
</pallas_src>

<mosaic_0001>
module attributes {stable_mosaic.version = 11 : i64} {
  func.func @kernel(%arg0: memref<2x2x17x102xf32, #tpu.memory_space<vmem>>, %arg1: memref<3x102x288xf32, #tpu.memory_space<vmem>>, %arg2: memref<3x288x320xf32, #tpu.memory_space<vmem>>, %arg3: memref<3x320x384xf32, #tpu.memory_space<vmem>>, %arg4: memref<3x384x256xf32, #tpu.memory_space<vmem>>, %arg5: memref<288x16xf32, #tpu.memory_space<vmem>>, %arg6: memref<320x32xf32, #tpu.memory_space<vmem>>, %arg7: memref<384x64xf32, #tpu.memory_space<vmem>>, %arg8: memref<256x128xf32, #tpu.memory_space<vmem>>, %arg9: memref<16x288xf32, #tpu.memory_space<vmem>>, %arg10: memref<32x320xf32, #tpu.memory_space<vmem>>, %arg11: memref<64x384xf32, #tpu.memory_space<vmem>>, %arg12: memref<128x256xf32, #tpu.memory_space<vmem>>, %arg13: memref<2x16xf32, #tpu.memory_space<vmem>>, %arg14: memref<2x32xf32, #tpu.memory_space<vmem>>, %arg15: memref<2x64xf32, #tpu.memory_space<vmem>>, %arg16: memref<2x128xf32, #tpu.memory_space<vmem>>, %arg17: memref<2x8x16xf32, #tpu.memory_space<vmem>>, %arg18: memref<2x4x8xf32, #tpu.memory_space<vmem>>, %arg19: memref<2x2x4xf32, #tpu.memory_space<vmem>>, %arg20: memref<2x256xf32, #tpu.memory_space<vmem>>, %arg21: memref<1x1xf32, #tpu.memory_space<vmem>>, %arg22: memref<2x1xf32, #tpu.memory_space<vmem>>, %arg23: memref<2x2x9x288xf32, #tpu.memory_space<vmem>>, %arg24: memref<2x2x5x320xf32, #tpu.memory_space<vmem>>, %arg25: memref<2x2x3x384xf32, #tpu.memory_space<vmem>>) attributes {dimension_semantics = [], scalar_prefetch = 0 : i64, scratch_operands = 3 : i64, tpu.core_type = #tpu.core_type<tc>} {
    %cst = arith.constant 0.000000e+00 : f32
    %0 = vector.broadcast %cst : f32 to vector<2x2x9x288xf32>
    %c0 = arith.constant 0 : index
    %c0_0 = arith.constant 0 : index
    %c0_1 = arith.constant 0 : index
    %c0_2 = arith.constant 0 : index
    %1 = vector.load %arg23[%c0, %c0_0, %c0_1, %c0_2] : memref<2x2x9x288xf32, #tpu.memory_space<vmem>>, vector<2x2x9x288xf32>
    tpu.vector_store %arg23[%c0, %c0_0, %c0_1, %c0_2], %0 {strides = array<i32>} : memref<2x2x9x288xf32, #tpu.memory_space<vmem>>, vector<2x2x9x288xf32>,
    %cst_3 = arith.constant 0.000000e+00 : f32
    %2 = vector.broadcast %cst_3 : f32 to vector<2x2x5x320xf32>
    %c0_4 = arith.constant 0 : index
    %c0_5 = arith.constant 0 : index
    %c0_6 = arith.constant 0 : index
    %c0_7 = arith.constant 0 : index
    %3 = vector.load %arg24[%c0_4, %c0_5, %c0_6, %c0_7] : memref<2x2x5x320xf32, #tpu.memory_space<vmem>>, vector<2x2x5x320xf32>
    tpu.vector_store %arg24[%c0_4, %c0_5, %c0_6, %c0_7], %2 {strides = array<i32>} : memref<2x2x5x320xf32, #tpu.memory_space<vmem>>, vector<2x2x5x320xf32>,
    %cst_8 = arith.constant 0.000000e+00 : f32
    %4 = vector.broadcast %cst_8 : f32 to vector<2x2x3x384xf32>
    %c0_9 = arith.constant 0 : index
    %c0_10 = arith.constant 0 : index
    %c0_11 = arith.constant 0 : index
    %c0_12 = arith.constant 0 : index
    %5 = vector.load %arg25[%c0_9, %c0_10, %c0_11, %c0_12] : memref<2x2x3x384xf32, #tpu.memory_space<vmem>>, vector<2x2x3x384xf32>
    tpu.vector_store %arg25[%c0_9, %c0_10, %c0_11, %c0_12], %4 {strides = array<i32>} : memref<2x2x3x384xf32, #tpu.memory_space<vmem>>, vector<2x2x3x384xf32>,
    %c0_13 = arith.constant 0 : index
    %c0_14 = arith.constant 0 : index
    %6 = vector.load %arg20[%c0_13, %c0_14] : memref<2x256xf32, #tpu.memory_space<vmem>>, vector<2x256xf32>
    %c0_15 = arith.constant 0 : index
    %c0_16 = arith.constant 0 : index
    %7 = vector.load %arg21[%c0_15, %c0_16] : memref<1x1xf32, #tpu.memory_space<vmem>>, vector<1x1xf32>
    %c0_17 = arith.constant 0 : index
    %c0_18 = arith.constant 0 : index
    %c0_19 = arith.constant 0 : index
    %8 = vector.load %arg1[%c0_17, %c0_18, %c0_19] : memref<3x102x288xf32, #tpu.memory_space<vmem>>, vector<1x102x288xf32>
    %9 = vector.shape_cast %8 : vector<1x102x288xf32> to vector<102x288xf32>
    %c1 = arith.constant 1 : index
    %c0_20 = arith.constant 0 : index
    %c0_21 = arith.constant 0 : index
    %10 = vector.load %arg1[%c1, %c0_20, %c0_21] : memref<3x102x288xf32, #tpu.memory_space<vmem>>, vector<1x102x288xf32>
    %11 = vector.shape_cast %10 : vector<1x102x288xf32> to vector<102x288xf32>
    %c2 = arith.constant 2 : index
    %c0_22 = arith.constant 0 : index
    %c0_23 = arith.constant 0 : index
    %12 = vector.load %arg1[%c2, %c0_22, %c0_23] : memref<3x102x288xf32, #tpu.memory_space<vmem>>, vector<1x102x288xf32>
    %13 = vector.shape_cast %12 : vector<1x102x288xf32> to vector<102x288xf32>
    %c0_24 = arith.constant 0 : index
    %c0_25 = arith.constant 0 : index
    %c0_26 = arith.constant 0 : index
    %c0_27 = arith.constant 0 : index
    %14 = vector.load %arg0[%c0_24, %c0_25, %c0_26, %c0_27] : memref<2x2x17x102xf32, #tpu.memory_space<vmem>>, vector<1x1x16x102xf32>
    %15 = vector.shape_cast %14 : vector<1x1x16x102xf32> to vector<16x102xf32>
    %c0_28 = arith.constant 0 : index
    %c1_29 = arith.constant 1 : index
    %c0_30 = arith.constant 0 : index
    %c0_31 = arith.constant 0 : index
    %16 = vector.load %arg0[%c0_28, %c1_29, %c0_30, %c0_31] : memref<2x2x17x102xf32, #tpu.memory_space<vmem>>, vector<1x1x16x102xf32>
    %17 = vector.shape_cast %16 : vector<1x1x16x102xf32> to vector<16x102xf32>
    %c0_32 = arith.constant 0 : index
    %c0_33 = arith.constant 0 : index
    %c1_34 = arith.constant 1 : index
    %c0_35 = arith.constant 0 : index
    %18 = vector.load %arg0[%c0_32, %c0_33, %c1_34, %c0_35] : memref<2x2x17x102xf32, #tpu.memory_space<vmem>>, vector<1x1x16x102xf32>
    %19 = vector.shape_cast %18 : vector<1x1x16x102xf32> to vector<16x102xf32>
    %cst_36 = arith.constant dense<0.000000e+00> : vector<16x288xf32>
    %20 = tpu.matmul %15, %9, %cst_36 {dimension_numbers = #tpu.dot_dimension_numbers<[1], [0], [0], [1], [0, 0, 1, 1], [], []>} : vector<16x102xf32>, vector<102x288xf32>, vector<16x288xf32> -> vector<16x288xf32>
    %cst_37 = arith.constant dense<0.000000e+00> : vector<16x288xf32>
    %21 = tpu.matmul %17, %11, %cst_37 {dimension_numbers = #tpu.dot_dimension_numbers<[1], [0], [0], [1], [0, 0, 1, 1], [], []>} : vector<16x102xf32>, vector<102x288xf32>, vector<16x288xf32> -> vector<16x288xf32>
    %22 = arith.addf %20, %21 : vector<16x288xf32>
    %cst_38 = arith.constant dense<0.000000e+00> : vector<16x288xf32>
    %23 = tpu.matmul %19, %13, %cst_38 {dimension_numbers = #tpu.dot_dimension_numbers<[1], [0], [0], [1], [0, 0, 1, 1], [], []>} : vector<16x102xf32>, vector<102x288xf32>, vector<16x288xf32> -> vector<16x288xf32>
    %24 = arith.addf %22, %23 : vector<16x288xf32>
    %c1_39 = arith.constant 1 : index
    %c0_40 = arith.constant 0 : index
    %c0_41 = arith.constant 0 : index
    %c0_42 = arith.constant 0 : index
    %25 = vector.load %arg0[%c1_39, %c0_40, %c0_41, %c0_42] : memref<2x2x17x102xf32, #tpu.memory_space<vmem>>, vector<1x1x16x102xf32>
    %26 = vector.shape_cast %25 : vector<1x1x16x102xf32> to vector<16x102xf32>
    %c1_43 = arith.constant 1 : index
    %c1_44 = arith.constant 1 : index
    %c0_45 = arith.constant 0 : index
    %c0_46 = arith.constant 0 : index
    %27 = vector.load %arg0[%c1_43, %c1_44, %c0_45, %c0_46] : memref<2x2x17x102xf32, #tpu.memory_space<vmem>>, vector<1x1x16x102xf32>
    %28 = vector.shape_cast %27 : vector<1x1x16x102xf32> to vector<16x102xf32>
    %c1_47 = arith.constant 1 : index
    %c0_48 = arith.constant 0 : index
    %c1_49 = arith.constant 1 : index
    %c0_50 = arith.constant 0 : index
    %29 = vector.load %arg0[%c1_47, %c0_48, %c1_49, %c0_50] : memref<2x2x17x102xf32, #tpu.memory_space<vmem>>, vector<1x1x16x102xf32>
    %30 = vector.shape_cast %29 : vector<1x1x16x102xf32> to vector<16x102xf32>
    %cst_51 = arith.constant dense<0.000000e+00> : vector<16x288xf32>
    %31 = tpu.matmul %26, %9, %cst_51 {dimension_numbers = #tpu.dot_dimension_numbers<[1], [0], [0], [1], [0, 0, 1, 1], [], []>} : vector<16x102xf32>, vector<102x288xf32>, vector<16x288xf32> -> vector<16x288xf32>
    %cst_52 = arith.constant dense<0.000000e+00> : vector<16x288xf32>
    %32 = tpu.matmul %28, %11, %cst_52 {dimension_numbers = #tpu.dot_dimension_numbers<[1], [0], [0], [1], [0, 0, 1, 1], [], []>} : vector<16x102xf32>, vector<102x288xf32>, vector<16x288xf32> -> vector<16x288xf32>
    %33 = arith.addf %31, %32 : vector<16x288xf32>
    %cst_53 = arith.constant dense<0.000000e+00> : vector<16x288xf32>
    %34 = tpu.matmul %30, %13, %cst_53 {dimension_numbers = #tpu.dot_dimension_numbers<[1], [0], [0], [1], [0, 0, 1, 1], [], []>} : vector<16x102xf32>, vector<102x288xf32>, vector<16x288xf32> -> vector<16x288xf32>
    %35 = arith.addf %33, %34 : vector<16x288xf32>
    %cst_54 = arith.constant dense<0.000000e+00> : vector<288xf32>
    %36 = vector.multi_reduction <add>, %24, %cst_54 [0] : vector<16x288xf32> to vector<288xf32>
    %37 = vector.shape_cast %36 : vector<288xf32> to vector<1x288xf32>
    %38 = arith.mulf %24, %24 : vector<16x288xf32>
    %cst_55 = arith.constant dense<0.000000e+00> : vector<288xf32>
    %39 = vector.multi_reduction <add>, %38, %cst_55 [0] : vector<16x288xf32> to vector<288xf32>
    %40 = vector.shape_cast %39 : vector<288xf32> to vector<1x288xf32>
    %cst_56 = arith.constant dense<0.000000e+00> : vector<288xf32>
    %41 = vector.multi_reduction <add>, %35, %cst_56 [0] : vector<16x288xf32> to vector<288xf32>
    %42 = vector.shape_cast %41 : vector<288xf32> to vector<1x288xf32>
    %43 = arith.addf %37, %42 : vector<1x288xf32>
    %44 = arith.mulf %35, %35 : vector<16x288xf32>
    %cst_57 = arith.constant dense<0.000000e+00> : vector<288xf32>
    %45 = vector.multi_reduction <add>, %44, %cst_57 [0] : vector<16x288xf32> to vector<288xf32>
    %46 = vector.shape_cast %45 : vector<288xf32> to vector<1x288xf32>
    %47 = arith.addf %40, %46 : vector<1x288xf32>
    %48 = tpu.concatenate %43, %47 in 0 : vector<1x288xf32>, vector<1x288xf32> -> vector<2x288xf32>
    %c0_58 = arith.constant 0 : index
    %c0_59 = arith.constant 0 : index
    %49 = vector.load %arg5[%c0_58, %c0_59] : memref<288x16xf32, #tpu.memory_space<vmem>>, vector<288x16xf32>
    %cst_60 = arith.constant dense<0.000000e+00> : vector<2x16xf32>
    %50 = tpu.matmul %48, %49, %cst_60 {dimension_numbers = #tpu.dot_dimension_numbers<[1], [0], [0], [1], [0, 0, 1, 1], [], []>} : vector<2x288xf32>, vector<288x16xf32>, vector<2x16xf32> -> vector<2x16xf32>
    %cst_61 = arith.constant 0.001953125 : f32
    %51 = vector.broadcast %cst_61 : f32 to vector<2x16xf32>
    %52 = arith.mulf %50, %51 : vector<2x16xf32>
    %53 = vector.extract_strided_slice %52 {offsets = [0, 0], sizes = [1, 16], strides = [1, 1]} : vector<2x16xf32> to vector<1x16xf32>
    %54 = vector.extract_strided_slice %52 {offsets = [1, 0], sizes = [1, 16], strides = [1, 1]} : vector<2x16xf32> to vector<1x16xf32>
    %55 = arith.mulf %53, %53 : vector<1x16xf32>
    %56 = arith.subf %54, %55 : vector<1x16xf32>
    %c0_62 = arith.constant 0 : index
    %c0_63 = arith.constant 0 : index
    %57 = vector.load %arg13[%c0_62, %c0_63] : memref<2x16xf32, #tpu.memory_space<vmem>>, vector<2x16xf32>
    %58 = vector.extract_strided_slice %57 {offsets = [0, 0], sizes = [1, 16], strides = [1, 1]} : vector<2x16xf32> to vector<1x16xf32>
    %59 = vector.extract_strided_slice %57 {offsets = [1, 0], sizes = [1, 16], strides = [1, 1]} : vector<2x16xf32> to vector<1x16xf32>
    %cst_64 = arith.constant 9.99999974E-6 : f32
    %60 = vector.broadcast %cst_64 : f32 to vector<1x16xf32>
    %61 = arith.addf %56, %60 : vector<1x16xf32>
    %62 = math.rsqrt %61 : vector<1x16xf32>
    %63 = arith.mulf %58, %62 : vector<1x16xf32>
    %64 = arith.mulf %53, %63 : vector<1x16xf32>
    %65 = arith.subf %59, %64 : vector<1x16xf32>
    %66 = tpu.concatenate %63, %65 in 0 : vector<1x16xf32>, vector<1x16xf32> -> vector<2x16xf32>
    %c0_65 = arith.constant 0 : index
    %c0_66 = arith.constant 0 : index
    %67 = vector.load %arg9[%c0_65, %c0_66] : memref<16x288xf32, #tpu.memory_space<vmem>>, vector<16x288xf32>
    %cst_67 = arith.constant dense<0.000000e+00> : vector<2x288xf32>
    %68 = tpu.matmul %66, %67, %cst_67 {dimension_numbers = #tpu.dot_dimension_numbers<[1], [0], [0], [1], [0, 0, 1, 1], [], []>} : vector<2x16xf32>, vector<16x288xf32>, vector<2x288xf32> -> vector<2x288xf32>
    %69 = vector.extract_strided_slice %68 {offsets = [0, 0], sizes = [1, 288], strides = [1, 1]} : vector<2x288xf32> to vector<1x288xf32>
    %70 = vector.extract_strided_slice %68 {offsets = [1, 0], sizes = [1, 288], strides = [1, 1]} : vector<2x288xf32> to vector<1x288xf32>
    %c0_68 = arith.constant 0 : index
    %c0_69 = arith.constant 0 : index
    %c0_70 = arith.constant 0 : index
    %71 = vector.load %arg17[%c0_68, %c0_69, %c0_70] : memref<2x8x16xf32, #tpu.memory_space<vmem>>, vector<1x8x16xf32>
    %72 = vector.shape_cast %71 : vector<1x8x16xf32> to vector<8x16xf32>
    %c1_71 = arith.constant 1 : index
    %c0_72 = arith.constant 0 : index
    %c0_73 = arith.constant 0 : index
    %73 = vector.load %arg17[%c1_71, %c0_72, %c0_73] : memref<2x8x16xf32, #tpu.memory_space<vmem>>, vector<1x8x16xf32>
    %74 = vector.shape_cast %73 : vector<1x8x16xf32> to vector<8x16xf32>
    %75 = vector.broadcast %69 : vector<1x288xf32> to vector<16x288xf32>
    %76 = arith.mulf %24, %75 : vector<16x288xf32>
    %77 = vector.broadcast %70 : vector<1x288xf32> to vector<16x288xf32>
    %78 = arith.addf %76, %77 : vector<16x288xf32>
    %cst_74 = arith.constant 0.000000e+00 : f32
    %79 = vector.broadcast %cst_74 : f32 to vector<16x288xf32>
    %80 = arith.cmpf oge, %78, %79 : vector<16x288xf32>
    %cst_75 = arith.constant 0.00999999977 : f32
    %81 = vector.broadcast %cst_75 : f32 to vector<16x288xf32>
    %82 = arith.mulf %81, %78 : vector<16x288xf32>
    %83 = arith.select %80, %78, %82 : vector<16x288xi1>, vector<16x288xf32>
    %cst_76 = arith.constant dense<0.000000e+00> : vector<8x288xf32>
    %84 = tpu.matmul %72, %83, %cst_76 {dimension_numbers = #tpu.dot_dimension_numbers<[1], [0], [0], [1], [0, 0, 1, 1], [], []>} : vector<8x16xf32>, vector<16x288xf32>, vector<8x288xf32> -> vector<8x288xf32>
    %c0_77 = arith.constant 0 : index
    %c1_78 = arith.constant 1 : index
    %c0_79 = arith.constant 0 : index
    %c0_80 = arith.constant 0 : index
    %85 = vector.load %arg23[%c0_77, %c1_78, %c0_79, %c0_80] : memref<2x2x9x288xf32, #tpu.memory_space<vmem>>, vector<1x1x8x288xf32>
    %86 = vector.shape_cast %85 : vector<1x1x8x288xf32> to vector<8x288xf32>
    %87 = vector.shape_cast %84 : vector<8x288xf32> to vector<1x1x8x288xf32>
    tpu.vector_store %arg23[%c0_77, %c1_78, %c0_79, %c0_80], %87 {strides = array<i32>} : memref<2x2x9x288xf32, #tpu.memory_space<vmem>>, vector<1x1x8x288xf32>,
    %cst_81 = arith.constant dense<0.000000e+00> : vector<8x288xf32>
    %88 = tpu.matmul %74, %83, %cst_81 {dimension_numbers = #tpu.dot_dimension_numbers<[1], [0], [0], [1], [0, 0, 1, 1], [], []>} : vector<8x16xf32>, vector<16x288xf32>, vector<8x288xf32> -> vector<8x288xf32>
    %c0_82 = arith.constant 0 : index
    %c0_83 = arith.constant 0 : index
    %c1_84 = arith.constant 1 : index
    %c0_85 = arith.constant 0 : index
    %89 = vector.load %arg23[%c0_82, %c0_83, %c1_84, %c0_85] : memref<2x2x9x288xf32, #tpu.memory_space<vmem>>, vector<1x1x8x288xf32>
    %90 = vector.shape_cast %89 : vector<1x1x8x288xf32> to vector<8x288xf32>
    %91 = vector.shape_cast %88 : vector<8x288xf32> to vector<1x1x8x288xf32>
    tpu.vector_store %arg23[%c0_82, %c0_83, %c1_84, %c0_85], %91 {strides = array<i32>} : memref<2x2x9x288xf32, #tpu.memory_space<vmem>>, vector<1x1x8x288xf32>,
    %92 = vector.broadcast %69 : vector<1x288xf32> to vector<16x288xf32>
    %93 = arith.mulf %35, %92 : vector<16x288xf32>
    %94 = vector.broadcast %70 : vector<1x288xf32> to vector<16x288xf32>
    %95 = arith.addf %93, %94 : vector<16x288xf32>
    %cst_86 = arith.constant 0.000000e+00 : f32
    %96 = vector.broadcast %cst_86 : f32 to vector<16x288xf32>
    %97 = arith.cmpf oge, %95, %96 : vector<16x288xf32>
    %cst_87 = arith.constant 0.00999999977 : f32
    %98 = vector.broadcast %cst_87 : f32 to vector<16x288xf32>
    %99 = arith.mulf %98, %95 : vector<16x288xf32>
    %100 = arith.select %97, %95, %99 : vector<16x288xi1>, vector<16x288xf32>
    %cst_88 = arith.constant dense<0.000000e+00> : vector<8x288xf32>
    %101 = tpu.matmul %72, %100, %cst_88 {dimension_numbers = #tpu.dot_dimension_numbers<[1], [0], [0], [1], [0, 0, 1, 1], [], []>} : vector<8x16xf32>, vector<16x288xf32>, vector<8x288xf32> -> vector<8x288xf32>
    %c1_89 = arith.constant 1 : index
    %c1_90 = arith.constant 1 : index
    %c0_91 = arith.constant 0 : index
    %c0_92 = arith.constant 0 : index
    %102 = vector.load %arg23[%c1_89, %c1_90, %c0_91, %c0_92] : memref<2x2x9x288xf32, #tpu.memory_space<vmem>>, vector<1x1x8x288xf32>
    %103 = vector.shape_cast %102 : vector<1x1x8x288xf32> to vector<8x288xf32>
    %104 = vector.shape_cast %101 : vector<8x288xf32> to vector<1x1x8x288xf32>
    tpu.vector_store %arg23[%c1_89, %c1_90, %c0_91, %c0_92], %104 {strides = array<i32>} : memref<2x2x9x288xf32, #tpu.memory_space<vmem>>, vector<1x1x8x288xf32>,
    %cst_93 = arith.constant dense<0.000000e+00> : vector<8x288xf32>
    %105 = tpu.matmul %74, %100, %cst_93 {dimension_numbers = #tpu.dot_dimension_numbers<[1], [0], [0], [1], [0, 0, 1, 1], [], []>} : vector<8x16xf32>, vector<16x288xf32>, vector<8x288xf32> -> vector<8x288xf32>
    %c1_94 = arith.constant 1 : index
    %c0_95 = arith.constant 0 : index
    %c1_96 = arith.constant 1 : index
    %c0_97 = arith.constant 0 : index
    %106 = vector.load %arg23[%c1_94, %c0_95, %c1_96, %c0_97] : memref<2x2x9x288xf32, #tpu.memory_space<vmem>>, vector<1x1x8x288xf32>
    %107 = vector.shape_cast %106 : vector<1x1x8x288xf32> to vector<8x288xf32>
    %108 = vector.shape_cast %105 : vector<8x288xf32> to vector<1x1x8x288xf32>
    tpu.vector_store %arg23[%c1_94, %c0_95, %c1_96, %c0_97], %108 {strides = array<i32>} : memref<2x2x9x288xf32, #tpu.memory_space<vmem>>, vector<1x1x8x288xf32>,
    %c0_98 = arith.constant 0 : index
    %c0_99 = arith.constant 0 : index
    %c0_100 = arith.constant 0 : index
    %109 = vector.load %arg2[%c0_98, %c0_99, %c0_100] : memref<3x288x320xf32, #tpu.memory_space<vmem>>, vector<1x288x320xf32>
    %110 = vector.shape_cast %109 : vector<1x288x320xf32> to vector<288x320xf32>
    %c1_101 = arith.constant 1 : index
    %c0_102 = arith.constant 0 : index
    %c0_103 = arith.constant 0 : index
    %111 = vector.load %arg2[%c1_101, %c0_102, %c0_103] : memref<3x288x320xf32, #tpu.memory_space<vmem>>, vector<1x288x320xf32>
    %112 = vector.shape_cast %111 : vector<1x288x320xf32> to vector<288x320xf32>
    %c2_104 = arith.constant 2 : index
    %c0_105 = arith.constant 0 : index
    %c0_106 = arith.constant 0 : index
    %113 = vector.load %arg2[%c2_104, %c0_105, %c0_106] : memref<3x288x320xf32, #tpu.memory_space<vmem>>, vector<1x288x320xf32>
    %114 = vector.shape_cast %113 : vector<1x288x320xf32> to vector<288x320xf32>
    %c0_107 = arith.constant 0 : index
    %c0_108 = arith.constant 0 : index
    %c0_109 = arith.constant 0 : index
    %c0_110 = arith.constant 0 : index
    %115 = vector.load %arg23[%c0_107, %c0_108, %c0_109, %c0_110] : memref<2x2x9x288xf32, #tpu.memory_space<vmem>>, vector<1x1x8x288xf32>
    %116 = vector.shape_cast %115 : vector<1x1x8x288xf32> to vector<8x288xf32>
    %c0_111 = arith.constant 0 : index
    %c1_112 = arith.constant 1 : index
    %c0_113 = arith.constant 0 : index
    %c0_114 = arith.constant 0 : index
    %117 = vector.load %arg23[%c0_111, %c1_112, %c0_113, %c0_114] : memref<2x2x9x288xf32, #tpu.memory_space<vmem>>, vector<1x1x8x288xf32>
    %118 = vector.shape_cast %117 : vector<1x1x8x288xf32> to vector<8x288xf32>
    %c0_115 = arith.constant 0 : index
    %c0_116 = arith.constant 0 : index
    %c1_117 = arith.constant 1 : index
    %c0_118 = arith.constant 0 : index
    %119 = vector.load %arg23[%c0_115, %c0_116, %c1_117, %c0_118] : memref<2x2x9x288xf32, #tpu.memory_space<vmem>>, vector<1x1x8x288xf32>
    %120 = vector.shape_cast %119 : vector<1x1x8x288xf32> to vector<8x288xf32>
    %cst_119 = arith.constant dense<0.000000e+00> : vector<8x320xf32>
    %121 = tpu.matmul %116, %110, %cst_119 {dimension_numbers = #tpu.dot_dimension_numbers<[1], [0], [0], [1], [0, 0, 1, 1], [], []>} : vector<8x288xf32>, vector<288x320xf32>, vector<8x320xf32> -> vector<8x320xf32>
    %cst_120 = arith.constant dense<0.000000e+00> : vector<8x320xf32>
    %122 = tpu.matmul %118, %112, %cst_120 {dimension_numbers = #tpu.dot_dimension_numbers<[1], [0], [0], [1], [0, 0, 1, 1], [], []>} : vector<8x288xf32>, vector<288x320xf32>, vector<8x320xf32> -> vector<8x320xf32>
    %123 = arith.addf %121, %122 : vector<8x320xf32>
    %cst_121 = arith.constant dense<0.000000e+00> : vector<8x320xf32>
    %124 = tpu.matmul %120, %114, %cst_121 {dimension_numbers = #tpu.dot_dimension_numbers<[1], [0], [0], [1], [0, 0, 1, 1], [], []>} : vector<8x288xf32>, vector<288x320xf32>, vector<8x320xf32> -> vector<8x320xf32>
    %125 = arith.addf %123, %124 : vector<8x320xf32>
    %c1_122 = arith.constant 1 : index
    %c0_123 = arith.constant 0 : index
    %c0_124 = arith.constant 0 : index
    %c0_125 = arith.constant 0 : index
    %126 = vector.load %arg23[%c1_122, %c0_123, %c0_124, %c0_125] : memref<2x2x9x288xf32, #tpu.memory_space<vmem>>, vector<1x1x8x288xf32>
    %127 = vector.shape_cast %126 : vector<1x1x8x288xf32> to vector<8x288xf32>
    %c1_126 = arith.constant 1 : index
    %c1_127 = arith.constant 1 : index
    %c0_128 = arith.constant 0 : index
    %c0_129 = arith.constant 0 : index
    %128 = vector.load %arg23[%c1_126, %c1_127, %c0_128, %c0_129] : memref<2x2x9x288xf32, #tpu.memory_space<vmem>>, vector<1x1x8x288xf32>
    %129 = vector.shape_cast %128 : vector<1x1x8x288xf32> to vector<8x288xf32>
    %c1_130 = arith.constant 1 : index
    %c0_131 = arith.constant 0 : index
    %c1_132 = arith.constant 1 : index
    %c0_133 = arith.constant 0 : index
    %130 = vector.load %arg23[%c1_130, %c0_131, %c1_132, %c0_133] : memref<2x2x9x288xf32, #tpu.memory_space<vmem>>, vector<1x1x8x288xf32>
    %131 = vector.shape_cast %130 : vector<1x1x8x288xf32> to vector<8x288xf32>
    %cst_134 = arith.constant dense<0.000000e+00> : vector<8x320xf32>
    %132 = tpu.matmul %127, %110, %cst_134 {dimension_numbers = #tpu.dot_dimension_numbers<[1], [0], [0], [1], [0, 0, 1, 1], [], []>} : vector<8x288xf32>, vector<288x320xf32>, vector<8x320xf32> -> vector<8x320xf32>
    %cst_135 = arith.constant dense<0.000000e+00> : vector<8x320xf32>
    %133 = tpu.matmul %129, %112, %cst_135 {dimension_numbers = #tpu.dot_dimension_numbers<[1], [0], [0], [1], [0, 0, 1, 1], [], []>} : vector<8x288xf32>, vector<288x320xf32>, vector<8x320xf32> -> vector<8x320xf32>
    %134 = arith.addf %132, %133 : vector<8x320xf32>
    %cst_136 = arith.constant dense<0.000000e+00> : vector<8x320xf32>
    %135 = tpu.matmul %131, %114, %cst_136 {dimension_numbers = #tpu.dot_dimension_numbers<[1], [0], [0], [1], [0, 0, 1, 1], [], []>} : vector<8x288xf32>, vector<288x320xf32>, vector<8x320xf32> -> vector<8x320xf32>
    %136 = arith.addf %134, %135 : vector<8x320xf32>
    %cst_137 = arith.constant dense<0.000000e+00> : vector<320xf32>
    %137 = vector.multi_reduction <add>, %125, %cst_137 [0] : vector<8x320xf32> to vector<320xf32>
    %138 = vector.shape_cast %137 : vector<320xf32> to vector<1x320xf32>
    %139 = arith.mulf %125, %125 : vector<8x320xf32>
    %cst_138 = arith.constant dense<0.000000e+00> : vector<320xf32>
    %140 = vector.multi_reduction <add>, %139, %cst_138 [0] : vector<8x320xf32> to vector<320xf32>
    %141 = vector.shape_cast %140 : vector<320xf32> to vector<1x320xf32>
    %cst_139 = arith.constant dense<0.000000e+00> : vector<320xf32>
    %142 = vector.multi_reduction <add>, %136, %cst_139 [0] : vector<8x320xf32> to vector<320xf32>
    %143 = vector.shape_cast %142 : vector<320xf32> to vector<1x320xf32>
    %144 = arith.addf %138, %143 : vector<1x320xf32>
    %145 = arith.mulf %136, %136 : vector<8x320xf32>
    %cst_140 = arith.constant dense<0.000000e+00> : vector<320xf32>
    %146 = vector.multi_reduction <add>, %145, %cst_140 [0] : vector<8x320xf32> to vector<320xf32>
    %147 = vector.shape_cast %146 : vector<320xf32> to vector<1x320xf32>
    %148 = arith.addf %141, %147 : vector<1x320xf32>
    %149 = tpu.concatenate %144, %148 in 0 : vector<1x320xf32>, vector<1x320xf32> -> vector<2x320xf32>
    %c0_141 = arith.constant 0 : index
    %c0_142 = arith.constant 0 : index
    %150 = vector.load %arg6[%c0_141, %c0_142] : memref<320x32xf32, #tpu.memory_space<vmem>>, vector<320x32xf32>
    %cst_143 = arith.constant dense<0.000000e+00> : vector<2x32xf32>
    %151 = tpu.matmul %149, %150, %cst_143 {dimension_numbers = #tpu.dot_dimension_numbers<[1], [0], [0], [1], [0, 0, 1, 1], [], []>} : vector<2x320xf32>, vector<320x32xf32>, vector<2x32xf32> -> vector<2x32xf32>
    %cst_144 = arith.constant 7.812500e-03 : f32
    %152 = vector.broadcast %cst_144 : f32 to vector<2x32xf32>
    %153 = arith.mulf %151, %152 : vector<2x32xf32>
    %154 = vector.extract_strided_slice %153 {offsets = [0, 0], sizes = [1, 32], strides = [1, 1]} : vector<2x32xf32> to vector<1x32xf32>
    %155 = vector.extract_strided_slice %153 {offsets = [1, 0], sizes = [1, 32], strides = [1, 1]} : vector<2x32xf32> to vector<1x32xf32>
    %156 = arith.mulf %154, %154 : vector<1x32xf32>
    %157 = arith.subf %155, %156 : vector<1x32xf32>
    %c0_145 = arith.constant 0 : index
    %c0_146 = arith.constant 0 : index
    %158 = vector.load %arg14[%c0_145, %c0_146] : memref<2x32xf32, #tpu.memory_space<vmem>>, vector<2x32xf32>
    %159 = vector.extract_strided_slice %158 {offsets = [0, 0], sizes = [1, 32], strides = [1, 1]} : vector<2x32xf32> to vector<1x32xf32>
    %160 = vector.extract_strided_slice %158 {offsets = [1, 0], sizes = [1, 32], strides = [1, 1]} : vector<2x32xf32> to vector<1x32xf32>
    %cst_147 = arith.constant 9.99999974E-6 : f32
    %161 = vector.broadcast %cst_147 : f32 to vector<1x32xf32>
    %162 = arith.addf %157, %161 : vector<1x32xf32>
    %163 = math.rsqrt %162 : vector<1x32xf32>
    %164 = arith.mulf %159, %163 : vector<1x32xf32>
    %165 = arith.mulf %154, %164 : vector<1x32xf32>
    %166 = arith.subf %160, %165 : vector<1x32xf32>
    %167 = tpu.concatenate %164, %166 in 0 : vector<1x32xf32>, vector<1x32xf32> -> vector<2x32xf32>
    %c0_148 = arith.constant 0 : index
    %c0_149 = arith.constant 0 : index
    %168 = vector.load %arg10[%c0_148, %c0_149] : memref<32x320xf32, #tpu.memory_space<vmem>>, vector<32x320xf32>
    %cst_150 = arith.constant dense<0.000000e+00> : vector<2x320xf32>
    %169 = tpu.matmul %167, %168, %cst_150 {dimension_numbers = #tpu.dot_dimension_numbers<[1], [0], [0], [1], [0, 0, 1, 1], [], []>} : vector<2x32xf32>, vector<32x320xf32>, vector<2x320xf32> -> vector<2x320xf32>
    %170 = vector.extract_strided_slice %169 {offsets = [0, 0], sizes = [1, 320], strides = [1, 1]} : vector<2x320xf32> to vector<1x320xf32>
    %171 = vector.extract_strided_slice %169 {offsets = [1, 0], sizes = [1, 320], strides = [1, 1]} : vector<2x320xf32> to vector<1x320xf32>
    %c0_151 = arith.constant 0 : index
    %c0_152 = arith.constant 0 : index
    %c0_153 = arith.constant 0 : index
    %172 = vector.load %arg18[%c0_151, %c0_152, %c0_153] : memref<2x4x8xf32, #tpu.memory_space<vmem>>, vector<1x4x8xf32>
    %173 = vector.shape_cast %172 : vector<1x4x8xf32> to vector<4x8xf32>
    %c1_154 = arith.constant 1 : index
    %c0_155 = arith.constant 0 : index
    %c0_156 = arith.constant 0 : index
    %174 = vector.load %arg18[%c1_154, %c0_155, %c0_156] : memref<2x4x8xf32, #tpu.memory_space<vmem>>, vector<1x4x8xf32>
    %175 = vector.shape_cast %174 : vector<1x4x8xf32> to vector<4x8xf32>
    %176 = vector.broadcast %170 : vector<1x320xf32> to vector<8x320xf32>
    %177 = arith.mulf %125, %176 : vector<8x320xf32>
    %178 = vector.broadcast %171 : vector<1x320xf32> to vector<8x320xf32>
    %179 = arith.addf %177, %178 : vector<8x320xf32>
    %cst_157 = arith.constant 0.000000e+00 : f32
    %180 = vector.broadcast %cst_157 : f32 to vector<8x320xf32>
    %181 = arith.cmpf oge, %179, %180 : vector<8x320xf32>
    %cst_158 = arith.constant 0.00999999977 : f32
    %182 = vector.broadcast %cst_158 : f32 to vector<8x320xf32>
    %183 = arith.mulf %182, %179 : vector<8x320xf32>
    %184 = arith.select %181, %179, %183 : vector<8x320xi1>, vector<8x320xf32>
    %cst_159 = arith.constant dense<0.000000e+00> : vector<4x320xf32>
    %185 = tpu.matmul %173, %184, %cst_159 {dimension_numbers = #tpu.dot_dimension_numbers<[1], [0], [0], [1], [0, 0, 1, 1], [], []>} : vector<4x8xf32>, vector<8x320xf32>, vector<4x320xf32> -> vector<4x320xf32>
    %c0_160 = arith.constant 0 : index
    %c1_161 = arith.constant 1 : index
    %c0_162 = arith.constant 0 : index
    %c0_163 = arith.constant 0 : index
    %186 = vector.load %arg24[%c0_160, %c1_161, %c0_162, %c0_163] : memref<2x2x5x320xf32, #tpu.memory_space<vmem>>, vector<1x1x4x320xf32>
    %187 = vector.shape_cast %186 : vector<1x1x4x320xf32> to vector<4x320xf32>
    %188 = vector.shape_cast %185 : vector<4x320xf32> to vector<1x1x4x320xf32>
    tpu.vector_store %arg24[%c0_160, %c1_161, %c0_162, %c0_163], %188 {strides = array<i32>} : memref<2x2x5x320xf32, #tpu.memory_space<vmem>>, vector<1x1x4x320xf32>,
    %cst_164 = arith.constant dense<0.000000e+00> : vector<4x320xf32>
    %189 = tpu.matmul %175, %184, %cst_164 {dimension_numbers = #tpu.dot_dimension_numbers<[1], [0], [0], [1], [0, 0, 1, 1], [], []>} : vector<4x8xf32>, vector<8x320xf32>, vector<4x320xf32> -> vector<4x320xf32>
    %c0_165 = arith.constant 0 : index
    %c0_166 = arith.constant 0 : index
    %c1_167 = arith.constant 1 : index
    %c0_168 = arith.constant 0 : index
    %190 = vector.load %arg24[%c0_165, %c0_166, %c1_167, %c0_168] : memref<2x2x5x320xf32, #tpu.memory_space<vmem>>, vector<1x1x4x320xf32>
    %191 = vector.shape_cast %190 : vector<1x1x4x320xf32> to vector<4x320xf32>
    %192 = vector.shape_cast %189 : vector<4x320xf32> to vector<1x1x4x320xf32>
    tpu.vector_store %arg24[%c0_165, %c0_166, %c1_167, %c0_168], %192 {strides = array<i32>} : memref<2x2x5x320xf32, #tpu.memory_space<vmem>>, vector<1x1x4x320xf32>,
    %193 = vector.broadcast %170 : vector<1x320xf32> to vector<8x320xf32>
    %194 = arith.mulf %136, %193 : vector<8x320xf32>
    %195 = vector.broadcast %171 : vector<1x320xf32> to vector<8x320xf32>
    %196 = arith.addf %194, %195 : vector<8x320xf32>
    %cst_169 = arith.constant 0.000000e+00 : f32
    %197 = vector.broadcast %cst_169 : f32 to vector<8x320xf32>
    %198 = arith.cmpf oge, %196, %197 : vector<8x320xf32>
    %cst_170 = arith.constant 0.00999999977 : f32
    %199 = vector.broadcast %cst_170 : f32 to vector<8x320xf32>
    %200 = arith.mulf %199, %196 : vector<8x320xf32>
    %201 = arith.select %198, %196, %200 : vector<8x320xi1>, vector<8x320xf32>
    %cst_171 = arith.constant dense<0.000000e+00> : vector<4x320xf32>
    %202 = tpu.matmul %173, %201, %cst_171 {dimension_numbers = #tpu.dot_dimension_numbers<[1], [0], [0], [1], [0, 0, 1, 1], [], []>} : vector<4x8xf32>, vector<8x320xf32>, vector<4x320xf32> -> vector<4x320xf32>
    %c1_172 = arith.constant 1 : index
    %c1_173 = arith.constant 1 : index
    %c0_174 = arith.constant 0 : index
    %c0_175 = arith.constant 0 : index
    %203 = vector.load %arg24[%c1_172, %c1_173, %c0_174, %c0_175] : memref<2x2x5x320xf32, #tpu.memory_space<vmem>>, vector<1x1x4x320xf32>
    %204 = vector.shape_cast %203 : vector<1x1x4x320xf32> to vector<4x320xf32>
    %205 = vector.shape_cast %202 : vector<4x320xf32> to vector<1x1x4x320xf32>
    tpu.vector_store %arg24[%c1_172, %c1_173, %c0_174, %c0_175], %205 {strides = array<i32>} : memref<2x2x5x320xf32, #tpu.memory_space<vmem>>, vector<1x1x4x320xf32>,
    %cst_176 = arith.constant dense<0.000000e+00> : vector<4x320xf32>
    %206 = tpu.matmul %175, %201, %cst_176 {dimension_numbers = #tpu.dot_dimension_numbers<[1], [0], [0], [1], [0, 0, 1, 1], [], []>} : vector<4x8xf32>, vector<8x320xf32>, vector<4x320xf32> -> vector<4x320xf32>
    %c1_177 = arith.constant 1 : index
    %c0_178 = arith.constant 0 : index
    %c1_179 = arith.constant 1 : index
    %c0_180 = arith.constant 0 : index
    %207 = vector.load %arg24[%c1_177, %c0_178, %c1_179, %c0_180] : memref<2x2x5x320xf32, #tpu.memory_space<vmem>>, vector<1x1x4x320xf32>
    %208 = vector.shape_cast %207 : vector<1x1x4x320xf32> to vector<4x320xf32>
    %209 = vector.shape_cast %206 : vector<4x320xf32> to vector<1x1x4x320xf32>
    tpu.vector_store %arg24[%c1_177, %c0_178, %c1_179, %c0_180], %209 {strides = array<i32>} : memref<2x2x5x320xf32, #tpu.memory_space<vmem>>, vector<1x1x4x320xf32>,
    %c0_181 = arith.constant 0 : index
    %c0_182 = arith.constant 0 : index
    %c0_183 = arith.constant 0 : index
    %210 = vector.load %arg3[%c0_181, %c0_182, %c0_183] : memref<3x320x384xf32, #tpu.memory_space<vmem>>, vector<1x320x384xf32>
    %211 = vector.shape_cast %210 : vector<1x320x384xf32> to vector<320x384xf32>
    %c1_184 = arith.constant 1 : index
    %c0_185 = arith.constant 0 : index
    %c0_186 = arith.constant 0 : index
    %212 = vector.load %arg3[%c1_184, %c0_185, %c0_186] : memref<3x320x384xf32, #tpu.memory_space<vmem>>, vector<1x320x384xf32>
    %213 = vector.shape_cast %212 : vector<1x320x384xf32> to vector<320x384xf32>
    %c2_187 = arith.constant 2 : index
    %c0_188 = arith.constant 0 : index
    %c0_189 = arith.constant 0 : index
    %214 = vector.load %arg3[%c2_187, %c0_188, %c0_189] : memref<3x320x384xf32, #tpu.memory_space<vmem>>, vector<1x320x384xf32>
    %215 = vector.shape_cast %214 : vector<1x320x384xf32> to vector<320x384xf32>
    %c0_190 = arith.constant 0 : index
    %c0_191 = arith.constant 0 : index
    %c0_192 = arith.constant 0 : index
    %c0_193 = arith.constant 0 : index
    %216 = vector.load %arg24[%c0_190, %c0_191, %c0_192, %c0_193] : memref<2x2x5x320xf32, #tpu.memory_space<vmem>>, vector<1x1x4x320xf32>
    %217 = vector.shape_cast %216 : vector<1x1x4x320xf32> to vector<4x320xf32>
    %c0_194 = arith.constant 0 : index
    %c1_195 = arith.constant 1 : index
    %c0_196 = arith.constant 0 : index
    %c0_197 = arith.constant 0 : index
    %218 = vector.load %arg24[%c0_194, %c1_195, %c0_196, %c0_197] : memref<2x2x5x320xf32, #tpu.memory_space<vmem>>, vector<1x1x4x320xf32>
    %219 = vector.shape_cast %218 : vector<1x1x4x320xf32> to vector<4x320xf32>
    %c0_198 = arith.constant 0 : index
    %c0_199 = arith.constant 0 : index
    %c1_200 = arith.constant 1 : index
    %c0_201 = arith.constant 0 : index
    %220 = vector.load %arg24[%c0_198, %c0_199, %c1_200, %c0_201] : memref<2x2x5x320xf32, #tpu.memory_space<vmem>>, vector<1x1x4x320xf32>
    %221 = vector.shape_cast %220 : vector<1x1x4x320xf32> to vector<4x320xf32>
    %cst_202 = arith.constant dense<0.000000e+00> : vector<4x384xf32>
    %222 = tpu.matmul %217, %211, %cst_202 {dimension_numbers = #tpu.dot_dimension_numbers<[1], [0], [0], [1], [0, 0, 1, 1], [], []>} : vector<4x320xf32>, vector<320x384xf32>, vector<4x384xf32> -> vector<4x384xf32>
    %cst_203 = arith.constant dense<0.000000e+00> : vector<4x384xf32>
    %223 = tpu.matmul %219, %213, %cst_203 {dimension_numbers = #tpu.dot_dimension_numbers<[1], [0], [0], [1], [0, 0, 1, 1], [], []>} : vector<4x320xf32>, vector<320x384xf32>, vector<4x384xf32> -> vector<4x384xf32>
    %224 = arith.addf %222, %223 : vector<4x384xf32>
    %cst_204 = arith.constant dense<0.000000e+00> : vector<4x384xf32>
    %225 = tpu.matmul %221, %215, %cst_204 {dimension_numbers = #tpu.dot_dimension_numbers<[1], [0], [0], [1], [0, 0, 1, 1], [], []>} : vector<4x320xf32>, vector<320x384xf32>, vector<4x384xf32> -> vector<4x384xf32>
    %226 = arith.addf %224, %225 : vector<4x384xf32>
    %c1_205 = arith.constant 1 : index
    %c0_206 = arith.constant 0 : index
    %c0_207 = arith.constant 0 : index
    %c0_208 = arith.constant 0 : index
    %227 = vector.load %arg24[%c1_205, %c0_206, %c0_207, %c0_208] : memref<2x2x5x320xf32, #tpu.memory_space<vmem>>, vector<1x1x4x320xf32>
    %228 = vector.shape_cast %227 : vector<1x1x4x320xf32> to vector<4x320xf32>
    %c1_209 = arith.constant 1 : index
    %c1_210 = arith.constant 1 : index
    %c0_211 = arith.constant 0 : index
    %c0_212 = arith.constant 0 : index
    %229 = vector.load %arg24[%c1_209, %c1_210, %c0_211, %c0_212] : memref<2x2x5x320xf32, #tpu.memory_space<vmem>>, vector<1x1x4x320xf32>
    %230 = vector.shape_cast %229 : vector<1x1x4x320xf32> to vector<4x320xf32>
    %c1_213 = arith.constant 1 : index
    %c0_214 = arith.constant 0 : index
    %c1_215 = arith.constant 1 : index
    %c0_216 = arith.constant 0 : index
    %231 = vector.load %arg24[%c1_213, %c0_214, %c1_215, %c0_216] : memref<2x2x5x320xf32, #tpu.memory_space<vmem>>, vector<1x1x4x320xf32>
    %232 = vector.shape_cast %231 : vector<1x1x4x320xf32> to vector<4x320xf32>
    %cst_217 = arith.constant dense<0.000000e+00> : vector<4x384xf32>
    %233 = tpu.matmul %228, %211, %cst_217 {dimension_numbers = #tpu.dot_dimension_numbers<[1], [0], [0], [1], [0, 0, 1, 1], [], []>} : vector<4x320xf32>, vector<320x384xf32>, vector<4x384xf32> -> vector<4x384xf32>
    %cst_218 = arith.constant dense<0.000000e+00> : vector<4x384xf32>
    %234 = tpu.matmul %230, %213, %cst_218 {dimension_numbers = #tpu.dot_dimension_numbers<[1], [0], [0], [1], [0, 0, 1, 1], [], []>} : vector<4x320xf32>, vector<320x384xf32>, vector<4x384xf32> -> vector<4x384xf32>
    %235 = arith.addf %233, %234 : vector<4x384xf32>
    %cst_219 = arith.constant dense<0.000000e+00> : vector<4x384xf32>
    %236 = tpu.matmul %232, %215, %cst_219 {dimension_numbers = #tpu.dot_dimension_numbers<[1], [0], [0], [1], [0, 0, 1, 1], [], []>} : vector<4x320xf32>, vector<320x384xf32>, vector<4x384xf32> -> vector<4x384xf32>
    %237 = arith.addf %235, %236 : vector<4x384xf32>
    %cst_220 = arith.constant dense<0.000000e+00> : vector<384xf32>
    %238 = vector.multi_reduction <add>, %226, %cst_220 [0] : vector<4x384xf32> to vector<384xf32>
    %239 = vector.shape_cast %238 : vector<384xf32> to vector<1x384xf32>
    %240 = arith.mulf %226, %226 : vector<4x384xf32>
    %cst_221 = arith.constant dense<0.000000e+00> : vector<384xf32>
    %241 = vector.multi_reduction <add>, %240, %cst_221 [0] : vector<4x384xf32> to vector<384xf32>
    %242 = vector.shape_cast %241 : vector<384xf32> to vector<1x384xf32>
    %cst_222 = arith.constant dense<0.000000e+00> : vector<384xf32>
    %243 = vector.multi_reduction <add>, %237, %cst_222 [0] : vector<4x384xf32> to vector<384xf32>
    %244 = vector.shape_cast %243 : vector<384xf32> to vector<1x384xf32>
    %245 = arith.addf %239, %244 : vector<1x384xf32>
    %246 = arith.mulf %237, %237 : vector<4x384xf32>
    %cst_223 = arith.constant dense<0.000000e+00> : vector<384xf32>
    %247 = vector.multi_reduction <add>, %246, %cst_223 [0] : vector<4x384xf32> to vector<384xf32>
    %248 = vector.shape_cast %247 : vector<384xf32> to vector<1x384xf32>
    %249 = arith.addf %242, %248 : vector<1x384xf32>
    %250 = tpu.concatenate %245, %249 in 0 : vector<1x384xf32>, vector<1x384xf32> -> vector<2x384xf32>
    %c0_224 = arith.constant 0 : index
    %c0_225 = arith.constant 0 : index
    %251 = vector.load %arg7[%c0_224, %c0_225] : memref<384x64xf32, #tpu.memory_space<vmem>>, vector<384x64xf32>
    %cst_226 = arith.constant dense<0.000000e+00> : vector<2x64xf32>
    %252 = tpu.matmul %250, %251, %cst_226 {dimension_numbers = #tpu.dot_dimension_numbers<[1], [0], [0], [1], [0, 0, 1, 1], [], []>} : vector<2x384xf32>, vector<384x64xf32>, vector<2x64xf32> -> vector<2x64xf32>
    %cst_227 = arith.constant 3.125000e-02 : f32
    %253 = vector.broadcast %cst_227 : f32 to vector<2x64xf32>
    %254 = arith.mulf %252, %253 : vector<2x64xf32>
    %255 = vector.extract_strided_slice %254 {offsets = [0, 0], sizes = [1, 64], strides = [1, 1]} : vector<2x64xf32> to vector<1x64xf32>
    %256 = vector.extract_strided_slice %254 {offsets = [1, 0], sizes = [1, 64], strides = [1, 1]} : vector<2x64xf32> to vector<1x64xf32>
    %257 = arith.mulf %255, %255 : vector<1x64xf32>
    %258 = arith.subf %256, %257 : vector<1x64xf32>
    %c0_228 = arith.constant 0 : index
    %c0_229 = arith.constant 0 : index
    %259 = vector.load %arg15[%c0_228, %c0_229] : memref<2x64xf32, #tpu.memory_space<vmem>>, vector<2x64xf32>
    %260 = vector.extract_strided_slice %259 {offsets = [0, 0], sizes = [1, 64], strides = [1, 1]} : vector<2x64xf32> to vector<1x64xf32>
    %261 = vector.extract_strided_slice %259 {offsets = [1, 0], sizes = [1, 64], strides = [1, 1]} : vector<2x64xf32> to vector<1x64xf32>
    %cst_230 = arith.constant 9.99999974E-6 : f32
    %262 = vector.broadcast %cst_230 : f32 to vector<1x64xf32>
    %263 = arith.addf %258, %262 : vector<1x64xf32>
    %264 = math.rsqrt %263 : vector<1x64xf32>
    %265 = arith.mulf %260, %264 : vector<1x64xf32>
    %266 = arith.mulf %255, %265 : vector<1x64xf32>
    %267 = arith.subf %261, %266 : vector<1x64xf32>
    %268 = tpu.concatenate %265, %267 in 0 : vector<1x64xf32>, vector<1x64xf32> -> vector<2x64xf32>
    %c0_231 = arith.constant 0 : index
    %c0_232 = arith.constant 0 : index
    %269 = vector.load %arg11[%c0_231, %c0_232] : memref<64x384xf32, #tpu.memory_space<vmem>>, vector<64x384xf32>
    %cst_233 = arith.constant dense<0.000000e+00> : vector<2x384xf32>
    %270 = tpu.matmul %268, %269, %cst_233 {dimension_numbers = #tpu.dot_dimension_numbers<[1], [0], [0], [1], [0, 0, 1, 1], [], []>} : vector<2x64xf32>, vector<64x384xf32>, vector<2x384xf32> -> vector<2x384xf32>
    %271 = vector.extract_strided_slice %270 {offsets = [0, 0], sizes = [1, 384], strides = [1, 1]} : vector<2x384xf32> to vector<1x384xf32>
    %272 = vector.extract_strided_slice %270 {offsets = [1, 0], sizes = [1, 384], strides = [1, 1]} : vector<2x384xf32> to vector<1x384xf32>
    %c0_234 = arith.constant 0 : index
    %c0_235 = arith.constant 0 : index
    %c0_236 = arith.constant 0 : index
    %273 = vector.load %arg19[%c0_234, %c0_235, %c0_236] : memref<2x2x4xf32, #tpu.memory_space<vmem>>, vector<1x2x4xf32>
    %274 = vector.shape_cast %273 : vector<1x2x4xf32> to vector<2x4xf32>
    %c1_237 = arith.constant 1 : index
    %c0_238 = arith.constant 0 : index
    %c0_239 = arith.constant 0 : index
    %275 = vector.load %arg19[%c1_237, %c0_238, %c0_239] : memref<2x2x4xf32, #tpu.memory_space<vmem>>, vector<1x2x4xf32>
    %276 = vector.shape_cast %275 : vector<1x2x4xf32> to vector<2x4xf32>
    %277 = vector.broadcast %271 : vector<1x384xf32> to vector<4x384xf32>
    %278 = arith.mulf %226, %277 : vector<4x384xf32>
    %279 = vector.broadcast %272 : vector<1x384xf32> to vector<4x384xf32>
    %280 = arith.addf %278, %279 : vector<4x384xf32>
    %cst_240 = arith.constant 0.000000e+00 : f32
    %281 = vector.broadcast %cst_240 : f32 to vector<4x384xf32>
    %282 = arith.cmpf oge, %280, %281 : vector<4x384xf32>
    %cst_241 = arith.constant 0.00999999977 : f32
    %283 = vector.broadcast %cst_241 : f32 to vector<4x384xf32>
    %284 = arith.mulf %283, %280 : vector<4x384xf32>
    %285 = arith.select %282, %280, %284 : vector<4x384xi1>, vector<4x384xf32>
    %cst_242 = arith.constant dense<0.000000e+00> : vector<2x384xf32>
    %286 = tpu.matmul %274, %285, %cst_242 {dimension_numbers = #tpu.dot_dimension_numbers<[1], [0], [0], [1], [0, 0, 1, 1], [], []>} : vector<2x4xf32>, vector<4x384xf32>, vector<2x384xf32> -> vector<2x384xf32>
    %c0_243 = arith.constant 0 : index
    %c1_244 = arith.constant 1 : index
    %c0_245 = arith.constant 0 : index
    %c0_246 = arith.constant 0 : index
    %287 = vector.load %arg25[%c0_243, %c1_244, %c0_245, %c0_246] : memref<2x2x3x384xf32, #tpu.memory_space<vmem>>, vector<1x1x2x384xf32>
    %288 = vector.shape_cast %287 : vector<1x1x2x384xf32> to vector<2x384xf32>
    %289 = vector.shape_cast %286 : vector<2x384xf32> to vector<1x1x2x384xf32>
    tpu.vector_store %arg25[%c0_243, %c1_244, %c0_245, %c0_246], %289 {strides = array<i32>} : memref<2x2x3x384xf32, #tpu.memory_space<vmem>>, vector<1x1x2x384xf32>,
    %cst_247 = arith.constant dense<0.000000e+00> : vector<2x384xf32>
    %290 = tpu.matmul %276, %285, %cst_247 {dimension_numbers = #tpu.dot_dimension_numbers<[1], [0], [0], [1], [0, 0, 1, 1], [], []>} : vector<2x4xf32>, vector<4x384xf32>, vector<2x384xf32> -> vector<2x384xf32>
    %c0_248 = arith.constant 0 : index
    %c0_249 = arith.constant 0 : index
    %c1_250 = arith.constant 1 : index
    %c0_251 = arith.constant 0 : index
    %291 = vector.load %arg25[%c0_248, %c0_249, %c1_250, %c0_251] : memref<2x2x3x384xf32, #tpu.memory_space<vmem>>, vector<1x1x2x384xf32>
    %292 = vector.shape_cast %291 : vector<1x1x2x384xf32> to vector<2x384xf32>
    %293 = vector.shape_cast %290 : vector<2x384xf32> to vector<1x1x2x384xf32>
    tpu.vector_store %arg25[%c0_248, %c0_249, %c1_250, %c0_251], %293 {strides = array<i32>} : memref<2x2x3x384xf32, #tpu.memory_space<vmem>>, vector<1x1x2x384xf32>,
    %294 = vector.broadcast %271 : vector<1x384xf32> to vector<4x384xf32>
    %295 = arith.mulf %237, %294 : vector<4x384xf32>
    %296 = vector.broadcast %272 : vector<1x384xf32> to vector<4x384xf32>
    %297 = arith.addf %295, %296 : vector<4x384xf32>
    %cst_252 = arith.constant 0.000000e+00 : f32
    %298 = vector.broadcast %cst_252 : f32 to vector<4x384xf32>
    %299 = arith.cmpf oge, %297, %298 : vector<4x384xf32>
    %cst_253 = arith.constant 0.00999999977 : f32
    %300 = vector.broadcast %cst_253 : f32 to vector<4x384xf32>
    %301 = arith.mulf %300, %297 : vector<4x384xf32>
    %302 = arith.select %299, %297, %301 : vector<4x384xi1>, vector<4x384xf32>
    %cst_254 = arith.constant dense<0.000000e+00> : vector<2x384xf32>
    %303 = tpu.matmul %274, %302, %cst_254 {dimension_numbers = #tpu.dot_dimension_numbers<[1], [0], [0], [1], [0, 0, 1, 1], [], []>} : vector<2x4xf32>, vector<4x384xf32>, vector<2x384xf32> -> vector<2x384xf32>
    %c1_255 = arith.constant 1 : index
    %c1_256 = arith.constant 1 : index
    %c0_257 = arith.constant 0 : index
    %c0_258 = arith.constant 0 : index
    %304 = vector.load %arg25[%c1_255, %c1_256, %c0_257, %c0_258] : memref<2x2x3x384xf32, #tpu.memory_space<vmem>>, vector<1x1x2x384xf32>
    %305 = vector.shape_cast %304 : vector<1x1x2x384xf32> to vector<2x384xf32>
    %306 = vector.shape_cast %303 : vector<2x384xf32> to vector<1x1x2x384xf32>
    tpu.vector_store %arg25[%c1_255, %c1_256, %c0_257, %c0_258], %306 {strides = array<i32>} : memref<2x2x3x384xf32, #tpu.memory_space<vmem>>, vector<1x1x2x384xf32>,
    %cst_259 = arith.constant dense<0.000000e+00> : vector<2x384xf32>
    %307 = tpu.matmul %276, %302, %cst_259 {dimension_numbers = #tpu.dot_dimension_numbers<[1], [0], [0], [1], [0, 0, 1, 1], [], []>} : vector<2x4xf32>, vector<4x384xf32>, vector<2x384xf32> -> vector<2x384xf32>
    %c1_260 = arith.constant 1 : index
    %c0_261 = arith.constant 0 : index
    %c1_262 = arith.constant 1 : index
    %c0_263 = arith.constant 0 : index
    %308 = vector.load %arg25[%c1_260, %c0_261, %c1_262, %c0_263] : memref<2x2x3x384xf32, #tpu.memory_space<vmem>>, vector<1x1x2x384xf32>
    %309 = vector.shape_cast %308 : vector<1x1x2x384xf32> to vector<2x384xf32>
    %310 = vector.shape_cast %307 : vector<2x384xf32> to vector<1x1x2x384xf32>
    tpu.vector_store %arg25[%c1_260, %c0_261, %c1_262, %c0_263], %310 {strides = array<i32>} : memref<2x2x3x384xf32, #tpu.memory_space<vmem>>, vector<1x1x2x384xf32>,
    %c0_264 = arith.constant 0 : index
    %c0_265 = arith.constant 0 : index
    %c0_266 = arith.constant 0 : index
    %311 = vector.load %arg4[%c0_264, %c0_265, %c0_266] : memref<3x384x256xf32, #tpu.memory_space<vmem>>, vector<1x384x256xf32>
    %312 = vector.shape_cast %311 : vector<1x384x256xf32> to vector<384x256xf32>
    %c1_267 = arith.constant 1 : index
    %c0_268 = arith.constant 0 : index
    %c0_269 = arith.constant 0 : index
    %313 = vector.load %arg4[%c1_267, %c0_268, %c0_269] : memref<3x384x256xf32, #tpu.memory_space<vmem>>, vector<1x384x256xf32>
    %314 = vector.shape_cast %313 : vector<1x384x256xf32> to vector<384x256xf32>
    %c2_270 = arith.constant 2 : index
    %c0_271 = arith.constant 0 : index
    %c0_272 = arith.constant 0 : index
    %315 = vector.load %arg4[%c2_270, %c0_271, %c0_272] : memref<3x384x256xf32, #tpu.memory_space<vmem>>, vector<1x384x256xf32>
    %316 = vector.shape_cast %315 : vector<1x384x256xf32> to vector<384x256xf32>
    %c0_273 = arith.constant 0 : index
    %c0_274 = arith.constant 0 : index
    %c0_275 = arith.constant 0 : index
    %c0_276 = arith.constant 0 : index
    %317 = vector.load %arg25[%c0_273, %c0_274, %c0_275, %c0_276] : memref<2x2x3x384xf32, #tpu.memory_space<vmem>>, vector<1x1x2x384xf32>
    %318 = vector.shape_cast %317 : vector<1x1x2x384xf32> to vector<2x384xf32>
    %c0_277 = arith.constant 0 : index
    %c1_278 = arith.constant 1 : index
    %c0_279 = arith.constant 0 : index
    %c0_280 = arith.constant 0 : index
    %319 = vector.load %arg25[%c0_277, %c1_278, %c0_279, %c0_280] : memref<2x2x3x384xf32, #tpu.memory_space<vmem>>, vector<1x1x2x384xf32>
    %320 = vector.shape_cast %319 : vector<1x1x2x384xf32> to vector<2x384xf32>
    %c0_281 = arith.constant 0 : index
    %c0_282 = arith.constant 0 : index
    %c1_283 = arith.constant 1 : index
    %c0_284 = arith.constant 0 : index
    %321 = vector.load %arg25[%c0_281, %c0_282, %c1_283, %c0_284] : memref<2x2x3x384xf32, #tpu.memory_space<vmem>>, vector<1x1x2x384xf32>
    %322 = vector.shape_cast %321 : vector<1x1x2x384xf32> to vector<2x384xf32>
    %cst_285 = arith.constant dense<0.000000e+00> : vector<2x256xf32>
    %323 = tpu.matmul %318, %312, %cst_285 {dimension_numbers = #tpu.dot_dimension_numbers<[1], [0], [0], [1], [0, 0, 1, 1], [], []>} : vector<2x384xf32>, vector<384x256xf32>, vector<2x256xf32> -> vector<2x256xf32>
    %cst_286 = arith.constant dense<0.000000e+00> : vector<2x256xf32>
    %324 = tpu.matmul %320, %314, %cst_286 {dimension_numbers = #tpu.dot_dimension_numbers<[1], [0], [0], [1], [0, 0, 1, 1], [], []>} : vector<2x384xf32>, vector<384x256xf32>, vector<2x256xf32> -> vector<2x256xf32>
    %325 = arith.addf %323, %324 : vector<2x256xf32>
    %cst_287 = arith.constant dense<0.000000e+00> : vector<2x256xf32>
    %326 = tpu.matmul %322, %316, %cst_287 {dimension_numbers = #tpu.dot_dimension_numbers<[1], [0], [0], [1], [0, 0, 1, 1], [], []>} : vector<2x384xf32>, vector<384x256xf32>, vector<2x256xf32> -> vector<2x256xf32>
    %327 = arith.addf %325, %326 : vector<2x256xf32>
    %c1_288 = arith.constant 1 : index
    %c0_289 = arith.constant 0 : index
    %c0_290 = arith.constant 0 : index
    %c0_291 = arith.constant 0 : index
    %328 = vector.load %arg25[%c1_288, %c0_289, %c0_290, %c0_291] : memref<2x2x3x384xf32, #tpu.memory_space<vmem>>, vector<1x1x2x384xf32>
    %329 = vector.shape_cast %328 : vector<1x1x2x384xf32> to vector<2x384xf32>
    %c1_292 = arith.constant 1 : index
    %c1_293 = arith.constant 1 : index
    %c0_294 = arith.constant 0 : index
    %c0_295 = arith.constant 0 : index
    %330 = vector.load %arg25[%c1_292, %c1_293, %c0_294, %c0_295] : memref<2x2x3x384xf32, #tpu.memory_space<vmem>>, vector<1x1x2x384xf32>
    %331 = vector.shape_cast %330 : vector<1x1x2x384xf32> to vector<2x384xf32>
    %c1_296 = arith.constant 1 : index
    %c0_297 = arith.constant 0 : index
    %c1_298 = arith.constant 1 : index
    %c0_299 = arith.constant 0 : index
    %332 = vector.load %arg25[%c1_296, %c0_297, %c1_298, %c0_299] : memref<2x2x3x384xf32, #tpu.memory_space<vmem>>, vector<1x1x2x384xf32>
    %333 = vector.shape_cast %332 : vector<1x1x2x384xf32> to vector<2x384xf32>
    %cst_300 = arith.constant dense<0.000000e+00> : vector<2x256xf32>
    %334 = tpu.matmul %329, %312, %cst_300 {dimension_numbers = #tpu.dot_dimension_numbers<[1], [0], [0], [1], [0, 0, 1, 1], [], []>} : vector<2x384xf32>, vector<384x256xf32>, vector<2x256xf32> -> vector<2x256xf32>
    %cst_301 = arith.constant dense<0.000000e+00> : vector<2x256xf32>
    %335 = tpu.matmul %331, %314, %cst_301 {dimension_numbers = #tpu.dot_dimension_numbers<[1], [0], [0], [1], [0, 0, 1, 1], [], []>} : vector<2x384xf32>, vector<384x256xf32>, vector<2x256xf32> -> vector<2x256xf32>
    %336 = arith.addf %334, %335 : vector<2x256xf32>
    %cst_302 = arith.constant dense<0.000000e+00> : vector<2x256xf32>
    %337 = tpu.matmul %333, %316, %cst_302 {dimension_numbers = #tpu.dot_dimension_numbers<[1], [0], [0], [1], [0, 0, 1, 1], [], []>} : vector<2x384xf32>, vector<384x256xf32>, vector<2x256xf32> -> vector<2x256xf32>
    %338 = arith.addf %336, %337 : vector<2x256xf32>
    %cst_303 = arith.constant dense<0.000000e+00> : vector<256xf32>
    %339 = vector.multi_reduction <add>, %327, %cst_303 [0] : vector<2x256xf32> to vector<256xf32>
    %340 = vector.shape_cast %339 : vector<256xf32> to vector<1x256xf32>
    %341 = arith.mulf %327, %327 : vector<2x256xf32>
    %cst_304 = arith.constant dense<0.000000e+00> : vector<256xf32>
    %342 = vector.multi_reduction <add>, %341, %cst_304 [0] : vector<2x256xf32> to vector<256xf32>
    %343 = vector.shape_cast %342 : vector<256xf32> to vector<1x256xf32>
    %cst_305 = arith.constant dense<0.000000e+00> : vector<256xf32>
    %344 = vector.multi_reduction <add>, %338, %cst_305 [0] : vector<2x256xf32> to vector<256xf32>
    %345 = vector.shape_cast %344 : vector<256xf32> to vector<1x256xf32>
    %346 = arith.addf %340, %345 : vector<1x256xf32>
    %347 = arith.mulf %338, %338 : vector<2x256xf32>
    %cst_306 = arith.constant dense<0.000000e+00> : vector<256xf32>
    %348 = vector.multi_reduction <add>, %347, %cst_306 [0] : vector<2x256xf32> to vector<256xf32>
    %349 = vector.shape_cast %348 : vector<256xf32> to vector<1x256xf32>
    %350 = arith.addf %343, %349 : vector<1x256xf32>
    %351 = tpu.concatenate %346, %350 in 0 : vector<1x256xf32>, vector<1x256xf32> -> vector<2x256xf32>
    %c0_307 = arith.constant 0 : index
    %c0_308 = arith.constant 0 : index
    %352 = vector.load %arg8[%c0_307, %c0_308] : memref<256x128xf32, #tpu.memory_space<vmem>>, vector<256x128xf32>
    %cst_309 = arith.constant dense<0.000000e+00> : vector<2x128xf32>
    %353 = tpu.matmul %351, %352, %cst_309 {dimension_numbers = #tpu.dot_dimension_numbers<[1], [0], [0], [1], [0, 0, 1, 1], [], []>} : vector<2x256xf32>, vector<256x128xf32>, vector<2x128xf32> -> vector<2x128xf32>
    %cst_310 = arith.constant 1.250000e-01 : f32
    %354 = vector.broadcast %cst_310 : f32 to vector<2x128xf32>
    %355 = arith.mulf %353, %354 : vector<2x128xf32>
    %356 = vector.extract_strided_slice %355 {offsets = [0, 0], sizes = [1, 128], strides = [1, 1]} : vector<2x128xf32> to vector<1x128xf32>
    %357 = vector.extract_strided_slice %355 {offsets = [1, 0], sizes = [1, 128], strides = [1, 1]} : vector<2x128xf32> to vector<1x128xf32>
    %358 = arith.mulf %356, %356 : vector<1x128xf32>
    %359 = arith.subf %357, %358 : vector<1x128xf32>
    %c0_311 = arith.constant 0 : index
    %c0_312 = arith.constant 0 : index
    %360 = vector.load %arg16[%c0_311, %c0_312] : memref<2x128xf32, #tpu.memory_space<vmem>>, vector<2x128xf32>
    %361 = vector.extract_strided_slice %360 {offsets = [0, 0], sizes = [1, 128], strides = [1, 1]} : vector<2x128xf32> to vector<1x128xf32>
    %362 = vector.extract_strided_slice %360 {offsets = [1, 0], sizes = [1, 128], strides = [1, 1]} : vector<2x128xf32> to vector<1x128xf32>
    %cst_313 = arith.constant 9.99999974E-6 : f32
    %363 = vector.broadcast %cst_313 : f32 to vector<1x128xf32>
    %364 = arith.addf %359, %363 : vector<1x128xf32>
    %365 = math.rsqrt %364 : vector<1x128xf32>
    %366 = arith.mulf %361, %365 : vector<1x128xf32>
    %367 = arith.mulf %356, %366 : vector<1x128xf32>
    %368 = arith.subf %362, %367 : vector<1x128xf32>
    %369 = tpu.concatenate %366, %368 in 0 : vector<1x128xf32>, vector<1x128xf32> -> vector<2x128xf32>
    %c0_314 = arith.constant 0 : index
    %c0_315 = arith.constant 0 : index
    %370 = vector.load %arg12[%c0_314, %c0_315] : memref<128x256xf32, #tpu.memory_space<vmem>>, vector<128x256xf32>
    %cst_316 = arith.constant dense<0.000000e+00> : vector<2x256xf32>
    %371 = tpu.matmul %369, %370, %cst_316 {dimension_numbers = #tpu.dot_dimension_numbers<[1], [0], [0], [1], [0, 0, 1, 1], [], []>} : vector<2x128xf32>, vector<128x256xf32>, vector<2x256xf32> -> vector<2x256xf32>
    %372 = vector.extract_strided_slice %371 {offsets = [0, 0], sizes = [1, 256], strides = [1, 1]} : vector<2x256xf32> to vector<1x256xf32>
    %373 = vector.extract_strided_slice %371 {offsets = [1, 0], sizes = [1, 256], strides = [1, 1]} : vector<2x256xf32> to vector<1x256xf32>
    %374 = vector.broadcast %372 : vector<1x256xf32> to vector<2x256xf32>
    %375 = arith.mulf %327, %374 : vector<2x256xf32>
    %376 = vector.broadcast %373 : vector<1x256xf32> to vector<2x256xf32>
    %377 = arith.addf %375, %376 : vector<2x256xf32>
    %cst_317 = arith.constant 0.000000e+00 : f32
    %378 = vector.broadcast %cst_317 : f32 to vector<2x256xf32>
    %379 = arith.cmpf oge, %377, %378 : vector<2x256xf32>
    %cst_318 = arith.constant 0.00999999977 : f32
    %380 = vector.broadcast %cst_318 : f32 to vector<2x256xf32>
    %381 = arith.mulf %380, %377 : vector<2x256xf32>
    %382 = arith.select %379, %377, %381 : vector<2x256xi1>, vector<2x256xf32>
    %383 = arith.mulf %382, %6 : vector<2x256xf32>
    %cst_319 = arith.constant dense<0.000000e+00> : vector<2xf32>
    %384 = vector.multi_reduction <add>, %383, %cst_319 [1] : vector<2x256xf32> to vector<2xf32>
    %385 = vector.shape_cast %384 : vector<2xf32> to vector<2x1xf32>
    %cst_320 = arith.constant dense<0.000000e+00> : vector<1xf32>
    %386 = vector.multi_reduction <add>, %385, %cst_320 [0] : vector<2x1xf32> to vector<1xf32>
    %387 = vector.shape_cast %386 : vector<1xf32> to vector<1x1xf32>
    %388 = arith.addf %387, %7 : vector<1x1xf32>
    %c0_321 = arith.constant 0 : index
    %c0_322 = arith.constant 0 : index
    %389 = vector.load %arg22[%c0_321, %c0_322] : memref<2x1xf32, #tpu.memory_space<vmem>>, vector<1x1xf32>
    tpu.vector_store %arg22[%c0_321, %c0_322], %388 {strides = array<i32>} : memref<2x1xf32, #tpu.memory_space<vmem>>, vector<1x1xf32>,
    %390 = vector.broadcast %372 : vector<1x256xf32> to vector<2x256xf32>
    %391 = arith.mulf %338, %390 : vector<2x256xf32>
    %392 = vector.broadcast %373 : vector<1x256xf32> to vector<2x256xf32>
    %393 = arith.addf %391, %392 : vector<2x256xf32>
    %cst_323 = arith.constant 0.000000e+00 : f32
    %394 = vector.broadcast %cst_323 : f32 to vector<2x256xf32>
    %395 = arith.cmpf oge, %393, %394 : vector<2x256xf32>
    %cst_324 = arith.constant 0.00999999977 : f32
    %396 = vector.broadcast %cst_324 : f32 to vector<2x256xf32>
    %397 = arith.mulf %396, %393 : vector<2x256xf32>
    %398 = arith.select %395, %393, %397 : vector<2x256xi1>, vector<2x256xf32>
    %399 = arith.mulf %398, %6 : vector<2x256xf32>
    %cst_325 = arith.constant dense<0.000000e+00> : vector<2xf32>
    %400 = vector.multi_reduction <add>, %399, %cst_325 [1] : vector<2x256xf32> to vector<2xf32>
    %401 = vector.shape_cast %400 : vector<2xf32> to vector<2x1xf32>
    %cst_326 = arith.constant dense<0.000000e+00> : vector<1xf32>
    %402 = vector.multi_reduction <add>, %401, %cst_326 [0] : vector<2x1xf32> to vector<1xf32>
    %403 = vector.shape_cast %402 : vector<1xf32> to vector<1x1xf32>
    %404 = arith.addf %403, %7 : vector<1x1xf32>
    %c1_327 = arith.constant 1 : index
    %c0_328 = arith.constant 0 : index
    %405 = vector.load %arg22[%c1_327, %c0_328] : memref<2x1xf32, #tpu.memory_space<vmem>>, vector<1x1xf32>
    tpu.vector_store %arg22[%c1_327, %c0_328], %404 {strides = array<i32>} : memref<2x1xf32, #tpu.memory_space<vmem>>, vector<1x1xf32>,
    return
  }
}

</mosaic_0001>

<llo_original>
// kernel: forward.1
$region0: #{forward.1}
  #allocation0 [shape = 'u32[]', space=smem, size = 0x4, offset = 0x4, fixed_abs, tag = 'smem constant byte address 0x4 - core index']
  #allocation1 [shape = 'u32[72,128]{1,0:T(1,128)}', space=vmem, size = 0x9000, scoped, tag = 'internal scratch']
  #allocation2 [shape = 'f32[2,2,9,288]{3,2,1,0:T(8,128)}', space=vmem, size = 0x18000, scoped, tag = 'scratch operand']
  #allocation3 [shape = 'f32[2,2,5,320]{3,2,1,0:T(8,128)}', space=vmem, size = 0xc000, scoped, tag = 'scratch operand']
  #allocation4 [shape = 'f32[2,2,3,384]{3,2,1,0:T(4,128)}', space=vmem, size = 0x6000, scoped, tag = 'scratch operand']
  #allocation5 [shape = 'f32[1,1]{1,0:T(1,128)S(1)}', space=vmem, size = 0x200, scoped, tag = 'scoped memory for forward.1']
  %s0 = inlined_call_operand.vmem [shape: f32[2,2,17,102], index: 0, kind: input, shape index: {}]
  %s1 = inlined_call_operand.vmem [shape: f32[3,102,288], index: 1, kind: input, shape index: {}]
  %s2 = inlined_call_operand.vmem [shape: f32[3,288,320], index: 2, kind: input, shape index: {}]
  %s3 = inlined_call_operand.vmem [shape: f32[3,320,384], index: 3, kind: input, shape index: {}]
  %s4 = inlined_call_operand.vmem [shape: f32[3,384,256], index: 4, kind: input, shape index: {}]
  %s5 = inlined_call_operand.vmem [shape: f32[288,16], index: 5, kind: input, shape index: {}]
  %s6 = inlined_call_operand.vmem [shape: f32[320,32], index: 6, kind: input, shape index: {}]
  %s7 = inlined_call_operand.vmem [shape: f32[384,64], index: 7, kind: input, shape index: {}]
  %s8 = inlined_call_operand.vmem [shape: f32[256,128], index: 8, kind: input, shape index: {}]
  %s9 = inlined_call_operand.vmem [shape: f32[16,288], index: 9, kind: input, shape index: {}]
  %s10 = inlined_call_operand.vmem [shape: f32[32,320], index: 10, kind: input, shape index: {}]
  %s11 = inlined_call_operand.vmem [shape: f32[64,384], index: 11, kind: input, shape index: {}]
  %s12 = inlined_call_operand.vmem [shape: f32[128,256], index: 12, kind: input, shape index: {}]
  %s13 = inlined_call_operand.vmem [shape: f32[2,16], index: 13, kind: input, shape index: {}]
  %s14 = inlined_call_operand.vmem [shape: f32[2,32], index: 14, kind: input, shape index: {}]
  %s15 = inlined_call_operand.vmem [shape: f32[2,64], index: 15, kind: input, shape index: {}]
  %s16 = inlined_call_operand.vmem [shape: f32[2,128], index: 16, kind: input, shape index: {}]
  %s17 = inlined_call_operand.vmem [shape: f32[2,8,16], index: 17, kind: input, shape index: {}]
  %s18 = inlined_call_operand.vmem [shape: f32[2,4,8], index: 18, kind: input, shape index: {}]
  %s19 = inlined_call_operand.vmem [shape: f32[2,2,4], index: 19, kind: input, shape index: {}]
  %s20 = inlined_call_operand.vmem [shape: f32[2,256], index: 20, kind: input, shape index: {}]
  %s21 = inlined_call_operand.<no memory space> [shape: f32[1,1], index: 21, kind: input, shape index: {}]
  %s22 = inlined_call_operand.vmem [shape: f32[2,1], index: 22, kind: output, shape index: {}]
  %s23 = sld [smem:[#allocation0]]
  $region98: #{forward.1} parent=0
    _
  %s25 = ssub.s32 1, %s23
  %s26 = scalar_select 0, %s25, %s23
  %v27 = vstv %s21
  %28 = vst [vmem:[#allocation5] sm:$0x1] %v27
  // Predicated region
  $region2: #{forward.1} parent=0 // pred_check
    _
  $region3: #{forward.1} parent=0 // pred_check_branch
    %30 = sbr.rel (0) target = $region5
  $region4: #{forward.1} parent=0 // pred_region
    _
  $region5: #{forward.1} parent=0 // pred_fallthru
    _
  // Predicated region
  $region6: #{forward.1} parent=0 // pred_check
    _
  $region7: #{forward.1} parent=0 // pred_check_branch
    %32 = sbr.rel (0) target = $region9
  $region8: #{forward.1} parent=0 // pred_region
    _
  $region9: #{forward.1} parent=0 // pred_fallthru
    _
  // Predicated region
  $region10: #{forward.1} parent=0 // pred_check
    _
  $region11: #{forward.1} parent=0 // pred_check_branch
    %34 = sbr.rel (0) target = $region13
  $region12: #{forward.1} parent=0 // pred_region
    _
  $region13: #{forward.1} parent=0 // pred_fallthru
    _
  // Predicated region
  $region14: #{forward.1} parent=0 // pred_check
    _
  $region15: #{forward.1} parent=0 // pred_check_branch
    %36 = sbr.rel (0) target = $region17
  $region16: #{forward.1} parent=0 // pred_region
    _
  $region17: #{forward.1} parent=0 // pred_fallthru
    _
  // Predicated region
  $region18: #{forward.1} parent=0 // pred_check
    _
  $region19: #{forward.1} parent=0 // pred_check_branch
    %38 = sbr.rel (0) target = $region21
  $region20: #{forward.1} parent=0 // pred_region
    _
  $region21: #{forward.1} parent=0 // pred_fallthru
    _
  // Predicated region
  $region22: #{forward.1} parent=0 // pred_check
    _
  $region23: #{forward.1} parent=0 // pred_check_branch
    %40 = sbr.rel (0) target = $region25
  $region24: #{forward.1} parent=0 // pred_region
    _
  $region25: #{forward.1} parent=0 // pred_fallthru
    _
  // Predicated region
  $region26: #{forward.1} parent=0 // pred_check
    _
  $region27: #{forward.1} parent=0 // pred_check_branch
    %42 = sbr.rel (0) target = $region29
  $region28: #{forward.1} parent=0 // pred_region
    _
  $region29: #{forward.1} parent=0 // pred_fallthru
    _
  // Predicated region
  $region30: #{forward.1} parent=0 // pred_check
    _
  $region31: #{forward.1} parent=0 // pred_check_branch
    %44 = sbr.rel (0) target = $region33
  $region32: #{forward.1} parent=0 // pred_region
    _
  $region33: #{forward.1} parent=0 // pred_fallthru
    _
  // Predicated region
  $region34: #{forward.1} parent=0 // pred_check
    _
  $region35: #{forward.1} parent=0 // pred_check_branch
    %46 = sbr.rel (0) target = $region37
  $region36: #{forward.1} parent=0 // pred_region
    _
  $region37: #{forward.1} parent=0 // pred_fallthru
    _
  // Predicated region
  $region38: #{forward.1} parent=0 // pred_check
    _
  $region39: #{forward.1} parent=0 // pred_check_branch
    %48 = sbr.rel (0) target = $region41
  $region40: #{forward.1} parent=0 // pred_region
    _
  $region41: #{forward.1} parent=0 // pred_fallthru
    _
  // Predicated region
  $region42: #{forward.1} parent=0 // pred_check
    _
  $region43: #{forward.1} parent=0 // pred_check_branch
    %50 = sbr.rel (0) target = $region45
  $region44: #{forward.1} parent=0 // pred_region
    _
  $region45: #{forward.1} parent=0 // pred_fallthru
    _
  // Predicated region
  $region46: #{forward.1} parent=0 // pred_check
    _
  $region47: #{forward.1} parent=0 // pred_check_branch
    %52 = sbr.rel (0) target = $region49
  $region48: #{forward.1} parent=0 // pred_region
    _
  $region49: #{forward.1} parent=0 // pred_fallthru
    _
  // Predicated region
  $region50: #{forward.1} parent=0 // pred_check
    _
  $region51: #{forward.1} parent=0 // pred_check_branch
    %54 = sbr.rel (0) target = $region53
  $region52: #{forward.1} parent=0 // pred_region
    _
  $region53: #{forward.1} parent=0 // pred_fallthru
    _
  // Predicated region
  $region54: #{forward.1} parent=0 // pred_check
    _
  $region55: #{forward.1} parent=0 // pred_check_branch
    %56 = sbr.rel (0) target = $region57
  $region56: #{forward.1} parent=0 // pred_region
    _
  $region57: #{forward.1} parent=0 // pred_fallthru
    _
  // Predicated region
  $region58: #{forward.1} parent=0 // pred_check
    _
  $region59: #{forward.1} parent=0 // pred_check_branch
    %58 = sbr.rel (0) target = $region61
  $region60: #{forward.1} parent=0 // pred_region
    _
  $region61: #{forward.1} parent=0 // pred_fallthru
    _
  // Predicated region
  $region62: #{forward.1} parent=0 // pred_check
    _
  $region63: #{forward.1} parent=0 // pred_check_branch
    %60 = sbr.rel (0) target = $region65
  $region64: #{forward.1} parent=0 // pred_region
    _
  $region65: #{forward.1} parent=0 // pred_fallthru
    _
  // Predicated region
  $region66: #{forward.1} parent=0 // pred_check
    _
  $region67: #{forward.1} parent=0 // pred_check_branch
    %62 = sbr.rel (0) target = $region69
  $region68: #{forward.1} parent=0 // pred_region
    _
  $region69: #{forward.1} parent=0 // pred_fallthru
    _
  // Predicated region
  $region70: #{forward.1} parent=0 // pred_check
    _
  $region71: #{forward.1} parent=0 // pred_check_branch
    %64 = sbr.rel (0) target = $region73
  $region72: #{forward.1} parent=0 // pred_region
    _
  $region73: #{forward.1} parent=0 // pred_fallthru
    _
  // Predicated region
  $region74: #{forward.1} parent=0 // pred_check
    _
  $region75: #{forward.1} parent=0 // pred_check_branch
    %66 = sbr.rel (0) target = $region77
  $region76: #{forward.1} parent=0 // pred_region
    _
  $region77: #{forward.1} parent=0 // pred_fallthru
    _
  // Predicated region
  $region78: #{forward.1} parent=0 // pred_check
    _
  $region79: #{forward.1} parent=0 // pred_check_branch
    %68 = sbr.rel (0) target = $region81
  $region80: #{forward.1} parent=0 // pred_region
    _
  $region81: #{forward.1} parent=0 // pred_fallthru
    _
  // Predicated region
  $region82: #{forward.1} parent=0 // pred_check
    _
  $region83: #{forward.1} parent=0 // pred_check_branch
    %70 = sbr.rel (0) target = $region85
  $region84: #{forward.1} parent=0 // pred_region
    _
  $region85: #{forward.1} parent=0 // pred_fallthru
    _
  // Predicated region
  $region86: #{forward.1} parent=0 // pred_check
    _
  $region87: #{forward.1} parent=0 // pred_check_branch
    %72 = sbr.rel (0) target = $region89
  $region88: #{forward.1} parent=0 // pred_region
    _
  $region89: #{forward.1} parent=0 // pred_fallthru
    _
  %73 = vst [vmem:[#allocation2] sm:$0xff] 0.0
  %74 = vst [vmem:[#allocation2 + $0x8] sm:$0xff] 0.0
  %vm75 = vcmask 261120
  %76 = vst.msk [vmem:[#allocation2 + $0x10] sm:$0xff] %vm75, 0.0
  %77 = vst [vmem:[#allocation2 + $0x18] sm:$0x1] 0.0
  %78 = vst [vmem:[#allocation2 + $0x20] sm:$0x1] 0.0
  %vm79 = vcmask 253952
  %80 = vst.msk [vmem:[#allocation2 + $0x28] sm:$0x1] %vm79, 0.0
  %81 = vst [vmem:[#allocation2 + $0x30] sm:$0xff] 0.0
  %82 = vst [vmem:[#allocation2 + $0x38] sm:$0xff] 0.0
  %83 = vst.msk [vmem:[#allocation2 + $0x40] sm:$0xff] %vm75, 0.0
  %84 = vst [vmem:[#allocation2 + $0x48] sm:$0x1] 0.0
  %85 = vst [vmem:[#allocation2 + $0x50] sm:$0x1] 0.0
  %86 = vst.msk [vmem:[#allocation2 + $0x58] sm:$0x1] %vm79, 0.0
  %87 = vst [vmem:[#allocation2 + $0x60] sm:$0xff] 0.0
  %88 = vst [vmem:[#allocation2 + $0x68] sm:$0xff] 0.0
  %89 = vst.msk [vmem:[#allocation2 + $0x70] sm:$0xff] %vm75, 0.0
  %90 = vst [vmem:[#allocation2 + $0x78] sm:$0x1] 0.0
  %91 = vst [vmem:[#allocation2 + $0x80] sm:$0x1] 0.0
  %92 = vst.msk [vmem:[#allocation2 + $0x88] sm:$0x1] %vm79, 0.0
  %93 = vst [vmem:[#allocation2 + $0x90] sm:$0xff] 0.0
  %94 = vst [vmem:[#allocation2 + $0x98] sm:$0xff] 0.0
  %95 = vst.msk [vmem:[#allocation2 + $0xa0] sm:$0xff] %vm75, 0.0
  %96 = vst [vmem:[#allocation2 + $0xa8] sm:$0x1] 0.0
  %97 = vst [vmem:[#allocation2 + $0xb0] sm:$0x1] 0.0
  %98 = vst.msk [vmem:[#allocation2 + $0xb8] sm:$0x1] %vm79, 0.0
  %99 = vst [vmem:[#allocation3] sm:$0x1f] 0.0
  %100 = vst [vmem:[#allocation3 + $0x8] sm:$0x1f] 0.0
  %vm101 = vcmask 520192
  %102 = vst.msk [vmem:[#allocation3 + $0x10] sm:$0x1f] %vm101, 0.0
  %103 = vst [vmem:[#allocation3 + $0x18] sm:$0x1f] 0.0
  %104 = vst [vmem:[#allocation3 + $0x20] sm:$0x1f] 0.0
  %105 = vst.msk [vmem:[#allocation3 + $0x28] sm:$0x1f] %vm101, 0.0
  %106 = vst [vmem:[#allocation3 + $0x30] sm:$0x1f] 0.0
  %107 = vst [vmem:[#allocation3 + $0x38] sm:$0x1f] 0.0
  %108 = vst.msk [vmem:[#allocation3 + $0x40] sm:$0x1f] %vm101, 0.0
  %109 = vst [vmem:[#allocation3 + $0x48] sm:$0x1f] 0.0
  %110 = vst [vmem:[#allocation3 + $0x50] sm:$0x1f] 0.0
  %111 = vst.msk [vmem:[#allocation3 + $0x58] sm:$0x1f] %vm101, 0.0
  %112 = vst [vmem:[#allocation4] sm:$0x77] 0.0
  %113 = vst [vmem:[#allocation4 + $0x8] sm:$0x7] 0.0
  %114 = vst [vmem:[#allocation4 + $0xc] sm:$0x77] 0.0
  %115 = vst [vmem:[#allocation4 + $0x14] sm:$0x7] 0.0
  %116 = vst [vmem:[#allocation4 + $0x18] sm:$0x77] 0.0
  %117 = vst [vmem:[#allocation4 + $0x20] sm:$0x7] 0.0
  %118 = vst [vmem:[#allocation4 + $0x24] sm:$0x77] 0.0
  %119 = vst [vmem:[#allocation4 + $0x2c] sm:$0x7] 0.0
  %v120 = vld [vmem:[%s20] sm:$0xf]
  %v121 = vld [vmem:[#allocation5] sm:$0x1]
  %v122 = vld [vmem:[%s1] sm:$0xff]
  %v123 = vld [vmem:[%s1 + $0x8] sm:$0xff]
  %v124 = vld [vmem:[%s1 + $0x10] sm:$0xff]
  %v125 = vld [vmem:[%s1 + $0x18] sm:$0xff]
  %v126 = vld [vmem:[%s1 + $0x20] sm:$0xff]
  %v127 = vld [vmem:[%s1 + $0x28] sm:$0xff]
  %v128 = vld [vmem:[%s1 + $0x30] sm:$0xff]
  %v129 = vld [vmem:[%s1 + $0x38] sm:$0xff]
  %v130 = vld [vmem:[%s1 + $0x40] sm:$0xff]
  %v131 = vld [vmem:[%s1 + $0x48] sm:$0xff]
  %v132 = vld [vmem:[%s1 + $0x50] sm:$0xff]
  %v133 = vld [vmem:[%s1 + $0x58] sm:$0xff]
  %v134 = vld [vmem:[%s1 + $0x60] sm:$0xff]
  %v135 = vld [vmem:[%s1 + $0x68] sm:$0xff]
  %v136 = vld [vmem:[%s1 + $0x70] sm:$0xff]
  %v137 = vld [vmem:[%s1 + $0x78] sm:$0xff]
  %v138 = vld [vmem:[%s1 + $0x80] sm:$0xff]
  %v139 = vld [vmem:[%s1 + $0x88] sm:$0xff]
  %v140 = vld [vmem:[%s1 + $0x90] sm:$0xff]
  %v141 = vld [vmem:[%s1 + $0x98] sm:$0xff]
  %v142 = vld [vmem:[%s1 + $0xa0] sm:$0xff]
  %v143 = vld [vmem:[%s1 + $0xa8] sm:$0xff]
  %v144 = vld [vmem:[%s1 + $0xb0] sm:$0xff]
  %v145 = vld [vmem:[%s1 + $0xb8] sm:$0xff]
  %v146 = vld [vmem:[%s1 + $0xc0] sm:$0xff]
  %v147 = vld [vmem:[%s1 + $0xc8] sm:$0xff]
  %v148 = vld [vmem:[%s1 + $0xd0] sm:$0xff]
  %v149 = vld [vmem:[%s1 + $0xd8] sm:$0xff]
  %v150 = vld [vmem:[%s1 + $0xe0] sm:$0xff]
  %v151 = vld [vmem:[%s1 + $0xe8] sm:$0xff]
  %v152 = vld [vmem:[%s1 + $0xf0] sm:$0xff]
  %v153 = vld [vmem:[%s1 + $0xf8] sm:$0xff]
  %v154 = vld [vmem:[%s1 + $0x100] sm:$0xff]
  %v155 = vld [vmem:[%s1 + $0x108] sm:$0xff]
  %v156 = vld [vmem:[%s1 + $0x110] sm:$0xff]
  %v157 = vld [vmem:[%s1 + $0x118] sm:$0xff]
  %v158 = vld [vmem:[%s1 + $0x120] sm:$0x3f]
  %v159 = vld [vmem:[%s1 + $0x128] sm:$0x3f]
  %v160 = vld [vmem:[%s1 + $0x130] sm:$0x3f]
  %s161 = scalar_lea.vmem %s1, 312
  %v162 = vld [vmem:[%s161] sm:$0xff]
  %v163 = vld [vmem:[%s161 + $0x8] sm:$0xff]
  %v164 = vld [vmem:[%s161 + $0x10] sm:$0xff]
  %v165 = vld [vmem:[%s161 + $0x18] sm:$0xff]
  %v166 = vld [vmem:[%s161 + $0x20] sm:$0xff]
  %v167 = vld [vmem:[%s161 + $0x28] sm:$0xff]
  %v168 = vld [vmem:[%s161 + $0x30] sm:$0xff]
  %v169 = vld [vmem:[%s161 + $0x38] sm:$0xff]
  %v170 = vld [vmem:[%s161 + $0x40] sm:$0xff]
  %v171 = vld [vmem:[%s161 + $0x48] sm:$0xff]
  %v172 = vld [vmem:[%s161 + $0x50] sm:$0xff]
  %v173 = vld [vmem:[%s161 + $0x58] sm:$0xff]
  %v174 = vld [vmem:[%s161 + $0x60] sm:$0xff]
  %v175 = vld [vmem:[%s161 + $0x68] sm:$0xff]
  %v176 = vld [vmem:[%s161 + $0x70] sm:$0xff]
  %v177 = vld [vmem:[%s161 + $0x78] sm:$0xff]
  %v178 = vld [vmem:[%s161 + $0x80] sm:$0xff]
  %v179 = vld [vmem:[%s161 + $0x88] sm:$0xff]
  %v180 = vld [vmem:[%s161 + $0x90] sm:$0xff]
  %v181 = vld [vmem:[%s161 + $0x98] sm:$0xff]
  %v182 = vld [vmem:[%s161 + $0xa0] sm:$0xff]
  %v183 = vld [vmem:[%s161 + $0xa8] sm:$0xff]
  %v184 = vld [vmem:[%s161 + $0xb0] sm:$0xff]
  %v185 = vld [vmem:[%s161 + $0xb8] sm:$0xff]
  %v186 = vld [vmem:[%s161 + $0xc0] sm:$0xff]
  %v187 = vld [vmem:[%s161 + $0xc8] sm:$0xff]
  %v188 = vld [vmem:[%s161 + $0xd0] sm:$0xff]
  %v189 = vld [vmem:[%s161 + $0xd8] sm:$0xff]
  %v190 = vld [vmem:[%s161 + $0xe0] sm:$0xff]
  %v191 = vld [vmem:[%s161 + $0xe8] sm:$0xff]
  %v192 = vld [vmem:[%s161 + $0xf0] sm:$0xff]
  %v193 = vld [vmem:[%s161 + $0xf8] sm:$0xff]
  %v194 = vld [vmem:[%s161 + $0x100] sm:$0xff]
  %v195 = vld [vmem:[%s161 + $0x108] sm:$0xff]
  %v196 = vld [vmem:[%s161 + $0x110] sm:$0xff]
  %v197 = vld [vmem:[%s161 + $0x118] sm:$0xff]
  %v198 = vld [vmem:[%s161 + $0x120] sm:$0x3f]
  %v199 = vld [vmem:[%s161 + $0x128] sm:$0x3f]
  %v200 = vld [vmem:[%s161 + $0x130] sm:$0x3f]
  %s201 = scalar_lea.vmem %s1, 624
  %v202 = vld [vmem:[%s201] sm:$0xff]
  %v203 = vld [vmem:[%s201 + $0x8] sm:$0xff]
  %v204 = vld [vmem:[%s201 + $0x10] sm:$0xff]
  %v205 = vld [vmem:[%s201 + $0x18] sm:$0xff]
  %v206 = vld [vmem:[%s201 + $0x20] sm:$0xff]
  %v207 = vld [vmem:[%s201 + $0x28] sm:$0xff]
  %v208 = vld [vmem:[%s201 + $0x30] sm:$0xff]
  %v209 = vld [vmem:[%s201 + $0x38] sm:$0xff]
  %v210 = vld [vmem:[%s201 + $0x40] sm:$0xff]
  %v211 = vld [vmem:[%s201 + $0x48] sm:$0xff]
  %v212 = vld [vmem:[%s201 + $0x50] sm:$0xff]
  %v213 = vld [vmem:[%s201 + $0x58] sm:$0xff]
  %v214 = vld [vmem:[%s201 + $0x60] sm:$0xff]
  %v215 = vld [vmem:[%s201 + $0x68] sm:$0xff]
  %v216 = vld [vmem:[%s201 + $0x70] sm:$0xff]
  %v217 = vld [vmem:[%s201 + $0x78] sm:$0xff]
  %v218 = vld [vmem:[%s201 + $0x80] sm:$0xff]
  %v219 = vld [vmem:[%s201 + $0x88] sm:$0xff]
  %v220 = vld [vmem:[%s201 + $0x90] sm:$0xff]
  %v221 = vld [vmem:[%s201 + $0x98] sm:$0xff]
  %v222 = vld [vmem:[%s201 + $0xa0] sm:$0xff]
  %v223 = vld [vmem:[%s201 + $0xa8] sm:$0xff]
  %v224 = vld [vmem:[%s201 + $0xb0] sm:$0xff]
  %v225 = vld [vmem:[%s201 + $0xb8] sm:$0xff]
  %v226 = vld [vmem:[%s201 + $0xc0] sm:$0xff]
  %v227 = vld [vmem:[%s201 + $0xc8] sm:$0xff]
  %v228 = vld [vmem:[%s201 + $0xd0] sm:$0xff]
  %v229 = vld [vmem:[%s201 + $0xd8] sm:$0xff]
  %v230 = vld [vmem:[%s201 + $0xe0] sm:$0xff]
  %v231 = vld [vmem:[%s201 + $0xe8] sm:$0xff]
  %v232 = vld [vmem:[%s201 + $0xf0] sm:$0xff]
  %v233 = vld [vmem:[%s201 + $0xf8] sm:$0xff]
  %v234 = vld [vmem:[%s201 + $0x100] sm:$0xff]
  %v235 = vld [vmem:[%s201 + $0x108] sm:$0xff]
  %v236 = vld [vmem:[%s201 + $0x110] sm:$0xff]
  %v237 = vld [vmem:[%s201 + $0x118] sm:$0xff]
  %v238 = vld [vmem:[%s201 + $0x120] sm:$0x3f]
  %v239 = vld [vmem:[%s201 + $0x128] sm:$0x3f]
  %v240 = vld [vmem:[%s201 + $0x130] sm:$0x3f]
  %v241 = vld [vmem:[%s0] sm:$0xff]
  %v242 = vld [vmem:[%s0 + $0x8] sm:$0xff]
  %s243 = scalar_lea.vmem %s0, 24
  %v244 = vld [vmem:[%s243] sm:$0xff]
  %v245 = vld [vmem:[%s243 + $0x8] sm:$0xff]
  %v246 = vld [vmem:[%s0 + $0x1] sm:$0xff]
  %v247 = vld [vmem:[%s0 + $0x9] sm:$0xff]
  %vm248 = vcmask 834560
  %v250 = vsel %vm248, %v244, 0
  %v253 = vsel %vm248, %v245, 0
  %vm255 = vcmask 1045504
  %v257 = vsel %vm255, %v198, 0
  %v260 = vsel %vm255, %v199, 0
  %v263 = vsel %vm255, %v200, 0
  %265 = vmatpush.msra.mxu0 0.0
  %266 = vmatpush.msra.mxu0 0.0
  %267 = vmatpush.msra.mxu0 0.0
  %268 = vmatpush.msra.mxu0 %v257
  %269 = vmatpush.msra.mxu0 %v195
  %270 = vmatpush.msra.mxu0 %v192
  %271 = vmatpush.msra.mxu0 %v189
  %272 = vmatpush.msra.mxu0 %v186
  %273 = vmatpush.msra.mxu0 %v183
  %274 = vmatpush.msra.mxu0 %v180
  %275 = vmatpush.msra.mxu0 %v177
  %276 = vmatpush.msra.mxu0 %v174
  %277 = vmatpush.msra.mxu0 %v171
  %278 = vmatpush.msra.mxu0 %v168
  %279 = vmatpush.msra.mxu0 %v165
  %280 = vmatpush.msra.mxu0 %v162
  %281 = vmatmul.f32.gmra.mxu0 %v250
  %v282 = vpop.f32.mrf.mxu0
  %v283 = vadd.f32 0.0, %v282
  %284 = vmatmul.f32.gmra.mxu0 %v253
  %v285 = vpop.f32.mrf.mxu0
  %v286 = vadd.f32 0.0, %v285
  %287 = vdwg.mxu0
  %288 = vmatpush.msra.mxu0 0.0
  %289 = vmatpush.msra.mxu0 0.0
  %290 = vmatpush.msra.mxu0 0.0
  %291 = vmatpush.msra.mxu0 %v260
  %292 = vmatpush.msra.mxu0 %v196
  %293 = vmatpush.msra.mxu0 %v193
  %294 = vmatpush.msra.mxu0 %v190
  %295 = vmatpush.msra.mxu0 %v187
  %296 = vmatpush.msra.mxu0 %v184
  %297 = vmatpush.msra.mxu0 %v181
  %298 = vmatpush.msra.mxu0 %v178
  %299 = vmatpush.msra.mxu0 %v175
  %300 = vmatpush.msra.mxu0 %v172
  %301 = vmatpush.msra.mxu0 %v169
  %302 = vmatpush.msra.mxu0 %v166
  %303 = vmatpush.msra.mxu0 %v163
  %304 = vmatmul.f32.gmra.mxu0 %v250
  %v305 = vpop.f32.mrf.mxu0
  %v306 = vadd.f32 0.0, %v305
  %307 = vmatmul.f32.gmra.mxu0 %v253
  %v308 = vpop.f32.mrf.mxu0
  %v309 = vadd.f32 0.0, %v308
  %310 = vdwg.mxu0
  %311 = vmatpush.msra.mxu0 0.0
  %312 = vmatpush.msra.mxu0 0.0
  %313 = vmatpush.msra.mxu0 0.0
  %314 = vmatpush.msra.mxu0 %v263
  %315 = vmatpush.msra.mxu0 %v197
  %316 = vmatpush.msra.mxu0 %v194
  %317 = vmatpush.msra.mxu0 %v191
  %318 = vmatpush.msra.mxu0 %v188
  %319 = vmatpush.msra.mxu0 %v185
  %320 = vmatpush.msra.mxu0 %v182
  %321 = vmatpush.msra.mxu0 %v179
  %322 = vmatpush.msra.mxu0 %v176
  %323 = vmatpush.msra.mxu0 %v173
  %324 = vmatpush.msra.mxu0 %v170
  %325 = vmatpush.msra.mxu0 %v167
  %326 = vmatpush.msra.mxu0 %v164
  %327 = vmatmul.f32.gmra.mxu0 %v250
  %v328 = vpop.f32.mrf.mxu0
  %v329 = vadd.f32 0.0, %v328
  %330 = vmatmul.f32.gmra.mxu0 %v253
  %v331 = vpop.f32.mrf.mxu0
  %v332 = vadd.f32 0.0, %v331
  %333 = vdwg.mxu0
  %v335 = vsel %vm248, %v241, 0
  %v338 = vsel %vm248, %v242, 0
  %v341 = vsel %vm255, %v158, 0
  %v344 = vsel %vm255, %v159, 0
  %v347 = vsel %vm255, %v160, 0
  %349 = vmatpush.msra.mxu0 0.0
  %350 = vmatpush.msra.mxu0 0.0
  %351 = vmatpush.msra.mxu0 0.0
  %352 = vmatpush.msra.mxu0 %v341
  %353 = vmatpush.msra.mxu0 %v155
  %354 = vmatpush.msra.mxu0 %v152
  %355 = vmatpush.msra.mxu0 %v149
  %356 = vmatpush.msra.mxu0 %v146
  %357 = vmatpush.msra.mxu0 %v143
  %358 = vmatpush.msra.mxu0 %v140
  %359 = vmatpush.msra.mxu0 %v137
  %360 = vmatpush.msra.mxu0 %v134
  %361 = vmatpush.msra.mxu0 %v131
  %362 = vmatpush.msra.mxu0 %v128
  %363 = vmatpush.msra.mxu0 %v125
  %364 = vmatpush.msra.mxu0 %v122
  %365 = vmatmul.f32.gmra.mxu0 %v335
  %v366 = vpop.f32.mrf.mxu0
  %v367 = vadd.f32 %v283, %v366
  %368 = vmatmul.f32.gmra.mxu0 %v338
  %v369 = vpop.f32.mrf.mxu0
  %v370 = vadd.f32 %v286, %v369
  %371 = vdwg.mxu0
  %372 = vmatpush.msra.mxu0 0.0
  %373 = vmatpush.msra.mxu0 0.0
  %374 = vmatpush.msra.mxu0 0.0
  %375 = vmatpush.msra.mxu0 %v344
  %376 = vmatpush.msra.mxu0 %v156
  %377 = vmatpush.msra.mxu0 %v153
  %378 = vmatpush.msra.mxu0 %v150
  %379 = vmatpush.msra.mxu0 %v147
  %380 = vmatpush.msra.mxu0 %v144
  %381 = vmatpush.msra.mxu0 %v141
  %382 = vmatpush.msra.mxu0 %v138
  %383 = vmatpush.msra.mxu0 %v135
  %384 = vmatpush.msra.mxu0 %v132
  %385 = vmatpush.msra.mxu0 %v129
  %386 = vmatpush.msra.mxu0 %v126
  %387 = vmatpush.msra.mxu0 %v123
  %388 = vmatmul.f32.gmra.mxu0 %v335
  %v389 = vpop.f32.mrf.mxu0
  %v390 = vadd.f32 %v306, %v389
  %391 = vmatmul.f32.gmra.mxu0 %v338
  %v392 = vpop.f32.mrf.mxu0
  %v393 = vadd.f32 %v309, %v392
  %394 = vdwg.mxu0
  %395 = vmatpush.msra.mxu0 0.0
  %396 = vmatpush.msra.mxu0 0.0
  %397 = vmatpush.msra.mxu0 0.0
  %398 = vmatpush.msra.mxu0 %v347
  %399 = vmatpush.msra.mxu0 %v157
  %400 = vmatpush.msra.mxu0 %v154
  %401 = vmatpush.msra.mxu0 %v151
  %402 = vmatpush.msra.mxu0 %v148
  %403 = vmatpush.msra.mxu0 %v145
  %404 = vmatpush.msra.mxu0 %v142
  %405 = vmatpush.msra.mxu0 %v139
  %406 = vmatpush.msra.mxu0 %v136
  %407 = vmatpush.msra.mxu0 %v133
  %408 = vmatpush.msra.mxu0 %v130
  %409 = vmatpush.msra.mxu0 %v127
  %410 = vmatpush.msra.mxu0 %v124
  %411 = vmatmul.f32.gmra.mxu0 %v335
  %v412 = vpop.f32.mrf.mxu0
  %v413 = vadd.f32 %v329, %v412
  %414 = vmatmul.f32.gmra.mxu0 %v338
  %v415 = vpop.f32.mrf.mxu0
  %v416 = vadd.f32 %v332, %v415
  %417 = vdwg.mxu0
  %v419 = vsel %vm248, %v246, 0
  %v422 = vsel %vm248, %v247, 0
  %v425 = vsel %vm255, %v238, 0
  %v428 = vsel %vm255, %v239, 0
  %v431 = vsel %vm255, %v240, 0
  %433 = vmatpush.msra.mxu0 0.0
  %434 = vmatpush.msra.mxu0 0.0
  %435 = vmatpush.msra.mxu0 0.0
  %436 = vmatpush.msra.mxu0 %v425
  %437 = vmatpush.msra.mxu0 %v235
  %438 = vmatpush.msra.mxu0 %v232
  %439 = vmatpush.msra.mxu0 %v229
  %440 = vmatpush.msra.mxu0 %v226
  %441 = vmatpush.msra.mxu0 %v223
  %442 = vmatpush.msra.mxu0 %v220
  %443 = vmatpush.msra.mxu0 %v217
  %444 = vmatpush.msra.mxu0 %v214
  %445 = vmatpush.msra.mxu0 %v211
  %446 = vmatpush.msra.mxu0 %v208
  %447 = vmatpush.msra.mxu0 %v205
  %448 = vmatpush.msra.mxu0 %v202
  %449 = vmatmul.f32.gmra.mxu0 %v419
  %v450 = vpop.f32.mrf.mxu0
  %v451 = vadd.f32 0.0, %v450
  %452 = vmatmul.f32.gmra.mxu0 %v422
  %v453 = vpop.f32.mrf.mxu0
  %v454 = vadd.f32 0.0, %v453
  %455 = vdwg.mxu0
  %456 = vmatpush.msra.mxu0 0.0
  %457 = vmatpush.msra.mxu0 0.0
  %458 = vmatpush.msra.mxu0 0.0
  %459 = vmatpush.msra.mxu0 %v428
  %460 = vmatpush.msra.mxu0 %v236
  %461 = vmatpush.msra.mxu0 %v233
  %462 = vmatpush.msra.mxu0 %v230
  %463 = vmatpush.msra.mxu0 %v227
  %464 = vmatpush.msra.mxu0 %v224
  %465 = vmatpush.msra.mxu0 %v221
  %466 = vmatpush.msra.mxu0 %v218
  %467 = vmatpush.msra.mxu0 %v215
  %468 = vmatpush.msra.mxu0 %v212
  %469 = vmatpush.msra.mxu0 %v209
  %470 = vmatpush.msra.mxu0 %v206
  %471 = vmatpush.msra.mxu0 %v203
  %472 = vmatmul.f32.gmra.mxu0 %v419
  %v473 = vpop.f32.mrf.mxu0
  %v474 = vadd.f32 0.0, %v473
  %475 = vmatmul.f32.gmra.mxu0 %v422
  %v476 = vpop.f32.mrf.mxu0
  %v477 = vadd.f32 0.0, %v476
  %478 = vdwg.mxu0
  %479 = vmatpush.msra.mxu0 0.0
  %480 = vmatpush.msra.mxu0 0.0
  %481 = vmatpush.msra.mxu0 0.0
  %482 = vmatpush.msra.mxu0 %v431
  %483 = vmatpush.msra.mxu0 %v237
  %484 = vmatpush.msra.mxu0 %v234
  %485 = vmatpush.msra.mxu0 %v231
  %486 = vmatpush.msra.mxu0 %v228
  %487 = vmatpush.msra.mxu0 %v225
  %488 = vmatpush.msra.mxu0 %v222
  %489 = vmatpush.msra.mxu0 %v219
  %490 = vmatpush.msra.mxu0 %v216
  %491 = vmatpush.msra.mxu0 %v213
  %492 = vmatpush.msra.mxu0 %v210
  %493 = vmatpush.msra.mxu0 %v207
  %494 = vmatpush.msra.mxu0 %v204
  %495 = vmatmul.f32.gmra.mxu0 %v419
  %v496 = vpop.f32.mrf.mxu0
  %v497 = vadd.f32 0.0, %v496
  %498 = vmatmul.f32.gmra.mxu0 %v422
  %v499 = vpop.f32.mrf.mxu0
  %v500 = vadd.f32 0.0, %v499
  %501 = vdwg.mxu0
  %v502 = vadd.f32 %v367, %v451
  %v503 = vadd.f32 %v390, %v474
  %v504 = vadd.f32 %v413, %v497
  %v505 = vadd.f32 %v370, %v454
  %v506 = vadd.f32 %v393, %v477
  %v507 = vadd.f32 %v416, %v500
  %s508 = scalar_lea.vmem %s0, 48
  %v509 = vld [vmem:[%s508] sm:$0xff]
  %v510 = vld [vmem:[%s508 + $0x8] sm:$0xff]
  %s511 = scalar_lea.vmem %s0, 72
  %v512 = vld [vmem:[%s511] sm:$0xff]
  %v513 = vld [vmem:[%s511 + $0x8] sm:$0xff]
  %v514 = vld [vmem:[%s508 + $0x1] sm:$0xff]
  %v515 = vld [vmem:[%s508 + $0x9] sm:$0xff]
  %v517 = vsel %vm248, %v512, 0
  %v520 = vsel %vm248, %v513, 0
  %522 = vmatpush.msra.mxu0 0.0
  %523 = vmatpush.msra.mxu0 0.0
  %524 = vmatpush.msra.mxu0 0.0
  %525 = vmatpush.msra.mxu0 %v257
  %526 = vmatpush.msra.mxu0 %v195
  %527 = vmatpush.msra.mxu0 %v192
  %528 = vmatpush.msra.mxu0 %v189
  %529 = vmatpush.msra.mxu0 %v186
  %530 = vmatpush.msra.mxu0 %v183
  %531 = vmatpush.msra.mxu0 %v180
  %532 = vmatpush.msra.mxu0 %v177
  %533 = vmatpush.msra.mxu0 %v174
  %534 = vmatpush.msra.mxu0 %v171
  %535 = vmatpush.msra.mxu0 %v168
  %536 = vmatpush.msra.mxu0 %v165
  %537 = vmatpush.msra.mxu0 %v162
  %538 = vmatmul.f32.gmra.mxu0 %v517
  %v539 = vpop.f32.mrf.mxu0
  %v540 = vadd.f32 0.0, %v539
  %541 = vmatmul.f32.gmra.mxu0 %v520
  %v542 = vpop.f32.mrf.mxu0
  %v543 = vadd.f32 0.0, %v542
  %544 = vdwg.mxu0
  %545 = vmatpush.msra.mxu0 0.0
  %546 = vmatpush.msra.mxu0 0.0
  %547 = vmatpush.msra.mxu0 0.0
  %548 = vmatpush.msra.mxu0 %v260
  %549 = vmatpush.msra.mxu0 %v196
  %550 = vmatpush.msra.mxu0 %v193
  %551 = vmatpush.msra.mxu0 %v190
  %552 = vmatpush.msra.mxu0 %v187
  %553 = vmatpush.msra.mxu0 %v184
  %554 = vmatpush.msra.mxu0 %v181
  %555 = vmatpush.msra.mxu0 %v178
  %556 = vmatpush.msra.mxu0 %v175
  %557 = vmatpush.msra.mxu0 %v172
  %558 = vmatpush.msra.mxu0 %v169
  %559 = vmatpush.msra.mxu0 %v166
  %560 = vmatpush.msra.mxu0 %v163
  %561 = vmatmul.f32.gmra.mxu0 %v517
  %v562 = vpop.f32.mrf.mxu0
  %v563 = vadd.f32 0.0, %v562
  %564 = vmatmul.f32.gmra.mxu0 %v520
  %v565 = vpop.f32.mrf.mxu0
  %v566 = vadd.f32 0.0, %v565
  %567 = vdwg.mxu0
  %568 = vmatpush.msra.mxu0 0.0
  %569 = vmatpush.msra.mxu0 0.0
  %570 = vmatpush.msra.mxu0 0.0
  %571 = vmatpush.msra.mxu0 %v263
  %572 = vmatpush.msra.mxu0 %v197
  %573 = vmatpush.msra.mxu0 %v194
  %574 = vmatpush.msra.mxu0 %v191
  %575 = vmatpush.msra.mxu0 %v188
  %576 = vmatpush.msra.mxu0 %v185
  %577 = vmatpush.msra.mxu0 %v182
  %578 = vmatpush.msra.mxu0 %v179
  %579 = vmatpush.msra.mxu0 %v176
  %580 = vmatpush.msra.mxu0 %v173
  %581 = vmatpush.msra.mxu0 %v170
  %582 = vmatpush.msra.mxu0 %v167
  %583 = vmatpush.msra.mxu0 %v164
  %584 = vmatmul.f32.gmra.mxu0 %v517
  %v585 = vpop.f32.mrf.mxu0
  %v586 = vadd.f32 0.0, %v585
  %587 = vmatmul.f32.gmra.mxu0 %v520
  %v588 = vpop.f32.mrf.mxu0
  %v589 = vadd.f32 0.0, %v588
  %590 = vdwg.mxu0
  %v592 = vsel %vm248, %v509, 0
  %v595 = vsel %vm248, %v510, 0
  %597 = vmatpush.msra.mxu0 0.0
  %598 = vmatpush.msra.mxu0 0.0
  %599 = vmatpush.msra.mxu0 0.0
  %600 = vmatpush.msra.mxu0 %v341
  %601 = vmatpush.msra.mxu0 %v155
  %602 = vmatpush.msra.mxu0 %v152
  %603 = vmatpush.msra.mxu0 %v149
  %604 = vmatpush.msra.mxu0 %v146
  %605 = vmatpush.msra.mxu0 %v143
  %606 = vmatpush.msra.mxu0 %v140
  %607 = vmatpush.msra.mxu0 %v137
  %608 = vmatpush.msra.mxu0 %v134
  %609 = vmatpush.msra.mxu0 %v131
  %610 = vmatpush.msra.mxu0 %v128
  %611 = vmatpush.msra.mxu0 %v125
  %612 = vmatpush.msra.mxu0 %v122
  %613 = vmatmul.f32.gmra.mxu0 %v592
  %v614 = vpop.f32.mrf.mxu0
  %v615 = vadd.f32 %v540, %v614
  %616 = vmatmul.f32.gmra.mxu0 %v595
  %v617 = vpop.f32.mrf.mxu0
  %v618 = vadd.f32 %v543, %v617
  %619 = vdwg.mxu0
  %620 = vmatpush.msra.mxu0 0.0
  %621 = vmatpush.msra.mxu0 0.0
  %622 = vmatpush.msra.mxu0 0.0
  %623 = vmatpush.msra.mxu0 %v344
  %624 = vmatpush.msra.mxu0 %v156
  %625 = vmatpush.msra.mxu0 %v153
  %626 = vmatpush.msra.mxu0 %v150
  %627 = vmatpush.msra.mxu0 %v147
  %628 = vmatpush.msra.mxu0 %v144
  %629 = vmatpush.msra.mxu0 %v141
  %630 = vmatpush.msra.mxu0 %v138
  %631 = vmatpush.msra.mxu0 %v135
  %632 = vmatpush.msra.mxu0 %v132
  %633 = vmatpush.msra.mxu0 %v129
  %634 = vmatpush.msra.mxu0 %v126
  %635 = vmatpush.msra.mxu0 %v123
  %636 = vmatmul.f32.gmra.mxu0 %v592
  %v637 = vpop.f32.mrf.mxu0
  %v638 = vadd.f32 %v563, %v637
  %639 = vmatmul.f32.gmra.mxu0 %v595
  %v640 = vpop.f32.mrf.mxu0
  %v641 = vadd.f32 %v566, %v640
  %642 = vdwg.mxu0
  %643 = vmatpush.msra.mxu0 0.0
  %644 = vmatpush.msra.mxu0 0.0
  %645 = vmatpush.msra.mxu0 0.0
  %646 = vmatpush.msra.mxu0 %v347
  %647 = vmatpush.msra.mxu0 %v157
  %648 = vmatpush.msra.mxu0 %v154
  %649 = vmatpush.msra.mxu0 %v151
  %650 = vmatpush.msra.mxu0 %v148
  %651 = vmatpush.msra.mxu0 %v145
  %652 = vmatpush.msra.mxu0 %v142
  %653 = vmatpush.msra.mxu0 %v139
  %654 = vmatpush.msra.mxu0 %v136
  %655 = vmatpush.msra.mxu0 %v133
  %656 = vmatpush.msra.mxu0 %v130
  %657 = vmatpush.msra.mxu0 %v127
  %658 = vmatpush.msra.mxu0 %v124
  %659 = vmatmul.f32.gmra.mxu0 %v592
  %v660 = vpop.f32.mrf.mxu0
  %v661 = vadd.f32 %v586, %v660
  %662 = vmatmul.f32.gmra.mxu0 %v595
  %v663 = vpop.f32.mrf.mxu0
  %v664 = vadd.f32 %v589, %v663
  %665 = vdwg.mxu0
  %v667 = vsel %vm248, %v514, 0
  %v670 = vsel %vm248, %v515, 0
  %672 = vmatpush.msra.mxu0 0.0
  %673 = vmatpush.msra.mxu0 0.0
  %674 = vmatpush.msra.mxu0 0.0
  %675 = vmatpush.msra.mxu0 %v425
  %676 = vmatpush.msra.mxu0 %v235
  %677 = vmatpush.msra.mxu0 %v232
  %678 = vmatpush.msra.mxu0 %v229
  %679 = vmatpush.msra.mxu0 %v226
  %680 = vmatpush.msra.mxu0 %v223
  %681 = vmatpush.msra.mxu0 %v220
  %682 = vmatpush.msra.mxu0 %v217
  %683 = vmatpush.msra.mxu0 %v214
  %684 = vmatpush.msra.mxu0 %v211
  %685 = vmatpush.msra.mxu0 %v208
  %686 = vmatpush.msra.mxu0 %v205
  %687 = vmatpush.msra.mxu0 %v202
  %688 = vmatmul.f32.gmra.mxu0 %v667
  %v689 = vpop.f32.mrf.mxu0
  %v690 = vadd.f32 0.0, %v689
  %691 = vmatmul.f32.gmra.mxu0 %v670
  %v692 = vpop.f32.mrf.mxu0
  %v693 = vadd.f32 0.0, %v692
  %694 = vdwg.mxu0
  %695 = vmatpush.msra.mxu0 0.0
  %696 = vmatpush.msra.mxu0 0.0
  %697 = vmatpush.msra.mxu0 0.0
  %698 = vmatpush.msra.mxu0 %v428
  %699 = vmatpush.msra.mxu0 %v236
  %700 = vmatpush.msra.mxu0 %v233
  %701 = vmatpush.msra.mxu0 %v230
  %702 = vmatpush.msra.mxu0 %v227
  %703 = vmatpush.msra.mxu0 %v224
  %704 = vmatpush.msra.mxu0 %v221
  %705 = vmatpush.msra.mxu0 %v218
  %706 = vmatpush.msra.mxu0 %v215
  %707 = vmatpush.msra.mxu0 %v212
  %708 = vmatpush.msra.mxu0 %v209
  %709 = vmatpush.msra.mxu0 %v206
  %710 = vmatpush.msra.mxu0 %v203
  %711 = vmatmul.f32.gmra.mxu0 %v667
  %v712 = vpop.f32.mrf.mxu0
  %v713 = vadd.f32 0.0, %v712
  %714 = vmatmul.f32.gmra.mxu0 %v670
  %v715 = vpop.f32.mrf.mxu0
  %v716 = vadd.f32 0.0, %v715
  %717 = vdwg.mxu0
  %718 = vmatpush.msra.mxu0 0.0
  %719 = vmatpush.msra.mxu0 0.0
  %720 = vmatpush.msra.mxu0 0.0
  %721 = vmatpush.msra.mxu0 %v431
  %722 = vmatpush.msra.mxu0 %v237
  %723 = vmatpush.msra.mxu0 %v234
  %724 = vmatpush.msra.mxu0 %v231
  %725 = vmatpush.msra.mxu0 %v228
  %726 = vmatpush.msra.mxu0 %v225
  %727 = vmatpush.msra.mxu0 %v222
  %728 = vmatpush.msra.mxu0 %v219
  %729 = vmatpush.msra.mxu0 %v216
  %730 = vmatpush.msra.mxu0 %v213
  %731 = vmatpush.msra.mxu0 %v210
  %732 = vmatpush.msra.mxu0 %v207
  %733 = vmatpush.msra.mxu0 %v204
  %734 = vmatmul.f32.gmra.mxu0 %v667
  %v735 = vpop.f32.mrf.mxu0
  %v736 = vadd.f32 0.0, %v735
  %737 = vmatmul.f32.gmra.mxu0 %v670
  %v738 = vpop.f32.mrf.mxu0
  %v739 = vadd.f32 0.0, %v738
  %740 = vdwg.mxu0
  %v741 = vadd.f32 %v615, %v690
  %v742 = vadd.f32 %v638, %v713
  %v743 = vadd.f32 %v661, %v736
  %v744 = vadd.f32 %v618, %v693
  %v745 = vadd.f32 %v641, %v716
  %v746 = vadd.f32 %v664, %v739
  %v747 = vadd.f32 %v502, %v505
  %v748 = vrot.slane %v747, 4
  %v749 = vadd.f32 %v747, %v748
  %v750 = vrot.slane %v749, 2
  %v751 = vadd.f32 %v749, %v750
  %v752 = vrot.slane %v751, 1
  %v753 = vadd.f32 %v751, %v752
  %v754 = vadd.f32 %v503, %v506
  %v755 = vrot.slane %v754, 4
  %v756 = vadd.f32 %v754, %v755
  %v757 = vrot.slane %v756, 2
  %v758 = vadd.f32 %v756, %v757
  %v759 = vrot.slane %v758, 1
  %v760 = vadd.f32 %v758, %v759
  %v761 = vsel %vm75, %v504, 0.0
  %v762 = vsel %vm75, %v507, 0.0
  %v763 = vadd.f32 %v761, %v762
  %v764 = vrot.slane %v763, 4
  %v765 = vadd.f32 %v763, %v764
  %v766 = vrot.slane %v765, 2
  %v767 = vadd.f32 %v765, %v766
  %v768 = vrot.slane %v767, 1
  %v769 = vadd.f32 %v767, %v768
  %v770 = vmul.f32 %v502, %v502
  %v771 = vmul.f32 %v503, %v503
  %v772 = vmul.f32 %v504, %v504
  %v773 = vmul.f32 %v505, %v505
  %v774 = vmul.f32 %v506, %v506
  %v775 = vmul.f32 %v507, %v507
  %v776 = vadd.f32 %v770, %v773
  %v777 = vrot.slane %v776, 4
  %v778 = vadd.f32 %v776, %v777
  %v779 = vrot.slane %v778, 2
  %v780 = vadd.f32 %v778, %v779
  %v781 = vrot.slane %v780, 1
  %v782 = vadd.f32 %v780, %v781
  %v783 = vadd.f32 %v771, %v774
  %v784 = vrot.slane %v783, 4
  %v785 = vadd.f32 %v783, %v784
  %v786 = vrot.slane %v785, 2
  %v787 = vadd.f32 %v785, %v786
  %v788 = vrot.slane %v787, 1
  %v789 = vadd.f32 %v787, %v788
  %v790 = vsel %vm75, %v772, 0.0
  %v791 = vsel %vm75, %v775, 0.0
  %v792 = vadd.f32 %v790, %v791
  %v793 = vrot.slane %v792, 4
  %v794 = vadd.f32 %v792, %v793
  %v795 = vrot.slane %v794, 2
  %v796 = vadd.f32 %v794, %v795
  %v797 = vrot.slane %v796, 1
  %v798 = vadd.f32 %v796, %v797
  %v799 = vadd.f32 %v741, %v744
  %v800 = vrot.slane %v799, 4
  %v801 = vadd.f32 %v799, %v800
  %v802 = vrot.slane %v801, 2
  %v803 = vadd.f32 %v801, %v802
  %v804 = vrot.slane %v803, 1
  %v805 = vadd.f32 %v803, %v804
  %v806 = vadd.f32 %v742, %v745
  %v807 = vrot.slane %v806, 4
  %v808 = vadd.f32 %v806, %v807
  %v809 = vrot.slane %v808, 2
  %v810 = vadd.f32 %v808, %v809
  %v811 = vrot.slane %v810, 1
  %v812 = vadd.f32 %v810, %v811
  %v813 = vsel %vm75, %v743, 0.0
  %v814 = vsel %vm75, %v746, 0.0
  %v815 = vadd.f32 %v813, %v814
  %v816 = vrot.slane %v815, 4
  %v817 = vadd.f32 %v815, %v816
  %v818 = vrot.slane %v817, 2
  %v819 = vadd.f32 %v817, %v818
  %v820 = vrot.slane %v819, 1
  %v821 = vadd.f32 %v819, %v820
  %v822 = vadd.f32 %v753, %v805
  %v823 = vadd.f32 %v760, %v812
  %v824 = vadd.f32 %v769, %v821
  %v825 = vmul.f32 %v741, %v741
  %v826 = vmul.f32 %v742, %v742
  %v827 = vmul.f32 %v743, %v743
  %v828 = vmul.f32 %v744, %v744
  %v829 = vmul.f32 %v745, %v745
  %v830 = vmul.f32 %v746, %v746
  %v831 = vadd.f32 %v825, %v828
  %v832 = vrot.slane %v831, 4
  %v833 = vadd.f32 %v831, %v832
  %v834 = vrot.slane %v833, 2
  %v835 = vadd.f32 %v833, %v834
  %v836 = vrot.slane %v835, 1
  %v837 = vadd.f32 %v835, %v836
  %v838 = vadd.f32 %v826, %v829
  %v839 = vrot.slane %v838, 4
  %v840 = vadd.f32 %v838, %v839
  %v841 = vrot.slane %v840, 2
  %v842 = vadd.f32 %v840, %v841
  %v843 = vrot.slane %v842, 1
  %v844 = vadd.f32 %v842, %v843
  %v845 = vsel %vm75, %v827, 0.0
  %v846 = vsel %vm75, %v830, 0.0
  %v847 = vadd.f32 %v845, %v846
  %v848 = vrot.slane %v847, 4
  %v849 = vadd.f32 %v847, %v848
  %v850 = vrot.slane %v849, 2
  %v851 = vadd.f32 %v849, %v850
  %v852 = vrot.slane %v851, 1
  %v853 = vadd.f32 %v851, %v852
  %v854 = vadd.f32 %v782, %v837
  %v855 = vadd.f32 %v789, %v844
  %v856 = vadd.f32 %v798, %v853
  %vm857 = vcmask 1040384
  %v858 = vsel %vm857, %v822, %v854
  %v859 = vsel %vm857, %v823, %v855
  %v860 = vsel %vm857, %v824, %v856
  %v861 = vld [vmem:[%s5] sm:$0xff]
  %v862 = vld [vmem:[%s5 + $0x8] sm:$0xff]
  %v863 = vld [vmem:[%s5 + $0x10] sm:$0xff]
  %v864 = vld [vmem:[%s5 + $0x18] sm:$0xff]
  %v865 = vld [vmem:[%s5 + $0x20] sm:$0xff]
  %v866 = vld [vmem:[%s5 + $0x28] sm:$0xff]
  %v867 = vld [vmem:[%s5 + $0x30] sm:$0xff]
  %v868 = vld [vmem:[%s5 + $0x38] sm:$0xff]
  %v869 = vld [vmem:[%s5 + $0x40] sm:$0xff]
  %v870 = vld [vmem:[%s5 + $0x48] sm:$0xff]
  %v871 = vld [vmem:[%s5 + $0x50] sm:$0xff]
  %v872 = vld [vmem:[%s5 + $0x58] sm:$0xff]
  %v873 = vld [vmem:[%s5 + $0x60] sm:$0xff]
  %v874 = vld [vmem:[%s5 + $0x68] sm:$0xff]
  %v875 = vld [vmem:[%s5 + $0x70] sm:$0xff]
  %v876 = vld [vmem:[%s5 + $0x78] sm:$0xff]
  %v877 = vld [vmem:[%s5 + $0x80] sm:$0xff]
  %v878 = vld [vmem:[%s5 + $0x88] sm:$0xff]
  %v879 = vld [vmem:[%s5 + $0x90] sm:$0xff]
  %v880 = vld [vmem:[%s5 + $0x98] sm:$0xff]
  %v881 = vld [vmem:[%s5 + $0xa0] sm:$0xff]
  %v882 = vld [vmem:[%s5 + $0xa8] sm:$0xff]
  %v883 = vld [vmem:[%s5 + $0xb0] sm:$0xff]
  %v884 = vld [vmem:[%s5 + $0xb8] sm:$0xff]
  %v885 = vld [vmem:[%s5 + $0xc0] sm:$0xff]
  %v886 = vld [vmem:[%s5 + $0xc8] sm:$0xff]
  %v887 = vld [vmem:[%s5 + $0xd0] sm:$0xff]
  %v888 = vld [vmem:[%s5 + $0xd8] sm:$0xff]
  %v889 = vld [vmem:[%s5 + $0xe0] sm:$0xff]
  %v890 = vld [vmem:[%s5 + $0xe8] sm:$0xff]
  %v891 = vld [vmem:[%s5 + $0xf0] sm:$0xff]
  %v892 = vld [vmem:[%s5 + $0xf8] sm:$0xff]
  %v893 = vld [vmem:[%s5 + $0x100] sm:$0xff]
  %v894 = vld [vmem:[%s5 + $0x108] sm:$0xff]
  %v895 = vld [vmem:[%s5 + $0x110] sm:$0xff]
  %v896 = vld [vmem:[%s5 + $0x118] sm:$0xff]
  %v898 = vsel %vm75, %v860, 0
  %900 = vmatpush.msra.mxu0 %v876
  %901 = vmatpush.msra.mxu0 %v875
  %902 = vmatpush.msra.mxu0 %v874
  %903 = vmatpush.msra.mxu0 %v873
  %904 = vmatpush.msra.mxu0 %v872
  %905 = vmatpush.msra.mxu0 %v871
  %906 = vmatpush.msra.mxu0 %v870
  %907 = vmatpush.msra.mxu0 %v869
  %908 = vmatpush.msra.mxu0 %v868
  %909 = vmatpush.msra.mxu0 %v867
  %910 = vmatpush.msra.mxu0 %v866
  %911 = vmatpush.msra.mxu0 %v865
  %912 = vmatpush.msra.mxu0 %v864
  %913 = vmatpush.msra.mxu0 %v863
  %914 = vmatpush.msra.mxu0 %v862
  %915 = vmatpush.msra.mxu0 %v861
  %916 = vmatmul.f32.gmra.mxu0 %v858
  %v917 = vpop.f32.mrf.mxu0
  %v918 = vadd.f32 0.0, %v917
  %919 = vdwg.mxu0
  %920 = vmatpush.msra.mxu0 %v892
  %921 = vmatpush.msra.mxu0 %v891
  %922 = vmatpush.msra.mxu0 %v890
  %923 = vmatpush.msra.mxu0 %v889
  %924 = vmatpush.msra.mxu0 %v888
  %925 = vmatpush.msra.mxu0 %v887
  %926 = vmatpush.msra.mxu0 %v886
  %927 = vmatpush.msra.mxu0 %v885
  %928 = vmatpush.msra.mxu0 %v884
  %929 = vmatpush.msra.mxu0 %v883
  %930 = vmatpush.msra.mxu0 %v882
  %931 = vmatpush.msra.mxu0 %v881
  %932 = vmatpush.msra.mxu0 %v880
  %933 = vmatpush.msra.mxu0 %v879
  %934 = vmatpush.msra.mxu0 %v878
  %935 = vmatpush.msra.mxu0 %v877
  %936 = vmatmul.f32.gmra.mxu0 %v859
  %v937 = vpop.f32.mrf.mxu0
  %v938 = vadd.f32 %v918, %v937
  %939 = vdwg.mxu0
  %940 = vmatpush.msra.mxu0 0.0
  %941 = vmatpush.msra.mxu0 0.0
  %942 = vmatpush.msra.mxu0 0.0
  %943 = vmatpush.msra.mxu0 0.0
  %944 = vmatpush.msra.mxu0 0.0
  %945 = vmatpush.msra.mxu0 0.0
  %946 = vmatpush.msra.mxu0 0.0
  %947 = vmatpush.msra.mxu0 0.0
  %948 = vmatpush.msra.mxu0 0.0
  %949 = vmatpush.msra.mxu0 0.0
  %950 = vmatpush.msra.mxu0 0.0
  %951 = vmatpush.msra.mxu0 0.0
  %952 = vmatpush.msra.mxu0 %v896
  %953 = vmatpush.msra.mxu0 %v895
  %954 = vmatpush.msra.mxu0 %v894
  %955 = vmatpush.msra.mxu0 %v893
  %956 = vmatmul.f32.gmra.mxu0 %v898
  %v957 = vpop.f32.mrf.mxu0
  %v958 = vadd.f32 %v938, %v957
  %959 = vdwg.mxu0
  %v960 = vmul.f32 %v958, 0.001953125
  %v961 = vmul.f32 %v960, %v960
  %v963 = vrot.slane %v961, 7
  %v965 = vsub.f32 %v960, %v963
  %v966 = vld [vmem:[%s13] sm:$0x3]
  %v967 = vadd.f32 %v965, 1e-05
  %v968 = vrsqrt.pop %v967
  %v969 = vmul.f32 %v968, %v967
  %v970 = vmul.f32 %v969, %v968
  %v971 = vmul.f32 0.5, %v970
  %v972 = vsub.f32 1.5, %v971
  %v973 = vmul.f32 %v968, %v972
  %vm974 = vweird.f32 %v967
  %vm975 = vweird.f32 %v968
  %vm976 = vmor %vm974, %vm975
  %v977 = vsel %vm976, %v968, %v973
  %v979 = vrot.slane %v977, 1
  %v981 = vmul.f32 %v966, %v979
  %v982 = vmul.f32 %v960, %v981
  %v984 = vrot.slane %v982, 7
  %v986 = vsub.f32 %v966, %v984
  %v987 = vsel %vm857, %v981, %v986
  %v988 = vld [vmem:[%s9] sm:$0xff]
  %v989 = vld [vmem:[%s9 + $0x8] sm:$0xff]
  %v990 = vld [vmem:[%s9 + $0x10] sm:$0xff]
  %v991 = vld [vmem:[%s9 + $0x18] sm:$0xff]
  %v992 = vld [vmem:[%s9 + $0x20] sm:$0xff]
  %v993 = vld [vmem:[%s9 + $0x28] sm:$0xff]
  %vm994 = vcmask 130048
  %v996 = vsel %vm994, %v987, 0
  %998 = vmatpush.msra.mxu0 0.0
  %999 = vmatpush.msra.mxu0 0.0
  %1000 = vmatpush.msra.mxu0 0.0
  %1001 = vmatpush.msra.mxu0 0.0
  %1002 = vmatpush.msra.mxu0 0.0
  %1003 = vmatpush.msra.mxu0 0.0
  %1004 = vmatpush.msra.mxu0 0.0
  %1005 = vmatpush.msra.mxu0 0.0
  %1006 = vmatpush.msra.mxu0 0.0
  %1007 = vmatpush.msra.mxu0 0.0
  %1008 = vmatpush.msra.mxu0 0.0
  %1009 = vmatpush.msra.mxu0 0.0
  %1010 = vmatpush.msra.mxu0 0.0
  %1011 = vmatpush.msra.mxu0 0.0
  %1012 = vmatpush.msra.mxu0 %v991
  %1013 = vmatpush.msra.mxu0 %v988
  %1014 = vmatmul.f32.gmra.mxu0 %v996
  %v1015 = vpop.f32.mrf.mxu0
  %v1016 = vadd.f32 0.0, %v1015
  %1017 = vdwg.mxu0
  %1018 = vmatpush.msra.mxu0 0.0
  %1019 = vmatpush.msra.mxu0 0.0
  %1020 = vmatpush.msra.mxu0 0.0
  %1021 = vmatpush.msra.mxu0 0.0
  %1022 = vmatpush.msra.mxu0 0.0
  %1023 = vmatpush.msra.mxu0 0.0
  %1024 = vmatpush.msra.mxu0 0.0
  %1025 = vmatpush.msra.mxu0 0.0
  %1026 = vmatpush.msra.mxu0 0.0
  %1027 = vmatpush.msra.mxu0 0.0
  %1028 = vmatpush.msra.mxu0 0.0
  %1029 = vmatpush.msra.mxu0 0.0
  %1030 = vmatpush.msra.mxu0 0.0
  %1031 = vmatpush.msra.mxu0 0.0
  %1032 = vmatpush.msra.mxu0 %v992
  %1033 = vmatpush.msra.mxu0 %v989
  %1034 = vmatmul.f32.gmra.mxu0 %v996
  %v1035 = vpop.f32.mrf.mxu0
  %v1036 = vadd.f32 0.0, %v1035
  %1037 = vdwg.mxu0
  %1038 = vmatpush.msra.mxu0 0.0
  %1039 = vmatpush.msra.mxu0 0.0
  %1040 = vmatpush.msra.mxu0 0.0
  %1041 = vmatpush.msra.mxu0 0.0
  %1042 = vmatpush.msra.mxu0 0.0
  %1043 = vmatpush.msra.mxu0 0.0
  %1044 = vmatpush.msra.mxu0 0.0
  %1045 = vmatpush.msra.mxu0 0.0
  %1046 = vmatpush.msra.mxu0 0.0
  %1047 = vmatpush.msra.mxu0 0.0
  %1048 = vmatpush.msra.mxu0 0.0
  %1049 = vmatpush.msra.mxu0 0.0
  %1050 = vmatpush.msra.mxu0 0.0
  %1051 = vmatpush.msra.mxu0 0.0
  %1052 = vmatpush.msra.mxu0 %v993
  %1053 = vmatpush.msra.mxu0 %v990
  %1054 = vmatmul.f32.gmra.mxu0 %v996
  %v1055 = vpop.f32.mrf.mxu0
  %v1056 = vadd.f32 0.0, %v1055
  %1057 = vdwg.mxu0
  %v1058 = vld [vmem:[%s17] sm:$0xff]
  %s1059 = scalar_lea.vmem %s17, 8
  %v1060 = vld [vmem:[%s1059] sm:$0xff]
  %v1061 = vperm.slane %v1016, 0
  %v1062 = vperm.slane %v1036, 0
  %v1063 = vperm.slane %v1056, 0
  %v1064 = vmul.f32 %v502, %v1061
  %v1065 = vmul.f32 %v503, %v1062
  %v1066 = vmul.f32 %v504, %v1063
  %v1067 = vmul.f32 %v505, %v1061
  %v1068 = vmul.f32 %v506, %v1062
  %v1069 = vmul.f32 %v507, %v1063
  %v1070 = vperm.slane %v1016, 1
  %v1071 = vperm.slane %v1036, 1
  %v1072 = vperm.slane %v1056, 1
  %v1073 = vadd.f32 %v1064, %v1070
  %v1074 = vadd.f32 %v1065, %v1071
  %v1075 = vadd.f32 %v1066, %v1072
  %v1076 = vadd.f32 %v1067, %v1070
  %v1077 = vadd.f32 %v1068, %v1071
  %v1078 = vadd.f32 %v1069, %v1072
  %vm1079 = vcmp.ge.f32.partialorder %v1073, 0.0
  %vm1080 = vcmp.ge.f32.partialorder %v1074, 0.0
  %vm1081 = vcmp.ge.f32.partialorder %v1075, 0.0
  %vm1082 = vcmp.ge.f32.partialorder %v1076, 0.0
  %vm1083 = vcmp.ge.f32.partialorder %v1077, 0.0
  %vm1084 = vcmp.ge.f32.partialorder %v1078, 0.0
  %v1085 = vmul.f32 %v1073, 0.01
  %v1086 = vmul.f32 %v1074, 0.01
  %v1087 = vmul.f32 %v1075, 0.01
  %v1088 = vmul.f32 %v1076, 0.01
  %v1089 = vmul.f32 %v1077, 0.01
  %v1090 = vmul.f32 %v1078, 0.01
  %v1091 = vsel %vm1079, %v1073, %v1085
  %v1092 = vsel %vm1080, %v1074, %v1086
  %v1093 = vsel %vm1081, %v1075, %v1087
  %v1094 = vsel %vm1082, %v1076, %v1088
  %v1095 = vsel %vm1083, %v1077, %v1089
  %v1096 = vsel %vm1084, %v1078, %v1090
  %v1098 = vsel %vm994, %v1058, 0
  %1100 = vmatpush.msra.mxu0 0.0
  %1101 = vmatpush.msra.mxu0 0.0
  %1102 = vmatpush.msra.mxu0 0.0
  %1103 = vmatpush.msra.mxu0 0.0
  %1104 = vmatpush.msra.mxu0 0.0
  %1105 = vmatpush.msra.mxu0 0.0
  %1106 = vmatpush.msra.mxu0 0.0
  %1107 = vmatpush.msra.mxu0 0.0
  %1108 = vmatpush.msra.mxu0 0.0
  %1109 = vmatpush.msra.mxu0 0.0
  %1110 = vmatpush.msra.mxu0 0.0
  %1111 = vmatpush.msra.mxu0 0.0
  %1112 = vmatpush.msra.mxu0 0.0
  %1113 = vmatpush.msra.mxu0 0.0
  %1114 = vmatpush.msra.mxu0 %v1094
  %1115 = vmatpush.msra.mxu0 %v1091
  %1116 = vmatmul.f32.gmra.mxu0 %v1098
  %v1117 = vpop.f32.mrf.mxu0
  %v1118 = vadd.f32 0.0, %v1117
  %1119 = vdwg.mxu0
  %1120 = vmatpush.msra.mxu0 0.0
  %1121 = vmatpush.msra.mxu0 0.0
  %1122 = vmatpush.msra.mxu0 0.0
  %1123 = vmatpush.msra.mxu0 0.0
  %1124 = vmatpush.msra.mxu0 0.0
  %1125 = vmatpush.msra.mxu0 0.0
  %1126 = vmatpush.msra.mxu0 0.0
  %1127 = vmatpush.msra.mxu0 0.0
  %1128 = vmatpush.msra.mxu0 0.0
  %1129 = vmatpush.msra.mxu0 0.0
  %1130 = vmatpush.msra.mxu0 0.0
  %1131 = vmatpush.msra.mxu0 0.0
  %1132 = vmatpush.msra.mxu0 0.0
  %1133 = vmatpush.msra.mxu0 0.0
  %1134 = vmatpush.msra.mxu0 %v1095
  %1135 = vmatpush.msra.mxu0 %v1092
  %1136 = vmatmul.f32.gmra.mxu0 %v1098
  %v1137 = vpop.f32.mrf.mxu0
  %v1138 = vadd.f32 0.0, %v1137
  %1139 = vdwg.mxu0
  %1140 = vmatpush.msra.mxu0 0.0
  %1141 = vmatpush.msra.mxu0 0.0
  %1142 = vmatpush.msra.mxu0 0.0
  %1143 = vmatpush.msra.mxu0 0.0
  %1144 = vmatpush.msra.mxu0 0.0
  %1145 = vmatpush.msra.mxu0 0.0
  %1146 = vmatpush.msra.mxu0 0.0
  %1147 = vmatpush.msra.mxu0 0.0
  %1148 = vmatpush.msra.mxu0 0.0
  %1149 = vmatpush.msra.mxu0 0.0
  %1150 = vmatpush.msra.mxu0 0.0
  %1151 = vmatpush.msra.mxu0 0.0
  %1152 = vmatpush.msra.mxu0 0.0
  %1153 = vmatpush.msra.mxu0 0.0
  %1154 = vmatpush.msra.mxu0 %v1096
  %1155 = vmatpush.msra.mxu0 %v1093
  %1156 = vmatmul.f32.gmra.mxu0 %v1098
  %v1157 = vpop.f32.mrf.mxu0
  %v1158 = vadd.f32 0.0, %v1157
  %1159 = vdwg.mxu0
  %s1160 = scalar_lea.vmem [#allocation2], 48
  %1161 = vst [vmem:[%s1160] sm:$0xff] %v1118
  %1162 = vst [vmem:[%s1160 + $0x8] sm:$0xff] %v1138
  %1163 = vst.msk [vmem:[%s1160 + $0x10] sm:$0xff] %vm75, %v1158
  %v1165 = vsel %vm994, %v1060, 0
  %1167 = vmatpush.msra.mxu0 0.0
  %1168 = vmatpush.msra.mxu0 0.0
  %1169 = vmatpush.msra.mxu0 0.0
  %1170 = vmatpush.msra.mxu0 0.0
  %1171 = vmatpush.msra.mxu0 0.0
  %1172 = vmatpush.msra.mxu0 0.0
  %1173 = vmatpush.msra.mxu0 0.0
  %1174 = vmatpush.msra.mxu0 0.0
  %1175 = vmatpush.msra.mxu0 0.0
  %1176 = vmatpush.msra.mxu0 0.0
  %1177 = vmatpush.msra.mxu0 0.0
  %1178 = vmatpush.msra.mxu0 0.0
  %1179 = vmatpush.msra.mxu0 0.0
  %1180 = vmatpush.msra.mxu0 0.0
  %1181 = vmatpush.msra.mxu0 %v1094
  %1182 = vmatpush.msra.mxu0 %v1091
  %1183 = vmatmul.f32.gmra.mxu0 %v1165
  %v1184 = vpop.f32.mrf.mxu0
  %v1185 = vadd.f32 0.0, %v1184
  %1186 = vdwg.mxu0
  %1187 = vmatpush.msra.mxu0 0.0
  %1188 = vmatpush.msra.mxu0 0.0
  %1189 = vmatpush.msra.mxu0 0.0
  %1190 = vmatpush.msra.mxu0 0.0
  %1191 = vmatpush.msra.mxu0 0.0
  %1192 = vmatpush.msra.mxu0 0.0
  %1193 = vmatpush.msra.mxu0 0.0
  %1194 = vmatpush.msra.mxu0 0.0
  %1195 = vmatpush.msra.mxu0 0.0
  %1196 = vmatpush.msra.mxu0 0.0
  %1197 = vmatpush.msra.mxu0 0.0
  %1198 = vmatpush.msra.mxu0 0.0
  %1199 = vmatpush.msra.mxu0 0.0
  %1200 = vmatpush.msra.mxu0 0.0
  %1201 = vmatpush.msra.mxu0 %v1095
  %1202 = vmatpush.msra.mxu0 %v1092
  %1203 = vmatmul.f32.gmra.mxu0 %v1165
  %v1204 = vpop.f32.mrf.mxu0
  %v1205 = vadd.f32 0.0, %v1204
  %1206 = vdwg.mxu0
  %1207 = vmatpush.msra.mxu0 0.0
  %1208 = vmatpush.msra.mxu0 0.0
  %1209 = vmatpush.msra.mxu0 0.0
  %1210 = vmatpush.msra.mxu0 0.0
  %1211 = vmatpush.msra.mxu0 0.0
  %1212 = vmatpush.msra.mxu0 0.0
  %1213 = vmatpush.msra.mxu0 0.0
  %1214 = vmatpush.msra.mxu0 0.0
  %1215 = vmatpush.msra.mxu0 0.0
  %1216 = vmatpush.msra.mxu0 0.0
  %1217 = vmatpush.msra.mxu0 0.0
  %1218 = vmatpush.msra.mxu0 0.0
  %1219 = vmatpush.msra.mxu0 0.0
  %1220 = vmatpush.msra.mxu0 0.0
  %1221 = vmatpush.msra.mxu0 %v1096
  %1222 = vmatpush.msra.mxu0 %v1093
  %1223 = vmatmul.f32.gmra.mxu0 %v1165
  %v1224 = vpop.f32.mrf.mxu0
  %v1225 = vadd.f32 0.0, %v1224
  %1226 = vdwg.mxu0
  %v1230 = vrot.slane %v1185, 7
  %v1231 = vrot.slane %v1205, 7
  %v1232 = vrot.slane %v1225, 7
  %1236 = vst [vmem:[#allocation2] sm:$0xfe] %v1230
  %1237 = vst [vmem:[#allocation2 + $0x8] sm:$0xfe] %v1231
  %vm1238 = vcmask 261121
  %1239 = vst.msk [vmem:[#allocation2 + $0x10] sm:$0xfe] %vm1238, %v1232
  %1240 = vst [vmem:[#allocation2 + $0x18] sm:$0x1] %v1230
  %1241 = vst [vmem:[#allocation2 + $0x20] sm:$0x1] %v1231
  %1242 = vst.msk [vmem:[#allocation2 + $0x28] sm:$0x1] %vm79, %v1232
  %v1243 = vmul.f32 %v741, %v1061
  %v1244 = vmul.f32 %v742, %v1062
  %v1245 = vmul.f32 %v743, %v1063
  %v1246 = vmul.f32 %v744, %v1061
  %v1247 = vmul.f32 %v745, %v1062
  %v1248 = vmul.f32 %v746, %v1063
  %v1249 = vadd.f32 %v1243, %v1070
  %v1250 = vadd.f32 %v1244, %v1071
  %v1251 = vadd.f32 %v1245, %v1072
  %v1252 = vadd.f32 %v1246, %v1070
  %v1253 = vadd.f32 %v1247, %v1071
  %v1254 = vadd.f32 %v1248, %v1072
  %vm1255 = vcmp.ge.f32.partialorder %v1249, 0.0
  %vm1256 = vcmp.ge.f32.partialorder %v1250, 0.0
  %vm1257 = vcmp.ge.f32.partialorder %v1251, 0.0
  %vm1258 = vcmp.ge.f32.partialorder %v1252, 0.0
  %vm1259 = vcmp.ge.f32.partialorder %v1253, 0.0
  %vm1260 = vcmp.ge.f32.partialorder %v1254, 0.0
  %v1261 = vmul.f32 %v1249, 0.01
  %v1262 = vmul.f32 %v1250, 0.01
  %v1263 = vmul.f32 %v1251, 0.01
  %v1264 = vmul.f32 %v1252, 0.01
  %v1265 = vmul.f32 %v1253, 0.01
  %v1266 = vmul.f32 %v1254, 0.01
  %v1267 = vsel %vm1255, %v1249, %v1261
  %v1268 = vsel %vm1256, %v1250, %v1262
  %v1269 = vsel %vm1257, %v1251, %v1263
  %v1270 = vsel %vm1258, %v1252, %v1264
  %v1271 = vsel %vm1259, %v1253, %v1265
  %v1272 = vsel %vm1260, %v1254, %v1266
  %1273 = vmatpush.msra.mxu0 0.0
  %1274 = vmatpush.msra.mxu0 0.0
  %1275 = vmatpush.msra.mxu0 0.0
  %1276 = vmatpush.msra.mxu0 0.0
  %1277 = vmatpush.msra.mxu0 0.0
  %1278 = vmatpush.msra.mxu0 0.0
  %1279 = vmatpush.msra.mxu0 0.0
  %1280 = vmatpush.msra.mxu0 0.0
  %1281 = vmatpush.msra.mxu0 0.0
  %1282 = vmatpush.msra.mxu0 0.0
  %1283 = vmatpush.msra.mxu0 0.0
  %1284 = vmatpush.msra.mxu0 0.0
  %1285 = vmatpush.msra.mxu0 0.0
  %1286 = vmatpush.msra.mxu0 0.0
  %1287 = vmatpush.msra.mxu0 %v1270
  %1288 = vmatpush.msra.mxu0 %v1267
  %1289 = vmatmul.f32.gmra.mxu0 %v1098
  %v1290 = vpop.f32.mrf.mxu0
  %v1291 = vadd.f32 0.0, %v1290
  %1292 = vdwg.mxu0
  %1293 = vmatpush.msra.mxu0 0.0
  %1294 = vmatpush.msra.mxu0 0.0
  %1295 = vmatpush.msra.mxu0 0.0
  %1296 = vmatpush.msra.mxu0 0.0
  %1297 = vmatpush.msra.mxu0 0.0
  %1298 = vmatpush.msra.mxu0 0.0
  %1299 = vmatpush.msra.mxu0 0.0
  %1300 = vmatpush.msra.mxu0 0.0
  %1301 = vmatpush.msra.mxu0 0.0
  %1302 = vmatpush.msra.mxu0 0.0
  %1303 = vmatpush.msra.mxu0 0.0
  %1304 = vmatpush.msra.mxu0 0.0
  %1305 = vmatpush.msra.mxu0 0.0
  %1306 = vmatpush.msra.mxu0 0.0
  %1307 = vmatpush.msra.mxu0 %v1271
  %1308 = vmatpush.msra.mxu0 %v1268
  %1309 = vmatmul.f32.gmra.mxu0 %v1098
  %v1310 = vpop.f32.mrf.mxu0
  %v1311 = vadd.f32 0.0, %v1310
  %1312 = vdwg.mxu0
  %1313 = vmatpush.msra.mxu0 0.0
  %1314 = vmatpush.msra.mxu0 0.0
  %1315 = vmatpush.msra.mxu0 0.0
  %1316 = vmatpush.msra.mxu0 0.0
  %1317 = vmatpush.msra.mxu0 0.0
  %1318 = vmatpush.msra.mxu0 0.0
  %1319 = vmatpush.msra.mxu0 0.0
  %1320 = vmatpush.msra.mxu0 0.0
  %1321 = vmatpush.msra.mxu0 0.0
  %1322 = vmatpush.msra.mxu0 0.0
  %1323 = vmatpush.msra.mxu0 0.0
  %1324 = vmatpush.msra.mxu0 0.0
  %1325 = vmatpush.msra.mxu0 0.0
  %1326 = vmatpush.msra.mxu0 0.0
  %1327 = vmatpush.msra.mxu0 %v1272
  %1328 = vmatpush.msra.mxu0 %v1269
  %1329 = vmatmul.f32.gmra.mxu0 %v1098
  %v1330 = vpop.f32.mrf.mxu0
  %v1331 = vadd.f32 0.0, %v1330
  %1332 = vdwg.mxu0
  %s1333 = scalar_lea.vmem [#allocation2], 144
  %1334 = vst [vmem:[%s1333] sm:$0xff] %v1291
  %1335 = vst [vmem:[%s1333 + $0x8] sm:$0xff] %v1311
  %1336 = vst.msk [vmem:[%s1333 + $0x10] sm:$0xff] %vm75, %v1331
  %1337 = vmatpush.msra.mxu0 0.0
  %1338 = vmatpush.msra.mxu0 0.0
  %1339 = vmatpush.msra.mxu0 0.0
  %1340 = vmatpush.msra.mxu0 0.0
  %1341 = vmatpush.msra.mxu0 0.0
  %1342 = vmatpush.msra.mxu0 0.0
  %1343 = vmatpush.msra.mxu0 0.0
  %1344 = vmatpush.msra.mxu0 0.0
  %1345 = vmatpush.msra.mxu0 0.0
  %1346 = vmatpush.msra.mxu0 0.0
  %1347 = vmatpush.msra.mxu0 0.0
  %1348 = vmatpush.msra.mxu0 0.0
  %1349 = vmatpush.msra.mxu0 0.0
  %1350 = vmatpush.msra.mxu0 0.0
  %1351 = vmatpush.msra.mxu0 %v1270
  %1352 = vmatpush.msra.mxu0 %v1267
  %1353 = vmatmul.f32.gmra.mxu0 %v1165
  %v1354 = vpop.f32.mrf.mxu0
  %v1355 = vadd.f32 0.0, %v1354
  %1356 = vdwg.mxu0
  %1357 = vmatpush.msra.mxu0 0.0
  %1358 = vmatpush.msra.mxu0 0.0
  %1359 = vmatpush.msra.mxu0 0.0
  %1360 = vmatpush.msra.mxu0 0.0
  %1361 = vmatpush.msra.mxu0 0.0
  %1362 = vmatpush.msra.mxu0 0.0
  %1363 = vmatpush.msra.mxu0 0.0
  %1364 = vmatpush.msra.mxu0 0.0
  %1365 = vmatpush.msra.mxu0 0.0
  %1366 = vmatpush.msra.mxu0 0.0
  %1367 = vmatpush.msra.mxu0 0.0
  %1368 = vmatpush.msra.mxu0 0.0
  %1369 = vmatpush.msra.mxu0 0.0
  %1370 = vmatpush.msra.mxu0 0.0
  %1371 = vmatpush.msra.mxu0 %v1271
  %1372 = vmatpush.msra.mxu0 %v1268
  %1373 = vmatmul.f32.gmra.mxu0 %v1165
  %v1374 = vpop.f32.mrf.mxu0
  %v1375 = vadd.f32 0.0, %v1374
  %1376 = vdwg.mxu0
  %1377 = vmatpush.msra.mxu0 0.0
  %1378 = vmatpush.msra.mxu0 0.0
  %1379 = vmatpush.msra.mxu0 0.0
  %1380 = vmatpush.msra.mxu0 0.0
  %1381 = vmatpush.msra.mxu0 0.0
  %1382 = vmatpush.msra.mxu0 0.0
  %1383 = vmatpush.msra.mxu0 0.0
  %1384 = vmatpush.msra.mxu0 0.0
  %1385 = vmatpush.msra.mxu0 0.0
  %1386 = vmatpush.msra.mxu0 0.0
  %1387 = vmatpush.msra.mxu0 0.0
  %1388 = vmatpush.msra.mxu0 0.0
  %1389 = vmatpush.msra.mxu0 0.0
  %1390 = vmatpush.msra.mxu0 0.0
  %1391 = vmatpush.msra.mxu0 %v1272
  %1392 = vmatpush.msra.mxu0 %v1269
  %1393 = vmatmul.f32.gmra.mxu0 %v1165
  %v1394 = vpop.f32.mrf.mxu0
  %v1395 = vadd.f32 0.0, %v1394
  %1396 = vdwg.mxu0
  %v1400 = vrot.slane %v1355, 7
  %v1401 = vrot.slane %v1375, 7
  %v1402 = vrot.slane %v1395, 7
  %s1406 = scalar_lea.vmem [#allocation2], 96
  %1407 = vst [vmem:[%s1406] sm:$0xfe] %v1400
  %1408 = vst [vmem:[%s1406 + $0x8] sm:$0xfe] %v1401
  %1409 = vst.msk [vmem:[%s1406 + $0x10] sm:$0xfe] %vm1238, %v1402
  %1410 = vst [vmem:[%s1406 + $0x18] sm:$0x1] %v1400
  %1411 = vst [vmem:[%s1406 + $0x20] sm:$0x1] %v1401
  %1412 = vst.msk [vmem:[%s1406 + $0x28] sm:$0x1] %vm79, %v1402
  %v1413 = vld [vmem:[%s2] sm:$0xff]
  %v1414 = vld [vmem:[%s2 + $0x8] sm:$0xff]
  %v1415 = vld [vmem:[%s2 + $0x10] sm:$0xff]
  %v1416 = vld [vmem:[%s2 + $0x18] sm:$0xff]
  %v1417 = vld [vmem:[%s2 + $0x20] sm:$0xff]
  %v1418 = vld [vmem:[%s2 + $0x28] sm:$0xff]
  %v1419 = vld [vmem:[%s2 + $0x30] sm:$0xff]
  %v1420 = vld [vmem:[%s2 + $0x38] sm:$0xff]
  %v1421 = vld [vmem:[%s2 + $0x40] sm:$0xff]
  %v1422 = vld [vmem:[%s2 + $0x48] sm:$0xff]
  %v1423 = vld [vmem:[%s2 + $0x50] sm:$0xff]
  %v1424 = vld [vmem:[%s2 + $0x58] sm:$0xff]
  %v1425 = vld [vmem:[%s2 + $0x60] sm:$0xff]
  %v1426 = vld [vmem:[%s2 + $0x68] sm:$0xff]
  %v1427 = vld [vmem:[%s2 + $0x70] sm:$0xff]
  %v1428 = vld [vmem:[%s2 + $0x78] sm:$0xff]
  %v1429 = vld [vmem:[%s2 + $0x80] sm:$0xff]
  %v1430 = vld [vmem:[%s2 + $0x88] sm:$0xff]
  %v1431 = vld [vmem:[%s2 + $0x90] sm:$0xff]
  %v1432 = vld [vmem:[%s2 + $0x98] sm:$0xff]
  %v1433 = vld [vmem:[%s2 + $0xa0] sm:$0xff]
  %v1434 = vld [vmem:[%s2 + $0xa8] sm:$0xff]
  %v1435 = vld [vmem:[%s2 + $0xb0] sm:$0xff]
  %v1436 = vld [vmem:[%s2 + $0xb8] sm:$0xff]
  %v1437 = vld [vmem:[%s2 + $0xc0] sm:$0xff]
  %v1438 = vld [vmem:[%s2 + $0xc8] sm:$0xff]
  %v1439 = vld [vmem:[%s2 + $0xd0] sm:$0xff]
  %v1440 = vld [vmem:[%s2 + $0xd8] sm:$0xff]
  %v1441 = vld [vmem:[%s2 + $0xe0] sm:$0xff]
  %v1442 = vld [vmem:[%s2 + $0xe8] sm:$0xff]
  %v1443 = vld [vmem:[%s2 + $0xf0] sm:$0xff]
  %v1444 = vld [vmem:[%s2 + $0xf8] sm:$0xff]
  %v1445 = vld [vmem:[%s2 + $0x100] sm:$0xff]
  %v1446 = vld [vmem:[%s2 + $0x108] sm:$0xff]
  %v1447 = vld [vmem:[%s2 + $0x110] sm:$0xff]
  %v1448 = vld [vmem:[%s2 + $0x118] sm:$0xff]
  %v1449 = vld [vmem:[%s2 + $0x120] sm:$0xff]
  %v1450 = vld [vmem:[%s2 + $0x128] sm:$0xff]
  %v1451 = vld [vmem:[%s2 + $0x130] sm:$0xff]
  %v1452 = vld [vmem:[%s2 + $0x138] sm:$0xff]
  %v1453 = vld [vmem:[%s2 + $0x140] sm:$0xff]
  %v1454 = vld [vmem:[%s2 + $0x148] sm:$0xff]
  %v1455 = vld [vmem:[%s2 + $0x150] sm:$0xff]
  %v1456 = vld [vmem:[%s2 + $0x158] sm:$0xff]
  %v1457 = vld [vmem:[%s2 + $0x160] sm:$0xff]
  %v1458 = vld [vmem:[%s2 + $0x168] sm:$0xff]
  %v1459 = vld [vmem:[%s2 + $0x170] sm:$0xff]
  %v1460 = vld [vmem:[%s2 + $0x178] sm:$0xff]
  %v1461 = vld [vmem:[%s2 + $0x180] sm:$0xff]
  %v1462 = vld [vmem:[%s2 + $0x188] sm:$0xff]
  %v1463 = vld [vmem:[%s2 + $0x190] sm:$0xff]
  %v1464 = vld [vmem:[%s2 + $0x198] sm:$0xff]
  %v1465 = vld [vmem:[%s2 + $0x1a0] sm:$0xff]
  %v1466 = vld [vmem:[%s2 + $0x1a8] sm:$0xff]
  %v1467 = vld [vmem:[%s2 + $0x1b0] sm:$0xff]
  %v1468 = vld [vmem:[%s2 + $0x1b8] sm:$0xff]
  %v1469 = vld [vmem:[%s2 + $0x1c0] sm:$0xff]
  %v1470 = vld [vmem:[%s2 + $0x1c8] sm:$0xff]
  %v1471 = vld [vmem:[%s2 + $0x1d0] sm:$0xff]
  %v1472 = vld [vmem:[%s2 + $0x1d8] sm:$0xff]
  %v1473 = vld [vmem:[%s2 + $0x1e0] sm:$0xff]
  %v1474 = vld [vmem:[%s2 + $0x1e8] sm:$0xff]
  %v1475 = vld [vmem:[%s2 + $0x1f0] sm:$0xff]
  %v1476 = vld [vmem:[%s2 + $0x1f8] sm:$0xff]
  %v1477 = vld [vmem:[%s2 + $0x200] sm:$0xff]
  %v1478 = vld [vmem:[%s2 + $0x208] sm:$0xff]
  %v1479 = vld [vmem:[%s2 + $0x210] sm:$0xff]
  %v1480 = vld [vmem:[%s2 + $0x218] sm:$0xff]
  %v1481 = vld [vmem:[%s2 + $0x220] sm:$0xff]
  %v1482 = vld [vmem:[%s2 + $0x228] sm:$0xff]
  %v1483 = vld [vmem:[%s2 + $0x230] sm:$0xff]
  %v1484 = vld [vmem:[%s2 + $0x238] sm:$0xff]
  %v1485 = vld [vmem:[%s2 + $0x240] sm:$0xff]
  %v1486 = vld [vmem:[%s2 + $0x248] sm:$0xff]
  %v1487 = vld [vmem:[%s2 + $0x250] sm:$0xff]
  %v1488 = vld [vmem:[%s2 + $0x258] sm:$0xff]
  %v1489 = vld [vmem:[%s2 + $0x260] sm:$0xff]
  %v1490 = vld [vmem:[%s2 + $0x268] sm:$0xff]
  %v1491 = vld [vmem:[%s2 + $0x270] sm:$0xff]
  %v1492 = vld [vmem:[%s2 + $0x278] sm:$0xff]
  %v1493 = vld [vmem:[%s2 + $0x280] sm:$0xff]
  %v1494 = vld [vmem:[%s2 + $0x288] sm:$0xff]
  %v1495 = vld [vmem:[%s2 + $0x290] sm:$0xff]
  %v1496 = vld [vmem:[%s2 + $0x298] sm:$0xff]
  %v1497 = vld [vmem:[%s2 + $0x2a0] sm:$0xff]
  %v1498 = vld [vmem:[%s2 + $0x2a8] sm:$0xff]
  %v1499 = vld [vmem:[%s2 + $0x2b0] sm:$0xff]
  %v1500 = vld [vmem:[%s2 + $0x2b8] sm:$0xff]
  %v1501 = vld [vmem:[%s2 + $0x2c0] sm:$0xff]
  %v1502 = vld [vmem:[%s2 + $0x2c8] sm:$0xff]
  %v1503 = vld [vmem:[%s2 + $0x2d0] sm:$0xff]
  %v1504 = vld [vmem:[%s2 + $0x2d8] sm:$0xff]
  %v1505 = vld [vmem:[%s2 + $0x2e0] sm:$0xff]
  %v1506 = vld [vmem:[%s2 + $0x2e8] sm:$0xff]
  %v1507 = vld [vmem:[%s2 + $0x2f0] sm:$0xff]
  %v1508 = vld [vmem:[%s2 + $0x2f8] sm:$0xff]
  %v1509 = vld [vmem:[%s2 + $0x300] sm:$0xff]
  %v1510 = vld [vmem:[%s2 + $0x308] sm:$0xff]
  %v1511 = vld [vmem:[%s2 + $0x310] sm:$0xff]
  %v1512 = vld [vmem:[%s2 + $0x318] sm:$0xff]
  %v1513 = vld [vmem:[%s2 + $0x320] sm:$0xff]
  %v1514 = vld [vmem:[%s2 + $0x328] sm:$0xff]
  %v1515 = vld [vmem:[%s2 + $0x330] sm:$0xff]
  %v1516 = vld [vmem:[%s2 + $0x338] sm:$0xff]
  %v1517 = vld [vmem:[%s2 + $0x340] sm:$0xff]
  %v1518 = vld [vmem:[%s2 + $0x348] sm:$0xff]
  %v1519 = vld [vmem:[%s2 + $0x350] sm:$0xff]
  %v1520 = vld [vmem:[%s2 + $0x358] sm:$0xff]
  %s1521 = scalar_lea.vmem %s2, 864
  %v1522 = vld [vmem:[%s1521] sm:$0xff]
  %v1523 = vld [vmem:[%s1521 + $0x8] sm:$0xff]
  %v1524 = vld [vmem:[%s1521 + $0x10] sm:$0xff]
  %v1525 = vld [vmem:[%s1521 + $0x18] sm:$0xff]
  %v1526 = vld [vmem:[%s1521 + $0x20] sm:$0xff]
  %v1527 = vld [vmem:[%s1521 + $0x28] sm:$0xff]
  %v1528 = vld [vmem:[%s1521 + $0x30] sm:$0xff]
  %v1529 = vld [vmem:[%s1521 + $0x38] sm:$0xff]
  %v1530 = vld [vmem:[%s1521 + $0x40] sm:$0xff]
  %v1531 = vld [vmem:[%s1521 + $0x48] sm:$0xff]
  %v1532 = vld [vmem:[%s1521 + $0x50] sm:$0xff]
  %v1533 = vld [vmem:[%s1521 + $0x58] sm:$0xff]
  %v1534 = vld [vmem:[%s1521 + $0x60] sm:$0xff]
  %v1535 = vld [vmem:[%s1521 + $0x68] sm:$0xff]
  %v1536 = vld [vmem:[%s1521 + $0x70] sm:$0xff]
  %v1537 = vld [vmem:[%s1521 + $0x78] sm:$0xff]
  %v1538 = vld [vmem:[%s1521 + $0x80] sm:$0xff]
  %v1539 = vld [vmem:[%s1521 + $0x88] sm:$0xff]
  %v1540 = vld [vmem:[%s1521 + $0x90] sm:$0xff]
  %v1541 = vld [vmem:[%s1521 + $0x98] sm:$0xff]
  %v1542 = vld [vmem:[%s1521 + $0xa0] sm:$0xff]
  %v1543 = vld [vmem:[%s1521 + $0xa8] sm:$0xff]
  %v1544 = vld [vmem:[%s1521 + $0xb0] sm:$0xff]
  %v1545 = vld [vmem:[%s1521 + $0xb8] sm:$0xff]
  %v1546 = vld [vmem:[%s1521 + $0xc0] sm:$0xff]
  %v1547 = vld [vmem:[%s1521 + $0xc8] sm:$0xff]
  %v1548 = vld [vmem:[%s1521 + $0xd0] sm:$0xff]
  %v1549 = vld [vmem:[%s1521 + $0xd8] sm:$0xff]
  %v1550 = vld [vmem:[%s1521 + $0xe0] sm:$0xff]
  %v1551 = vld [vmem:[%s1521 + $0xe8] sm:$0xff]
  %v1552 = vld [vmem:[%s1521 + $0xf0] sm:$0xff]
  %v1553 = vld [vmem:[%s1521 + $0xf8] sm:$0xff]
  %v1554 = vld [vmem:[%s1521 + $0x100] sm:$0xff]
  %v1555 = vld [vmem:[%s1521 + $0x108] sm:$0xff]
  %v1556 = vld [vmem:[%s1521 + $0x110] sm:$0xff]
  %v1557 = vld [vmem:[%s1521 + $0x118] sm:$0xff]
  %v1558 = vld [vmem:[%s1521 + $0x120] sm:$0xff]
  %v1559 = vld [vmem:[%s1521 + $0x128] sm:$0xff]
  %v1560 = vld [vmem:[%s1521 + $0x130] sm:$0xff]
  %v1561 = vld [vmem:[%s1521 + $0x138] sm:$0xff]
  %v1562 = vld [vmem:[%s1521 + $0x140] sm:$0xff]
  %v1563 = vld [vmem:[%s1521 + $0x148] sm:$0xff]
  %v1564 = vld [vmem:[%s1521 + $0x150] sm:$0xff]
  %v1565 = vld [vmem:[%s1521 + $0x158] sm:$0xff]
  %v1566 = vld [vmem:[%s1521 + $0x160] sm:$0xff]
  %v1567 = vld [vmem:[%s1521 + $0x168] sm:$0xff]
  %v1568 = vld [vmem:[%s1521 + $0x170] sm:$0xff]
  %v1569 = vld [vmem:[%s1521 + $0x178] sm:$0xff]
  %v1570 = vld [vmem:[%s1521 + $0x180] sm:$0xff]
  %v1571 = vld [vmem:[%s1521 + $0x188] sm:$0xff]
  %v1572 = vld [vmem:[%s1521 + $0x190] sm:$0xff]
  %v1573 = vld [vmem:[%s1521 + $0x198] sm:$0xff]
  %v1574 = vld [vmem:[%s1521 + $0x1a0] sm:$0xff]
  %v1575 = vld [vmem:[%s1521 + $0x1a8] sm:$0xff]
  %v1576 = vld [vmem:[%s1521 + $0x1b0] sm:$0xff]
  %v1577 = vld [vmem:[%s1521 + $0x1b8] sm:$0xff]
  %v1578 = vld [vmem:[%s1521 + $0x1c0] sm:$0xff]
  %v1579 = vld [vmem:[%s1521 + $0x1c8] sm:$0xff]
  %v1580 = vld [vmem:[%s1521 + $0x1d0] sm:$0xff]
  %v1581 = vld [vmem:[%s1521 + $0x1d8] sm:$0xff]
  %v1582 = vld [vmem:[%s1521 + $0x1e0] sm:$0xff]
  %v1583 = vld [vmem:[%s1521 + $0x1e8] sm:$0xff]
  %v1584 = vld [vmem:[%s1521 + $0x1f0] sm:$0xff]
  %v1585 = vld [vmem:[%s1521 + $0x1f8] sm:$0xff]
  %v1586 = vld [vmem:[%s1521 + $0x200] sm:$0xff]
  %v1587 = vld [vmem:[%s1521 + $0x208] sm:$0xff]
  %v1588 = vld [vmem:[%s1521 + $0x210] sm:$0xff]
  %v1589 = vld [vmem:[%s1521 + $0x218] sm:$0xff]
  %v1590 = vld [vmem:[%s1521 + $0x220] sm:$0xff]
  %v1591 = vld [vmem:[%s1521 + $0x228] sm:$0xff]
  %v1592 = vld [vmem:[%s1521 + $0x230] sm:$0xff]
  %v1593 = vld [vmem:[%s1521 + $0x238] sm:$0xff]
  %v1594 = vld [vmem:[%s1521 + $0x240] sm:$0xff]
  %v1595 = vld [vmem:[%s1521 + $0x248] sm:$0xff]
  %v1596 = vld [vmem:[%s1521 + $0x250] sm:$0xff]
  %v1597 = vld [vmem:[%s1521 + $0x258] sm:$0xff]
  %v1598 = vld [vmem:[%s1521 + $0x260] sm:$0xff]
  %v1599 = vld [vmem:[%s1521 + $0x268] sm:$0xff]
  %v1600 = vld [vmem:[%s1521 + $0x270] sm:$0xff]
  %v1601 = vld [vmem:[%s1521 + $0x278] sm:$0xff]
  %v1602 = vld [vmem:[%s1521 + $0x280] sm:$0xff]
  %v1603 = vld [vmem:[%s1521 + $0x288] sm:$0xff]
  %v1604 = vld [vmem:[%s1521 + $0x290] sm:$0xff]
  %v1605 = vld [vmem:[%s1521 + $0x298] sm:$0xff]
  %v1606 = vld [vmem:[%s1521 + $0x2a0] sm:$0xff]
  %v1607 = vld [vmem:[%s1521 + $0x2a8] sm:$0xff]
  %v1608 = vld [vmem:[%s1521 + $0x2b0] sm:$0xff]
  %v1609 = vld [vmem:[%s1521 + $0x2b8] sm:$0xff]
  %v1610 = vld [vmem:[%s1521 + $0x2c0] sm:$0xff]
  %v1611 = vld [vmem:[%s1521 + $0x2c8] sm:$0xff]
  %v1612 = vld [vmem:[%s1521 + $0x2d0] sm:$0xff]
  %v1613 = vld [vmem:[%s1521 + $0x2d8] sm:$0xff]
  %v1614 = vld [vmem:[%s1521 + $0x2e0] sm:$0xff]
  %v1615 = vld [vmem:[%s1521 + $0x2e8] sm:$0xff]
  %v1616 = vld [vmem:[%s1521 + $0x2f0] sm:$0xff]
  %v1617 = vld [vmem:[%s1521 + $0x2f8] sm:$0xff]
  %v1618 = vld [vmem:[%s1521 + $0x300] sm:$0xff]
  %v1619 = vld [vmem:[%s1521 + $0x308] sm:$0xff]
  %v1620 = vld [vmem:[%s1521 + $0x310] sm:$0xff]
  %v1621 = vld [vmem:[%s1521 + $0x318] sm:$0xff]
  %v1622 = vld [vmem:[%s1521 + $0x320] sm:$0xff]
  %v1623 = vld [vmem:[%s1521 + $0x328] sm:$0xff]
  %v1624 = vld [vmem:[%s1521 + $0x330] sm:$0xff]
  %v1625 = vld [vmem:[%s1521 + $0x338] sm:$0xff]
  %v1626 = vld [vmem:[%s1521 + $0x340] sm:$0xff]
  %v1627 = vld [vmem:[%s1521 + $0x348] sm:$0xff]
  %v1628 = vld [vmem:[%s1521 + $0x350] sm:$0xff]
  %v1629 = vld [vmem:[%s1521 + $0x358] sm:$0xff]
  %s1630 = scalar_lea.vmem %s2, 1728
  %v1631 = vld [vmem:[%s1630] sm:$0xff]
  %v1632 = vld [vmem:[%s1630 + $0x8] sm:$0xff]
  %v1633 = vld [vmem:[%s1630 + $0x10] sm:$0xff]
  %v1634 = vld [vmem:[%s1630 + $0x18] sm:$0xff]
  %v1635 = vld [vmem:[%s1630 + $0x20] sm:$0xff]
  %v1636 = vld [vmem:[%s1630 + $0x28] sm:$0xff]
  %v1637 = vld [vmem:[%s1630 + $0x30] sm:$0xff]
  %v1638 = vld [vmem:[%s1630 + $0x38] sm:$0xff]
  %v1639 = vld [vmem:[%s1630 + $0x40] sm:$0xff]
  %v1640 = vld [vmem:[%s1630 + $0x48] sm:$0xff]
  %v1641 = vld [vmem:[%s1630 + $0x50] sm:$0xff]
  %v1642 = vld [vmem:[%s1630 + $0x58] sm:$0xff]
  %v1643 = vld [vmem:[%s1630 + $0x60] sm:$0xff]
  %v1644 = vld [vmem:[%s1630 + $0x68] sm:$0xff]
  %v1645 = vld [vmem:[%s1630 + $0x70] sm:$0xff]
  %v1646 = vld [vmem:[%s1630 + $0x78] sm:$0xff]
  %v1647 = vld [vmem:[%s1630 + $0x80] sm:$0xff]
  %v1648 = vld [vmem:[%s1630 + $0x88] sm:$0xff]
  %v1649 = vld [vmem:[%s1630 + $0x90] sm:$0xff]
  %v1650 = vld [vmem:[%s1630 + $0x98] sm:$0xff]
  %v1651 = vld [vmem:[%s1630 + $0xa0] sm:$0xff]
  %v1652 = vld [vmem:[%s1630 + $0xa8] sm:$0xff]
  %v1653 = vld [vmem:[%s1630 + $0xb0] sm:$0xff]
  %v1654 = vld [vmem:[%s1630 + $0xb8] sm:$0xff]
  %v1655 = vld [vmem:[%s1630 + $0xc0] sm:$0xff]
  %v1656 = vld [vmem:[%s1630 + $0xc8] sm:$0xff]
  %v1657 = vld [vmem:[%s1630 + $0xd0] sm:$0xff]
  %v1658 = vld [vmem:[%s1630 + $0xd8] sm:$0xff]
  %v1659 = vld [vmem:[%s1630 + $0xe0] sm:$0xff]
  %v1660 = vld [vmem:[%s1630 + $0xe8] sm:$0xff]
  %v1661 = vld [vmem:[%s1630 + $0xf0] sm:$0xff]
  %v1662 = vld [vmem:[%s1630 + $0xf8] sm:$0xff]
  %v1663 = vld [vmem:[%s1630 + $0x100] sm:$0xff]
  %v1664 = vld [vmem:[%s1630 + $0x108] sm:$0xff]
  %v1665 = vld [vmem:[%s1630 + $0x110] sm:$0xff]
  %v1666 = vld [vmem:[%s1630 + $0x118] sm:$0xff]
  %v1667 = vld [vmem:[%s1630 + $0x120] sm:$0xff]
  %v1668 = vld [vmem:[%s1630 + $0x128] sm:$0xff]
  %v1669 = vld [vmem:[%s1630 + $0x130] sm:$0xff]
  %v1670 = vld [vmem:[%s1630 + $0x138] sm:$0xff]
  %v1671 = vld [vmem:[%s1630 + $0x140] sm:$0xff]
  %v1672 = vld [vmem:[%s1630 + $0x148] sm:$0xff]
  %v1673 = vld [vmem:[%s1630 + $0x150] sm:$0xff]
  %v1674 = vld [vmem:[%s1630 + $0x158] sm:$0xff]
  %v1675 = vld [vmem:[%s1630 + $0x160] sm:$0xff]
  %v1676 = vld [vmem:[%s1630 + $0x168] sm:$0xff]
  %v1677 = vld [vmem:[%s1630 + $0x170] sm:$0xff]
  %v1678 = vld [vmem:[%s1630 + $0x178] sm:$0xff]
  %v1679 = vld [vmem:[%s1630 + $0x180] sm:$0xff]
  %v1680 = vld [vmem:[%s1630 + $0x188] sm:$0xff]
  %v1681 = vld [vmem:[%s1630 + $0x190] sm:$0xff]
  %v1682 = vld [vmem:[%s1630 + $0x198] sm:$0xff]
  %v1683 = vld [vmem:[%s1630 + $0x1a0] sm:$0xff]
  %v1684 = vld [vmem:[%s1630 + $0x1a8] sm:$0xff]
  %v1685 = vld [vmem:[%s1630 + $0x1b0] sm:$0xff]
  %v1686 = vld [vmem:[%s1630 + $0x1b8] sm:$0xff]
  %v1687 = vld [vmem:[%s1630 + $0x1c0] sm:$0xff]
  %v1688 = vld [vmem:[%s1630 + $0x1c8] sm:$0xff]
  %v1689 = vld [vmem:[%s1630 + $0x1d0] sm:$0xff]
  %v1690 = vld [vmem:[%s1630 + $0x1d8] sm:$0xff]
  %v1691 = vld [vmem:[%s1630 + $0x1e0] sm:$0xff]
  %v1692 = vld [vmem:[%s1630 + $0x1e8] sm:$0xff]
  %v1693 = vld [vmem:[%s1630 + $0x1f0] sm:$0xff]
  %v1694 = vld [vmem:[%s1630 + $0x1f8] sm:$0xff]
  %v1695 = vld [vmem:[%s1630 + $0x200] sm:$0xff]
  %v1696 = vld [vmem:[%s1630 + $0x208] sm:$0xff]
  %v1697 = vld [vmem:[%s1630 + $0x210] sm:$0xff]
  %v1698 = vld [vmem:[%s1630 + $0x218] sm:$0xff]
  %v1699 = vld [vmem:[%s1630 + $0x220] sm:$0xff]
  %v1700 = vld [vmem:[%s1630 + $0x228] sm:$0xff]
  %v1701 = vld [vmem:[%s1630 + $0x230] sm:$0xff]
  %v1702 = vld [vmem:[%s1630 + $0x238] sm:$0xff]
  %v1703 = vld [vmem:[%s1630 + $0x240] sm:$0xff]
  %v1704 = vld [vmem:[%s1630 + $0x248] sm:$0xff]
  %v1705 = vld [vmem:[%s1630 + $0x250] sm:$0xff]
  %v1706 = vld [vmem:[%s1630 + $0x258] sm:$0xff]
  %v1707 = vld [vmem:[%s1630 + $0x260] sm:$0xff]
  %v1708 = vld [vmem:[%s1630 + $0x268] sm:$0xff]
  %v1709 = vld [vmem:[%s1630 + $0x270] sm:$0xff]
  %v1710 = vld [vmem:[%s1630 + $0x278] sm:$0xff]
  %v1711 = vld [vmem:[%s1630 + $0x280] sm:$0xff]
  %v1712 = vld [vmem:[%s1630 + $0x288] sm:$0xff]
  %v1713 = vld [vmem:[%s1630 + $0x290] sm:$0xff]
  %v1714 = vld [vmem:[%s1630 + $0x298] sm:$0xff]
  %v1715 = vld [vmem:[%s1630 + $0x2a0] sm:$0xff]
  %v1716 = vld [vmem:[%s1630 + $0x2a8] sm:$0xff]
  %v1717 = vld [vmem:[%s1630 + $0x2b0] sm:$0xff]
  %v1718 = vld [vmem:[%s1630 + $0x2b8] sm:$0xff]
  %v1719 = vld [vmem:[%s1630 + $0x2c0] sm:$0xff]
  %v1720 = vld [vmem:[%s1630 + $0x2c8] sm:$0xff]
  %v1721 = vld [vmem:[%s1630 + $0x2d0] sm:$0xff]
  %v1722 = vld [vmem:[%s1630 + $0x2d8] sm:$0xff]
  %v1723 = vld [vmem:[%s1630 + $0x2e0] sm:$0xff]
  %v1724 = vld [vmem:[%s1630 + $0x2e8] sm:$0xff]
  %v1725 = vld [vmem:[%s1630 + $0x2f0] sm:$0xff]
  %v1726 = vld [vmem:[%s1630 + $0x2f8] sm:$0xff]
  %v1727 = vld [vmem:[%s1630 + $0x300] sm:$0xff]
  %v1728 = vld [vmem:[%s1630 + $0x308] sm:$0xff]
  %v1729 = vld [vmem:[%s1630 + $0x310] sm:$0xff]
  %v1730 = vld [vmem:[%s1630 + $0x318] sm:$0xff]
  %v1731 = vld [vmem:[%s1630 + $0x320] sm:$0xff]
  %v1732 = vld [vmem:[%s1630 + $0x328] sm:$0xff]
  %v1733 = vld [vmem:[%s1630 + $0x330] sm:$0xff]
  %v1734 = vld [vmem:[%s1630 + $0x338] sm:$0xff]
  %v1735 = vld [vmem:[%s1630 + $0x340] sm:$0xff]
  %v1736 = vld [vmem:[%s1630 + $0x348] sm:$0xff]
  %v1737 = vld [vmem:[%s1630 + $0x350] sm:$0xff]
  %v1738 = vld [vmem:[%s1630 + $0x358] sm:$0xff]
  %v1739 = vld [vmem:[#allocation2] sm:$0xff]
  %v1740 = vld [vmem:[#allocation2 + $0x8] sm:$0xff]
  %v1741 = vld [vmem:[#allocation2 + $0x10] sm:$0xff]
  %v1742 = vld [vmem:[%s1160] sm:$0xff]
  %v1743 = vld [vmem:[%s1160 + $0x8] sm:$0xff]
  %v1744 = vld [vmem:[%s1160 + $0x10] sm:$0xff]
  %v1745 = vld [vmem:[#allocation2] sm:$0xfe]
  %v1746 = vld [vmem:[#allocation2 + $0x8] sm:$0xfe]
  %v1747 = vld [vmem:[#allocation2 + $0x10] sm:$0xfe]
  %v1748 = vld [vmem:[#allocation2 + $0x18] sm:$0x1]
  %v1749 = vld [vmem:[#allocation2 + $0x20] sm:$0x1]
  %v1750 = vld [vmem:[#allocation2 + $0x28] sm:$0x1]
  %v1752 = vsel %vm75, %v1744, 0
  %1754 = vmatpush.msra.mxu0 %v1567
  %1755 = vmatpush.msra.mxu0 %v1564
  %1756 = vmatpush.msra.mxu0 %v1561
  %1757 = vmatpush.msra.mxu0 %v1558
  %1758 = vmatpush.msra.mxu0 %v1555
  %1759 = vmatpush.msra.mxu0 %v1552
  %1760 = vmatpush.msra.mxu0 %v1549
  %1761 = vmatpush.msra.mxu0 %v1546
  %1762 = vmatpush.msra.mxu0 %v1543
  %1763 = vmatpush.msra.mxu0 %v1540
  %1764 = vmatpush.msra.mxu0 %v1537
  %1765 = vmatpush.msra.mxu0 %v1534
  %1766 = vmatpush.msra.mxu0 %v1531
  %1767 = vmatpush.msra.mxu0 %v1528
  %1768 = vmatpush.msra.mxu0 %v1525
  %1769 = vmatpush.msra.mxu0 %v1522
  %1770 = vmatmul.f32.gmra.mxu0 %v1742
  %v1771 = vpop.f32.mrf.mxu0
  %v1772 = vadd.f32 0.0, %v1771
  %1773 = vdwg.mxu0
  %1774 = vmatpush.msra.mxu0 %v1615
  %1775 = vmatpush.msra.mxu0 %v1612
  %1776 = vmatpush.msra.mxu0 %v1609
  %1777 = vmatpush.msra.mxu0 %v1606
  %1778 = vmatpush.msra.mxu0 %v1603
  %1779 = vmatpush.msra.mxu0 %v1600
  %1780 = vmatpush.msra.mxu0 %v1597
  %1781 = vmatpush.msra.mxu0 %v1594
  %1782 = vmatpush.msra.mxu0 %v1591
  %1783 = vmatpush.msra.mxu0 %v1588
  %1784 = vmatpush.msra.mxu0 %v1585
  %1785 = vmatpush.msra.mxu0 %v1582
  %1786 = vmatpush.msra.mxu0 %v1579
  %1787 = vmatpush.msra.mxu0 %v1576
  %1788 = vmatpush.msra.mxu0 %v1573
  %1789 = vmatpush.msra.mxu0 %v1570
  %1790 = vmatmul.f32.gmra.mxu0 %v1743
  %v1791 = vpop.f32.mrf.mxu0
  %v1792 = vadd.f32 %v1772, %v1791
  %1793 = vdwg.mxu0
  %1794 = vmatpush.msra.mxu0 0.0
  %1795 = vmatpush.msra.mxu0 0.0
  %1796 = vmatpush.msra.mxu0 0.0
  %1797 = vmatpush.msra.mxu0 0.0
  %1798 = vmatpush.msra.mxu0 0.0
  %1799 = vmatpush.msra.mxu0 0.0
  %1800 = vmatpush.msra.mxu0 0.0
  %1801 = vmatpush.msra.mxu0 0.0
  %1802 = vmatpush.msra.mxu0 0.0
  %1803 = vmatpush.msra.mxu0 0.0
  %1804 = vmatpush.msra.mxu0 0.0
  %1805 = vmatpush.msra.mxu0 0.0
  %1806 = vmatpush.msra.mxu0 %v1627
  %1807 = vmatpush.msra.mxu0 %v1624
  %1808 = vmatpush.msra.mxu0 %v1621
  %1809 = vmatpush.msra.mxu0 %v1618
  %1810 = vmatmul.f32.gmra.mxu0 %v1752
  %v1811 = vpop.f32.mrf.mxu0
  %v1812 = vadd.f32 %v1792, %v1811
  %1813 = vdwg.mxu0
  %1814 = vmatpush.msra.mxu0 %v1568
  %1815 = vmatpush.msra.mxu0 %v1565
  %1816 = vmatpush.msra.mxu0 %v1562
  %1817 = vmatpush.msra.mxu0 %v1559
  %1818 = vmatpush.msra.mxu0 %v1556
  %1819 = vmatpush.msra.mxu0 %v1553
  %1820 = vmatpush.msra.mxu0 %v1550
  %1821 = vmatpush.msra.mxu0 %v1547
  %1822 = vmatpush.msra.mxu0 %v1544
  %1823 = vmatpush.msra.mxu0 %v1541
  %1824 = vmatpush.msra.mxu0 %v1538
  %1825 = vmatpush.msra.mxu0 %v1535
  %1826 = vmatpush.msra.mxu0 %v1532
  %1827 = vmatpush.msra.mxu0 %v1529
  %1828 = vmatpush.msra.mxu0 %v1526
  %1829 = vmatpush.msra.mxu0 %v1523
  %1830 = vmatmul.f32.gmra.mxu0 %v1742
  %v1831 = vpop.f32.mrf.mxu0
  %v1832 = vadd.f32 0.0, %v1831
  %1833 = vdwg.mxu0
  %1834 = vmatpush.msra.mxu0 %v1616
  %1835 = vmatpush.msra.mxu0 %v1613
  %1836 = vmatpush.msra.mxu0 %v1610
  %1837 = vmatpush.msra.mxu0 %v1607
  %1838 = vmatpush.msra.mxu0 %v1604
  %1839 = vmatpush.msra.mxu0 %v1601
  %1840 = vmatpush.msra.mxu0 %v1598
  %1841 = vmatpush.msra.mxu0 %v1595
  %1842 = vmatpush.msra.mxu0 %v1592
  %1843 = vmatpush.msra.mxu0 %v1589
  %1844 = vmatpush.msra.mxu0 %v1586
  %1845 = vmatpush.msra.mxu0 %v1583
  %1846 = vmatpush.msra.mxu0 %v1580
  %1847 = vmatpush.msra.mxu0 %v1577
  %1848 = vmatpush.msra.mxu0 %v1574
  %1849 = vmatpush.msra.mxu0 %v1571
  %1850 = vmatmul.f32.gmra.mxu0 %v1743
  %v1851 = vpop.f32.mrf.mxu0
  %v1852 = vadd.f32 %v1832, %v1851
  %1853 = vdwg.mxu0
  %1854 = vmatpush.msra.mxu0 0.0
  %1855 = vmatpush.msra.mxu0 0.0
  %1856 = vmatpush.msra.mxu0 0.0
  %1857 = vmatpush.msra.mxu0 0.0
  %1858 = vmatpush.msra.mxu0 0.0
  %1859 = vmatpush.msra.mxu0 0.0
  %1860 = vmatpush.msra.mxu0 0.0
  %1861 = vmatpush.msra.mxu0 0.0
  %1862 = vmatpush.msra.mxu0 0.0
  %1863 = vmatpush.msra.mxu0 0.0
  %1864 = vmatpush.msra.mxu0 0.0
  %1865 = vmatpush.msra.mxu0 0.0
  %1866 = vmatpush.msra.mxu0 %v1628
  %1867 = vmatpush.msra.mxu0 %v1625
  %1868 = vmatpush.msra.mxu0 %v1622
  %1869 = vmatpush.msra.mxu0 %v1619
  %1870 = vmatmul.f32.gmra.mxu0 %v1752
  %v1871 = vpop.f32.mrf.mxu0
  %v1872 = vadd.f32 %v1852, %v1871
  %1873 = vdwg.mxu0
  %1874 = vmatpush.msra.mxu0 %v1569
  %1875 = vmatpush.msra.mxu0 %v1566
  %1876 = vmatpush.msra.mxu0 %v1563
  %1877 = vmatpush.msra.mxu0 %v1560
  %1878 = vmatpush.msra.mxu0 %v1557
  %1879 = vmatpush.msra.mxu0 %v1554
  %1880 = vmatpush.msra.mxu0 %v1551
  %1881 = vmatpush.msra.mxu0 %v1548
  %1882 = vmatpush.msra.mxu0 %v1545
  %1883 = vmatpush.msra.mxu0 %v1542
  %1884 = vmatpush.msra.mxu0 %v1539
  %1885 = vmatpush.msra.mxu0 %v1536
  %1886 = vmatpush.msra.mxu0 %v1533
  %1887 = vmatpush.msra.mxu0 %v1530
  %1888 = vmatpush.msra.mxu0 %v1527
  %1889 = vmatpush.msra.mxu0 %v1524
  %1890 = vmatmul.f32.gmra.mxu0 %v1742
  %v1891 = vpop.f32.mrf.mxu0
  %v1892 = vadd.f32 0.0, %v1891
  %1893 = vdwg.mxu0
  %1894 = vmatpush.msra.mxu0 %v1617
  %1895 = vmatpush.msra.mxu0 %v1614
  %1896 = vmatpush.msra.mxu0 %v1611
  %1897 = vmatpush.msra.mxu0 %v1608
  %1898 = vmatpush.msra.mxu0 %v1605
  %1899 = vmatpush.msra.mxu0 %v1602
  %1900 = vmatpush.msra.mxu0 %v1599
  %1901 = vmatpush.msra.mxu0 %v1596
  %1902 = vmatpush.msra.mxu0 %v1593
  %1903 = vmatpush.msra.mxu0 %v1590
  %1904 = vmatpush.msra.mxu0 %v1587
  %1905 = vmatpush.msra.mxu0 %v1584
  %1906 = vmatpush.msra.mxu0 %v1581
  %1907 = vmatpush.msra.mxu0 %v1578
  %1908 = vmatpush.msra.mxu0 %v1575
  %1909 = vmatpush.msra.mxu0 %v1572
  %1910 = vmatmul.f32.gmra.mxu0 %v1743
  %v1911 = vpop.f32.mrf.mxu0
  %v1912 = vadd.f32 %v1892, %v1911
  %1913 = vdwg.mxu0
  %1914 = vmatpush.msra.mxu0 0.0
  %1915 = vmatpush.msra.mxu0 0.0
  %1916 = vmatpush.msra.mxu0 0.0
  %1917 = vmatpush.msra.mxu0 0.0
  %1918 = vmatpush.msra.mxu0 0.0
  %1919 = vmatpush.msra.mxu0 0.0
  %1920 = vmatpush.msra.mxu0 0.0
  %1921 = vmatpush.msra.mxu0 0.0
  %1922 = vmatpush.msra.mxu0 0.0
  %1923 = vmatpush.msra.mxu0 0.0
  %1924 = vmatpush.msra.mxu0 0.0
  %1925 = vmatpush.msra.mxu0 0.0
  %1926 = vmatpush.msra.mxu0 %v1629
  %1927 = vmatpush.msra.mxu0 %v1626
  %1928 = vmatpush.msra.mxu0 %v1623
  %1929 = vmatpush.msra.mxu0 %v1620
  %1930 = vmatmul.f32.gmra.mxu0 %v1752
  %v1931 = vpop.f32.mrf.mxu0
  %v1932 = vadd.f32 %v1912, %v1931
  %1933 = vdwg.mxu0
  %v1935 = vsel %vm75, %v1741, 0
  %1937 = vmatpush.msra.mxu0 %v1458
  %1938 = vmatpush.msra.mxu0 %v1455
  %1939 = vmatpush.msra.mxu0 %v1452
  %1940 = vmatpush.msra.mxu0 %v1449
  %1941 = vmatpush.msra.mxu0 %v1446
  %1942 = vmatpush.msra.mxu0 %v1443
  %1943 = vmatpush.msra.mxu0 %v1440
  %1944 = vmatpush.msra.mxu0 %v1437
  %1945 = vmatpush.msra.mxu0 %v1434
  %1946 = vmatpush.msra.mxu0 %v1431
  %1947 = vmatpush.msra.mxu0 %v1428
  %1948 = vmatpush.msra.mxu0 %v1425
  %1949 = vmatpush.msra.mxu0 %v1422
  %1950 = vmatpush.msra.mxu0 %v1419
  %1951 = vmatpush.msra.mxu0 %v1416
  %1952 = vmatpush.msra.mxu0 %v1413
  %1953 = vmatmul.f32.gmra.mxu0 %v1739
  %v1954 = vpop.f32.mrf.mxu0
  %v1955 = vadd.f32 %v1812, %v1954
  %1956 = vdwg.mxu0
  %1957 = vmatpush.msra.mxu0 %v1506
  %1958 = vmatpush.msra.mxu0 %v1503
  %1959 = vmatpush.msra.mxu0 %v1500
  %1960 = vmatpush.msra.mxu0 %v1497
  %1961 = vmatpush.msra.mxu0 %v1494
  %1962 = vmatpush.msra.mxu0 %v1491
  %1963 = vmatpush.msra.mxu0 %v1488
  %1964 = vmatpush.msra.mxu0 %v1485
  %1965 = vmatpush.msra.mxu0 %v1482
  %1966 = vmatpush.msra.mxu0 %v1479
  %1967 = vmatpush.msra.mxu0 %v1476
  %1968 = vmatpush.msra.mxu0 %v1473
  %1969 = vmatpush.msra.mxu0 %v1470
  %1970 = vmatpush.msra.mxu0 %v1467
  %1971 = vmatpush.msra.mxu0 %v1464
  %1972 = vmatpush.msra.mxu0 %v1461
  %1973 = vmatmul.f32.gmra.mxu0 %v1740
  %v1974 = vpop.f32.mrf.mxu0
  %v1975 = vadd.f32 %v1955, %v1974
  %1976 = vdwg.mxu0
  %1977 = vmatpush.msra.mxu0 0.0
  %1978 = vmatpush.msra.mxu0 0.0
  %1979 = vmatpush.msra.mxu0 0.0
  %1980 = vmatpush.msra.mxu0 0.0
  %1981 = vmatpush.msra.mxu0 0.0
  %1982 = vmatpush.msra.mxu0 0.0
  %1983 = vmatpush.msra.mxu0 0.0
  %1984 = vmatpush.msra.mxu0 0.0
  %1985 = vmatpush.msra.mxu0 0.0
  %1986 = vmatpush.msra.mxu0 0.0
  %1987 = vmatpush.msra.mxu0 0.0
  %1988 = vmatpush.msra.mxu0 0.0
  %1989 = vmatpush.msra.mxu0 %v1518
  %1990 = vmatpush.msra.mxu0 %v1515
  %1991 = vmatpush.msra.mxu0 %v1512
  %1992 = vmatpush.msra.mxu0 %v1509
  %1993 = vmatmul.f32.gmra.mxu0 %v1935
  %v1994 = vpop.f32.mrf.mxu0
  %v1995 = vadd.f32 %v1975, %v1994
  %1996 = vdwg.mxu0
  %1997 = vmatpush.msra.mxu0 %v1459
  %1998 = vmatpush.msra.mxu0 %v1456
  %1999 = vmatpush.msra.mxu0 %v1453
  %2000 = vmatpush.msra.mxu0 %v1450
  %2001 = vmatpush.msra.mxu0 %v1447
  %2002 = vmatpush.msra.mxu0 %v1444
  %2003 = vmatpush.msra.mxu0 %v1441
  %2004 = vmatpush.msra.mxu0 %v1438
  %2005 = vmatpush.msra.mxu0 %v1435
  %2006 = vmatpush.msra.mxu0 %v1432
  %2007 = vmatpush.msra.mxu0 %v1429
  %2008 = vmatpush.msra.mxu0 %v1426
  %2009 = vmatpush.msra.mxu0 %v1423
  %2010 = vmatpush.msra.mxu0 %v1420
  %2011 = vmatpush.msra.mxu0 %v1417
  %2012 = vmatpush.msra.mxu0 %v1414
  %2013 = vmatmul.f32.gmra.mxu0 %v1739
  %v2014 = vpop.f32.mrf.mxu0
  %v2015 = vadd.f32 %v1872, %v2014
  %2016 = vdwg.mxu0
  %2017 = vmatpush.msra.mxu0 %v1507
  %2018 = vmatpush.msra.mxu0 %v1504
  %2019 = vmatpush.msra.mxu0 %v1501
  %2020 = vmatpush.msra.mxu0 %v1498
  %2021 = vmatpush.msra.mxu0 %v1495
  %2022 = vmatpush.msra.mxu0 %v1492
  %2023 = vmatpush.msra.mxu0 %v1489
  %2024 = vmatpush.msra.mxu0 %v1486
  %2025 = vmatpush.msra.mxu0 %v1483
  %2026 = vmatpush.msra.mxu0 %v1480
  %2027 = vmatpush.msra.mxu0 %v1477
  %2028 = vmatpush.msra.mxu0 %v1474
  %2029 = vmatpush.msra.mxu0 %v1471
  %2030 = vmatpush.msra.mxu0 %v1468
  %2031 = vmatpush.msra.mxu0 %v1465
  %2032 = vmatpush.msra.mxu0 %v1462
  %2033 = vmatmul.f32.gmra.mxu0 %v1740
  %v2034 = vpop.f32.mrf.mxu0
  %v2035 = vadd.f32 %v2015, %v2034
  %2036 = vdwg.mxu0
  %2037 = vmatpush.msra.mxu0 0.0
  %2038 = vmatpush.msra.mxu0 0.0
  %2039 = vmatpush.msra.mxu0 0.0
  %2040 = vmatpush.msra.mxu0 0.0
  %2041 = vmatpush.msra.mxu0 0.0
  %2042 = vmatpush.msra.mxu0 0.0
  %2043 = vmatpush.msra.mxu0 0.0
  %2044 = vmatpush.msra.mxu0 0.0
  %2045 = vmatpush.msra.mxu0 0.0
  %2046 = vmatpush.msra.mxu0 0.0
  %2047 = vmatpush.msra.mxu0 0.0
  %2048 = vmatpush.msra.mxu0 0.0
  %2049 = vmatpush.msra.mxu0 %v1519
  %2050 = vmatpush.msra.mxu0 %v1516
  %2051 = vmatpush.msra.mxu0 %v1513
  %2052 = vmatpush.msra.mxu0 %v1510
  %2053 = vmatmul.f32.gmra.mxu0 %v1935
  %v2054 = vpop.f32.mrf.mxu0
  %v2055 = vadd.f32 %v2035, %v2054
  %2056 = vdwg.mxu0
  %2057 = vmatpush.msra.mxu0 %v1460
  %2058 = vmatpush.msra.mxu0 %v1457
  %2059 = vmatpush.msra.mxu0 %v1454
  %2060 = vmatpush.msra.mxu0 %v1451
  %2061 = vmatpush.msra.mxu0 %v1448
  %2062 = vmatpush.msra.mxu0 %v1445
  %2063 = vmatpush.msra.mxu0 %v1442
  %2064 = vmatpush.msra.mxu0 %v1439
  %2065 = vmatpush.msra.mxu0 %v1436
  %2066 = vmatpush.msra.mxu0 %v1433
  %2067 = vmatpush.msra.mxu0 %v1430
  %2068 = vmatpush.msra.mxu0 %v1427
  %2069 = vmatpush.msra.mxu0 %v1424
  %2070 = vmatpush.msra.mxu0 %v1421
  %2071 = vmatpush.msra.mxu0 %v1418
  %2072 = vmatpush.msra.mxu0 %v1415
  %2073 = vmatmul.f32.gmra.mxu0 %v1739
  %v2074 = vpop.f32.mrf.mxu0
  %v2075 = vadd.f32 %v1932, %v2074
  %2076 = vdwg.mxu0
  %2077 = vmatpush.msra.mxu0 %v1508
  %2078 = vmatpush.msra.mxu0 %v1505
  %2079 = vmatpush.msra.mxu0 %v1502
  %2080 = vmatpush.msra.mxu0 %v1499
  %2081 = vmatpush.msra.mxu0 %v1496
  %2082 = vmatpush.msra.mxu0 %v1493
  %2083 = vmatpush.msra.mxu0 %v1490
  %2084 = vmatpush.msra.mxu0 %v1487
  %2085 = vmatpush.msra.mxu0 %v1484
  %2086 = vmatpush.msra.mxu0 %v1481
  %2087 = vmatpush.msra.mxu0 %v1478
  %2088 = vmatpush.msra.mxu0 %v1475
  %2089 = vmatpush.msra.mxu0 %v1472
  %2090 = vmatpush.msra.mxu0 %v1469
  %2091 = vmatpush.msra.mxu0 %v1466
  %2092 = vmatpush.msra.mxu0 %v1463
  %2093 = vmatmul.f32.gmra.mxu0 %v1740
  %v2094 = vpop.f32.mrf.mxu0
  %v2095 = vadd.f32 %v2075, %v2094
  %2096 = vdwg.mxu0
  %2097 = vmatpush.msra.mxu0 0.0
  %2098 = vmatpush.msra.mxu0 0.0
  %2099 = vmatpush.msra.mxu0 0.0
  %2100 = vmatpush.msra.mxu0 0.0
  %2101 = vmatpush.msra.mxu0 0.0
  %2102 = vmatpush.msra.mxu0 0.0
  %2103 = vmatpush.msra.mxu0 0.0
  %2104 = vmatpush.msra.mxu0 0.0
  %2105 = vmatpush.msra.mxu0 0.0
  %2106 = vmatpush.msra.mxu0 0.0
  %2107 = vmatpush.msra.mxu0 0.0
  %2108 = vmatpush.msra.mxu0 0.0
  %2109 = vmatpush.msra.mxu0 %v1520
  %2110 = vmatpush.msra.mxu0 %v1517
  %2111 = vmatpush.msra.mxu0 %v1514
  %2112 = vmatpush.msra.mxu0 %v1511
  %2113 = vmatmul.f32.gmra.mxu0 %v1935
  %v2114 = vpop.f32.mrf.mxu0
  %v2115 = vadd.f32 %v2095, %v2114
  %2116 = vdwg.mxu0
  %vm2123 = vcmask 1046528
  %v2124 = vrot.slane %v1745, 1
  %v2125 = vrot.slane %v1748, 1
  %v2126 = vsel %vm2123, %v2124, %v2125
  %v2127 = vrot.slane %v1746, 1
  %v2128 = vrot.slane %v1749, 1
  %v2129 = vsel %vm2123, %v2127, %v2128
  %v2130 = vrot.slane %v1747, 1
  %v2131 = vrot.slane %v1750, 1
  %v2132 = vsel %vm2123, %v2130, %v2131
  %v2135 = vsel %vm75, %v2132, 0
  %2137 = vmatpush.msra.mxu0 %v1676
  %2138 = vmatpush.msra.mxu0 %v1673
  %2139 = vmatpush.msra.mxu0 %v1670
  %2140 = vmatpush.msra.mxu0 %v1667
  %2141 = vmatpush.msra.mxu0 %v1664
  %2142 = vmatpush.msra.mxu0 %v1661
  %2143 = vmatpush.msra.mxu0 %v1658
  %2144 = vmatpush.msra.mxu0 %v1655
  %2145 = vmatpush.msra.mxu0 %v1652
  %2146 = vmatpush.msra.mxu0 %v1649
  %2147 = vmatpush.msra.mxu0 %v1646
  %2148 = vmatpush.msra.mxu0 %v1643
  %2149 = vmatpush.msra.mxu0 %v1640
  %2150 = vmatpush.msra.mxu0 %v1637
  %2151 = vmatpush.msra.mxu0 %v1634
  %2152 = vmatpush.msra.mxu0 %v1631
  %2153 = vmatmul.f32.gmra.mxu0 %v2126
  %v2154 = vpop.f32.mrf.mxu0
  %v2155 = vadd.f32 0.0, %v2154
  %2156 = vdwg.mxu0
  %2157 = vmatpush.msra.mxu0 %v1724
  %2158 = vmatpush.msra.mxu0 %v1721
  %2159 = vmatpush.msra.mxu0 %v1718
  %2160 = vmatpush.msra.mxu0 %v1715
  %2161 = vmatpush.msra.mxu0 %v1712
  %2162 = vmatpush.msra.mxu0 %v1709
  %2163 = vmatpush.msra.mxu0 %v1706
  %2164 = vmatpush.msra.mxu0 %v1703
  %2165 = vmatpush.msra.mxu0 %v1700
  %2166 = vmatpush.msra.mxu0 %v1697
  %2167 = vmatpush.msra.mxu0 %v1694
  %2168 = vmatpush.msra.mxu0 %v1691
  %2169 = vmatpush.msra.mxu0 %v1688
  %2170 = vmatpush.msra.mxu0 %v1685
  %2171 = vmatpush.msra.mxu0 %v1682
  %2172 = vmatpush.msra.mxu0 %v1679
  %2173 = vmatmul.f32.gmra.mxu0 %v2129
  %v2174 = vpop.f32.mrf.mxu0
  %v2175 = vadd.f32 %v2155, %v2174
  %2176 = vdwg.mxu0
  %2177 = vmatpush.msra.mxu0 0.0
  %2178 = vmatpush.msra.mxu0 0.0
  %2179 = vmatpush.msra.mxu0 0.0
  %2180 = vmatpush.msra.mxu0 0.0
  %2181 = vmatpush.msra.mxu0 0.0
  %2182 = vmatpush.msra.mxu0 0.0
  %2183 = vmatpush.msra.mxu0 0.0
  %2184 = vmatpush.msra.mxu0 0.0
  %2185 = vmatpush.msra.mxu0 0.0
  %2186 = vmatpush.msra.mxu0 0.0
  %2187 = vmatpush.msra.mxu0 0.0
  %2188 = vmatpush.msra.mxu0 0.0
  %2189 = vmatpush.msra.mxu0 %v1736
  %2190 = vmatpush.msra.mxu0 %v1733
  %2191 = vmatpush.msra.mxu0 %v1730
  %2192 = vmatpush.msra.mxu0 %v1727
  %2193 = vmatmul.f32.gmra.mxu0 %v2135
  %v2194 = vpop.f32.mrf.mxu0
  %v2195 = vadd.f32 %v2175, %v2194
  %2196 = vdwg.mxu0
  %2197 = vmatpush.msra.mxu0 %v1677
  %2198 = vmatpush.msra.mxu0 %v1674
  %2199 = vmatpush.msra.mxu0 %v1671
  %2200 = vmatpush.msra.mxu0 %v1668
  %2201 = vmatpush.msra.mxu0 %v1665
  %2202 = vmatpush.msra.mxu0 %v1662
  %2203 = vmatpush.msra.mxu0 %v1659
  %2204 = vmatpush.msra.mxu0 %v1656
  %2205 = vmatpush.msra.mxu0 %v1653
  %2206 = vmatpush.msra.mxu0 %v1650
  %2207 = vmatpush.msra.mxu0 %v1647
  %2208 = vmatpush.msra.mxu0 %v1644
  %2209 = vmatpush.msra.mxu0 %v1641
  %2210 = vmatpush.msra.mxu0 %v1638
  %2211 = vmatpush.msra.mxu0 %v1635
  %2212 = vmatpush.msra.mxu0 %v1632
  %2213 = vmatmul.f32.gmra.mxu0 %v2126
  %v2214 = vpop.f32.mrf.mxu0
  %v2215 = vadd.f32 0.0, %v2214
  %2216 = vdwg.mxu0
  %2217 = vmatpush.msra.mxu0 %v1725
  %2218 = vmatpush.msra.mxu0 %v1722
  %2219 = vmatpush.msra.mxu0 %v1719
  %2220 = vmatpush.msra.mxu0 %v1716
  %2221 = vmatpush.msra.mxu0 %v1713
  %2222 = vmatpush.msra.mxu0 %v1710
  %2223 = vmatpush.msra.mxu0 %v1707
  %2224 = vmatpush.msra.mxu0 %v1704
  %2225 = vmatpush.msra.mxu0 %v1701
  %2226 = vmatpush.msra.mxu0 %v1698
  %2227 = vmatpush.msra.mxu0 %v1695
  %2228 = vmatpush.msra.mxu0 %v1692
  %2229 = vmatpush.msra.mxu0 %v1689
  %2230 = vmatpush.msra.mxu0 %v1686
  %2231 = vmatpush.msra.mxu0 %v1683
  %2232 = vmatpush.msra.mxu0 %v1680
  %2233 = vmatmul.f32.gmra.mxu0 %v2129
  %v2234 = vpop.f32.mrf.mxu0
  %v2235 = vadd.f32 %v2215, %v2234
  %2236 = vdwg.mxu0
  %2237 = vmatpush.msra.mxu0 0.0
  %2238 = vmatpush.msra.mxu0 0.0
  %2239 = vmatpush.msra.mxu0 0.0
  %2240 = vmatpush.msra.mxu0 0.0
  %2241 = vmatpush.msra.mxu0 0.0
  %2242 = vmatpush.msra.mxu0 0.0
  %2243 = vmatpush.msra.mxu0 0.0
  %2244 = vmatpush.msra.mxu0 0.0
  %2245 = vmatpush.msra.mxu0 0.0
  %2246 = vmatpush.msra.mxu0 0.0
  %2247 = vmatpush.msra.mxu0 0.0
  %2248 = vmatpush.msra.mxu0 0.0
  %2249 = vmatpush.msra.mxu0 %v1737
  %2250 = vmatpush.msra.mxu0 %v1734
  %2251 = vmatpush.msra.mxu0 %v1731
  %2252 = vmatpush.msra.mxu0 %v1728
  %2253 = vmatmul.f32.gmra.mxu0 %v2135
  %v2254 = vpop.f32.mrf.mxu0
  %v2255 = vadd.f32 %v2235, %v2254
  %2256 = vdwg.mxu0
  %2257 = vmatpush.msra.mxu0 %v1678
  %2258 = vmatpush.msra.mxu0 %v1675
  %2259 = vmatpush.msra.mxu0 %v1672
  %2260 = vmatpush.msra.mxu0 %v1669
  %2261 = vmatpush.msra.mxu0 %v1666
  %2262 = vmatpush.msra.mxu0 %v1663
  %2263 = vmatpush.msra.mxu0 %v1660
  %2264 = vmatpush.msra.mxu0 %v1657
  %2265 = vmatpush.msra.mxu0 %v1654
  %2266 = vmatpush.msra.mxu0 %v1651
  %2267 = vmatpush.msra.mxu0 %v1648
  %2268 = vmatpush.msra.mxu0 %v1645
  %2269 = vmatpush.msra.mxu0 %v1642
  %2270 = vmatpush.msra.mxu0 %v1639
  %2271 = vmatpush.msra.mxu0 %v1636
  %2272 = vmatpush.msra.mxu0 %v1633
  %2273 = vmatmul.f32.gmra.mxu0 %v2126
  %v2274 = vpop.f32.mrf.mxu0
  %v2275 = vadd.f32 0.0, %v2274
  %2276 = vdwg.mxu0
  %2277 = vmatpush.msra.mxu0 %v1726
  %2278 = vmatpush.msra.mxu0 %v1723
  %2279 = vmatpush.msra.mxu0 %v1720
  %2280 = vmatpush.msra.mxu0 %v1717
  %2281 = vmatpush.msra.mxu0 %v1714
  %2282 = vmatpush.msra.mxu0 %v1711
  %2283 = vmatpush.msra.mxu0 %v1708
  %2284 = vmatpush.msra.mxu0 %v1705
  %2285 = vmatpush.msra.mxu0 %v1702
  %2286 = vmatpush.msra.mxu0 %v1699
  %2287 = vmatpush.msra.mxu0 %v1696
  %2288 = vmatpush.msra.mxu0 %v1693
  %2289 = vmatpush.msra.mxu0 %v1690
  %2290 = vmatpush.msra.mxu0 %v1687
  %2291 = vmatpush.msra.mxu0 %v1684
  %2292 = vmatpush.msra.mxu0 %v1681
  %2293 = vmatmul.f32.gmra.mxu0 %v2129
  %v2294 = vpop.f32.mrf.mxu0
  %v2295 = vadd.f32 %v2275, %v2294
  %2296 = vdwg.mxu0
  %2297 = vmatpush.msra.mxu0 0.0
  %2298 = vmatpush.msra.mxu0 0.0
  %2299 = vmatpush.msra.mxu0 0.0
  %2300 = vmatpush.msra.mxu0 0.0
  %2301 = vmatpush.msra.mxu0 0.0
  %2302 = vmatpush.msra.mxu0 0.0
  %2303 = vmatpush.msra.mxu0 0.0
  %2304 = vmatpush.msra.mxu0 0.0
  %2305 = vmatpush.msra.mxu0 0.0
  %2306 = vmatpush.msra.mxu0 0.0
  %2307 = vmatpush.msra.mxu0 0.0
  %2308 = vmatpush.msra.mxu0 0.0
  %2309 = vmatpush.msra.mxu0 %v1738
  %2310 = vmatpush.msra.mxu0 %v1735
  %2311 = vmatpush.msra.mxu0 %v1732
  %2312 = vmatpush.msra.mxu0 %v1729
  %2313 = vmatmul.f32.gmra.mxu0 %v2135
  %v2314 = vpop.f32.mrf.mxu0
  %v2315 = vadd.f32 %v2295, %v2314
  %2316 = vdwg.mxu0
  %v2317 = vadd.f32 %v1995, %v2195
  %v2318 = vadd.f32 %v2055, %v2255
  %v2319 = vadd.f32 %v2115, %v2315
  %v2320 = vld [vmem:[%s1406] sm:$0xff]
  %v2321 = vld [vmem:[%s1406 + $0x8] sm:$0xff]
  %v2322 = vld [vmem:[%s1406 + $0x10] sm:$0xff]
  %v2323 = vld [vmem:[%s1333] sm:$0xff]
  %v2324 = vld [vmem:[%s1333 + $0x8] sm:$0xff]
  %v2325 = vld [vmem:[%s1333 + $0x10] sm:$0xff]
  %v2326 = vld [vmem:[%s1406] sm:$0xfe]
  %v2327 = vld [vmem:[%s1406 + $0x8] sm:$0xfe]
  %v2328 = vld [vmem:[%s1406 + $0x10] sm:$0xfe]
  %v2329 = vld [vmem:[%s1406 + $0x18] sm:$0x1]
  %v2330 = vld [vmem:[%s1406 + $0x20] sm:$0x1]
  %v2331 = vld [vmem:[%s1406 + $0x28] sm:$0x1]
  %v2333 = vsel %vm75, %v2325, 0
  %2335 = vmatpush.msra.mxu0 %v1567
  %2336 = vmatpush.msra.mxu0 %v1564
  %2337 = vmatpush.msra.mxu0 %v1561
  %2338 = vmatpush.msra.mxu0 %v1558
  %2339 = vmatpush.msra.mxu0 %v1555
  %2340 = vmatpush.msra.mxu0 %v1552
  %2341 = vmatpush.msra.mxu0 %v1549
  %2342 = vmatpush.msra.mxu0 %v1546
  %2343 = vmatpush.msra.mxu0 %v1543
  %2344 = vmatpush.msra.mxu0 %v1540
  %2345 = vmatpush.msra.mxu0 %v1537
  %2346 = vmatpush.msra.mxu0 %v1534
  %2347 = vmatpush.msra.mxu0 %v1531
  %2348 = vmatpush.msra.mxu0 %v1528
  %2349 = vmatpush.msra.mxu0 %v1525
  %2350 = vmatpush.msra.mxu0 %v1522
  %2351 = vmatmul.f32.gmra.mxu0 %v2323
  %v2352 = vpop.f32.mrf.mxu0
  %v2353 = vadd.f32 0.0, %v2352
  %2354 = vdwg.mxu0
  %2355 = vmatpush.msra.mxu0 %v1615
  %2356 = vmatpush.msra.mxu0 %v1612
  %2357 = vmatpush.msra.mxu0 %v1609
  %2358 = vmatpush.msra.mxu0 %v1606
  %2359 = vmatpush.msra.mxu0 %v1603
  %2360 = vmatpush.msra.mxu0 %v1600
  %2361 = vmatpush.msra.mxu0 %v1597
  %2362 = vmatpush.msra.mxu0 %v1594
  %2363 = vmatpush.msra.mxu0 %v1591
  %2364 = vmatpush.msra.mxu0 %v1588
  %2365 = vmatpush.msra.mxu0 %v1585
  %2366 = vmatpush.msra.mxu0 %v1582
  %2367 = vmatpush.msra.mxu0 %v1579
  %2368 = vmatpush.msra.mxu0 %v1576
  %2369 = vmatpush.msra.mxu0 %v1573
  %2370 = vmatpush.msra.mxu0 %v1570
  %2371 = vmatmul.f32.gmra.mxu0 %v2324
  %v2372 = vpop.f32.mrf.mxu0
  %v2373 = vadd.f32 %v2353, %v2372
  %2374 = vdwg.mxu0
  %2375 = vmatpush.msra.mxu0 0.0
  %2376 = vmatpush.msra.mxu0 0.0
  %2377 = vmatpush.msra.mxu0 0.0
  %2378 = vmatpush.msra.mxu0 0.0
  %2379 = vmatpush.msra.mxu0 0.0
  %2380 = vmatpush.msra.mxu0 0.0
  %2381 = vmatpush.msra.mxu0 0.0
  %2382 = vmatpush.msra.mxu0 0.0
  %2383 = vmatpush.msra.mxu0 0.0
  %2384 = vmatpush.msra.mxu0 0.0
  %2385 = vmatpush.msra.mxu0 0.0
  %2386 = vmatpush.msra.mxu0 0.0
  %2387 = vmatpush.msra.mxu0 %v1627
  %2388 = vmatpush.msra.mxu0 %v1624
  %2389 = vmatpush.msra.mxu0 %v1621
  %2390 = vmatpush.msra.mxu0 %v1618
  %2391 = vmatmul.f32.gmra.mxu0 %v2333
  %v2392 = vpop.f32.mrf.mxu0
  %v2393 = vadd.f32 %v2373, %v2392
  %2394 = vdwg.mxu0
  %2395 = vmatpush.msra.mxu0 %v1568
  %2396 = vmatpush.msra.mxu0 %v1565
  %2397 = vmatpush.msra.mxu0 %v1562
  %2398 = vmatpush.msra.mxu0 %v1559
  %2399 = vmatpush.msra.mxu0 %v1556
  %2400 = vmatpush.msra.mxu0 %v1553
  %2401 = vmatpush.msra.mxu0 %v1550
  %2402 = vmatpush.msra.mxu0 %v1547
  %2403 = vmatpush.msra.mxu0 %v1544
  %2404 = vmatpush.msra.mxu0 %v1541
  %2405 = vmatpush.msra.mxu0 %v1538
  %2406 = vmatpush.msra.mxu0 %v1535
  %2407 = vmatpush.msra.mxu0 %v1532
  %2408 = vmatpush.msra.mxu0 %v1529
  %2409 = vmatpush.msra.mxu0 %v1526
  %2410 = vmatpush.msra.mxu0 %v1523
  %2411 = vmatmul.f32.gmra.mxu0 %v2323
  %v2412 = vpop.f32.mrf.mxu0
  %v2413 = vadd.f32 0.0, %v2412
  %2414 = vdwg.mxu0
  %2415 = vmatpush.msra.mxu0 %v1616
  %2416 = vmatpush.msra.mxu0 %v1613
  %2417 = vmatpush.msra.mxu0 %v1610
  %2418 = vmatpush.msra.mxu0 %v1607
  %2419 = vmatpush.msra.mxu0 %v1604
  %2420 = vmatpush.msra.mxu0 %v1601
  %2421 = vmatpush.msra.mxu0 %v1598
  %2422 = vmatpush.msra.mxu0 %v1595
  %2423 = vmatpush.msra.mxu0 %v1592
  %2424 = vmatpush.msra.mxu0 %v1589
  %2425 = vmatpush.msra.mxu0 %v1586
  %2426 = vmatpush.msra.mxu0 %v1583
  %2427 = vmatpush.msra.mxu0 %v1580
  %2428 = vmatpush.msra.mxu0 %v1577
  %2429 = vmatpush.msra.mxu0 %v1574
  %2430 = vmatpush.msra.mxu0 %v1571
  %2431 = vmatmul.f32.gmra.mxu0 %v2324
  %v2432 = vpop.f32.mrf.mxu0
  %v2433 = vadd.f32 %v2413, %v2432
  %2434 = vdwg.mxu0
  %2435 = vmatpush.msra.mxu0 0.0
  %2436 = vmatpush.msra.mxu0 0.0
  %2437 = vmatpush.msra.mxu0 0.0
  %2438 = vmatpush.msra.mxu0 0.0
  %2439 = vmatpush.msra.mxu0 0.0
  %2440 = vmatpush.msra.mxu0 0.0
  %2441 = vmatpush.msra.mxu0 0.0
  %2442 = vmatpush.msra.mxu0 0.0
  %2443 = vmatpush.msra.mxu0 0.0
  %2444 = vmatpush.msra.mxu0 0.0
  %2445 = vmatpush.msra.mxu0 0.0
  %2446 = vmatpush.msra.mxu0 0.0
  %2447 = vmatpush.msra.mxu0 %v1628
  %2448 = vmatpush.msra.mxu0 %v1625
  %2449 = vmatpush.msra.mxu0 %v1622
  %2450 = vmatpush.msra.mxu0 %v1619
  %2451 = vmatmul.f32.gmra.mxu0 %v2333
  %v2452 = vpop.f32.mrf.mxu0
  %v2453 = vadd.f32 %v2433, %v2452
  %2454 = vdwg.mxu0
  %2455 = vmatpush.msra.mxu0 %v1569
  %2456 = vmatpush.msra.mxu0 %v1566
  %2457 = vmatpush.msra.mxu0 %v1563
  %2458 = vmatpush.msra.mxu0 %v1560
  %2459 = vmatpush.msra.mxu0 %v1557
  %2460 = vmatpush.msra.mxu0 %v1554
  %2461 = vmatpush.msra.mxu0 %v1551
  %2462 = vmatpush.msra.mxu0 %v1548
  %2463 = vmatpush.msra.mxu0 %v1545
  %2464 = vmatpush.msra.mxu0 %v1542
  %2465 = vmatpush.msra.mxu0 %v1539
  %2466 = vmatpush.msra.mxu0 %v1536
  %2467 = vmatpush.msra.mxu0 %v1533
  %2468 = vmatpush.msra.mxu0 %v1530
  %2469 = vmatpush.msra.mxu0 %v1527
  %2470 = vmatpush.msra.mxu0 %v1524
  %2471 = vmatmul.f32.gmra.mxu0 %v2323
  %v2472 = vpop.f32.mrf.mxu0
  %v2473 = vadd.f32 0.0, %v2472
  %2474 = vdwg.mxu0
  %2475 = vmatpush.msra.mxu0 %v1617
  %2476 = vmatpush.msra.mxu0 %v1614
  %2477 = vmatpush.msra.mxu0 %v1611
  %2478 = vmatpush.msra.mxu0 %v1608
  %2479 = vmatpush.msra.mxu0 %v1605
  %2480 = vmatpush.msra.mxu0 %v1602
  %2481 = vmatpush.msra.mxu0 %v1599
  %2482 = vmatpush.msra.mxu0 %v1596
  %2483 = vmatpush.msra.mxu0 %v1593
  %2484 = vmatpush.msra.mxu0 %v1590
  %2485 = vmatpush.msra.mxu0 %v1587
  %2486 = vmatpush.msra.mxu0 %v1584
  %2487 = vmatpush.msra.mxu0 %v1581
  %2488 = vmatpush.msra.mxu0 %v1578
  %2489 = vmatpush.msra.mxu0 %v1575
  %2490 = vmatpush.msra.mxu0 %v1572
  %2491 = vmatmul.f32.gmra.mxu0 %v2324
  %v2492 = vpop.f32.mrf.mxu0
  %v2493 = vadd.f32 %v2473, %v2492
  %2494 = vdwg.mxu0
  %2495 = vmatpush.msra.mxu0 0.0
  %2496 = vmatpush.msra.mxu0 0.0
  %2497 = vmatpush.msra.mxu0 0.0
  %2498 = vmatpush.msra.mxu0 0.0
  %2499 = vmatpush.msra.mxu0 0.0
  %2500 = vmatpush.msra.mxu0 0.0
  %2501 = vmatpush.msra.mxu0 0.0
  %2502 = vmatpush.msra.mxu0 0.0
  %2503 = vmatpush.msra.mxu0 0.0
  %2504 = vmatpush.msra.mxu0 0.0
  %2505 = vmatpush.msra.mxu0 0.0
  %2506 = vmatpush.msra.mxu0 0.0
  %2507 = vmatpush.msra.mxu0 %v1629
  %2508 = vmatpush.msra.mxu0 %v1626
  %2509 = vmatpush.msra.mxu0 %v1623
  %2510 = vmatpush.msra.mxu0 %v1620
  %2511 = vmatmul.f32.gmra.mxu0 %v2333
  %v2512 = vpop.f32.mrf.mxu0
  %v2513 = vadd.f32 %v2493, %v2512
  %2514 = vdwg.mxu0
  %v2516 = vsel %vm75, %v2322, 0
  %2518 = vmatpush.msra.mxu0 %v1458
  %2519 = vmatpush.msra.mxu0 %v1455
  %2520 = vmatpush.msra.mxu0 %v1452
  %2521 = vmatpush.msra.mxu0 %v1449
  %2522 = vmatpush.msra.mxu0 %v1446
  %2523 = vmatpush.msra.mxu0 %v1443
  %2524 = vmatpush.msra.mxu0 %v1440
  %2525 = vmatpush.msra.mxu0 %v1437
  %2526 = vmatpush.msra.mxu0 %v1434
  %2527 = vmatpush.msra.mxu0 %v1431
  %2528 = vmatpush.msra.mxu0 %v1428
  %2529 = vmatpush.msra.mxu0 %v1425
  %2530 = vmatpush.msra.mxu0 %v1422
  %2531 = vmatpush.msra.mxu0 %v1419
  %2532 = vmatpush.msra.mxu0 %v1416
  %2533 = vmatpush.msra.mxu0 %v1413
  %2534 = vmatmul.f32.gmra.mxu0 %v2320
  %v2535 = vpop.f32.mrf.mxu0
  %v2536 = vadd.f32 %v2393, %v2535
  %2537 = vdwg.mxu0
  %2538 = vmatpush.msra.mxu0 %v1506
  %2539 = vmatpush.msra.mxu0 %v1503
  %2540 = vmatpush.msra.mxu0 %v1500
  %2541 = vmatpush.msra.mxu0 %v1497
  %2542 = vmatpush.msra.mxu0 %v1494
  %2543 = vmatpush.msra.mxu0 %v1491
  %2544 = vmatpush.msra.mxu0 %v1488
  %2545 = vmatpush.msra.mxu0 %v1485
  %2546 = vmatpush.msra.mxu0 %v1482
  %2547 = vmatpush.msra.mxu0 %v1479
  %2548 = vmatpush.msra.mxu0 %v1476
  %2549 = vmatpush.msra.mxu0 %v1473
  %2550 = vmatpush.msra.mxu0 %v1470
  %2551 = vmatpush.msra.mxu0 %v1467
  %2552 = vmatpush.msra.mxu0 %v1464
  %2553 = vmatpush.msra.mxu0 %v1461
  %2554 = vmatmul.f32.gmra.mxu0 %v2321
  %v2555 = vpop.f32.mrf.mxu0
  %v2556 = vadd.f32 %v2536, %v2555
  %2557 = vdwg.mxu0
  %2558 = vmatpush.msra.mxu0 0.0
  %2559 = vmatpush.msra.mxu0 0.0
  %2560 = vmatpush.msra.mxu0 0.0
  %2561 = vmatpush.msra.mxu0 0.0
  %2562 = vmatpush.msra.mxu0 0.0
  %2563 = vmatpush.msra.mxu0 0.0
  %2564 = vmatpush.msra.mxu0 0.0
  %2565 = vmatpush.msra.mxu0 0.0
  %2566 = vmatpush.msra.mxu0 0.0
  %2567 = vmatpush.msra.mxu0 0.0
  %2568 = vmatpush.msra.mxu0 0.0
  %2569 = vmatpush.msra.mxu0 0.0
  %2570 = vmatpush.msra.mxu0 %v1518
  %2571 = vmatpush.msra.mxu0 %v1515
  %2572 = vmatpush.msra.mxu0 %v1512
  %2573 = vmatpush.msra.mxu0 %v1509
  %2574 = vmatmul.f32.gmra.mxu0 %v2516
  %v2575 = vpop.f32.mrf.mxu0
  %v2576 = vadd.f32 %v2556, %v2575
  %2577 = vdwg.mxu0
  %2578 = vmatpush.msra.mxu0 %v1459
  %2579 = vmatpush.msra.mxu0 %v1456
  %2580 = vmatpush.msra.mxu0 %v1453
  %2581 = vmatpush.msra.mxu0 %v1450
  %2582 = vmatpush.msra.mxu0 %v1447
  %2583 = vmatpush.msra.mxu0 %v1444
  %2584 = vmatpush.msra.mxu0 %v1441
  %2585 = vmatpush.msra.mxu0 %v1438
  %2586 = vmatpush.msra.mxu0 %v1435
  %2587 = vmatpush.msra.mxu0 %v1432
  %2588 = vmatpush.msra.mxu0 %v1429
  %2589 = vmatpush.msra.mxu0 %v1426
  %2590 = vmatpush.msra.mxu0 %v1423
  %2591 = vmatpush.msra.mxu0 %v1420
  %2592 = vmatpush.msra.mxu0 %v1417
  %2593 = vmatpush.msra.mxu0 %v1414
  %2594 = vmatmul.f32.gmra.mxu0 %v2320
  %v2595 = vpop.f32.mrf.mxu0
  %v2596 = vadd.f32 %v2453, %v2595
  %2597 = vdwg.mxu0
  %2598 = vmatpush.msra.mxu0 %v1507
  %2599 = vmatpush.msra.mxu0 %v1504
  %2600 = vmatpush.msra.mxu0 %v1501
  %2601 = vmatpush.msra.mxu0 %v1498
  %2602 = vmatpush.msra.mxu0 %v1495
  %2603 = vmatpush.msra.mxu0 %v1492
  %2604 = vmatpush.msra.mxu0 %v1489
  %2605 = vmatpush.msra.mxu0 %v1486
  %2606 = vmatpush.msra.mxu0 %v1483
  %2607 = vmatpush.msra.mxu0 %v1480
  %2608 = vmatpush.msra.mxu0 %v1477
  %2609 = vmatpush.msra.mxu0 %v1474
  %2610 = vmatpush.msra.mxu0 %v1471
  %2611 = vmatpush.msra.mxu0 %v1468
  %2612 = vmatpush.msra.mxu0 %v1465
  %2613 = vmatpush.msra.mxu0 %v1462
  %2614 = vmatmul.f32.gmra.mxu0 %v2321
  %v2615 = vpop.f32.mrf.mxu0
  %v2616 = vadd.f32 %v2596, %v2615
  %2617 = vdwg.mxu0
  %2618 = vmatpush.msra.mxu0 0.0
  %2619 = vmatpush.msra.mxu0 0.0
  %2620 = vmatpush.msra.mxu0 0.0
  %2621 = vmatpush.msra.mxu0 0.0
  %2622 = vmatpush.msra.mxu0 0.0
  %2623 = vmatpush.msra.mxu0 0.0
  %2624 = vmatpush.msra.mxu0 0.0
  %2625 = vmatpush.msra.mxu0 0.0
  %2626 = vmatpush.msra.mxu0 0.0
  %2627 = vmatpush.msra.mxu0 0.0
  %2628 = vmatpush.msra.mxu0 0.0
  %2629 = vmatpush.msra.mxu0 0.0
  %2630 = vmatpush.msra.mxu0 %v1519
  %2631 = vmatpush.msra.mxu0 %v1516
  %2632 = vmatpush.msra.mxu0 %v1513
  %2633 = vmatpush.msra.mxu0 %v1510
  %2634 = vmatmul.f32.gmra.mxu0 %v2516
  %v2635 = vpop.f32.mrf.mxu0
  %v2636 = vadd.f32 %v2616, %v2635
  %2637 = vdwg.mxu0
  %2638 = vmatpush.msra.mxu0 %v1460
  %2639 = vmatpush.msra.mxu0 %v1457
  %2640 = vmatpush.msra.mxu0 %v1454
  %2641 = vmatpush.msra.mxu0 %v1451
  %2642 = vmatpush.msra.mxu0 %v1448
  %2643 = vmatpush.msra.mxu0 %v1445
  %2644 = vmatpush.msra.mxu0 %v1442
  %2645 = vmatpush.msra.mxu0 %v1439
  %2646 = vmatpush.msra.mxu0 %v1436
  %2647 = vmatpush.msra.mxu0 %v1433
  %2648 = vmatpush.msra.mxu0 %v1430
  %2649 = vmatpush.msra.mxu0 %v1427
  %2650 = vmatpush.msra.mxu0 %v1424
  %2651 = vmatpush.msra.mxu0 %v1421
  %2652 = vmatpush.msra.mxu0 %v1418
  %2653 = vmatpush.msra.mxu0 %v1415
  %2654 = vmatmul.f32.gmra.mxu0 %v2320
  %v2655 = vpop.f32.mrf.mxu0
  %v2656 = vadd.f32 %v2513, %v2655
  %2657 = vdwg.mxu0
  %2658 = vmatpush.msra.mxu0 %v1508
  %2659 = vmatpush.msra.mxu0 %v1505
  %2660 = vmatpush.msra.mxu0 %v1502
  %2661 = vmatpush.msra.mxu0 %v1499
  %2662 = vmatpush.msra.mxu0 %v1496
  %2663 = vmatpush.msra.mxu0 %v1493
  %2664 = vmatpush.msra.mxu0 %v1490
  %2665 = vmatpush.msra.mxu0 %v1487
  %2666 = vmatpush.msra.mxu0 %v1484
  %2667 = vmatpush.msra.mxu0 %v1481
  %2668 = vmatpush.msra.mxu0 %v1478
  %2669 = vmatpush.msra.mxu0 %v1475
  %2670 = vmatpush.msra.mxu0 %v1472
  %2671 = vmatpush.msra.mxu0 %v1469
  %2672 = vmatpush.msra.mxu0 %v1466
  %2673 = vmatpush.msra.mxu0 %v1463
  %2674 = vmatmul.f32.gmra.mxu0 %v2321
  %v2675 = vpop.f32.mrf.mxu0
  %v2676 = vadd.f32 %v2656, %v2675
  %2677 = vdwg.mxu0
  %2678 = vmatpush.msra.mxu0 0.0
  %2679 = vmatpush.msra.mxu0 0.0
  %2680 = vmatpush.msra.mxu0 0.0
  %2681 = vmatpush.msra.mxu0 0.0
  %2682 = vmatpush.msra.mxu0 0.0
  %2683 = vmatpush.msra.mxu0 0.0
  %2684 = vmatpush.msra.mxu0 0.0
  %2685 = vmatpush.msra.mxu0 0.0
  %2686 = vmatpush.msra.mxu0 0.0
  %2687 = vmatpush.msra.mxu0 0.0
  %2688 = vmatpush.msra.mxu0 0.0
  %2689 = vmatpush.msra.mxu0 0.0
  %2690 = vmatpush.msra.mxu0 %v1520
  %2691 = vmatpush.msra.mxu0 %v1517
  %2692 = vmatpush.msra.mxu0 %v1514
  %2693 = vmatpush.msra.mxu0 %v1511
  %2694 = vmatmul.f32.gmra.mxu0 %v2516
  %v2695 = vpop.f32.mrf.mxu0
  %v2696 = vadd.f32 %v2676, %v2695
  %2697 = vdwg.mxu0
  %v2704 = vrot.slane %v2326, 1
  %v2705 = vrot.slane %v2329, 1
  %v2706 = vsel %vm2123, %v2704, %v2705
  %v2707 = vrot.slane %v2327, 1
  %v2708 = vrot.slane %v2330, 1
  %v2709 = vsel %vm2123, %v2707, %v2708
  %v2710 = vrot.slane %v2328, 1
  %v2711 = vrot.slane %v2331, 1
  %v2712 = vsel %vm2123, %v2710, %v2711
  %v2715 = vsel %vm75, %v2712, 0
  %2717 = vmatpush.msra.mxu0 %v1676
  %2718 = vmatpush.msra.mxu0 %v1673
  %2719 = vmatpush.msra.mxu0 %v1670
  %2720 = vmatpush.msra.mxu0 %v1667
  %2721 = vmatpush.msra.mxu0 %v1664
  %2722 = vmatpush.msra.mxu0 %v1661
  %2723 = vmatpush.msra.mxu0 %v1658
  %2724 = vmatpush.msra.mxu0 %v1655
  %2725 = vmatpush.msra.mxu0 %v1652
  %2726 = vmatpush.msra.mxu0 %v1649
  %2727 = vmatpush.msra.mxu0 %v1646
  %2728 = vmatpush.msra.mxu0 %v1643
  %2729 = vmatpush.msra.mxu0 %v1640
  %2730 = vmatpush.msra.mxu0 %v1637
  %2731 = vmatpush.msra.mxu0 %v1634
  %2732 = vmatpush.msra.mxu0 %v1631
  %2733 = vmatmul.f32.gmra.mxu0 %v2706
  %v2734 = vpop.f32.mrf.mxu0
  %v2735 = vadd.f32 0.0, %v2734
  %2736 = vdwg.mxu0
  %2737 = vmatpush.msra.mxu0 %v1724
  %2738 = vmatpush.msra.mxu0 %v1721
  %2739 = vmatpush.msra.mxu0 %v1718
  %2740 = vmatpush.msra.mxu0 %v1715
  %2741 = vmatpush.msra.mxu0 %v1712
  %2742 = vmatpush.msra.mxu0 %v1709
  %2743 = vmatpush.msra.mxu0 %v1706
  %2744 = vmatpush.msra.mxu0 %v1703
  %2745 = vmatpush.msra.mxu0 %v1700
  %2746 = vmatpush.msra.mxu0 %v1697
  %2747 = vmatpush.msra.mxu0 %v1694
  %2748 = vmatpush.msra.mxu0 %v1691
  %2749 = vmatpush.msra.mxu0 %v1688
  %2750 = vmatpush.msra.mxu0 %v1685
  %2751 = vmatpush.msra.mxu0 %v1682
  %2752 = vmatpush.msra.mxu0 %v1679
  %2753 = vmatmul.f32.gmra.mxu0 %v2709
  %v2754 = vpop.f32.mrf.mxu0
  %v2755 = vadd.f32 %v2735, %v2754
  %2756 = vdwg.mxu0
  %2757 = vmatpush.msra.mxu0 0.0
  %2758 = vmatpush.msra.mxu0 0.0
  %2759 = vmatpush.msra.mxu0 0.0
  %2760 = vmatpush.msra.mxu0 0.0
  %2761 = vmatpush.msra.mxu0 0.0
  %2762 = vmatpush.msra.mxu0 0.0
  %2763 = vmatpush.msra.mxu0 0.0
  %2764 = vmatpush.msra.mxu0 0.0
  %2765 = vmatpush.msra.mxu0 0.0
  %2766 = vmatpush.msra.mxu0 0.0
  %2767 = vmatpush.msra.mxu0 0.0
  %2768 = vmatpush.msra.mxu0 0.0
  %2769 = vmatpush.msra.mxu0 %v1736
  %2770 = vmatpush.msra.mxu0 %v1733
  %2771 = vmatpush.msra.mxu0 %v1730
  %2772 = vmatpush.msra.mxu0 %v1727
  %2773 = vmatmul.f32.gmra.mxu0 %v2715
  %v2774 = vpop.f32.mrf.mxu0
  %v2775 = vadd.f32 %v2755, %v2774
  %2776 = vdwg.mxu0
  %2777 = vmatpush.msra.mxu0 %v1677
  %2778 = vmatpush.msra.mxu0 %v1674
  %2779 = vmatpush.msra.mxu0 %v1671
  %2780 = vmatpush.msra.mxu0 %v1668
  %2781 = vmatpush.msra.mxu0 %v1665
  %2782 = vmatpush.msra.mxu0 %v1662
  %2783 = vmatpush.msra.mxu0 %v1659
  %2784 = vmatpush.msra.mxu0 %v1656
  %2785 = vmatpush.msra.mxu0 %v1653
  %2786 = vmatpush.msra.mxu0 %v1650
  %2787 = vmatpush.msra.mxu0 %v1647
  %2788 = vmatpush.msra.mxu0 %v1644
  %2789 = vmatpush.msra.mxu0 %v1641
  %2790 = vmatpush.msra.mxu0 %v1638
  %2791 = vmatpush.msra.mxu0 %v1635
  %2792 = vmatpush.msra.mxu0 %v1632
  %2793 = vmatmul.f32.gmra.mxu0 %v2706
  %v2794 = vpop.f32.mrf.mxu0
  %v2795 = vadd.f32 0.0, %v2794
  %2796 = vdwg.mxu0
  %2797 = vmatpush.msra.mxu0 %v1725
  %2798 = vmatpush.msra.mxu0 %v1722
  %2799 = vmatpush.msra.mxu0 %v1719
  %2800 = vmatpush.msra.mxu0 %v1716
  %2801 = vmatpush.msra.mxu0 %v1713
  %2802 = vmatpush.msra.mxu0 %v1710
  %2803 = vmatpush.msra.mxu0 %v1707
  %2804 = vmatpush.msra.mxu0 %v1704
  %2805 = vmatpush.msra.mxu0 %v1701
  %2806 = vmatpush.msra.mxu0 %v1698
  %2807 = vmatpush.msra.mxu0 %v1695
  %2808 = vmatpush.msra.mxu0 %v1692
  %2809 = vmatpush.msra.mxu0 %v1689
  %2810 = vmatpush.msra.mxu0 %v1686
  %2811 = vmatpush.msra.mxu0 %v1683
  %2812 = vmatpush.msra.mxu0 %v1680
  %2813 = vmatmul.f32.gmra.mxu0 %v2709
  %v2814 = vpop.f32.mrf.mxu0
  %v2815 = vadd.f32 %v2795, %v2814
  %2816 = vdwg.mxu0
  %2817 = vmatpush.msra.mxu0 0.0
  %2818 = vmatpush.msra.mxu0 0.0
  %2819 = vmatpush.msra.mxu0 0.0
  %2820 = vmatpush.msra.mxu0 0.0
  %2821 = vmatpush.msra.mxu0 0.0
  %2822 = vmatpush.msra.mxu0 0.0
  %2823 = vmatpush.msra.mxu0 0.0
  %2824 = vmatpush.msra.mxu0 0.0
  %2825 = vmatpush.msra.mxu0 0.0
  %2826 = vmatpush.msra.mxu0 0.0
  %2827 = vmatpush.msra.mxu0 0.0
  %2828 = vmatpush.msra.mxu0 0.0
  %2829 = vmatpush.msra.mxu0 %v1737
  %2830 = vmatpush.msra.mxu0 %v1734
  %2831 = vmatpush.msra.mxu0 %v1731
  %2832 = vmatpush.msra.mxu0 %v1728
  %2833 = vmatmul.f32.gmra.mxu0 %v2715
  %v2834 = vpop.f32.mrf.mxu0
  %v2835 = vadd.f32 %v2815, %v2834
  %2836 = vdwg.mxu0
  %2837 = vmatpush.msra.mxu0 %v1678
  %2838 = vmatpush.msra.mxu0 %v1675
  %2839 = vmatpush.msra.mxu0 %v1672
  %2840 = vmatpush.msra.mxu0 %v1669
  %2841 = vmatpush.msra.mxu0 %v1666
  %2842 = vmatpush.msra.mxu0 %v1663
  %2843 = vmatpush.msra.mxu0 %v1660
  %2844 = vmatpush.msra.mxu0 %v1657
  %2845 = vmatpush.msra.mxu0 %v1654
  %2846 = vmatpush.msra.mxu0 %v1651
  %2847 = vmatpush.msra.mxu0 %v1648
  %2848 = vmatpush.msra.mxu0 %v1645
  %2849 = vmatpush.msra.mxu0 %v1642
  %2850 = vmatpush.msra.mxu0 %v1639
  %2851 = vmatpush.msra.mxu0 %v1636
  %2852 = vmatpush.msra.mxu0 %v1633
  %2853 = vmatmul.f32.gmra.mxu0 %v2706
  %v2854 = vpop.f32.mrf.mxu0
  %v2855 = vadd.f32 0.0, %v2854
  %2856 = vdwg.mxu0
  %2857 = vmatpush.msra.mxu0 %v1726
  %2858 = vmatpush.msra.mxu0 %v1723
  %2859 = vmatpush.msra.mxu0 %v1720
  %2860 = vmatpush.msra.mxu0 %v1717
  %2861 = vmatpush.msra.mxu0 %v1714
  %2862 = vmatpush.msra.mxu0 %v1711
  %2863 = vmatpush.msra.mxu0 %v1708
  %2864 = vmatpush.msra.mxu0 %v1705
  %2865 = vmatpush.msra.mxu0 %v1702
  %2866 = vmatpush.msra.mxu0 %v1699
  %2867 = vmatpush.msra.mxu0 %v1696
  %2868 = vmatpush.msra.mxu0 %v1693
  %2869 = vmatpush.msra.mxu0 %v1690
  %2870 = vmatpush.msra.mxu0 %v1687
  %2871 = vmatpush.msra.mxu0 %v1684
  %2872 = vmatpush.msra.mxu0 %v1681
  %2873 = vmatmul.f32.gmra.mxu0 %v2709
  %v2874 = vpop.f32.mrf.mxu0
  %v2875 = vadd.f32 %v2855, %v2874
  %2876 = vdwg.mxu0
  %2877 = vmatpush.msra.mxu0 0.0
  %2878 = vmatpush.msra.mxu0 0.0
  %2879 = vmatpush.msra.mxu0 0.0
  %2880 = vmatpush.msra.mxu0 0.0
  %2881 = vmatpush.msra.mxu0 0.0
  %2882 = vmatpush.msra.mxu0 0.0
  %2883 = vmatpush.msra.mxu0 0.0
  %2884 = vmatpush.msra.mxu0 0.0
  %2885 = vmatpush.msra.mxu0 0.0
  %2886 = vmatpush.msra.mxu0 0.0
  %2887 = vmatpush.msra.mxu0 0.0
  %2888 = vmatpush.msra.mxu0 0.0
  %2889 = vmatpush.msra.mxu0 %v1738
  %2890 = vmatpush.msra.mxu0 %v1735
  %2891 = vmatpush.msra.mxu0 %v1732
  %2892 = vmatpush.msra.mxu0 %v1729
  %2893 = vmatmul.f32.gmra.mxu0 %v2715
  %v2894 = vpop.f32.mrf.mxu0
  %v2895 = vadd.f32 %v2875, %v2894
  %2896 = vdwg.mxu0
  %v2897 = vadd.f32 %v2576, %v2775
  %v2898 = vadd.f32 %v2636, %v2835
  %v2899 = vadd.f32 %v2696, %v2895
  %v2900 = vrot.slane %v2317, 4
  %v2901 = vadd.f32 %v2317, %v2900
  %v2902 = vrot.slane %v2901, 2
  %v2903 = vadd.f32 %v2901, %v2902
  %v2904 = vrot.slane %v2903, 1
  %v2905 = vadd.f32 %v2903, %v2904
  %v2906 = vrot.slane %v2318, 4
  %v2907 = vadd.f32 %v2318, %v2906
  %v2908 = vrot.slane %v2907, 2
  %v2909 = vadd.f32 %v2907, %v2908
  %v2910 = vrot.slane %v2909, 1
  %v2911 = vadd.f32 %v2909, %v2910
  %vm2912 = vcmask 523264
  %v2913 = vsel %vm2912, %v2319, 0.0
  %v2914 = vrot.slane %v2913, 4
  %v2915 = vadd.f32 %v2913, %v2914
  %v2916 = vrot.slane %v2915, 2
  %v2917 = vadd.f32 %v2915, %v2916
  %v2918 = vrot.slane %v2917, 1
  %v2919 = vadd.f32 %v2917, %v2918
  %v2920 = vmul.f32 %v2317, %v2317
  %v2921 = vmul.f32 %v2318, %v2318
  %v2922 = vmul.f32 %v2319, %v2319
  %v2923 = vrot.slane %v2920, 4
  %v2924 = vadd.f32 %v2920, %v2923
  %v2925 = vrot.slane %v2924, 2
  %v2926 = vadd.f32 %v2924, %v2925
  %v2927 = vrot.slane %v2926, 1
  %v2928 = vadd.f32 %v2926, %v2927
  %v2929 = vrot.slane %v2921, 4
  %v2930 = vadd.f32 %v2921, %v2929
  %v2931 = vrot.slane %v2930, 2
  %v2932 = vadd.f32 %v2930, %v2931
  %v2933 = vrot.slane %v2932, 1
  %v2934 = vadd.f32 %v2932, %v2933
  %v2935 = vsel %vm2912, %v2922, 0.0
  %v2936 = vrot.slane %v2935, 4
  %v2937 = vadd.f32 %v2935, %v2936
  %v2938 = vrot.slane %v2937, 2
  %v2939 = vadd.f32 %v2937, %v2938
  %v2940 = vrot.slane %v2939, 1
  %v2941 = vadd.f32 %v2939, %v2940
  %v2942 = vrot.slane %v2897, 4
  %v2943 = vadd.f32 %v2897, %v2942
  %v2944 = vrot.slane %v2943, 2
  %v2945 = vadd.f32 %v2943, %v2944
  %v2946 = vrot.slane %v2945, 1
  %v2947 = vadd.f32 %v2945, %v2946
  %v2948 = vrot.slane %v2898, 4
  %v2949 = vadd.f32 %v2898, %v2948
  %v2950 = vrot.slane %v2949, 2
  %v2951 = vadd.f32 %v2949, %v2950
  %v2952 = vrot.slane %v2951, 1
  %v2953 = vadd.f32 %v2951, %v2952
  %v2954 = vsel %vm2912, %v2899, 0.0
  %v2955 = vrot.slane %v2954, 4
  %v2956 = vadd.f32 %v2954, %v2955
  %v2957 = vrot.slane %v2956, 2
  %v2958 = vadd.f32 %v2956, %v2957
  %v2959 = vrot.slane %v2958, 1
  %v2960 = vadd.f32 %v2958, %v2959
  %v2961 = vadd.f32 %v2905, %v2947
  %v2962 = vadd.f32 %v2911, %v2953
  %v2963 = vadd.f32 %v2919, %v2960
  %v2964 = vmul.f32 %v2897, %v2897
  %v2965 = vmul.f32 %v2898, %v2898
  %v2966 = vmul.f32 %v2899, %v2899
  %v2967 = vrot.slane %v2964, 4
  %v2968 = vadd.f32 %v2964, %v2967
  %v2969 = vrot.slane %v2968, 2
  %v2970 = vadd.f32 %v2968, %v2969
  %v2971 = vrot.slane %v2970, 1
  %v2972 = vadd.f32 %v2970, %v2971
  %v2973 = vrot.slane %v2965, 4
  %v2974 = vadd.f32 %v2965, %v2973
  %v2975 = vrot.slane %v2974, 2
  %v2976 = vadd.f32 %v2974, %v2975
  %v2977 = vrot.slane %v2976, 1
  %v2978 = vadd.f32 %v2976, %v2977
  %v2979 = vsel %vm2912, %v2966, 0.0
  %v2980 = vrot.slane %v2979, 4
  %v2981 = vadd.f32 %v2979, %v2980
  %v2982 = vrot.slane %v2981, 2
  %v2983 = vadd.f32 %v2981, %v2982
  %v2984 = vrot.slane %v2983, 1
  %v2985 = vadd.f32 %v2983, %v2984
  %v2986 = vadd.f32 %v2928, %v2972
  %v2987 = vadd.f32 %v2934, %v2978
  %v2988 = vadd.f32 %v2941, %v2985
  %v2989 = vsel %vm857, %v2961, %v2986
  %v2990 = vsel %vm857, %v2962, %v2987
  %v2991 = vsel %vm857, %v2963, %v2988
  %v2992 = vld [vmem:[%s6] sm:$0xff]
  %v2993 = vld [vmem:[%s6 + $0x8] sm:$0xff]
  %v2994 = vld [vmem:[%s6 + $0x10] sm:$0xff]
  %v2995 = vld [vmem:[%s6 + $0x18] sm:$0xff]
  %v2996 = vld [vmem:[%s6 + $0x20] sm:$0xff]
  %v2997 = vld [vmem:[%s6 + $0x28] sm:$0xff]
  %v2998 = vld [vmem:[%s6 + $0x30] sm:$0xff]
  %v2999 = vld [vmem:[%s6 + $0x38] sm:$0xff]
  %v3000 = vld [vmem:[%s6 + $0x40] sm:$0xff]
  %v3001 = vld [vmem:[%s6 + $0x48] sm:$0xff]
  %v3002 = vld [vmem:[%s6 + $0x50] sm:$0xff]
  %v3003 = vld [vmem:[%s6 + $0x58] sm:$0xff]
  %v3004 = vld [vmem:[%s6 + $0x60] sm:$0xff]
  %v3005 = vld [vmem:[%s6 + $0x68] sm:$0xff]
  %v3006 = vld [vmem:[%s6 + $0x70] sm:$0xff]
  %v3007 = vld [vmem:[%s6 + $0x78] sm:$0xff]
  %v3008 = vld [vmem:[%s6 + $0x80] sm:$0xff]
  %v3009 = vld [vmem:[%s6 + $0x88] sm:$0xff]
  %v3010 = vld [vmem:[%s6 + $0x90] sm:$0xff]
  %v3011 = vld [vmem:[%s6 + $0x98] sm:$0xff]
  %v3012 = vld [vmem:[%s6 + $0xa0] sm:$0xff]
  %v3013 = vld [vmem:[%s6 + $0xa8] sm:$0xff]
  %v3014 = vld [vmem:[%s6 + $0xb0] sm:$0xff]
  %v3015 = vld [vmem:[%s6 + $0xb8] sm:$0xff]
  %v3016 = vld [vmem:[%s6 + $0xc0] sm:$0xff]
  %v3017 = vld [vmem:[%s6 + $0xc8] sm:$0xff]
  %v3018 = vld [vmem:[%s6 + $0xd0] sm:$0xff]
  %v3019 = vld [vmem:[%s6 + $0xd8] sm:$0xff]
  %v3020 = vld [vmem:[%s6 + $0xe0] sm:$0xff]
  %v3021 = vld [vmem:[%s6 + $0xe8] sm:$0xff]
  %v3022 = vld [vmem:[%s6 + $0xf0] sm:$0xff]
  %v3023 = vld [vmem:[%s6 + $0xf8] sm:$0xff]
  %v3024 = vld [vmem:[%s6 + $0x100] sm:$0xff]
  %v3025 = vld [vmem:[%s6 + $0x108] sm:$0xff]
  %v3026 = vld [vmem:[%s6 + $0x110] sm:$0xff]
  %v3027 = vld [vmem:[%s6 + $0x118] sm:$0xff]
  %v3028 = vld [vmem:[%s6 + $0x120] sm:$0xff]
  %v3029 = vld [vmem:[%s6 + $0x128] sm:$0xff]
  %v3030 = vld [vmem:[%s6 + $0x130] sm:$0xff]
  %v3031 = vld [vmem:[%s6 + $0x138] sm:$0xff]
  %v3033 = vsel %vm2912, %v2991, 0
  %3035 = vmatpush.msra.mxu0 %v3007
  %3036 = vmatpush.msra.mxu0 %v3006
  %3037 = vmatpush.msra.mxu0 %v3005
  %3038 = vmatpush.msra.mxu0 %v3004
  %3039 = vmatpush.msra.mxu0 %v3003
  %3040 = vmatpush.msra.mxu0 %v3002
  %3041 = vmatpush.msra.mxu0 %v3001
  %3042 = vmatpush.msra.mxu0 %v3000
  %3043 = vmatpush.msra.mxu0 %v2999
  %3044 = vmatpush.msra.mxu0 %v2998
  %3045 = vmatpush.msra.mxu0 %v2997
  %3046 = vmatpush.msra.mxu0 %v2996
  %3047 = vmatpush.msra.mxu0 %v2995
  %3048 = vmatpush.msra.mxu0 %v2994
  %3049 = vmatpush.msra.mxu0 %v2993
  %3050 = vmatpush.msra.mxu0 %v2992
  %3051 = vmatmul.f32.gmra.mxu0 %v2989
  %v3052 = vpop.f32.mrf.mxu0
  %v3053 = vadd.f32 0.0, %v3052
  %3054 = vdwg.mxu0
  %3055 = vmatpush.msra.mxu0 %v3023
  %3056 = vmatpush.msra.mxu0 %v3022
  %3057 = vmatpush.msra.mxu0 %v3021
  %3058 = vmatpush.msra.mxu0 %v3020
  %3059 = vmatpush.msra.mxu0 %v3019
  %3060 = vmatpush.msra.mxu0 %v3018
  %3061 = vmatpush.msra.mxu0 %v3017
  %3062 = vmatpush.msra.mxu0 %v3016
  %3063 = vmatpush.msra.mxu0 %v3015
  %3064 = vmatpush.msra.mxu0 %v3014
  %3065 = vmatpush.msra.mxu0 %v3013
  %3066 = vmatpush.msra.mxu0 %v3012
  %3067 = vmatpush.msra.mxu0 %v3011
  %3068 = vmatpush.msra.mxu0 %v3010
  %3069 = vmatpush.msra.mxu0 %v3009
  %3070 = vmatpush.msra.mxu0 %v3008
  %3071 = vmatmul.f32.gmra.mxu0 %v2990
  %v3072 = vpop.f32.mrf.mxu0
  %v3073 = vadd.f32 %v3053, %v3072
  %3074 = vdwg.mxu0
  %3075 = vmatpush.msra.mxu0 0.0
  %3076 = vmatpush.msra.mxu0 0.0
  %3077 = vmatpush.msra.mxu0 0.0
  %3078 = vmatpush.msra.mxu0 0.0
  %3079 = vmatpush.msra.mxu0 0.0
  %3080 = vmatpush.msra.mxu0 0.0
  %3081 = vmatpush.msra.mxu0 0.0
  %3082 = vmatpush.msra.mxu0 0.0
  %3083 = vmatpush.msra.mxu0 %v3031
  %3084 = vmatpush.msra.mxu0 %v3030
  %3085 = vmatpush.msra.mxu0 %v3029
  %3086 = vmatpush.msra.mxu0 %v3028
  %3087 = vmatpush.msra.mxu0 %v3027
  %3088 = vmatpush.msra.mxu0 %v3026
  %3089 = vmatpush.msra.mxu0 %v3025
  %3090 = vmatpush.msra.mxu0 %v3024
  %3091 = vmatmul.f32.gmra.mxu0 %v3033
  %v3092 = vpop.f32.mrf.mxu0
  %v3093 = vadd.f32 %v3073, %v3092
  %3094 = vdwg.mxu0
  %v3095 = vmul.f32 %v3093, 0.0078125
  %v3096 = vmul.f32 %v3095, %v3095
  %v3098 = vrot.slane %v3096, 7
  %v3100 = vsub.f32 %v3095, %v3098
  %v3101 = vld [vmem:[%s14] sm:$0x3]
  %v3102 = vadd.f32 %v3100, 1e-05
  %v3103 = vrsqrt.pop %v3102
  %v3104 = vmul.f32 %v3103, %v3102
  %v3105 = vmul.f32 %v3104, %v3103
  %v3106 = vmul.f32 0.5, %v3105
  %v3107 = vsub.f32 1.5, %v3106
  %v3108 = vmul.f32 %v3103, %v3107
  %vm3109 = vweird.f32 %v3102
  %vm3110 = vweird.f32 %v3103
  %vm3111 = vmor %vm3109, %vm3110
  %v3112 = vsel %vm3111, %v3103, %v3108
  %v3114 = vrot.slane %v3112, 1
  %v3116 = vmul.f32 %v3101, %v3114
  %v3117 = vmul.f32 %v3095, %v3116
  %v3119 = vrot.slane %v3117, 7
  %v3121 = vsub.f32 %v3101, %v3119
  %v3122 = vsel %vm857, %v3116, %v3121
  %v3123 = vld [vmem:[%s10] sm:$0xff]
  %v3124 = vld [vmem:[%s10 + $0x8] sm:$0xff]
  %v3125 = vld [vmem:[%s10 + $0x10] sm:$0xff]
  %v3126 = vld [vmem:[%s10 + $0x18] sm:$0xff]
  %v3127 = vld [vmem:[%s10 + $0x20] sm:$0xff]
  %v3128 = vld [vmem:[%s10 + $0x28] sm:$0xff]
  %v3129 = vld [vmem:[%s10 + $0x30] sm:$0xff]
  %v3130 = vld [vmem:[%s10 + $0x38] sm:$0xff]
  %v3131 = vld [vmem:[%s10 + $0x40] sm:$0xff]
  %v3132 = vld [vmem:[%s10 + $0x48] sm:$0xff]
  %v3133 = vld [vmem:[%s10 + $0x50] sm:$0xff]
  %v3134 = vld [vmem:[%s10 + $0x58] sm:$0xff]
  %v3136 = vsel %vm75, %v3122, 0
  %3138 = vmatpush.msra.mxu0 0.0
  %3139 = vmatpush.msra.mxu0 0.0
  %3140 = vmatpush.msra.mxu0 0.0
  %3141 = vmatpush.msra.mxu0 0.0
  %3142 = vmatpush.msra.mxu0 0.0
  %3143 = vmatpush.msra.mxu0 0.0
  %3144 = vmatpush.msra.mxu0 0.0
  %3145 = vmatpush.msra.mxu0 0.0
  %3146 = vmatpush.msra.mxu0 0.0
  %3147 = vmatpush.msra.mxu0 0.0
  %3148 = vmatpush.msra.mxu0 0.0
  %3149 = vmatpush.msra.mxu0 0.0
  %3150 = vmatpush.msra.mxu0 %v3132
  %3151 = vmatpush.msra.mxu0 %v3129
  %3152 = vmatpush.msra.mxu0 %v3126
  %3153 = vmatpush.msra.mxu0 %v3123
  %3154 = vmatmul.f32.gmra.mxu0 %v3136
  %v3155 = vpop.f32.mrf.mxu0
  %v3156 = vadd.f32 0.0, %v3155
  %3157 = vdwg.mxu0
  %3158 = vmatpush.msra.mxu0 0.0
  %3159 = vmatpush.msra.mxu0 0.0
  %3160 = vmatpush.msra.mxu0 0.0
  %3161 = vmatpush.msra.mxu0 0.0
  %3162 = vmatpush.msra.mxu0 0.0
  %3163 = vmatpush.msra.mxu0 0.0
  %3164 = vmatpush.msra.mxu0 0.0
  %3165 = vmatpush.msra.mxu0 0.0
  %3166 = vmatpush.msra.mxu0 0.0
  %3167 = vmatpush.msra.mxu0 0.0
  %3168 = vmatpush.msra.mxu0 0.0
  %3169 = vmatpush.msra.mxu0 0.0
  %3170 = vmatpush.msra.mxu0 %v3133
  %3171 = vmatpush.msra.mxu0 %v3130
  %3172 = vmatpush.msra.mxu0 %v3127
  %3173 = vmatpush.msra.mxu0 %v3124
  %3174 = vmatmul.f32.gmra.mxu0 %v3136
  %v3175 = vpop.f32.mrf.mxu0
  %v3176 = vadd.f32 0.0, %v3175
  %3177 = vdwg.mxu0
  %3178 = vmatpush.msra.mxu0 0.0
  %3179 = vmatpush.msra.mxu0 0.0
  %3180 = vmatpush.msra.mxu0 0.0
  %3181 = vmatpush.msra.mxu0 0.0
  %3182 = vmatpush.msra.mxu0 0.0
  %3183 = vmatpush.msra.mxu0 0.0
  %3184 = vmatpush.msra.mxu0 0.0
  %3185 = vmatpush.msra.mxu0 0.0
  %3186 = vmatpush.msra.mxu0 0.0
  %3187 = vmatpush.msra.mxu0 0.0
  %3188 = vmatpush.msra.mxu0 0.0
  %3189 = vmatpush.msra.mxu0 0.0
  %3190 = vmatpush.msra.mxu0 %v3134
  %3191 = vmatpush.msra.mxu0 %v3131
  %3192 = vmatpush.msra.mxu0 %v3128
  %3193 = vmatpush.msra.mxu0 %v3125
  %3194 = vmatmul.f32.gmra.mxu0 %v3136
  %v3195 = vpop.f32.mrf.mxu0
  %v3196 = vadd.f32 0.0, %v3195
  %3197 = vdwg.mxu0
  %v3198 = vld [vmem:[%s18] sm:$0xf]
  %s3199 = scalar_lea.vmem %s18, 4
  %v3200 = vld [vmem:[%s3199] sm:$0xf]
  %v3201 = vperm.slane %v3156, 0
  %v3202 = vperm.slane %v3176, 0
  %v3203 = vperm.slane %v3196, 0
  %v3204 = vmul.f32 %v2317, %v3201
  %v3205 = vmul.f32 %v2318, %v3202
  %v3206 = vmul.f32 %v2319, %v3203
  %v3207 = vperm.slane %v3156, 1
  %v3208 = vperm.slane %v3176, 1
  %v3209 = vperm.slane %v3196, 1
  %v3210 = vadd.f32 %v3204, %v3207
  %v3211 = vadd.f32 %v3205, %v3208
  %v3212 = vadd.f32 %v3206, %v3209
  %vm3213 = vcmp.ge.f32.partialorder %v3210, 0.0
  %vm3214 = vcmp.ge.f32.partialorder %v3211, 0.0
  %vm3215 = vcmp.ge.f32.partialorder %v3212, 0.0
  %v3216 = vmul.f32 %v3210, 0.01
  %v3217 = vmul.f32 %v3211, 0.01
  %v3218 = vmul.f32 %v3212, 0.01
  %v3219 = vsel %vm3213, %v3210, %v3216
  %v3220 = vsel %vm3214, %v3211, %v3217
  %v3221 = vsel %vm3215, %v3212, %v3218
  %vm3222 = vcmask 64512
  %v3224 = vsel %vm3222, %v3198, 0
  %3226 = vmatpush.msra.mxu0 0.0
  %3227 = vmatpush.msra.mxu0 0.0
  %3228 = vmatpush.msra.mxu0 0.0
  %3229 = vmatpush.msra.mxu0 0.0
  %3230 = vmatpush.msra.mxu0 0.0
  %3231 = vmatpush.msra.mxu0 0.0
  %3232 = vmatpush.msra.mxu0 0.0
  %3233 = vmatpush.msra.mxu0 0.0
  %3234 = vmatpush.msra.mxu0 0.0
  %3235 = vmatpush.msra.mxu0 0.0
  %3236 = vmatpush.msra.mxu0 0.0
  %3237 = vmatpush.msra.mxu0 0.0
  %3238 = vmatpush.msra.mxu0 0.0
  %3239 = vmatpush.msra.mxu0 0.0
  %3240 = vmatpush.msra.mxu0 0.0
  %3241 = vmatpush.msra.mxu0 %v3219
  %3242 = vmatmul.f32.gmra.mxu0 %v3224
  %v3243 = vpop.f32.mrf.mxu0
  %v3244 = vadd.f32 0.0, %v3243
  %3245 = vdwg.mxu0
  %3246 = vmatpush.msra.mxu0 0.0
  %3247 = vmatpush.msra.mxu0 0.0
  %3248 = vmatpush.msra.mxu0 0.0
  %3249 = vmatpush.msra.mxu0 0.0
  %3250 = vmatpush.msra.mxu0 0.0
  %3251 = vmatpush.msra.mxu0 0.0
  %3252 = vmatpush.msra.mxu0 0.0
  %3253 = vmatpush.msra.mxu0 0.0
  %3254 = vmatpush.msra.mxu0 0.0
  %3255 = vmatpush.msra.mxu0 0.0
  %3256 = vmatpush.msra.mxu0 0.0
  %3257 = vmatpush.msra.mxu0 0.0
  %3258 = vmatpush.msra.mxu0 0.0
  %3259 = vmatpush.msra.mxu0 0.0
  %3260 = vmatpush.msra.mxu0 0.0
  %3261 = vmatpush.msra.mxu0 %v3220
  %3262 = vmatmul.f32.gmra.mxu0 %v3224
  %v3263 = vpop.f32.mrf.mxu0
  %v3264 = vadd.f32 0.0, %v3263
  %3265 = vdwg.mxu0
  %3266 = vmatpush.msra.mxu0 0.0
  %3267 = vmatpush.msra.mxu0 0.0
  %3268 = vmatpush.msra.mxu0 0.0
  %3269 = vmatpush.msra.mxu0 0.0
  %3270 = vmatpush.msra.mxu0 0.0
  %3271 = vmatpush.msra.mxu0 0.0
  %3272 = vmatpush.msra.mxu0 0.0
  %3273 = vmatpush.msra.mxu0 0.0
  %3274 = vmatpush.msra.mxu0 0.0
  %3275 = vmatpush.msra.mxu0 0.0
  %3276 = vmatpush.msra.mxu0 0.0
  %3277 = vmatpush.msra.mxu0 0.0
  %3278 = vmatpush.msra.mxu0 0.0
  %3279 = vmatpush.msra.mxu0 0.0
  %3280 = vmatpush.msra.mxu0 0.0
  %3281 = vmatpush.msra.mxu0 %v3221
  %3282 = vmatmul.f32.gmra.mxu0 %v3224
  %v3283 = vpop.f32.mrf.mxu0
  %v3284 = vadd.f32 0.0, %v3283
  %3285 = vdwg.mxu0
  %s3286 = scalar_lea.vmem [#allocation3], 24
  %3287 = vst [vmem:[%s3286] sm:$0xf] %v3244
  %3288 = vst [vmem:[%s3286 + $0x8] sm:$0xf] %v3264
  %vm3289 = vcmask 519168
  %3290 = vst.msk [vmem:[%s3286 + $0x10] sm:$0xf] %vm3289, %v3284
  %v3292 = vsel %vm3222, %v3200, 0
  %3294 = vmatpush.msra.mxu0 0.0
  %3295 = vmatpush.msra.mxu0 0.0
  %3296 = vmatpush.msra.mxu0 0.0
  %3297 = vmatpush.msra.mxu0 0.0
  %3298 = vmatpush.msra.mxu0 0.0
  %3299 = vmatpush.msra.mxu0 0.0
  %3300 = vmatpush.msra.mxu0 0.0
  %3301 = vmatpush.msra.mxu0 0.0
  %3302 = vmatpush.msra.mxu0 0.0
  %3303 = vmatpush.msra.mxu0 0.0
  %3304 = vmatpush.msra.mxu0 0.0
  %3305 = vmatpush.msra.mxu0 0.0
  %3306 = vmatpush.msra.mxu0 0.0
  %3307 = vmatpush.msra.mxu0 0.0
  %3308 = vmatpush.msra.mxu0 0.0
  %3309 = vmatpush.msra.mxu0 %v3219
  %3310 = vmatmul.f32.gmra.mxu0 %v3292
  %v3311 = vpop.f32.mrf.mxu0
  %v3312 = vadd.f32 0.0, %v3311
  %3313 = vdwg.mxu0
  %3314 = vmatpush.msra.mxu0 0.0
  %3315 = vmatpush.msra.mxu0 0.0
  %3316 = vmatpush.msra.mxu0 0.0
  %3317 = vmatpush.msra.mxu0 0.0
  %3318 = vmatpush.msra.mxu0 0.0
  %3319 = vmatpush.msra.mxu0 0.0
  %3320 = vmatpush.msra.mxu0 0.0
  %3321 = vmatpush.msra.mxu0 0.0
  %3322 = vmatpush.msra.mxu0 0.0
  %3323 = vmatpush.msra.mxu0 0.0
  %3324 = vmatpush.msra.mxu0 0.0
  %3325 = vmatpush.msra.mxu0 0.0
  %3326 = vmatpush.msra.mxu0 0.0
  %3327 = vmatpush.msra.mxu0 0.0
  %3328 = vmatpush.msra.mxu0 0.0
  %3329 = vmatpush.msra.mxu0 %v3220
  %3330 = vmatmul.f32.gmra.mxu0 %v3292
  %v3331 = vpop.f32.mrf.mxu0
  %v3332 = vadd.f32 0.0, %v3331
  %3333 = vdwg.mxu0
  %3334 = vmatpush.msra.mxu0 0.0
  %3335 = vmatpush.msra.mxu0 0.0
  %3336 = vmatpush.msra.mxu0 0.0
  %3337 = vmatpush.msra.mxu0 0.0
  %3338 = vmatpush.msra.mxu0 0.0
  %3339 = vmatpush.msra.mxu0 0.0
  %3340 = vmatpush.msra.mxu0 0.0
  %3341 = vmatpush.msra.mxu0 0.0
  %3342 = vmatpush.msra.mxu0 0.0
  %3343 = vmatpush.msra.mxu0 0.0
  %3344 = vmatpush.msra.mxu0 0.0
  %3345 = vmatpush.msra.mxu0 0.0
  %3346 = vmatpush.msra.mxu0 0.0
  %3347 = vmatpush.msra.mxu0 0.0
  %3348 = vmatpush.msra.mxu0 0.0
  %3349 = vmatpush.msra.mxu0 %v3221
  %3350 = vmatmul.f32.gmra.mxu0 %v3292
  %v3351 = vpop.f32.mrf.mxu0
  %v3352 = vadd.f32 0.0, %v3351
  %3353 = vdwg.mxu0
  %v3357 = vrot.slane %v3312, 7
  %v3358 = vrot.slane %v3332, 7
  %v3359 = vrot.slane %v3352, 7
  %3363 = vst [vmem:[#allocation3] sm:$0x1e] %v3357
  %3364 = vst [vmem:[#allocation3 + $0x8] sm:$0x1e] %v3358
  %vm3365 = vcmask 520193
  %3366 = vst.msk [vmem:[#allocation3 + $0x10] sm:$0x1e] %vm3365, %v3359
  %v3367 = vmul.f32 %v2897, %v3201
  %v3368 = vmul.f32 %v2898, %v3202
  %v3369 = vmul.f32 %v2899, %v3203
  %v3370 = vadd.f32 %v3367, %v3207
  %v3371 = vadd.f32 %v3368, %v3208
  %v3372 = vadd.f32 %v3369, %v3209
  %vm3373 = vcmp.ge.f32.partialorder %v3370, 0.0
  %vm3374 = vcmp.ge.f32.partialorder %v3371, 0.0
  %vm3375 = vcmp.ge.f32.partialorder %v3372, 0.0
  %v3376 = vmul.f32 %v3370, 0.01
  %v3377 = vmul.f32 %v3371, 0.01
  %v3378 = vmul.f32 %v3372, 0.01
  %v3379 = vsel %vm3373, %v3370, %v3376
  %v3380 = vsel %vm3374, %v3371, %v3377
  %v3381 = vsel %vm3375, %v3372, %v3378
  %3382 = vmatpush.msra.mxu0 0.0
  %3383 = vmatpush.msra.mxu0 0.0
  %3384 = vmatpush.msra.mxu0 0.0
  %3385 = vmatpush.msra.mxu0 0.0
  %3386 = vmatpush.msra.mxu0 0.0
  %3387 = vmatpush.msra.mxu0 0.0
  %3388 = vmatpush.msra.mxu0 0.0
  %3389 = vmatpush.msra.mxu0 0.0
  %3390 = vmatpush.msra.mxu0 0.0
  %3391 = vmatpush.msra.mxu0 0.0
  %3392 = vmatpush.msra.mxu0 0.0
  %3393 = vmatpush.msra.mxu0 0.0
  %3394 = vmatpush.msra.mxu0 0.0
  %3395 = vmatpush.msra.mxu0 0.0
  %3396 = vmatpush.msra.mxu0 0.0
  %3397 = vmatpush.msra.mxu0 %v3379
  %3398 = vmatmul.f32.gmra.mxu0 %v3224
  %v3399 = vpop.f32.mrf.mxu0
  %v3400 = vadd.f32 0.0, %v3399
  %3401 = vdwg.mxu0
  %3402 = vmatpush.msra.mxu0 0.0
  %3403 = vmatpush.msra.mxu0 0.0
  %3404 = vmatpush.msra.mxu0 0.0
  %3405 = vmatpush.msra.mxu0 0.0
  %3406 = vmatpush.msra.mxu0 0.0
  %3407 = vmatpush.msra.mxu0 0.0
  %3408 = vmatpush.msra.mxu0 0.0
  %3409 = vmatpush.msra.mxu0 0.0
  %3410 = vmatpush.msra.mxu0 0.0
  %3411 = vmatpush.msra.mxu0 0.0
  %3412 = vmatpush.msra.mxu0 0.0
  %3413 = vmatpush.msra.mxu0 0.0
  %3414 = vmatpush.msra.mxu0 0.0
  %3415 = vmatpush.msra.mxu0 0.0
  %3416 = vmatpush.msra.mxu0 0.0
  %3417 = vmatpush.msra.mxu0 %v3380
  %3418 = vmatmul.f32.gmra.mxu0 %v3224
  %v3419 = vpop.f32.mrf.mxu0
  %v3420 = vadd.f32 0.0, %v3419
  %3421 = vdwg.mxu0
  %3422 = vmatpush.msra.mxu0 0.0
  %3423 = vmatpush.msra.mxu0 0.0
  %3424 = vmatpush.msra.mxu0 0.0
  %3425 = vmatpush.msra.mxu0 0.0
  %3426 = vmatpush.msra.mxu0 0.0
  %3427 = vmatpush.msra.mxu0 0.0
  %3428 = vmatpush.msra.mxu0 0.0
  %3429 = vmatpush.msra.mxu0 0.0
  %3430 = vmatpush.msra.mxu0 0.0
  %3431 = vmatpush.msra.mxu0 0.0
  %3432 = vmatpush.msra.mxu0 0.0
  %3433 = vmatpush.msra.mxu0 0.0
  %3434 = vmatpush.msra.mxu0 0.0
  %3435 = vmatpush.msra.mxu0 0.0
  %3436 = vmatpush.msra.mxu0 0.0
  %3437 = vmatpush.msra.mxu0 %v3381
  %3438 = vmatmul.f32.gmra.mxu0 %v3224
  %v3439 = vpop.f32.mrf.mxu0
  %v3440 = vadd.f32 0.0, %v3439
  %3441 = vdwg.mxu0
  %s3442 = scalar_lea.vmem [#allocation3], 72
  %3443 = vst [vmem:[%s3442] sm:$0xf] %v3400
  %3444 = vst [vmem:[%s3442 + $0x8] sm:$0xf] %v3420
  %3445 = vst.msk [vmem:[%s3442 + $0x10] sm:$0xf] %vm3289, %v3440
  %3446 = vmatpush.msra.mxu0 0.0
  %3447 = vmatpush.msra.mxu0 0.0
  %3448 = vmatpush.msra.mxu0 0.0
  %3449 = vmatpush.msra.mxu0 0.0
  %3450 = vmatpush.msra.mxu0 0.0
  %3451 = vmatpush.msra.mxu0 0.0
  %3452 = vmatpush.msra.mxu0 0.0
  %3453 = vmatpush.msra.mxu0 0.0
  %3454 = vmatpush.msra.mxu0 0.0
  %3455 = vmatpush.msra.mxu0 0.0
  %3456 = vmatpush.msra.mxu0 0.0
  %3457 = vmatpush.msra.mxu0 0.0
  %3458 = vmatpush.msra.mxu0 0.0
  %3459 = vmatpush.msra.mxu0 0.0
  %3460 = vmatpush.msra.mxu0 0.0
  %3461 = vmatpush.msra.mxu0 %v3379
  %3462 = vmatmul.f32.gmra.mxu0 %v3292
  %v3463 = vpop.f32.mrf.mxu0
  %v3464 = vadd.f32 0.0, %v3463
  %3465 = vdwg.mxu0
  %3466 = vmatpush.msra.mxu0 0.0
  %3467 = vmatpush.msra.mxu0 0.0
  %3468 = vmatpush.msra.mxu0 0.0
  %3469 = vmatpush.msra.mxu0 0.0
  %3470 = vmatpush.msra.mxu0 0.0
  %3471 = vmatpush.msra.mxu0 0.0
  %3472 = vmatpush.msra.mxu0 0.0
  %3473 = vmatpush.msra.mxu0 0.0
  %3474 = vmatpush.msra.mxu0 0.0
  %3475 = vmatpush.msra.mxu0 0.0
  %3476 = vmatpush.msra.mxu0 0.0
  %3477 = vmatpush.msra.mxu0 0.0
  %3478 = vmatpush.msra.mxu0 0.0
  %3479 = vmatpush.msra.mxu0 0.0
  %3480 = vmatpush.msra.mxu0 0.0
  %3481 = vmatpush.msra.mxu0 %v3380
  %3482 = vmatmul.f32.gmra.mxu0 %v3292
  %v3483 = vpop.f32.mrf.mxu0
  %v3484 = vadd.f32 0.0, %v3483
  %3485 = vdwg.mxu0
  %3486 = vmatpush.msra.mxu0 0.0
  %3487 = vmatpush.msra.mxu0 0.0
  %3488 = vmatpush.msra.mxu0 0.0
  %3489 = vmatpush.msra.mxu0 0.0
  %3490 = vmatpush.msra.mxu0 0.0
  %3491 = vmatpush.msra.mxu0 0.0
  %3492 = vmatpush.msra.mxu0 0.0
  %3493 = vmatpush.msra.mxu0 0.0
  %3494 = vmatpush.msra.mxu0 0.0
  %3495 = vmatpush.msra.mxu0 0.0
  %3496 = vmatpush.msra.mxu0 0.0
  %3497 = vmatpush.msra.mxu0 0.0
  %3498 = vmatpush.msra.mxu0 0.0
  %3499 = vmatpush.msra.mxu0 0.0
  %3500 = vmatpush.msra.mxu0 0.0
  %3501 = vmatpush.msra.mxu0 %v3381
  %3502 = vmatmul.f32.gmra.mxu0 %v3292
  %v3503 = vpop.f32.mrf.mxu0
  %v3504 = vadd.f32 0.0, %v3503
  %3505 = vdwg.mxu0
  %v3509 = vrot.slane %v3464, 7
  %v3510 = vrot.slane %v3484, 7
  %v3511 = vrot.slane %v3504, 7
  %s3515 = scalar_lea.vmem [#allocation3], 48
  %3516 = vst [vmem:[%s3515] sm:$0x1e] %v3509
  %3517 = vst [vmem:[%s3515 + $0x8] sm:$0x1e] %v3510
  %3518 = vst.msk [vmem:[%s3515 + $0x10] sm:$0x1e] %vm3365, %v3511
  %v3519 = vld [vmem:[%s3] sm:$0xff]
  %v3520 = vld [vmem:[%s3 + $0x8] sm:$0xff]
  %v3521 = vld [vmem:[%s3 + $0x10] sm:$0xff]
  %v3522 = vld [vmem:[%s3 + $0x18] sm:$0xff]
  %v3523 = vld [vmem:[%s3 + $0x20] sm:$0xff]
  %v3524 = vld [vmem:[%s3 + $0x28] sm:$0xff]
  %v3525 = vld [vmem:[%s3 + $0x30] sm:$0xff]
  %v3526 = vld [vmem:[%s3 + $0x38] sm:$0xff]
  %v3527 = vld [vmem:[%s3 + $0x40] sm:$0xff]
  %v3528 = vld [vmem:[%s3 + $0x48] sm:$0xff]
  %v3529 = vld [vmem:[%s3 + $0x50] sm:$0xff]
  %v3530 = vld [vmem:[%s3 + $0x58] sm:$0xff]
  %v3531 = vld [vmem:[%s3 + $0x60] sm:$0xff]
  %v3532 = vld [vmem:[%s3 + $0x68] sm:$0xff]
  %v3533 = vld [vmem:[%s3 + $0x70] sm:$0xff]
  %v3534 = vld [vmem:[%s3 + $0x78] sm:$0xff]
  %v3535 = vld [vmem:[%s3 + $0x80] sm:$0xff]
  %v3536 = vld [vmem:[%s3 + $0x88] sm:$0xff]
  %v3537 = vld [vmem:[%s3 + $0x90] sm:$0xff]
  %v3538 = vld [vmem:[%s3 + $0x98] sm:$0xff]
  %v3539 = vld [vmem:[%s3 + $0xa0] sm:$0xff]
  %v3540 = vld [vmem:[%s3 + $0xa8] sm:$0xff]
  %v3541 = vld [vmem:[%s3 + $0xb0] sm:$0xff]
  %v3542 = vld [vmem:[%s3 + $0xb8] sm:$0xff]
  %v3543 = vld [vmem:[%s3 + $0xc0] sm:$0xff]
  %v3544 = vld [vmem:[%s3 + $0xc8] sm:$0xff]
  %v3545 = vld [vmem:[%s3 + $0xd0] sm:$0xff]
  %v3546 = vld [vmem:[%s3 + $0xd8] sm:$0xff]
  %v3547 = vld [vmem:[%s3 + $0xe0] sm:$0xff]
  %v3548 = vld [vmem:[%s3 + $0xe8] sm:$0xff]
  %v3549 = vld [vmem:[%s3 + $0xf0] sm:$0xff]
  %v3550 = vld [vmem:[%s3 + $0xf8] sm:$0xff]
  %v3551 = vld [vmem:[%s3 + $0x100] sm:$0xff]
  %v3552 = vld [vmem:[%s3 + $0x108] sm:$0xff]
  %v3553 = vld [vmem:[%s3 + $0x110] sm:$0xff]
  %v3554 = vld [vmem:[%s3 + $0x118] sm:$0xff]
  %v3555 = vld [vmem:[%s3 + $0x120] sm:$0xff]
  %v3556 = vld [vmem:[%s3 + $0x128] sm:$0xff]
  %v3557 = vld [vmem:[%s3 + $0x130] sm:$0xff]
  %v3558 = vld [vmem:[%s3 + $0x138] sm:$0xff]
  %v3559 = vld [vmem:[%s3 + $0x140] sm:$0xff]
  %v3560 = vld [vmem:[%s3 + $0x148] sm:$0xff]
  %v3561 = vld [vmem:[%s3 + $0x150] sm:$0xff]
  %v3562 = vld [vmem:[%s3 + $0x158] sm:$0xff]
  %v3563 = vld [vmem:[%s3 + $0x160] sm:$0xff]
  %v3564 = vld [vmem:[%s3 + $0x168] sm:$0xff]
  %v3565 = vld [vmem:[%s3 + $0x170] sm:$0xff]
  %v3566 = vld [vmem:[%s3 + $0x178] sm:$0xff]
  %v3567 = vld [vmem:[%s3 + $0x180] sm:$0xff]
  %v3568 = vld [vmem:[%s3 + $0x188] sm:$0xff]
  %v3569 = vld [vmem:[%s3 + $0x190] sm:$0xff]
  %v3570 = vld [vmem:[%s3 + $0x198] sm:$0xff]
  %v3571 = vld [vmem:[%s3 + $0x1a0] sm:$0xff]
  %v3572 = vld [vmem:[%s3 + $0x1a8] sm:$0xff]
  %v3573 = vld [vmem:[%s3 + $0x1b0] sm:$0xff]
  %v3574 = vld [vmem:[%s3 + $0x1b8] sm:$0xff]
  %v3575 = vld [vmem:[%s3 + $0x1c0] sm:$0xff]
  %v3576 = vld [vmem:[%s3 + $0x1c8] sm:$0xff]
  %v3577 = vld [vmem:[%s3 + $0x1d0] sm:$0xff]
  %v3578 = vld [vmem:[%s3 + $0x1d8] sm:$0xff]
  %v3579 = vld [vmem:[%s3 + $0x1e0] sm:$0xff]
  %v3580 = vld [vmem:[%s3 + $0x1e8] sm:$0xff]
  %v3581 = vld [vmem:[%s3 + $0x1f0] sm:$0xff]
  %v3582 = vld [vmem:[%s3 + $0x1f8] sm:$0xff]
  %v3583 = vld [vmem:[%s3 + $0x200] sm:$0xff]
  %v3584 = vld [vmem:[%s3 + $0x208] sm:$0xff]
  %v3585 = vld [vmem:[%s3 + $0x210] sm:$0xff]
  %v3586 = vld [vmem:[%s3 + $0x218] sm:$0xff]
  %v3587 = vld [vmem:[%s3 + $0x220] sm:$0xff]
  %v3588 = vld [vmem:[%s3 + $0x228] sm:$0xff]
  %v3589 = vld [vmem:[%s3 + $0x230] sm:$0xff]
  %v3590 = vld [vmem:[%s3 + $0x238] sm:$0xff]
  %v3591 = vld [vmem:[%s3 + $0x240] sm:$0xff]
  %v3592 = vld [vmem:[%s3 + $0x248] sm:$0xff]
  %v3593 = vld [vmem:[%s3 + $0x250] sm:$0xff]
  %v3594 = vld [vmem:[%s3 + $0x258] sm:$0xff]
  %v3595 = vld [vmem:[%s3 + $0x260] sm:$0xff]
  %v3596 = vld [vmem:[%s3 + $0x268] sm:$0xff]
  %v3597 = vld [vmem:[%s3 + $0x270] sm:$0xff]
  %v3598 = vld [vmem:[%s3 + $0x278] sm:$0xff]
  %v3599 = vld [vmem:[%s3 + $0x280] sm:$0xff]
  %v3600 = vld [vmem:[%s3 + $0x288] sm:$0xff]
  %v3601 = vld [vmem:[%s3 + $0x290] sm:$0xff]
  %v3602 = vld [vmem:[%s3 + $0x298] sm:$0xff]
  %v3603 = vld [vmem:[%s3 + $0x2a0] sm:$0xff]
  %v3604 = vld [vmem:[%s3 + $0x2a8] sm:$0xff]
  %v3605 = vld [vmem:[%s3 + $0x2b0] sm:$0xff]
  %v3606 = vld [vmem:[%s3 + $0x2b8] sm:$0xff]
  %v3607 = vld [vmem:[%s3 + $0x2c0] sm:$0xff]
  %v3608 = vld [vmem:[%s3 + $0x2c8] sm:$0xff]
  %v3609 = vld [vmem:[%s3 + $0x2d0] sm:$0xff]
  %v3610 = vld [vmem:[%s3 + $0x2d8] sm:$0xff]
  %v3611 = vld [vmem:[%s3 + $0x2e0] sm:$0xff]
  %v3612 = vld [vmem:[%s3 + $0x2e8] sm:$0xff]
  %v3613 = vld [vmem:[%s3 + $0x2f0] sm:$0xff]
  %v3614 = vld [vmem:[%s3 + $0x2f8] sm:$0xff]
  %v3615 = vld [vmem:[%s3 + $0x300] sm:$0xff]
  %v3616 = vld [vmem:[%s3 + $0x308] sm:$0xff]
  %v3617 = vld [vmem:[%s3 + $0x310] sm:$0xff]
  %v3618 = vld [vmem:[%s3 + $0x318] sm:$0xff]
  %v3619 = vld [vmem:[%s3 + $0x320] sm:$0xff]
  %v3620 = vld [vmem:[%s3 + $0x328] sm:$0xff]
  %v3621 = vld [vmem:[%s3 + $0x330] sm:$0xff]
  %v3622 = vld [vmem:[%s3 + $0x338] sm:$0xff]
  %v3623 = vld [vmem:[%s3 + $0x340] sm:$0xff]
  %v3624 = vld [vmem:[%s3 + $0x348] sm:$0xff]
  %v3625 = vld [vmem:[%s3 + $0x350] sm:$0xff]
  %v3626 = vld [vmem:[%s3 + $0x358] sm:$0xff]
  %v3627 = vld [vmem:[%s3 + $0x360] sm:$0xff]
  %v3628 = vld [vmem:[%s3 + $0x368] sm:$0xff]
  %v3629 = vld [vmem:[%s3 + $0x370] sm:$0xff]
  %v3630 = vld [vmem:[%s3 + $0x378] sm:$0xff]
  %v3631 = vld [vmem:[%s3 + $0x380] sm:$0xff]
  %v3632 = vld [vmem:[%s3 + $0x388] sm:$0xff]
  %v3633 = vld [vmem:[%s3 + $0x390] sm:$0xff]
  %v3634 = vld [vmem:[%s3 + $0x398] sm:$0xff]
  %v3635 = vld [vmem:[%s3 + $0x3a0] sm:$0xff]
  %v3636 = vld [vmem:[%s3 + $0x3a8] sm:$0xff]
  %v3637 = vld [vmem:[%s3 + $0x3b0] sm:$0xff]
  %v3638 = vld [vmem:[%s3 + $0x3b8] sm:$0xff]
  %s3639 = scalar_lea.vmem %s3, 960
  %v3640 = vld [vmem:[%s3639] sm:$0xff]
  %v3641 = vld [vmem:[%s3639 + $0x8] sm:$0xff]
  %v3642 = vld [vmem:[%s3639 + $0x10] sm:$0xff]
  %v3643 = vld [vmem:[%s3639 + $0x18] sm:$0xff]
  %v3644 = vld [vmem:[%s3639 + $0x20] sm:$0xff]
  %v3645 = vld [vmem:[%s3639 + $0x28] sm:$0xff]
  %v3646 = vld [vmem:[%s3639 + $0x30] sm:$0xff]
  %v3647 = vld [vmem:[%s3639 + $0x38] sm:$0xff]
  %v3648 = vld [vmem:[%s3639 + $0x40] sm:$0xff]
  %v3649 = vld [vmem:[%s3639 + $0x48] sm:$0xff]
  %v3650 = vld [vmem:[%s3639 + $0x50] sm:$0xff]
  %v3651 = vld [vmem:[%s3639 + $0x58] sm:$0xff]
  %v3652 = vld [vmem:[%s3639 + $0x60] sm:$0xff]
  %v3653 = vld [vmem:[%s3639 + $0x68] sm:$0xff]
  %v3654 = vld [vmem:[%s3639 + $0x70] sm:$0xff]
  %v3655 = vld [vmem:[%s3639 + $0x78] sm:$0xff]
  %v3656 = vld [vmem:[%s3639 + $0x80] sm:$0xff]
  %v3657 = vld [vmem:[%s3639 + $0x88] sm:$0xff]
  %v3658 = vld [vmem:[%s3639 + $0x90] sm:$0xff]
  %v3659 = vld [vmem:[%s3639 + $0x98] sm:$0xff]
  %v3660 = vld [vmem:[%s3639 + $0xa0] sm:$0xff]
  %v3661 = vld [vmem:[%s3639 + $0xa8] sm:$0xff]
  %v3662 = vld [vmem:[%s3639 + $0xb0] sm:$0xff]
  %v3663 = vld [vmem:[%s3639 + $0xb8] sm:$0xff]
  %v3664 = vld [vmem:[%s3639 + $0xc0] sm:$0xff]
  %v3665 = vld [vmem:[%s3639 + $0xc8] sm:$0xff]
  %v3666 = vld [vmem:[%s3639 + $0xd0] sm:$0xff]
  %v3667 = vld [vmem:[%s3639 + $0xd8] sm:$0xff]
  %v3668 = vld [vmem:[%s3639 + $0xe0] sm:$0xff]
  %v3669 = vld [vmem:[%s3639 + $0xe8] sm:$0xff]
  %v3670 = vld [vmem:[%s3639 + $0xf0] sm:$0xff]
  %v3671 = vld [vmem:[%s3639 + $0xf8] sm:$0xff]
  %v3672 = vld [vmem:[%s3639 + $0x100] sm:$0xff]
  %v3673 = vld [vmem:[%s3639 + $0x108] sm:$0xff]
  %v3674 = vld [vmem:[%s3639 + $0x110] sm:$0xff]
  %v3675 = vld [vmem:[%s3639 + $0x118] sm:$0xff]
  %v3676 = vld [vmem:[%s3639 + $0x120] sm:$0xff]
  %v3677 = vld [vmem:[%s3639 + $0x128] sm:$0xff]
  %v3678 = vld [vmem:[%s3639 + $0x130] sm:$0xff]
  %v3679 = vld [vmem:[%s3639 + $0x138] sm:$0xff]
  %v3680 = vld [vmem:[%s3639 + $0x140] sm:$0xff]
  %v3681 = vld [vmem:[%s3639 + $0x148] sm:$0xff]
  %v3682 = vld [vmem:[%s3639 + $0x150] sm:$0xff]
  %v3683 = vld [vmem:[%s3639 + $0x158] sm:$0xff]
  %v3684 = vld [vmem:[%s3639 + $0x160] sm:$0xff]
  %v3685 = vld [vmem:[%s3639 + $0x168] sm:$0xff]
  %v3686 = vld [vmem:[%s3639 + $0x170] sm:$0xff]
  %v3687 = vld [vmem:[%s3639 + $0x178] sm:$0xff]
  %v3688 = vld [vmem:[%s3639 + $0x180] sm:$0xff]
  %v3689 = vld [vmem:[%s3639 + $0x188] sm:$0xff]
  %v3690 = vld [vmem:[%s3639 + $0x190] sm:$0xff]
  %v3691 = vld [vmem:[%s3639 + $0x198] sm:$0xff]
  %v3692 = vld [vmem:[%s3639 + $0x1a0] sm:$0xff]
  %v3693 = vld [vmem:[%s3639 + $0x1a8] sm:$0xff]
  %v3694 = vld [vmem:[%s3639 + $0x1b0] sm:$0xff]
  %v3695 = vld [vmem:[%s3639 + $0x1b8] sm:$0xff]
  %v3696 = vld [vmem:[%s3639 + $0x1c0] sm:$0xff]
  %v3697 = vld [vmem:[%s3639 + $0x1c8] sm:$0xff]
  %v3698 = vld [vmem:[%s3639 + $0x1d0] sm:$0xff]
  %v3699 = vld [vmem:[%s3639 + $0x1d8] sm:$0xff]
  %v3700 = vld [vmem:[%s3639 + $0x1e0] sm:$0xff]
  %v3701 = vld [vmem:[%s3639 + $0x1e8] sm:$0xff]
  %v3702 = vld [vmem:[%s3639 + $0x1f0] sm:$0xff]
  %v3703 = vld [vmem:[%s3639 + $0x1f8] sm:$0xff]
  %v3704 = vld [vmem:[%s3639 + $0x200] sm:$0xff]
  %v3705 = vld [vmem:[%s3639 + $0x208] sm:$0xff]
  %v3706 = vld [vmem:[%s3639 + $0x210] sm:$0xff]
  %v3707 = vld [vmem:[%s3639 + $0x218] sm:$0xff]
  %v3708 = vld [vmem:[%s3639 + $0x220] sm:$0xff]
  %v3709 = vld [vmem:[%s3639 + $0x228] sm:$0xff]
  %v3710 = vld [vmem:[%s3639 + $0x230] sm:$0xff]
  %v3711 = vld [vmem:[%s3639 + $0x238] sm:$0xff]
  %v3712 = vld [vmem:[%s3639 + $0x240] sm:$0xff]
  %v3713 = vld [vmem:[%s3639 + $0x248] sm:$0xff]
  %v3714 = vld [vmem:[%s3639 + $0x250] sm:$0xff]
  %v3715 = vld [vmem:[%s3639 + $0x258] sm:$0xff]
  %v3716 = vld [vmem:[%s3639 + $0x260] sm:$0xff]
  %v3717 = vld [vmem:[%s3639 + $0x268] sm:$0xff]
  %v3718 = vld [vmem:[%s3639 + $0x270] sm:$0xff]
  %v3719 = vld [vmem:[%s3639 + $0x278] sm:$0xff]
  %v3720 = vld [vmem:[%s3639 + $0x280] sm:$0xff]
  %v3721 = vld [vmem:[%s3639 + $0x288] sm:$0xff]
  %v3722 = vld [vmem:[%s3639 + $0x290] sm:$0xff]
  %v3723 = vld [vmem:[%s3639 + $0x298] sm:$0xff]
  %v3724 = vld [vmem:[%s3639 + $0x2a0] sm:$0xff]
  %v3725 = vld [vmem:[%s3639 + $0x2a8] sm:$0xff]
  %v3726 = vld [vmem:[%s3639 + $0x2b0] sm:$0xff]
  %v3727 = vld [vmem:[%s3639 + $0x2b8] sm:$0xff]
  %v3728 = vld [vmem:[%s3639 + $0x2c0] sm:$0xff]
  %v3729 = vld [vmem:[%s3639 + $0x2c8] sm:$0xff]
  %v3730 = vld [vmem:[%s3639 + $0x2d0] sm:$0xff]
  %v3731 = vld [vmem:[%s3639 + $0x2d8] sm:$0xff]
  %v3732 = vld [vmem:[%s3639 + $0x2e0] sm:$0xff]
  %v3733 = vld [vmem:[%s3639 + $0x2e8] sm:$0xff]
  %v3734 = vld [vmem:[%s3639 + $0x2f0] sm:$0xff]
  %v3735 = vld [vmem:[%s3639 + $0x2f8] sm:$0xff]
  %v3736 = vld [vmem:[%s3639 + $0x300] sm:$0xff]
  %v3737 = vld [vmem:[%s3639 + $0x308] sm:$0xff]
  %v3738 = vld [vmem:[%s3639 + $0x310] sm:$0xff]
  %v3739 = vld [vmem:[%s3639 + $0x318] sm:$0xff]
  %v3740 = vld [vmem:[%s3639 + $0x320] sm:$0xff]
  %v3741 = vld [vmem:[%s3639 + $0x328] sm:$0xff]
  %v3742 = vld [vmem:[%s3639 + $0x330] sm:$0xff]
  %v3743 = vld [vmem:[%s3639 + $0x338] sm:$0xff]
  %v3744 = vld [vmem:[%s3639 + $0x340] sm:$0xff]
  %v3745 = vld [vmem:[%s3639 + $0x348] sm:$0xff]
  %v3746 = vld [vmem:[%s3639 + $0x350] sm:$0xff]
  %v3747 = vld [vmem:[%s3639 + $0x358] sm:$0xff]
  %v3748 = vld [vmem:[%s3639 + $0x360] sm:$0xff]
  %v3749 = vld [vmem:[%s3639 + $0x368] sm:$0xff]
  %v3750 = vld [vmem:[%s3639 + $0x370] sm:$0xff]
  %v3751 = vld [vmem:[%s3639 + $0x378] sm:$0xff]
  %v3752 = vld [vmem:[%s3639 + $0x380] sm:$0xff]
  %v3753 = vld [vmem:[%s3639 + $0x388] sm:$0xff]
  %v3754 = vld [vmem:[%s3639 + $0x390] sm:$0xff]
  %v3755 = vld [vmem:[%s3639 + $0x398] sm:$0xff]
  %v3756 = vld [vmem:[%s3639 + $0x3a0] sm:$0xff]
  %v3757 = vld [vmem:[%s3639 + $0x3a8] sm:$0xff]
  %v3758 = vld [vmem:[%s3639 + $0x3b0] sm:$0xff]
  %v3759 = vld [vmem:[%s3639 + $0x3b8] sm:$0xff]
  %s3760 = scalar_lea.vmem %s3, 1920
  %v3761 = vld [vmem:[%s3760] sm:$0xff]
  %v3762 = vld [vmem:[%s3760 + $0x8] sm:$0xff]
  %v3763 = vld [vmem:[%s3760 + $0x10] sm:$0xff]
  %v3764 = vld [vmem:[%s3760 + $0x18] sm:$0xff]
  %v3765 = vld [vmem:[%s3760 + $0x20] sm:$0xff]
  %v3766 = vld [vmem:[%s3760 + $0x28] sm:$0xff]
  %v3767 = vld [vmem:[%s3760 + $0x30] sm:$0xff]
  %v3768 = vld [vmem:[%s3760 + $0x38] sm:$0xff]
  %v3769 = vld [vmem:[%s3760 + $0x40] sm:$0xff]
  %v3770 = vld [vmem:[%s3760 + $0x48] sm:$0xff]
  %v3771 = vld [vmem:[%s3760 + $0x50] sm:$0xff]
  %v3772 = vld [vmem:[%s3760 + $0x58] sm:$0xff]
  %v3773 = vld [vmem:[%s3760 + $0x60] sm:$0xff]
  %v3774 = vld [vmem:[%s3760 + $0x68] sm:$0xff]
  %v3775 = vld [vmem:[%s3760 + $0x70] sm:$0xff]
  %v3776 = vld [vmem:[%s3760 + $0x78] sm:$0xff]
  %v3777 = vld [vmem:[%s3760 + $0x80] sm:$0xff]
  %v3778 = vld [vmem:[%s3760 + $0x88] sm:$0xff]
  %v3779 = vld [vmem:[%s3760 + $0x90] sm:$0xff]
  %v3780 = vld [vmem:[%s3760 + $0x98] sm:$0xff]
  %v3781 = vld [vmem:[%s3760 + $0xa0] sm:$0xff]
  %v3782 = vld [vmem:[%s3760 + $0xa8] sm:$0xff]
  %v3783 = vld [vmem:[%s3760 + $0xb0] sm:$0xff]
  %v3784 = vld [vmem:[%s3760 + $0xb8] sm:$0xff]
  %v3785 = vld [vmem:[%s3760 + $0xc0] sm:$0xff]
  %v3786 = vld [vmem:[%s3760 + $0xc8] sm:$0xff]
  %v3787 = vld [vmem:[%s3760 + $0xd0] sm:$0xff]
  %v3788 = vld [vmem:[%s3760 + $0xd8] sm:$0xff]
  %v3789 = vld [vmem:[%s3760 + $0xe0] sm:$0xff]
  %v3790 = vld [vmem:[%s3760 + $0xe8] sm:$0xff]
  %v3791 = vld [vmem:[%s3760 + $0xf0] sm:$0xff]
  %v3792 = vld [vmem:[%s3760 + $0xf8] sm:$0xff]
  %v3793 = vld [vmem:[%s3760 + $0x100] sm:$0xff]
  %v3794 = vld [vmem:[%s3760 + $0x108] sm:$0xff]
  %v3795 = vld [vmem:[%s3760 + $0x110] sm:$0xff]
  %v3796 = vld [vmem:[%s3760 + $0x118] sm:$0xff]
  %v3797 = vld [vmem:[%s3760 + $0x120] sm:$0xff]
  %v3798 = vld [vmem:[%s3760 + $0x128] sm:$0xff]
  %v3799 = vld [vmem:[%s3760 + $0x130] sm:$0xff]
  %v3800 = vld [vmem:[%s3760 + $0x138] sm:$0xff]
  %v3801 = vld [vmem:[%s3760 + $0x140] sm:$0xff]
  %v3802 = vld [vmem:[%s3760 + $0x148] sm:$0xff]
  %v3803 = vld [vmem:[%s3760 + $0x150] sm:$0xff]
  %v3804 = vld [vmem:[%s3760 + $0x158] sm:$0xff]
  %v3805 = vld [vmem:[%s3760 + $0x160] sm:$0xff]
  %v3806 = vld [vmem:[%s3760 + $0x168] sm:$0xff]
  %v3807 = vld [vmem:[%s3760 + $0x170] sm:$0xff]
  %v3808 = vld [vmem:[%s3760 + $0x178] sm:$0xff]
  %v3809 = vld [vmem:[%s3760 + $0x180] sm:$0xff]
  %v3810 = vld [vmem:[%s3760 + $0x188] sm:$0xff]
  %v3811 = vld [vmem:[%s3760 + $0x190] sm:$0xff]
  %v3812 = vld [vmem:[%s3760 + $0x198] sm:$0xff]
  %v3813 = vld [vmem:[%s3760 + $0x1a0] sm:$0xff]
  %v3814 = vld [vmem:[%s3760 + $0x1a8] sm:$0xff]
  %v3815 = vld [vmem:[%s3760 + $0x1b0] sm:$0xff]
  %v3816 = vld [vmem:[%s3760 + $0x1b8] sm:$0xff]
  %v3817 = vld [vmem:[%s3760 + $0x1c0] sm:$0xff]
  %v3818 = vld [vmem:[%s3760 + $0x1c8] sm:$0xff]
  %v3819 = vld [vmem:[%s3760 + $0x1d0] sm:$0xff]
  %v3820 = vld [vmem:[%s3760 + $0x1d8] sm:$0xff]
  %v3821 = vld [vmem:[%s3760 + $0x1e0] sm:$0xff]
  %v3822 = vld [vmem:[%s3760 + $0x1e8] sm:$0xff]
  %v3823 = vld [vmem:[%s3760 + $0x1f0] sm:$0xff]
  %v3824 = vld [vmem:[%s3760 + $0x1f8] sm:$0xff]
  %v3825 = vld [vmem:[%s3760 + $0x200] sm:$0xff]
  %v3826 = vld [vmem:[%s3760 + $0x208] sm:$0xff]
  %v3827 = vld [vmem:[%s3760 + $0x210] sm:$0xff]
  %v3828 = vld [vmem:[%s3760 + $0x218] sm:$0xff]
  %v3829 = vld [vmem:[%s3760 + $0x220] sm:$0xff]
  %v3830 = vld [vmem:[%s3760 + $0x228] sm:$0xff]
  %v3831 = vld [vmem:[%s3760 + $0x230] sm:$0xff]
  %v3832 = vld [vmem:[%s3760 + $0x238] sm:$0xff]
  %v3833 = vld [vmem:[%s3760 + $0x240] sm:$0xff]
  %v3834 = vld [vmem:[%s3760 + $0x248] sm:$0xff]
  %v3835 = vld [vmem:[%s3760 + $0x250] sm:$0xff]
  %v3836 = vld [vmem:[%s3760 + $0x258] sm:$0xff]
  %v3837 = vld [vmem:[%s3760 + $0x260] sm:$0xff]
  %v3838 = vld [vmem:[%s3760 + $0x268] sm:$0xff]
  %v3839 = vld [vmem:[%s3760 + $0x270] sm:$0xff]
  %v3840 = vld [vmem:[%s3760 + $0x278] sm:$0xff]
  %v3841 = vld [vmem:[%s3760 + $0x280] sm:$0xff]
  %v3842 = vld [vmem:[%s3760 + $0x288] sm:$0xff]
  %v3843 = vld [vmem:[%s3760 + $0x290] sm:$0xff]
  %v3844 = vld [vmem:[%s3760 + $0x298] sm:$0xff]
  %v3845 = vld [vmem:[%s3760 + $0x2a0] sm:$0xff]
  %v3846 = vld [vmem:[%s3760 + $0x2a8] sm:$0xff]
  %v3847 = vld [vmem:[%s3760 + $0x2b0] sm:$0xff]
  %v3848 = vld [vmem:[%s3760 + $0x2b8] sm:$0xff]
  %v3849 = vld [vmem:[%s3760 + $0x2c0] sm:$0xff]
  %v3850 = vld [vmem:[%s3760 + $0x2c8] sm:$0xff]
  %v3851 = vld [vmem:[%s3760 + $0x2d0] sm:$0xff]
  %v3852 = vld [vmem:[%s3760 + $0x2d8] sm:$0xff]
  %v3853 = vld [vmem:[%s3760 + $0x2e0] sm:$0xff]
  %v3854 = vld [vmem:[%s3760 + $0x2e8] sm:$0xff]
  %v3855 = vld [vmem:[%s3760 + $0x2f0] sm:$0xff]
  %v3856 = vld [vmem:[%s3760 + $0x2f8] sm:$0xff]
  %v3857 = vld [vmem:[%s3760 + $0x300] sm:$0xff]
  %v3858 = vld [vmem:[%s3760 + $0x308] sm:$0xff]
  %v3859 = vld [vmem:[%s3760 + $0x310] sm:$0xff]
  %v3860 = vld [vmem:[%s3760 + $0x318] sm:$0xff]
  %v3861 = vld [vmem:[%s3760 + $0x320] sm:$0xff]
  %v3862 = vld [vmem:[%s3760 + $0x328] sm:$0xff]
  %v3863 = vld [vmem:[%s3760 + $0x330] sm:$0xff]
  %v3864 = vld [vmem:[%s3760 + $0x338] sm:$0xff]
  %v3865 = vld [vmem:[%s3760 + $0x340] sm:$0xff]
  %v3866 = vld [vmem:[%s3760 + $0x348] sm:$0xff]
  %v3867 = vld [vmem:[%s3760 + $0x350] sm:$0xff]
  %v3868 = vld [vmem:[%s3760 + $0x358] sm:$0xff]
  %v3869 = vld [vmem:[%s3760 + $0x360] sm:$0xff]
  %v3870 = vld [vmem:[%s3760 + $0x368] sm:$0xff]
  %v3871 = vld [vmem:[%s3760 + $0x370] sm:$0xff]
  %v3872 = vld [vmem:[%s3760 + $0x378] sm:$0xff]
  %v3873 = vld [vmem:[%s3760 + $0x380] sm:$0xff]
  %v3874 = vld [vmem:[%s3760 + $0x388] sm:$0xff]
  %v3875 = vld [vmem:[%s3760 + $0x390] sm:$0xff]
  %v3876 = vld [vmem:[%s3760 + $0x398] sm:$0xff]
  %v3877 = vld [vmem:[%s3760 + $0x3a0] sm:$0xff]
  %v3878 = vld [vmem:[%s3760 + $0x3a8] sm:$0xff]
  %v3879 = vld [vmem:[%s3760 + $0x3b0] sm:$0xff]
  %v3880 = vld [vmem:[%s3760 + $0x3b8] sm:$0xff]
  %v3881 = vld [vmem:[#allocation3] sm:$0xf]
  %v3882 = vld [vmem:[#allocation3 + $0x8] sm:$0xf]
  %v3883 = vld [vmem:[#allocation3 + $0x10] sm:$0xf]
  %v3884 = vld [vmem:[%s3286] sm:$0xf]
  %v3885 = vld [vmem:[%s3286 + $0x8] sm:$0xf]
  %v3886 = vld [vmem:[%s3286 + $0x10] sm:$0xf]
  %v3887 = vld [vmem:[#allocation3] sm:$0x1e]
  %v3888 = vld [vmem:[#allocation3 + $0x8] sm:$0x1e]
  %v3889 = vld [vmem:[#allocation3 + $0x10] sm:$0x1e]
  %v3891 = vsel %vm2912, %v3886, 0
  %3893 = vmatpush.msra.mxu0 %v3685
  %3894 = vmatpush.msra.mxu0 %v3682
  %3895 = vmatpush.msra.mxu0 %v3679
  %3896 = vmatpush.msra.mxu0 %v3676
  %3897 = vmatpush.msra.mxu0 %v3673
  %3898 = vmatpush.msra.mxu0 %v3670
  %3899 = vmatpush.msra.mxu0 %v3667
  %3900 = vmatpush.msra.mxu0 %v3664
  %3901 = vmatpush.msra.mxu0 %v3661
  %3902 = vmatpush.msra.mxu0 %v3658
  %3903 = vmatpush.msra.mxu0 %v3655
  %3904 = vmatpush.msra.mxu0 %v3652
  %3905 = vmatpush.msra.mxu0 %v3649
  %3906 = vmatpush.msra.mxu0 %v3646
  %3907 = vmatpush.msra.mxu0 %v3643
  %3908 = vmatpush.msra.mxu0 %v3640
  %3909 = vmatmul.f32.gmra.mxu0 %v3884
  %v3910 = vpop.f32.mrf.mxu0
  %v3911 = vadd.f32 0.0, %v3910
  %3912 = vdwg.mxu0
  %3913 = vmatpush.msra.mxu0 %v3733
  %3914 = vmatpush.msra.mxu0 %v3730
  %3915 = vmatpush.msra.mxu0 %v3727
  %3916 = vmatpush.msra.mxu0 %v3724
  %3917 = vmatpush.msra.mxu0 %v3721
  %3918 = vmatpush.msra.mxu0 %v3718
  %3919 = vmatpush.msra.mxu0 %v3715
  %3920 = vmatpush.msra.mxu0 %v3712
  %3921 = vmatpush.msra.mxu0 %v3709
  %3922 = vmatpush.msra.mxu0 %v3706
  %3923 = vmatpush.msra.mxu0 %v3703
  %3924 = vmatpush.msra.mxu0 %v3700
  %3925 = vmatpush.msra.mxu0 %v3697
  %3926 = vmatpush.msra.mxu0 %v3694
  %3927 = vmatpush.msra.mxu0 %v3691
  %3928 = vmatpush.msra.mxu0 %v3688
  %3929 = vmatmul.f32.gmra.mxu0 %v3885
  %v3930 = vpop.f32.mrf.mxu0
  %v3931 = vadd.f32 %v3911, %v3930
  %3932 = vdwg.mxu0
  %3933 = vmatpush.msra.mxu0 0.0
  %3934 = vmatpush.msra.mxu0 0.0
  %3935 = vmatpush.msra.mxu0 0.0
  %3936 = vmatpush.msra.mxu0 0.0
  %3937 = vmatpush.msra.mxu0 0.0
  %3938 = vmatpush.msra.mxu0 0.0
  %3939 = vmatpush.msra.mxu0 0.0
  %3940 = vmatpush.msra.mxu0 0.0
  %3941 = vmatpush.msra.mxu0 %v3757
  %3942 = vmatpush.msra.mxu0 %v3754
  %3943 = vmatpush.msra.mxu0 %v3751
  %3944 = vmatpush.msra.mxu0 %v3748
  %3945 = vmatpush.msra.mxu0 %v3745
  %3946 = vmatpush.msra.mxu0 %v3742
  %3947 = vmatpush.msra.mxu0 %v3739
  %3948 = vmatpush.msra.mxu0 %v3736
  %3949 = vmatmul.f32.gmra.mxu0 %v3891
  %v3950 = vpop.f32.mrf.mxu0
  %v3951 = vadd.f32 %v3931, %v3950
  %3952 = vdwg.mxu0
  %3953 = vmatpush.msra.mxu0 %v3686
  %3954 = vmatpush.msra.mxu0 %v3683
  %3955 = vmatpush.msra.mxu0 %v3680
  %3956 = vmatpush.msra.mxu0 %v3677
  %3957 = vmatpush.msra.mxu0 %v3674
  %3958 = vmatpush.msra.mxu0 %v3671
  %3959 = vmatpush.msra.mxu0 %v3668
  %3960 = vmatpush.msra.mxu0 %v3665
  %3961 = vmatpush.msra.mxu0 %v3662
  %3962 = vmatpush.msra.mxu0 %v3659
  %3963 = vmatpush.msra.mxu0 %v3656
  %3964 = vmatpush.msra.mxu0 %v3653
  %3965 = vmatpush.msra.mxu0 %v3650
  %3966 = vmatpush.msra.mxu0 %v3647
  %3967 = vmatpush.msra.mxu0 %v3644
  %3968 = vmatpush.msra.mxu0 %v3641
  %3969 = vmatmul.f32.gmra.mxu0 %v3884
  %v3970 = vpop.f32.mrf.mxu0
  %v3971 = vadd.f32 0.0, %v3970
  %3972 = vdwg.mxu0
  %3973 = vmatpush.msra.mxu0 %v3734
  %3974 = vmatpush.msra.mxu0 %v3731
  %3975 = vmatpush.msra.mxu0 %v3728
  %3976 = vmatpush.msra.mxu0 %v3725
  %3977 = vmatpush.msra.mxu0 %v3722
  %3978 = vmatpush.msra.mxu0 %v3719
  %3979 = vmatpush.msra.mxu0 %v3716
  %3980 = vmatpush.msra.mxu0 %v3713
  %3981 = vmatpush.msra.mxu0 %v3710
  %3982 = vmatpush.msra.mxu0 %v3707
  %3983 = vmatpush.msra.mxu0 %v3704
  %3984 = vmatpush.msra.mxu0 %v3701
  %3985 = vmatpush.msra.mxu0 %v3698
  %3986 = vmatpush.msra.mxu0 %v3695
  %3987 = vmatpush.msra.mxu0 %v3692
  %3988 = vmatpush.msra.mxu0 %v3689
  %3989 = vmatmul.f32.gmra.mxu0 %v3885
  %v3990 = vpop.f32.mrf.mxu0
  %v3991 = vadd.f32 %v3971, %v3990
  %3992 = vdwg.mxu0
  %3993 = vmatpush.msra.mxu0 0.0
  %3994 = vmatpush.msra.mxu0 0.0
  %3995 = vmatpush.msra.mxu0 0.0
  %3996 = vmatpush.msra.mxu0 0.0
  %3997 = vmatpush.msra.mxu0 0.0
  %3998 = vmatpush.msra.mxu0 0.0
  %3999 = vmatpush.msra.mxu0 0.0
  %4000 = vmatpush.msra.mxu0 0.0
  %4001 = vmatpush.msra.mxu0 %v3758
  %4002 = vmatpush.msra.mxu0 %v3755
  %4003 = vmatpush.msra.mxu0 %v3752
  %4004 = vmatpush.msra.mxu0 %v3749
  %4005 = vmatpush.msra.mxu0 %v3746
  %4006 = vmatpush.msra.mxu0 %v3743
  %4007 = vmatpush.msra.mxu0 %v3740
  %4008 = vmatpush.msra.mxu0 %v3737
  %4009 = vmatmul.f32.gmra.mxu0 %v3891
  %v4010 = vpop.f32.mrf.mxu0
  %v4011 = vadd.f32 %v3991, %v4010
  %4012 = vdwg.mxu0
  %4013 = vmatpush.msra.mxu0 %v3687
  %4014 = vmatpush.msra.mxu0 %v3684
  %4015 = vmatpush.msra.mxu0 %v3681
  %4016 = vmatpush.msra.mxu0 %v3678
  %4017 = vmatpush.msra.mxu0 %v3675
  %4018 = vmatpush.msra.mxu0 %v3672
  %4019 = vmatpush.msra.mxu0 %v3669
  %4020 = vmatpush.msra.mxu0 %v3666
  %4021 = vmatpush.msra.mxu0 %v3663
  %4022 = vmatpush.msra.mxu0 %v3660
  %4023 = vmatpush.msra.mxu0 %v3657
  %4024 = vmatpush.msra.mxu0 %v3654
  %4025 = vmatpush.msra.mxu0 %v3651
  %4026 = vmatpush.msra.mxu0 %v3648
  %4027 = vmatpush.msra.mxu0 %v3645
  %4028 = vmatpush.msra.mxu0 %v3642
  %4029 = vmatmul.f32.gmra.mxu0 %v3884
  %v4030 = vpop.f32.mrf.mxu0
  %v4031 = vadd.f32 0.0, %v4030
  %4032 = vdwg.mxu0
  %4033 = vmatpush.msra.mxu0 %v3735
  %4034 = vmatpush.msra.mxu0 %v3732
  %4035 = vmatpush.msra.mxu0 %v3729
  %4036 = vmatpush.msra.mxu0 %v3726
  %4037 = vmatpush.msra.mxu0 %v3723
  %4038 = vmatpush.msra.mxu0 %v3720
  %4039 = vmatpush.msra.mxu0 %v3717
  %4040 = vmatpush.msra.mxu0 %v3714
  %4041 = vmatpush.msra.mxu0 %v3711
  %4042 = vmatpush.msra.mxu0 %v3708
  %4043 = vmatpush.msra.mxu0 %v3705
  %4044 = vmatpush.msra.mxu0 %v3702
  %4045 = vmatpush.msra.mxu0 %v3699
  %4046 = vmatpush.msra.mxu0 %v3696
  %4047 = vmatpush.msra.mxu0 %v3693
  %4048 = vmatpush.msra.mxu0 %v3690
  %4049 = vmatmul.f32.gmra.mxu0 %v3885
  %v4050 = vpop.f32.mrf.mxu0
  %v4051 = vadd.f32 %v4031, %v4050
  %4052 = vdwg.mxu0
  %4053 = vmatpush.msra.mxu0 0.0
  %4054 = vmatpush.msra.mxu0 0.0
  %4055 = vmatpush.msra.mxu0 0.0
  %4056 = vmatpush.msra.mxu0 0.0
  %4057 = vmatpush.msra.mxu0 0.0
  %4058 = vmatpush.msra.mxu0 0.0
  %4059 = vmatpush.msra.mxu0 0.0
  %4060 = vmatpush.msra.mxu0 0.0
  %4061 = vmatpush.msra.mxu0 %v3759
  %4062 = vmatpush.msra.mxu0 %v3756
  %4063 = vmatpush.msra.mxu0 %v3753
  %4064 = vmatpush.msra.mxu0 %v3750
  %4065 = vmatpush.msra.mxu0 %v3747
  %4066 = vmatpush.msra.mxu0 %v3744
  %4067 = vmatpush.msra.mxu0 %v3741
  %4068 = vmatpush.msra.mxu0 %v3738
  %4069 = vmatmul.f32.gmra.mxu0 %v3891
  %v4070 = vpop.f32.mrf.mxu0
  %v4071 = vadd.f32 %v4051, %v4070
  %4072 = vdwg.mxu0
  %v4074 = vsel %vm2912, %v3883, 0
  %4076 = vmatpush.msra.mxu0 %v3564
  %4077 = vmatpush.msra.mxu0 %v3561
  %4078 = vmatpush.msra.mxu0 %v3558
  %4079 = vmatpush.msra.mxu0 %v3555
  %4080 = vmatpush.msra.mxu0 %v3552
  %4081 = vmatpush.msra.mxu0 %v3549
  %4082 = vmatpush.msra.mxu0 %v3546
  %4083 = vmatpush.msra.mxu0 %v3543
  %4084 = vmatpush.msra.mxu0 %v3540
  %4085 = vmatpush.msra.mxu0 %v3537
  %4086 = vmatpush.msra.mxu0 %v3534
  %4087 = vmatpush.msra.mxu0 %v3531
  %4088 = vmatpush.msra.mxu0 %v3528
  %4089 = vmatpush.msra.mxu0 %v3525
  %4090 = vmatpush.msra.mxu0 %v3522
  %4091 = vmatpush.msra.mxu0 %v3519
  %4092 = vmatmul.f32.gmra.mxu0 %v3881
  %v4093 = vpop.f32.mrf.mxu0
  %v4094 = vadd.f32 %v3951, %v4093
  %4095 = vdwg.mxu0
  %4096 = vmatpush.msra.mxu0 %v3612
  %4097 = vmatpush.msra.mxu0 %v3609
  %4098 = vmatpush.msra.mxu0 %v3606
  %4099 = vmatpush.msra.mxu0 %v3603
  %4100 = vmatpush.msra.mxu0 %v3600
  %4101 = vmatpush.msra.mxu0 %v3597
  %4102 = vmatpush.msra.mxu0 %v3594
  %4103 = vmatpush.msra.mxu0 %v3591
  %4104 = vmatpush.msra.mxu0 %v3588
  %4105 = vmatpush.msra.mxu0 %v3585
  %4106 = vmatpush.msra.mxu0 %v3582
  %4107 = vmatpush.msra.mxu0 %v3579
  %4108 = vmatpush.msra.mxu0 %v3576
  %4109 = vmatpush.msra.mxu0 %v3573
  %4110 = vmatpush.msra.mxu0 %v3570
  %4111 = vmatpush.msra.mxu0 %v3567
  %4112 = vmatmul.f32.gmra.mxu0 %v3882
  %v4113 = vpop.f32.mrf.mxu0
  %v4114 = vadd.f32 %v4094, %v4113
  %4115 = vdwg.mxu0
  %4116 = vmatpush.msra.mxu0 0.0
  %4117 = vmatpush.msra.mxu0 0.0
  %4118 = vmatpush.msra.mxu0 0.0
  %4119 = vmatpush.msra.mxu0 0.0
  %4120 = vmatpush.msra.mxu0 0.0
  %4121 = vmatpush.msra.mxu0 0.0
  %4122 = vmatpush.msra.mxu0 0.0
  %4123 = vmatpush.msra.mxu0 0.0
  %4124 = vmatpush.msra.mxu0 %v3636
  %4125 = vmatpush.msra.mxu0 %v3633
  %4126 = vmatpush.msra.mxu0 %v3630
  %4127 = vmatpush.msra.mxu0 %v3627
  %4128 = vmatpush.msra.mxu0 %v3624
  %4129 = vmatpush.msra.mxu0 %v3621
  %4130 = vmatpush.msra.mxu0 %v3618
  %4131 = vmatpush.msra.mxu0 %v3615
  %4132 = vmatmul.f32.gmra.mxu0 %v4074
  %v4133 = vpop.f32.mrf.mxu0
  %v4134 = vadd.f32 %v4114, %v4133
  %4135 = vdwg.mxu0
  %4136 = vmatpush.msra.mxu0 %v3565
  %4137 = vmatpush.msra.mxu0 %v3562
  %4138 = vmatpush.msra.mxu0 %v3559
  %4139 = vmatpush.msra.mxu0 %v3556
  %4140 = vmatpush.msra.mxu0 %v3553
  %4141 = vmatpush.msra.mxu0 %v3550
  %4142 = vmatpush.msra.mxu0 %v3547
  %4143 = vmatpush.msra.mxu0 %v3544
  %4144 = vmatpush.msra.mxu0 %v3541
  %4145 = vmatpush.msra.mxu0 %v3538
  %4146 = vmatpush.msra.mxu0 %v3535
  %4147 = vmatpush.msra.mxu0 %v3532
  %4148 = vmatpush.msra.mxu0 %v3529
  %4149 = vmatpush.msra.mxu0 %v3526
  %4150 = vmatpush.msra.mxu0 %v3523
  %4151 = vmatpush.msra.mxu0 %v3520
  %4152 = vmatmul.f32.gmra.mxu0 %v3881
  %v4153 = vpop.f32.mrf.mxu0
  %v4154 = vadd.f32 %v4011, %v4153
  %4155 = vdwg.mxu0
  %4156 = vmatpush.msra.mxu0 %v3613
  %4157 = vmatpush.msra.mxu0 %v3610
  %4158 = vmatpush.msra.mxu0 %v3607
  %4159 = vmatpush.msra.mxu0 %v3604
  %4160 = vmatpush.msra.mxu0 %v3601
  %4161 = vmatpush.msra.mxu0 %v3598
  %4162 = vmatpush.msra.mxu0 %v3595
  %4163 = vmatpush.msra.mxu0 %v3592
  %4164 = vmatpush.msra.mxu0 %v3589
  %4165 = vmatpush.msra.mxu0 %v3586
  %4166 = vmatpush.msra.mxu0 %v3583
  %4167 = vmatpush.msra.mxu0 %v3580
  %4168 = vmatpush.msra.mxu0 %v3577
  %4169 = vmatpush.msra.mxu0 %v3574
  %4170 = vmatpush.msra.mxu0 %v3571
  %4171 = vmatpush.msra.mxu0 %v3568
  %4172 = vmatmul.f32.gmra.mxu0 %v3882
  %v4173 = vpop.f32.mrf.mxu0
  %v4174 = vadd.f32 %v4154, %v4173
  %4175 = vdwg.mxu0
  %4176 = vmatpush.msra.mxu0 0.0
  %4177 = vmatpush.msra.mxu0 0.0
  %4178 = vmatpush.msra.mxu0 0.0
  %4179 = vmatpush.msra.mxu0 0.0
  %4180 = vmatpush.msra.mxu0 0.0
  %4181 = vmatpush.msra.mxu0 0.0
  %4182 = vmatpush.msra.mxu0 0.0
  %4183 = vmatpush.msra.mxu0 0.0
  %4184 = vmatpush.msra.mxu0 %v3637
  %4185 = vmatpush.msra.mxu0 %v3634
  %4186 = vmatpush.msra.mxu0 %v3631
  %4187 = vmatpush.msra.mxu0 %v3628
  %4188 = vmatpush.msra.mxu0 %v3625
  %4189 = vmatpush.msra.mxu0 %v3622
  %4190 = vmatpush.msra.mxu0 %v3619
  %4191 = vmatpush.msra.mxu0 %v3616
  %4192 = vmatmul.f32.gmra.mxu0 %v4074
  %v4193 = vpop.f32.mrf.mxu0
  %v4194 = vadd.f32 %v4174, %v4193
  %4195 = vdwg.mxu0
  %4196 = vmatpush.msra.mxu0 %v3566
  %4197 = vmatpush.msra.mxu0 %v3563
  %4198 = vmatpush.msra.mxu0 %v3560
  %4199 = vmatpush.msra.mxu0 %v3557
  %4200 = vmatpush.msra.mxu0 %v3554
  %4201 = vmatpush.msra.mxu0 %v3551
  %4202 = vmatpush.msra.mxu0 %v3548
  %4203 = vmatpush.msra.mxu0 %v3545
  %4204 = vmatpush.msra.mxu0 %v3542
  %4205 = vmatpush.msra.mxu0 %v3539
  %4206 = vmatpush.msra.mxu0 %v3536
  %4207 = vmatpush.msra.mxu0 %v3533
  %4208 = vmatpush.msra.mxu0 %v3530
  %4209 = vmatpush.msra.mxu0 %v3527
  %4210 = vmatpush.msra.mxu0 %v3524
  %4211 = vmatpush.msra.mxu0 %v3521
  %4212 = vmatmul.f32.gmra.mxu0 %v3881
  %v4213 = vpop.f32.mrf.mxu0
  %v4214 = vadd.f32 %v4071, %v4213
  %4215 = vdwg.mxu0
  %4216 = vmatpush.msra.mxu0 %v3614
  %4217 = vmatpush.msra.mxu0 %v3611
  %4218 = vmatpush.msra.mxu0 %v3608
  %4219 = vmatpush.msra.mxu0 %v3605
  %4220 = vmatpush.msra.mxu0 %v3602
  %4221 = vmatpush.msra.mxu0 %v3599
  %4222 = vmatpush.msra.mxu0 %v3596
  %4223 = vmatpush.msra.mxu0 %v3593
  %4224 = vmatpush.msra.mxu0 %v3590
  %4225 = vmatpush.msra.mxu0 %v3587
  %4226 = vmatpush.msra.mxu0 %v3584
  %4227 = vmatpush.msra.mxu0 %v3581
  %4228 = vmatpush.msra.mxu0 %v3578
  %4229 = vmatpush.msra.mxu0 %v3575
  %4230 = vmatpush.msra.mxu0 %v3572
  %4231 = vmatpush.msra.mxu0 %v3569
  %4232 = vmatmul.f32.gmra.mxu0 %v3882
  %v4233 = vpop.f32.mrf.mxu0
  %v4234 = vadd.f32 %v4214, %v4233
  %4235 = vdwg.mxu0
  %4236 = vmatpush.msra.mxu0 0.0
  %4237 = vmatpush.msra.mxu0 0.0
  %4238 = vmatpush.msra.mxu0 0.0
  %4239 = vmatpush.msra.mxu0 0.0
  %4240 = vmatpush.msra.mxu0 0.0
  %4241 = vmatpush.msra.mxu0 0.0
  %4242 = vmatpush.msra.mxu0 0.0
  %4243 = vmatpush.msra.mxu0 0.0
  %4244 = vmatpush.msra.mxu0 %v3638
  %4245 = vmatpush.msra.mxu0 %v3635
  %4246 = vmatpush.msra.mxu0 %v3632
  %4247 = vmatpush.msra.mxu0 %v3629
  %4248 = vmatpush.msra.mxu0 %v3626
  %4249 = vmatpush.msra.mxu0 %v3623
  %4250 = vmatpush.msra.mxu0 %v3620
  %4251 = vmatpush.msra.mxu0 %v3617
  %4252 = vmatmul.f32.gmra.mxu0 %v4074
  %v4253 = vpop.f32.mrf.mxu0
  %v4254 = vadd.f32 %v4234, %v4253
  %4255 = vdwg.mxu0
  %v4259 = vrot.slane %v3887, 1
  %v4260 = vrot.slane %v3888, 1
  %v4261 = vrot.slane %v3889, 1
  %v4264 = vsel %vm2912, %v4261, 0
  %4266 = vmatpush.msra.mxu0 %v3806
  %4267 = vmatpush.msra.mxu0 %v3803
  %4268 = vmatpush.msra.mxu0 %v3800
  %4269 = vmatpush.msra.mxu0 %v3797
  %4270 = vmatpush.msra.mxu0 %v3794
  %4271 = vmatpush.msra.mxu0 %v3791
  %4272 = vmatpush.msra.mxu0 %v3788
  %4273 = vmatpush.msra.mxu0 %v3785
  %4274 = vmatpush.msra.mxu0 %v3782
  %4275 = vmatpush.msra.mxu0 %v3779
  %4276 = vmatpush.msra.mxu0 %v3776
  %4277 = vmatpush.msra.mxu0 %v3773
  %4278 = vmatpush.msra.mxu0 %v3770
  %4279 = vmatpush.msra.mxu0 %v3767
  %4280 = vmatpush.msra.mxu0 %v3764
  %4281 = vmatpush.msra.mxu0 %v3761
  %4282 = vmatmul.f32.gmra.mxu0 %v4259
  %v4283 = vpop.f32.mrf.mxu0
  %v4284 = vadd.f32 0.0, %v4283
  %4285 = vdwg.mxu0
  %4286 = vmatpush.msra.mxu0 %v3854
  %4287 = vmatpush.msra.mxu0 %v3851
  %4288 = vmatpush.msra.mxu0 %v3848
  %4289 = vmatpush.msra.mxu0 %v3845
  %4290 = vmatpush.msra.mxu0 %v3842
  %4291 = vmatpush.msra.mxu0 %v3839
  %4292 = vmatpush.msra.mxu0 %v3836
  %4293 = vmatpush.msra.mxu0 %v3833
  %4294 = vmatpush.msra.mxu0 %v3830
  %4295 = vmatpush.msra.mxu0 %v3827
  %4296 = vmatpush.msra.mxu0 %v3824
  %4297 = vmatpush.msra.mxu0 %v3821
  %4298 = vmatpush.msra.mxu0 %v3818
  %4299 = vmatpush.msra.mxu0 %v3815
  %4300 = vmatpush.msra.mxu0 %v3812
  %4301 = vmatpush.msra.mxu0 %v3809
  %4302 = vmatmul.f32.gmra.mxu0 %v4260
  %v4303 = vpop.f32.mrf.mxu0
  %v4304 = vadd.f32 %v4284, %v4303
  %4305 = vdwg.mxu0
  %4306 = vmatpush.msra.mxu0 0.0
  %4307 = vmatpush.msra.mxu0 0.0
  %4308 = vmatpush.msra.mxu0 0.0
  %4309 = vmatpush.msra.mxu0 0.0
  %4310 = vmatpush.msra.mxu0 0.0
  %4311 = vmatpush.msra.mxu0 0.0
  %4312 = vmatpush.msra.mxu0 0.0
  %4313 = vmatpush.msra.mxu0 0.0
  %4314 = vmatpush.msra.mxu0 %v3878
  %4315 = vmatpush.msra.mxu0 %v3875
  %4316 = vmatpush.msra.mxu0 %v3872
  %4317 = vmatpush.msra.mxu0 %v3869
  %4318 = vmatpush.msra.mxu0 %v3866
  %4319 = vmatpush.msra.mxu0 %v3863
  %4320 = vmatpush.msra.mxu0 %v3860
  %4321 = vmatpush.msra.mxu0 %v3857
  %4322 = vmatmul.f32.gmra.mxu0 %v4264
  %v4323 = vpop.f32.mrf.mxu0
  %v4324 = vadd.f32 %v4304, %v4323
  %4325 = vdwg.mxu0
  %4326 = vmatpush.msra.mxu0 %v3807
  %4327 = vmatpush.msra.mxu0 %v3804
  %4328 = vmatpush.msra.mxu0 %v3801
  %4329 = vmatpush.msra.mxu0 %v3798
  %4330 = vmatpush.msra.mxu0 %v3795
  %4331 = vmatpush.msra.mxu0 %v3792
  %4332 = vmatpush.msra.mxu0 %v3789
  %4333 = vmatpush.msra.mxu0 %v3786
  %4334 = vmatpush.msra.mxu0 %v3783
  %4335 = vmatpush.msra.mxu0 %v3780
  %4336 = vmatpush.msra.mxu0 %v3777
  %4337 = vmatpush.msra.mxu0 %v3774
  %4338 = vmatpush.msra.mxu0 %v3771
  %4339 = vmatpush.msra.mxu0 %v3768
  %4340 = vmatpush.msra.mxu0 %v3765
  %4341 = vmatpush.msra.mxu0 %v3762
  %4342 = vmatmul.f32.gmra.mxu0 %v4259
  %v4343 = vpop.f32.mrf.mxu0
  %v4344 = vadd.f32 0.0, %v4343
  %4345 = vdwg.mxu0
  %4346 = vmatpush.msra.mxu0 %v3855
  %4347 = vmatpush.msra.mxu0 %v3852
  %4348 = vmatpush.msra.mxu0 %v3849
  %4349 = vmatpush.msra.mxu0 %v3846
  %4350 = vmatpush.msra.mxu0 %v3843
  %4351 = vmatpush.msra.mxu0 %v3840
  %4352 = vmatpush.msra.mxu0 %v3837
  %4353 = vmatpush.msra.mxu0 %v3834
  %4354 = vmatpush.msra.mxu0 %v3831
  %4355 = vmatpush.msra.mxu0 %v3828
  %4356 = vmatpush.msra.mxu0 %v3825
  %4357 = vmatpush.msra.mxu0 %v3822
  %4358 = vmatpush.msra.mxu0 %v3819
  %4359 = vmatpush.msra.mxu0 %v3816
  %4360 = vmatpush.msra.mxu0 %v3813
  %4361 = vmatpush.msra.mxu0 %v3810
  %4362 = vmatmul.f32.gmra.mxu0 %v4260
  %v4363 = vpop.f32.mrf.mxu0
  %v4364 = vadd.f32 %v4344, %v4363
  %4365 = vdwg.mxu0
  %4366 = vmatpush.msra.mxu0 0.0
  %4367 = vmatpush.msra.mxu0 0.0
  %4368 = vmatpush.msra.mxu0 0.0
  %4369 = vmatpush.msra.mxu0 0.0
  %4370 = vmatpush.msra.mxu0 0.0
  %4371 = vmatpush.msra.mxu0 0.0
  %4372 = vmatpush.msra.mxu0 0.0
  %4373 = vmatpush.msra.mxu0 0.0
  %4374 = vmatpush.msra.mxu0 %v3879
  %4375 = vmatpush.msra.mxu0 %v3876
  %4376 = vmatpush.msra.mxu0 %v3873
  %4377 = vmatpush.msra.mxu0 %v3870
  %4378 = vmatpush.msra.mxu0 %v3867
  %4379 = vmatpush.msra.mxu0 %v3864
  %4380 = vmatpush.msra.mxu0 %v3861
  %4381 = vmatpush.msra.mxu0 %v3858
  %4382 = vmatmul.f32.gmra.mxu0 %v4264
  %v4383 = vpop.f32.mrf.mxu0
  %v4384 = vadd.f32 %v4364, %v4383
  %4385 = vdwg.mxu0
  %4386 = vmatpush.msra.mxu0 %v3808
  %4387 = vmatpush.msra.mxu0 %v3805
  %4388 = vmatpush.msra.mxu0 %v3802
  %4389 = vmatpush.msra.mxu0 %v3799
  %4390 = vmatpush.msra.mxu0 %v3796
  %4391 = vmatpush.msra.mxu0 %v3793
  %4392 = vmatpush.msra.mxu0 %v3790
  %4393 = vmatpush.msra.mxu0 %v3787
  %4394 = vmatpush.msra.mxu0 %v3784
  %4395 = vmatpush.msra.mxu0 %v3781
  %4396 = vmatpush.msra.mxu0 %v3778
  %4397 = vmatpush.msra.mxu0 %v3775
  %4398 = vmatpush.msra.mxu0 %v3772
  %4399 = vmatpush.msra.mxu0 %v3769
  %4400 = vmatpush.msra.mxu0 %v3766
  %4401 = vmatpush.msra.mxu0 %v3763
  %4402 = vmatmul.f32.gmra.mxu0 %v4259
  %v4403 = vpop.f32.mrf.mxu0
  %v4404 = vadd.f32 0.0, %v4403
  %4405 = vdwg.mxu0
  %4406 = vmatpush.msra.mxu0 %v3856
  %4407 = vmatpush.msra.mxu0 %v3853
  %4408 = vmatpush.msra.mxu0 %v3850
  %4409 = vmatpush.msra.mxu0 %v3847
  %4410 = vmatpush.msra.mxu0 %v3844
  %4411 = vmatpush.msra.mxu0 %v3841
  %4412 = vmatpush.msra.mxu0 %v3838
  %4413 = vmatpush.msra.mxu0 %v3835
  %4414 = vmatpush.msra.mxu0 %v3832
  %4415 = vmatpush.msra.mxu0 %v3829
  %4416 = vmatpush.msra.mxu0 %v3826
  %4417 = vmatpush.msra.mxu0 %v3823
  %4418 = vmatpush.msra.mxu0 %v3820
  %4419 = vmatpush.msra.mxu0 %v3817
  %4420 = vmatpush.msra.mxu0 %v3814
  %4421 = vmatpush.msra.mxu0 %v3811
  %4422 = vmatmul.f32.gmra.mxu0 %v4260
  %v4423 = vpop.f32.mrf.mxu0
  %v4424 = vadd.f32 %v4404, %v4423
  %4425 = vdwg.mxu0
  %4426 = vmatpush.msra.mxu0 0.0
  %4427 = vmatpush.msra.mxu0 0.0
  %4428 = vmatpush.msra.mxu0 0.0
  %4429 = vmatpush.msra.mxu0 0.0
  %4430 = vmatpush.msra.mxu0 0.0
  %4431 = vmatpush.msra.mxu0 0.0
  %4432 = vmatpush.msra.mxu0 0.0
  %4433 = vmatpush.msra.mxu0 0.0
  %4434 = vmatpush.msra.mxu0 %v3880
  %4435 = vmatpush.msra.mxu0 %v3877
  %4436 = vmatpush.msra.mxu0 %v3874
  %4437 = vmatpush.msra.mxu0 %v3871
  %4438 = vmatpush.msra.mxu0 %v3868
  %4439 = vmatpush.msra.mxu0 %v3865
  %4440 = vmatpush.msra.mxu0 %v3862
  %4441 = vmatpush.msra.mxu0 %v3859
  %4442 = vmatmul.f32.gmra.mxu0 %v4264
  %v4443 = vpop.f32.mrf.mxu0
  %v4444 = vadd.f32 %v4424, %v4443
  %4445 = vdwg.mxu0
  %v4446 = vadd.f32 %v4134, %v4324
  %v4447 = vadd.f32 %v4194, %v4384
  %v4448 = vadd.f32 %v4254, %v4444
  %v4449 = vld [vmem:[%s3515] sm:$0xf]
  %v4450 = vld [vmem:[%s3515 + $0x8] sm:$0xf]
  %v4451 = vld [vmem:[%s3515 + $0x10] sm:$0xf]
  %v4452 = vld [vmem:[%s3442] sm:$0xf]
  %v4453 = vld [vmem:[%s3442 + $0x8] sm:$0xf]
  %v4454 = vld [vmem:[%s3442 + $0x10] sm:$0xf]
  %v4455 = vld [vmem:[%s3515] sm:$0x1e]
  %v4456 = vld [vmem:[%s3515 + $0x8] sm:$0x1e]
  %v4457 = vld [vmem:[%s3515 + $0x10] sm:$0x1e]
  %v4459 = vsel %vm2912, %v4454, 0
  %4461 = vmatpush.msra.mxu0 %v3685
  %4462 = vmatpush.msra.mxu0 %v3682
  %4463 = vmatpush.msra.mxu0 %v3679
  %4464 = vmatpush.msra.mxu0 %v3676
  %4465 = vmatpush.msra.mxu0 %v3673
  %4466 = vmatpush.msra.mxu0 %v3670
  %4467 = vmatpush.msra.mxu0 %v3667
  %4468 = vmatpush.msra.mxu0 %v3664
  %4469 = vmatpush.msra.mxu0 %v3661
  %4470 = vmatpush.msra.mxu0 %v3658
  %4471 = vmatpush.msra.mxu0 %v3655
  %4472 = vmatpush.msra.mxu0 %v3652
  %4473 = vmatpush.msra.mxu0 %v3649
  %4474 = vmatpush.msra.mxu0 %v3646
  %4475 = vmatpush.msra.mxu0 %v3643
  %4476 = vmatpush.msra.mxu0 %v3640
  %4477 = vmatmul.f32.gmra.mxu0 %v4452
  %v4478 = vpop.f32.mrf.mxu0
  %v4479 = vadd.f32 0.0, %v4478
  %4480 = vdwg.mxu0
  %4481 = vmatpush.msra.mxu0 %v3733
  %4482 = vmatpush.msra.mxu0 %v3730
  %4483 = vmatpush.msra.mxu0 %v3727
  %4484 = vmatpush.msra.mxu0 %v3724
  %4485 = vmatpush.msra.mxu0 %v3721
  %4486 = vmatpush.msra.mxu0 %v3718
  %4487 = vmatpush.msra.mxu0 %v3715
  %4488 = vmatpush.msra.mxu0 %v3712
  %4489 = vmatpush.msra.mxu0 %v3709
  %4490 = vmatpush.msra.mxu0 %v3706
  %4491 = vmatpush.msra.mxu0 %v3703
  %4492 = vmatpush.msra.mxu0 %v3700
  %4493 = vmatpush.msra.mxu0 %v3697
  %4494 = vmatpush.msra.mxu0 %v3694
  %4495 = vmatpush.msra.mxu0 %v3691
  %4496 = vmatpush.msra.mxu0 %v3688
  %4497 = vmatmul.f32.gmra.mxu0 %v4453
  %v4498 = vpop.f32.mrf.mxu0
  %v4499 = vadd.f32 %v4479, %v4498
  %4500 = vdwg.mxu0
  %4501 = vmatpush.msra.mxu0 0.0
  %4502 = vmatpush.msra.mxu0 0.0
  %4503 = vmatpush.msra.mxu0 0.0
  %4504 = vmatpush.msra.mxu0 0.0
  %4505 = vmatpush.msra.mxu0 0.0
  %4506 = vmatpush.msra.mxu0 0.0
  %4507 = vmatpush.msra.mxu0 0.0
  %4508 = vmatpush.msra.mxu0 0.0
  %4509 = vmatpush.msra.mxu0 %v3757
  %4510 = vmatpush.msra.mxu0 %v3754
  %4511 = vmatpush.msra.mxu0 %v3751
  %4512 = vmatpush.msra.mxu0 %v3748
  %4513 = vmatpush.msra.mxu0 %v3745
  %4514 = vmatpush.msra.mxu0 %v3742
  %4515 = vmatpush.msra.mxu0 %v3739
  %4516 = vmatpush.msra.mxu0 %v3736
  %4517 = vmatmul.f32.gmra.mxu0 %v4459
  %v4518 = vpop.f32.mrf.mxu0
  %v4519 = vadd.f32 %v4499, %v4518
  %4520 = vdwg.mxu0
  %4521 = vmatpush.msra.mxu0 %v3686
  %4522 = vmatpush.msra.mxu0 %v3683
  %4523 = vmatpush.msra.mxu0 %v3680
  %4524 = vmatpush.msra.mxu0 %v3677
  %4525 = vmatpush.msra.mxu0 %v3674
  %4526 = vmatpush.msra.mxu0 %v3671
  %4527 = vmatpush.msra.mxu0 %v3668
  %4528 = vmatpush.msra.mxu0 %v3665
  %4529 = vmatpush.msra.mxu0 %v3662
  %4530 = vmatpush.msra.mxu0 %v3659
  %4531 = vmatpush.msra.mxu0 %v3656
  %4532 = vmatpush.msra.mxu0 %v3653
  %4533 = vmatpush.msra.mxu0 %v3650
  %4534 = vmatpush.msra.mxu0 %v3647
  %4535 = vmatpush.msra.mxu0 %v3644
  %4536 = vmatpush.msra.mxu0 %v3641
  %4537 = vmatmul.f32.gmra.mxu0 %v4452
  %v4538 = vpop.f32.mrf.mxu0
  %v4539 = vadd.f32 0.0, %v4538
  %4540 = vdwg.mxu0
  %4541 = vmatpush.msra.mxu0 %v3734
  %4542 = vmatpush.msra.mxu0 %v3731
  %4543 = vmatpush.msra.mxu0 %v3728
  %4544 = vmatpush.msra.mxu0 %v3725
  %4545 = vmatpush.msra.mxu0 %v3722
  %4546 = vmatpush.msra.mxu0 %v3719
  %4547 = vmatpush.msra.mxu0 %v3716
  %4548 = vmatpush.msra.mxu0 %v3713
  %4549 = vmatpush.msra.mxu0 %v3710
  %4550 = vmatpush.msra.mxu0 %v3707
  %4551 = vmatpush.msra.mxu0 %v3704
  %4552 = vmatpush.msra.mxu0 %v3701
  %4553 = vmatpush.msra.mxu0 %v3698
  %4554 = vmatpush.msra.mxu0 %v3695
  %4555 = vmatpush.msra.mxu0 %v3692
  %4556 = vmatpush.msra.mxu0 %v3689
  %4557 = vmatmul.f32.gmra.mxu0 %v4453
  %v4558 = vpop.f32.mrf.mxu0
  %v4559 = vadd.f32 %v4539, %v4558
  %4560 = vdwg.mxu0
  %4561 = vmatpush.msra.mxu0 0.0
  %4562 = vmatpush.msra.mxu0 0.0
  %4563 = vmatpush.msra.mxu0 0.0
  %4564 = vmatpush.msra.mxu0 0.0
  %4565 = vmatpush.msra.mxu0 0.0
  %4566 = vmatpush.msra.mxu0 0.0
  %4567 = vmatpush.msra.mxu0 0.0
  %4568 = vmatpush.msra.mxu0 0.0
  %4569 = vmatpush.msra.mxu0 %v3758
  %4570 = vmatpush.msra.mxu0 %v3755
  %4571 = vmatpush.msra.mxu0 %v3752
  %4572 = vmatpush.msra.mxu0 %v3749
  %4573 = vmatpush.msra.mxu0 %v3746
  %4574 = vmatpush.msra.mxu0 %v3743
  %4575 = vmatpush.msra.mxu0 %v3740
  %4576 = vmatpush.msra.mxu0 %v3737
  %4577 = vmatmul.f32.gmra.mxu0 %v4459
  %v4578 = vpop.f32.mrf.mxu0
  %v4579 = vadd.f32 %v4559, %v4578
  %4580 = vdwg.mxu0
  %4581 = vmatpush.msra.mxu0 %v3687
  %4582 = vmatpush.msra.mxu0 %v3684
  %4583 = vmatpush.msra.mxu0 %v3681
  %4584 = vmatpush.msra.mxu0 %v3678
  %4585 = vmatpush.msra.mxu0 %v3675
  %4586 = vmatpush.msra.mxu0 %v3672
  %4587 = vmatpush.msra.mxu0 %v3669
  %4588 = vmatpush.msra.mxu0 %v3666
  %4589 = vmatpush.msra.mxu0 %v3663
  %4590 = vmatpush.msra.mxu0 %v3660
  %4591 = vmatpush.msra.mxu0 %v3657
  %4592 = vmatpush.msra.mxu0 %v3654
  %4593 = vmatpush.msra.mxu0 %v3651
  %4594 = vmatpush.msra.mxu0 %v3648
  %4595 = vmatpush.msra.mxu0 %v3645
  %4596 = vmatpush.msra.mxu0 %v3642
  %4597 = vmatmul.f32.gmra.mxu0 %v4452
  %v4598 = vpop.f32.mrf.mxu0
  %v4599 = vadd.f32 0.0, %v4598
  %4600 = vdwg.mxu0
  %4601 = vmatpush.msra.mxu0 %v3735
  %4602 = vmatpush.msra.mxu0 %v3732
  %4603 = vmatpush.msra.mxu0 %v3729
  %4604 = vmatpush.msra.mxu0 %v3726
  %4605 = vmatpush.msra.mxu0 %v3723
  %4606 = vmatpush.msra.mxu0 %v3720
  %4607 = vmatpush.msra.mxu0 %v3717
  %4608 = vmatpush.msra.mxu0 %v3714
  %4609 = vmatpush.msra.mxu0 %v3711
  %4610 = vmatpush.msra.mxu0 %v3708
  %4611 = vmatpush.msra.mxu0 %v3705
  %4612 = vmatpush.msra.mxu0 %v3702
  %4613 = vmatpush.msra.mxu0 %v3699
  %4614 = vmatpush.msra.mxu0 %v3696
  %4615 = vmatpush.msra.mxu0 %v3693
  %4616 = vmatpush.msra.mxu0 %v3690
  %4617 = vmatmul.f32.gmra.mxu0 %v4453
  %v4618 = vpop.f32.mrf.mxu0
  %v4619 = vadd.f32 %v4599, %v4618
  %4620 = vdwg.mxu0
  %4621 = vmatpush.msra.mxu0 0.0
  %4622 = vmatpush.msra.mxu0 0.0
  %4623 = vmatpush.msra.mxu0 0.0
  %4624 = vmatpush.msra.mxu0 0.0
  %4625 = vmatpush.msra.mxu0 0.0
  %4626 = vmatpush.msra.mxu0 0.0
  %4627 = vmatpush.msra.mxu0 0.0
  %4628 = vmatpush.msra.mxu0 0.0
  %4629 = vmatpush.msra.mxu0 %v3759
  %4630 = vmatpush.msra.mxu0 %v3756
  %4631 = vmatpush.msra.mxu0 %v3753
  %4632 = vmatpush.msra.mxu0 %v3750
  %4633 = vmatpush.msra.mxu0 %v3747
  %4634 = vmatpush.msra.mxu0 %v3744
  %4635 = vmatpush.msra.mxu0 %v3741
  %4636 = vmatpush.msra.mxu0 %v3738
  %4637 = vmatmul.f32.gmra.mxu0 %v4459
  %v4638 = vpop.f32.mrf.mxu0
  %v4639 = vadd.f32 %v4619, %v4638
  %4640 = vdwg.mxu0
  %v4642 = vsel %vm2912, %v4451, 0
  %4644 = vmatpush.msra.mxu0 %v3564
  %4645 = vmatpush.msra.mxu0 %v3561
  %4646 = vmatpush.msra.mxu0 %v3558
  %4647 = vmatpush.msra.mxu0 %v3555
  %4648 = vmatpush.msra.mxu0 %v3552
  %4649 = vmatpush.msra.mxu0 %v3549
  %4650 = vmatpush.msra.mxu0 %v3546
  %4651 = vmatpush.msra.mxu0 %v3543
  %4652 = vmatpush.msra.mxu0 %v3540
  %4653 = vmatpush.msra.mxu0 %v3537
  %4654 = vmatpush.msra.mxu0 %v3534
  %4655 = vmatpush.msra.mxu0 %v3531
  %4656 = vmatpush.msra.mxu0 %v3528
  %4657 = vmatpush.msra.mxu0 %v3525
  %4658 = vmatpush.msra.mxu0 %v3522
  %4659 = vmatpush.msra.mxu0 %v3519
  %4660 = vmatmul.f32.gmra.mxu0 %v4449
  %v4661 = vpop.f32.mrf.mxu0
  %v4662 = vadd.f32 %v4519, %v4661
  %4663 = vdwg.mxu0
  %4664 = vmatpush.msra.mxu0 %v3612
  %4665 = vmatpush.msra.mxu0 %v3609
  %4666 = vmatpush.msra.mxu0 %v3606
  %4667 = vmatpush.msra.mxu0 %v3603
  %4668 = vmatpush.msra.mxu0 %v3600
  %4669 = vmatpush.msra.mxu0 %v3597
  %4670 = vmatpush.msra.mxu0 %v3594
  %4671 = vmatpush.msra.mxu0 %v3591
  %4672 = vmatpush.msra.mxu0 %v3588
  %4673 = vmatpush.msra.mxu0 %v3585
  %4674 = vmatpush.msra.mxu0 %v3582
  %4675 = vmatpush.msra.mxu0 %v3579
  %4676 = vmatpush.msra.mxu0 %v3576
  %4677 = vmatpush.msra.mxu0 %v3573
  %4678 = vmatpush.msra.mxu0 %v3570
  %4679 = vmatpush.msra.mxu0 %v3567
  %4680 = vmatmul.f32.gmra.mxu0 %v4450
  %v4681 = vpop.f32.mrf.mxu0
  %v4682 = vadd.f32 %v4662, %v4681
  %4683 = vdwg.mxu0
  %4684 = vmatpush.msra.mxu0 0.0
  %4685 = vmatpush.msra.mxu0 0.0
  %4686 = vmatpush.msra.mxu0 0.0
  %4687 = vmatpush.msra.mxu0 0.0
  %4688 = vmatpush.msra.mxu0 0.0
  %4689 = vmatpush.msra.mxu0 0.0
  %4690 = vmatpush.msra.mxu0 0.0
  %4691 = vmatpush.msra.mxu0 0.0
  %4692 = vmatpush.msra.mxu0 %v3636
  %4693 = vmatpush.msra.mxu0 %v3633
  %4694 = vmatpush.msra.mxu0 %v3630
  %4695 = vmatpush.msra.mxu0 %v3627
  %4696 = vmatpush.msra.mxu0 %v3624
  %4697 = vmatpush.msra.mxu0 %v3621
  %4698 = vmatpush.msra.mxu0 %v3618
  %4699 = vmatpush.msra.mxu0 %v3615
  %4700 = vmatmul.f32.gmra.mxu0 %v4642
  %v4701 = vpop.f32.mrf.mxu0
  %v4702 = vadd.f32 %v4682, %v4701
  %4703 = vdwg.mxu0
  %4704 = vmatpush.msra.mxu0 %v3565
  %4705 = vmatpush.msra.mxu0 %v3562
  %4706 = vmatpush.msra.mxu0 %v3559
  %4707 = vmatpush.msra.mxu0 %v3556
  %4708 = vmatpush.msra.mxu0 %v3553
  %4709 = vmatpush.msra.mxu0 %v3550
  %4710 = vmatpush.msra.mxu0 %v3547
  %4711 = vmatpush.msra.mxu0 %v3544
  %4712 = vmatpush.msra.mxu0 %v3541
  %4713 = vmatpush.msra.mxu0 %v3538
  %4714 = vmatpush.msra.mxu0 %v3535
  %4715 = vmatpush.msra.mxu0 %v3532
  %4716 = vmatpush.msra.mxu0 %v3529
  %4717 = vmatpush.msra.mxu0 %v3526
  %4718 = vmatpush.msra.mxu0 %v3523
  %4719 = vmatpush.msra.mxu0 %v3520
  %4720 = vmatmul.f32.gmra.mxu0 %v4449
  %v4721 = vpop.f32.mrf.mxu0
  %v4722 = vadd.f32 %v4579, %v4721
  %4723 = vdwg.mxu0
  %4724 = vmatpush.msra.mxu0 %v3613
  %4725 = vmatpush.msra.mxu0 %v3610
  %4726 = vmatpush.msra.mxu0 %v3607
  %4727 = vmatpush.msra.mxu0 %v3604
  %4728 = vmatpush.msra.mxu0 %v3601
  %4729 = vmatpush.msra.mxu0 %v3598
  %4730 = vmatpush.msra.mxu0 %v3595
  %4731 = vmatpush.msra.mxu0 %v3592
  %4732 = vmatpush.msra.mxu0 %v3589
  %4733 = vmatpush.msra.mxu0 %v3586
  %4734 = vmatpush.msra.mxu0 %v3583
  %4735 = vmatpush.msra.mxu0 %v3580
  %4736 = vmatpush.msra.mxu0 %v3577
  %4737 = vmatpush.msra.mxu0 %v3574
  %4738 = vmatpush.msra.mxu0 %v3571
  %4739 = vmatpush.msra.mxu0 %v3568
  %4740 = vmatmul.f32.gmra.mxu0 %v4450
  %v4741 = vpop.f32.mrf.mxu0
  %v4742 = vadd.f32 %v4722, %v4741
  %4743 = vdwg.mxu0
  %4744 = vmatpush.msra.mxu0 0.0
  %4745 = vmatpush.msra.mxu0 0.0
  %4746 = vmatpush.msra.mxu0 0.0
  %4747 = vmatpush.msra.mxu0 0.0
  %4748 = vmatpush.msra.mxu0 0.0
  %4749 = vmatpush.msra.mxu0 0.0
  %4750 = vmatpush.msra.mxu0 0.0
  %4751 = vmatpush.msra.mxu0 0.0
  %4752 = vmatpush.msra.mxu0 %v3637
  %4753 = vmatpush.msra.mxu0 %v3634
  %4754 = vmatpush.msra.mxu0 %v3631
  %4755 = vmatpush.msra.mxu0 %v3628
  %4756 = vmatpush.msra.mxu0 %v3625
  %4757 = vmatpush.msra.mxu0 %v3622
  %4758 = vmatpush.msra.mxu0 %v3619
  %4759 = vmatpush.msra.mxu0 %v3616
  %4760 = vmatmul.f32.gmra.mxu0 %v4642
  %v4761 = vpop.f32.mrf.mxu0
  %v4762 = vadd.f32 %v4742, %v4761
  %4763 = vdwg.mxu0
  %4764 = vmatpush.msra.mxu0 %v3566
  %4765 = vmatpush.msra.mxu0 %v3563
  %4766 = vmatpush.msra.mxu0 %v3560
  %4767 = vmatpush.msra.mxu0 %v3557
  %4768 = vmatpush.msra.mxu0 %v3554
  %4769 = vmatpush.msra.mxu0 %v3551
  %4770 = vmatpush.msra.mxu0 %v3548
  %4771 = vmatpush.msra.mxu0 %v3545
  %4772 = vmatpush.msra.mxu0 %v3542
  %4773 = vmatpush.msra.mxu0 %v3539
  %4774 = vmatpush.msra.mxu0 %v3536
  %4775 = vmatpush.msra.mxu0 %v3533
  %4776 = vmatpush.msra.mxu0 %v3530
  %4777 = vmatpush.msra.mxu0 %v3527
  %4778 = vmatpush.msra.mxu0 %v3524
  %4779 = vmatpush.msra.mxu0 %v3521
  %4780 = vmatmul.f32.gmra.mxu0 %v4449
  %v4781 = vpop.f32.mrf.mxu0
  %v4782 = vadd.f32 %v4639, %v4781
  %4783 = vdwg.mxu0
  %4784 = vmatpush.msra.mxu0 %v3614
  %4785 = vmatpush.msra.mxu0 %v3611
  %4786 = vmatpush.msra.mxu0 %v3608
  %4787 = vmatpush.msra.mxu0 %v3605
  %4788 = vmatpush.msra.mxu0 %v3602
  %4789 = vmatpush.msra.mxu0 %v3599
  %4790 = vmatpush.msra.mxu0 %v3596
  %4791 = vmatpush.msra.mxu0 %v3593
  %4792 = vmatpush.msra.mxu0 %v3590
  %4793 = vmatpush.msra.mxu0 %v3587
  %4794 = vmatpush.msra.mxu0 %v3584
  %4795 = vmatpush.msra.mxu0 %v3581
  %4796 = vmatpush.msra.mxu0 %v3578
  %4797 = vmatpush.msra.mxu0 %v3575
  %4798 = vmatpush.msra.mxu0 %v3572
  %4799 = vmatpush.msra.mxu0 %v3569
  %4800 = vmatmul.f32.gmra.mxu0 %v4450
  %v4801 = vpop.f32.mrf.mxu0
  %v4802 = vadd.f32 %v4782, %v4801
  %4803 = vdwg.mxu0
  %4804 = vmatpush.msra.mxu0 0.0
  %4805 = vmatpush.msra.mxu0 0.0
  %4806 = vmatpush.msra.mxu0 0.0
  %4807 = vmatpush.msra.mxu0 0.0
  %4808 = vmatpush.msra.mxu0 0.0
  %4809 = vmatpush.msra.mxu0 0.0
  %4810 = vmatpush.msra.mxu0 0.0
  %4811 = vmatpush.msra.mxu0 0.0
  %4812 = vmatpush.msra.mxu0 %v3638
  %4813 = vmatpush.msra.mxu0 %v3635
  %4814 = vmatpush.msra.mxu0 %v3632
  %4815 = vmatpush.msra.mxu0 %v3629
  %4816 = vmatpush.msra.mxu0 %v3626
  %4817 = vmatpush.msra.mxu0 %v3623
  %4818 = vmatpush.msra.mxu0 %v3620
  %4819 = vmatpush.msra.mxu0 %v3617
  %4820 = vmatmul.f32.gmra.mxu0 %v4642
  %v4821 = vpop.f32.mrf.mxu0
  %v4822 = vadd.f32 %v4802, %v4821
  %4823 = vdwg.mxu0
  %v4827 = vrot.slane %v4455, 1
  %v4828 = vrot.slane %v4456, 1
  %v4829 = vrot.slane %v4457, 1
  %v4832 = vsel %vm2912, %v4829, 0
  %4834 = vmatpush.msra.mxu0 %v3806
  %4835 = vmatpush.msra.mxu0 %v3803
  %4836 = vmatpush.msra.mxu0 %v3800
  %4837 = vmatpush.msra.mxu0 %v3797
  %4838 = vmatpush.msra.mxu0 %v3794
  %4839 = vmatpush.msra.mxu0 %v3791
  %4840 = vmatpush.msra.mxu0 %v3788
  %4841 = vmatpush.msra.mxu0 %v3785
  %4842 = vmatpush.msra.mxu0 %v3782
  %4843 = vmatpush.msra.mxu0 %v3779
  %4844 = vmatpush.msra.mxu0 %v3776
  %4845 = vmatpush.msra.mxu0 %v3773
  %4846 = vmatpush.msra.mxu0 %v3770
  %4847 = vmatpush.msra.mxu0 %v3767
  %4848 = vmatpush.msra.mxu0 %v3764
  %4849 = vmatpush.msra.mxu0 %v3761
  %4850 = vmatmul.f32.gmra.mxu0 %v4827
  %v4851 = vpop.f32.mrf.mxu0
  %v4852 = vadd.f32 0.0, %v4851
  %4853 = vdwg.mxu0
  %4854 = vmatpush.msra.mxu0 %v3854
  %4855 = vmatpush.msra.mxu0 %v3851
  %4856 = vmatpush.msra.mxu0 %v3848
  %4857 = vmatpush.msra.mxu0 %v3845
  %4858 = vmatpush.msra.mxu0 %v3842
  %4859 = vmatpush.msra.mxu0 %v3839
  %4860 = vmatpush.msra.mxu0 %v3836
  %4861 = vmatpush.msra.mxu0 %v3833
  %4862 = vmatpush.msra.mxu0 %v3830
  %4863 = vmatpush.msra.mxu0 %v3827
  %4864 = vmatpush.msra.mxu0 %v3824
  %4865 = vmatpush.msra.mxu0 %v3821
  %4866 = vmatpush.msra.mxu0 %v3818
  %4867 = vmatpush.msra.mxu0 %v3815
  %4868 = vmatpush.msra.mxu0 %v3812
  %4869 = vmatpush.msra.mxu0 %v3809
  %4870 = vmatmul.f32.gmra.mxu0 %v4828
  %v4871 = vpop.f32.mrf.mxu0
  %v4872 = vadd.f32 %v4852, %v4871
  %4873 = vdwg.mxu0
  %4874 = vmatpush.msra.mxu0 0.0
  %4875 = vmatpush.msra.mxu0 0.0
  %4876 = vmatpush.msra.mxu0 0.0
  %4877 = vmatpush.msra.mxu0 0.0
  %4878 = vmatpush.msra.mxu0 0.0
  %4879 = vmatpush.msra.mxu0 0.0
  %4880 = vmatpush.msra.mxu0 0.0
  %4881 = vmatpush.msra.mxu0 0.0
  %4882 = vmatpush.msra.mxu0 %v3878
  %4883 = vmatpush.msra.mxu0 %v3875
  %4884 = vmatpush.msra.mxu0 %v3872
  %4885 = vmatpush.msra.mxu0 %v3869
  %4886 = vmatpush.msra.mxu0 %v3866
  %4887 = vmatpush.msra.mxu0 %v3863
  %4888 = vmatpush.msra.mxu0 %v3860
  %4889 = vmatpush.msra.mxu0 %v3857
  %4890 = vmatmul.f32.gmra.mxu0 %v4832
  %v4891 = vpop.f32.mrf.mxu0
  %v4892 = vadd.f32 %v4872, %v4891
  %4893 = vdwg.mxu0
  %4894 = vmatpush.msra.mxu0 %v3807
  %4895 = vmatpush.msra.mxu0 %v3804
  %4896 = vmatpush.msra.mxu0 %v3801
  %4897 = vmatpush.msra.mxu0 %v3798
  %4898 = vmatpush.msra.mxu0 %v3795
  %4899 = vmatpush.msra.mxu0 %v3792
  %4900 = vmatpush.msra.mxu0 %v3789
  %4901 = vmatpush.msra.mxu0 %v3786
  %4902 = vmatpush.msra.mxu0 %v3783
  %4903 = vmatpush.msra.mxu0 %v3780
  %4904 = vmatpush.msra.mxu0 %v3777
  %4905 = vmatpush.msra.mxu0 %v3774
  %4906 = vmatpush.msra.mxu0 %v3771
  %4907 = vmatpush.msra.mxu0 %v3768
  %4908 = vmatpush.msra.mxu0 %v3765
  %4909 = vmatpush.msra.mxu0 %v3762
  %4910 = vmatmul.f32.gmra.mxu0 %v4827
  %v4911 = vpop.f32.mrf.mxu0
  %v4912 = vadd.f32 0.0, %v4911
  %4913 = vdwg.mxu0
  %4914 = vmatpush.msra.mxu0 %v3855
  %4915 = vmatpush.msra.mxu0 %v3852
  %4916 = vmatpush.msra.mxu0 %v3849
  %4917 = vmatpush.msra.mxu0 %v3846
  %4918 = vmatpush.msra.mxu0 %v3843
  %4919 = vmatpush.msra.mxu0 %v3840
  %4920 = vmatpush.msra.mxu0 %v3837
  %4921 = vmatpush.msra.mxu0 %v3834
  %4922 = vmatpush.msra.mxu0 %v3831
  %4923 = vmatpush.msra.mxu0 %v3828
  %4924 = vmatpush.msra.mxu0 %v3825
  %4925 = vmatpush.msra.mxu0 %v3822
  %4926 = vmatpush.msra.mxu0 %v3819
  %4927 = vmatpush.msra.mxu0 %v3816
  %4928 = vmatpush.msra.mxu0 %v3813
  %4929 = vmatpush.msra.mxu0 %v3810
  %4930 = vmatmul.f32.gmra.mxu0 %v4828
  %v4931 = vpop.f32.mrf.mxu0
  %v4932 = vadd.f32 %v4912, %v4931
  %4933 = vdwg.mxu0
  %4934 = vmatpush.msra.mxu0 0.0
  %4935 = vmatpush.msra.mxu0 0.0
  %4936 = vmatpush.msra.mxu0 0.0
  %4937 = vmatpush.msra.mxu0 0.0
  %4938 = vmatpush.msra.mxu0 0.0
  %4939 = vmatpush.msra.mxu0 0.0
  %4940 = vmatpush.msra.mxu0 0.0
  %4941 = vmatpush.msra.mxu0 0.0
  %4942 = vmatpush.msra.mxu0 %v3879
  %4943 = vmatpush.msra.mxu0 %v3876
  %4944 = vmatpush.msra.mxu0 %v3873
  %4945 = vmatpush.msra.mxu0 %v3870
  %4946 = vmatpush.msra.mxu0 %v3867
  %4947 = vmatpush.msra.mxu0 %v3864
  %4948 = vmatpush.msra.mxu0 %v3861
  %4949 = vmatpush.msra.mxu0 %v3858
  %4950 = vmatmul.f32.gmra.mxu0 %v4832
  %v4951 = vpop.f32.mrf.mxu0
  %v4952 = vadd.f32 %v4932, %v4951
  %4953 = vdwg.mxu0
  %4954 = vmatpush.msra.mxu0 %v3808
  %4955 = vmatpush.msra.mxu0 %v3805
  %4956 = vmatpush.msra.mxu0 %v3802
  %4957 = vmatpush.msra.mxu0 %v3799
  %4958 = vmatpush.msra.mxu0 %v3796
  %4959 = vmatpush.msra.mxu0 %v3793
  %4960 = vmatpush.msra.mxu0 %v3790
  %4961 = vmatpush.msra.mxu0 %v3787
  %4962 = vmatpush.msra.mxu0 %v3784
  %4963 = vmatpush.msra.mxu0 %v3781
  %4964 = vmatpush.msra.mxu0 %v3778
  %4965 = vmatpush.msra.mxu0 %v3775
  %4966 = vmatpush.msra.mxu0 %v3772
  %4967 = vmatpush.msra.mxu0 %v3769
  %4968 = vmatpush.msra.mxu0 %v3766
  %4969 = vmatpush.msra.mxu0 %v3763
  %4970 = vmatmul.f32.gmra.mxu0 %v4827
  %v4971 = vpop.f32.mrf.mxu0
  %v4972 = vadd.f32 0.0, %v4971
  %4973 = vdwg.mxu0
  %4974 = vmatpush.msra.mxu0 %v3856
  %4975 = vmatpush.msra.mxu0 %v3853
  %4976 = vmatpush.msra.mxu0 %v3850
  %4977 = vmatpush.msra.mxu0 %v3847
  %4978 = vmatpush.msra.mxu0 %v3844
  %4979 = vmatpush.msra.mxu0 %v3841
  %4980 = vmatpush.msra.mxu0 %v3838
  %4981 = vmatpush.msra.mxu0 %v3835
  %4982 = vmatpush.msra.mxu0 %v3832
  %4983 = vmatpush.msra.mxu0 %v3829
  %4984 = vmatpush.msra.mxu0 %v3826
  %4985 = vmatpush.msra.mxu0 %v3823
  %4986 = vmatpush.msra.mxu0 %v3820
  %4987 = vmatpush.msra.mxu0 %v3817
  %4988 = vmatpush.msra.mxu0 %v3814
  %4989 = vmatpush.msra.mxu0 %v3811
  %4990 = vmatmul.f32.gmra.mxu0 %v4828
  %v4991 = vpop.f32.mrf.mxu0
  %v4992 = vadd.f32 %v4972, %v4991
  %4993 = vdwg.mxu0
  %4994 = vmatpush.msra.mxu0 0.0
  %4995 = vmatpush.msra.mxu0 0.0
  %4996 = vmatpush.msra.mxu0 0.0
  %4997 = vmatpush.msra.mxu0 0.0
  %4998 = vmatpush.msra.mxu0 0.0
  %4999 = vmatpush.msra.mxu0 0.0
  %5000 = vmatpush.msra.mxu0 0.0
  %5001 = vmatpush.msra.mxu0 0.0
  %5002 = vmatpush.msra.mxu0 %v3880
  %5003 = vmatpush.msra.mxu0 %v3877
  %5004 = vmatpush.msra.mxu0 %v3874
  %5005 = vmatpush.msra.mxu0 %v3871
  %5006 = vmatpush.msra.mxu0 %v3868
  %5007 = vmatpush.msra.mxu0 %v3865
  %5008 = vmatpush.msra.mxu0 %v3862
  %5009 = vmatpush.msra.mxu0 %v3859
  %5010 = vmatmul.f32.gmra.mxu0 %v4832
  %v5011 = vpop.f32.mrf.mxu0
  %v5012 = vadd.f32 %v4992, %v5011
  %5013 = vdwg.mxu0
  %v5014 = vadd.f32 %v4702, %v4892
  %v5015 = vadd.f32 %v4762, %v4952
  %v5016 = vadd.f32 %v4822, %v5012
  %vm5017 = vcmask 1043456
  %v5018 = vsel %vm5017, %v4446, 0.0
  %v5019 = vrot.slane %v5018, 4
  %v5020 = vadd.f32 %v5018, %v5019
  %v5021 = vrot.slane %v5020, 2
  %v5022 = vadd.f32 %v5020, %v5021
  %v5023 = vrot.slane %v5022, 1
  %v5024 = vadd.f32 %v5022, %v5023
  %v5025 = vsel %vm5017, %v4447, 0.0
  %v5026 = vrot.slane %v5025, 4
  %v5027 = vadd.f32 %v5025, %v5026
  %v5028 = vrot.slane %v5027, 2
  %v5029 = vadd.f32 %v5027, %v5028
  %v5030 = vrot.slane %v5029, 1
  %v5031 = vadd.f32 %v5029, %v5030
  %v5032 = vsel %vm5017, %v4448, 0.0
  %v5033 = vrot.slane %v5032, 4
  %v5034 = vadd.f32 %v5032, %v5033
  %v5035 = vrot.slane %v5034, 2
  %v5036 = vadd.f32 %v5034, %v5035
  %v5037 = vrot.slane %v5036, 1
  %v5038 = vadd.f32 %v5036, %v5037
  %v5039 = vmul.f32 %v4446, %v4446
  %v5040 = vmul.f32 %v4447, %v4447
  %v5041 = vmul.f32 %v4448, %v4448
  %v5042 = vsel %vm5017, %v5039, 0.0
  %v5043 = vrot.slane %v5042, 4
  %v5044 = vadd.f32 %v5042, %v5043
  %v5045 = vrot.slane %v5044, 2
  %v5046 = vadd.f32 %v5044, %v5045
  %v5047 = vrot.slane %v5046, 1
  %v5048 = vadd.f32 %v5046, %v5047
  %v5049 = vsel %vm5017, %v5040, 0.0
  %v5050 = vrot.slane %v5049, 4
  %v5051 = vadd.f32 %v5049, %v5050
  %v5052 = vrot.slane %v5051, 2
  %v5053 = vadd.f32 %v5051, %v5052
  %v5054 = vrot.slane %v5053, 1
  %v5055 = vadd.f32 %v5053, %v5054
  %v5056 = vsel %vm5017, %v5041, 0.0
  %v5057 = vrot.slane %v5056, 4
  %v5058 = vadd.f32 %v5056, %v5057
  %v5059 = vrot.slane %v5058, 2
  %v5060 = vadd.f32 %v5058, %v5059
  %v5061 = vrot.slane %v5060, 1
  %v5062 = vadd.f32 %v5060, %v5061
  %v5063 = vsel %vm5017, %v5014, 0.0
  %v5064 = vrot.slane %v5063, 4
  %v5065 = vadd.f32 %v5063, %v5064
  %v5066 = vrot.slane %v5065, 2
  %v5067 = vadd.f32 %v5065, %v5066
  %v5068 = vrot.slane %v5067, 1
  %v5069 = vadd.f32 %v5067, %v5068
  %v5070 = vsel %vm5017, %v5015, 0.0
  %v5071 = vrot.slane %v5070, 4
  %v5072 = vadd.f32 %v5070, %v5071
  %v5073 = vrot.slane %v5072, 2
  %v5074 = vadd.f32 %v5072, %v5073
  %v5075 = vrot.slane %v5074, 1
  %v5076 = vadd.f32 %v5074, %v5075
  %v5077 = vsel %vm5017, %v5016, 0.0
  %v5078 = vrot.slane %v5077, 4
  %v5079 = vadd.f32 %v5077, %v5078
  %v5080 = vrot.slane %v5079, 2
  %v5081 = vadd.f32 %v5079, %v5080
  %v5082 = vrot.slane %v5081, 1
  %v5083 = vadd.f32 %v5081, %v5082
  %v5084 = vadd.f32 %v5024, %v5069
  %v5085 = vadd.f32 %v5031, %v5076
  %v5086 = vadd.f32 %v5038, %v5083
  %v5087 = vmul.f32 %v5014, %v5014
  %v5088 = vmul.f32 %v5015, %v5015
  %v5089 = vmul.f32 %v5016, %v5016
  %v5090 = vsel %vm5017, %v5087, 0.0
  %v5091 = vrot.slane %v5090, 4
  %v5092 = vadd.f32 %v5090, %v5091
  %v5093 = vrot.slane %v5092, 2
  %v5094 = vadd.f32 %v5092, %v5093
  %v5095 = vrot.slane %v5094, 1
  %v5096 = vadd.f32 %v5094, %v5095
  %v5097 = vsel %vm5017, %v5088, 0.0
  %v5098 = vrot.slane %v5097, 4
  %v5099 = vadd.f32 %v5097, %v5098
  %v5100 = vrot.slane %v5099, 2
  %v5101 = vadd.f32 %v5099, %v5100
  %v5102 = vrot.slane %v5101, 1
  %v5103 = vadd.f32 %v5101, %v5102
  %v5104 = vsel %vm5017, %v5089, 0.0
  %v5105 = vrot.slane %v5104, 4
  %v5106 = vadd.f32 %v5104, %v5105
  %v5107 = vrot.slane %v5106, 2
  %v5108 = vadd.f32 %v5106, %v5107
  %v5109 = vrot.slane %v5108, 1
  %v5110 = vadd.f32 %v5108, %v5109
  %v5111 = vadd.f32 %v5048, %v5096
  %v5112 = vadd.f32 %v5055, %v5103
  %v5113 = vadd.f32 %v5062, %v5110
  %v5114 = vsel %vm857, %v5084, %v5111
  %v5115 = vsel %vm857, %v5085, %v5112
  %v5116 = vsel %vm857, %v5086, %v5113
  %v5117 = vld [vmem:[%s7] sm:$0xff]
  %v5118 = vld [vmem:[%s7 + $0x8] sm:$0xff]
  %v5119 = vld [vmem:[%s7 + $0x10] sm:$0xff]
  %v5120 = vld [vmem:[%s7 + $0x18] sm:$0xff]
  %v5121 = vld [vmem:[%s7 + $0x20] sm:$0xff]
  %v5122 = vld [vmem:[%s7 + $0x28] sm:$0xff]
  %v5123 = vld [vmem:[%s7 + $0x30] sm:$0xff]
  %v5124 = vld [vmem:[%s7 + $0x38] sm:$0xff]
  %v5125 = vld [vmem:[%s7 + $0x40] sm:$0xff]
  %v5126 = vld [vmem:[%s7 + $0x48] sm:$0xff]
  %v5127 = vld [vmem:[%s7 + $0x50] sm:$0xff]
  %v5128 = vld [vmem:[%s7 + $0x58] sm:$0xff]
  %v5129 = vld [vmem:[%s7 + $0x60] sm:$0xff]
  %v5130 = vld [vmem:[%s7 + $0x68] sm:$0xff]
  %v5131 = vld [vmem:[%s7 + $0x70] sm:$0xff]
  %v5132 = vld [vmem:[%s7 + $0x78] sm:$0xff]
  %v5133 = vld [vmem:[%s7 + $0x80] sm:$0xff]
  %v5134 = vld [vmem:[%s7 + $0x88] sm:$0xff]
  %v5135 = vld [vmem:[%s7 + $0x90] sm:$0xff]
  %v5136 = vld [vmem:[%s7 + $0x98] sm:$0xff]
  %v5137 = vld [vmem:[%s7 + $0xa0] sm:$0xff]
  %v5138 = vld [vmem:[%s7 + $0xa8] sm:$0xff]
  %v5139 = vld [vmem:[%s7 + $0xb0] sm:$0xff]
  %v5140 = vld [vmem:[%s7 + $0xb8] sm:$0xff]
  %v5141 = vld [vmem:[%s7 + $0xc0] sm:$0xff]
  %v5142 = vld [vmem:[%s7 + $0xc8] sm:$0xff]
  %v5143 = vld [vmem:[%s7 + $0xd0] sm:$0xff]
  %v5144 = vld [vmem:[%s7 + $0xd8] sm:$0xff]
  %v5145 = vld [vmem:[%s7 + $0xe0] sm:$0xff]
  %v5146 = vld [vmem:[%s7 + $0xe8] sm:$0xff]
  %v5147 = vld [vmem:[%s7 + $0xf0] sm:$0xff]
  %v5148 = vld [vmem:[%s7 + $0xf8] sm:$0xff]
  %v5149 = vld [vmem:[%s7 + $0x100] sm:$0xff]
  %v5150 = vld [vmem:[%s7 + $0x108] sm:$0xff]
  %v5151 = vld [vmem:[%s7 + $0x110] sm:$0xff]
  %v5152 = vld [vmem:[%s7 + $0x118] sm:$0xff]
  %v5153 = vld [vmem:[%s7 + $0x120] sm:$0xff]
  %v5154 = vld [vmem:[%s7 + $0x128] sm:$0xff]
  %v5155 = vld [vmem:[%s7 + $0x130] sm:$0xff]
  %v5156 = vld [vmem:[%s7 + $0x138] sm:$0xff]
  %v5157 = vld [vmem:[%s7 + $0x140] sm:$0xff]
  %v5158 = vld [vmem:[%s7 + $0x148] sm:$0xff]
  %v5159 = vld [vmem:[%s7 + $0x150] sm:$0xff]
  %v5160 = vld [vmem:[%s7 + $0x158] sm:$0xff]
  %v5161 = vld [vmem:[%s7 + $0x160] sm:$0xff]
  %v5162 = vld [vmem:[%s7 + $0x168] sm:$0xff]
  %v5163 = vld [vmem:[%s7 + $0x170] sm:$0xff]
  %v5164 = vld [vmem:[%s7 + $0x178] sm:$0xff]
  %5165 = vmatpush.msra.mxu0 %v5132
  %5166 = vmatpush.msra.mxu0 %v5131
  %5167 = vmatpush.msra.mxu0 %v5130
  %5168 = vmatpush.msra.mxu0 %v5129
  %5169 = vmatpush.msra.mxu0 %v5128
  %5170 = vmatpush.msra.mxu0 %v5127
  %5171 = vmatpush.msra.mxu0 %v5126
  %5172 = vmatpush.msra.mxu0 %v5125
  %5173 = vmatpush.msra.mxu0 %v5124
  %5174 = vmatpush.msra.mxu0 %v5123
  %5175 = vmatpush.msra.mxu0 %v5122
  %5176 = vmatpush.msra.mxu0 %v5121
  %5177 = vmatpush.msra.mxu0 %v5120
  %5178 = vmatpush.msra.mxu0 %v5119
  %5179 = vmatpush.msra.mxu0 %v5118
  %5180 = vmatpush.msra.mxu0 %v5117
  %5181 = vmatmul.f32.gmra.mxu0 %v5114
  %v5182 = vpop.f32.mrf.mxu0
  %v5183 = vadd.f32 0.0, %v5182
  %5184 = vdwg.mxu0
  %5185 = vmatpush.msra.mxu0 %v5148
  %5186 = vmatpush.msra.mxu0 %v5147
  %5187 = vmatpush.msra.mxu0 %v5146
  %5188 = vmatpush.msra.mxu0 %v5145
  %5189 = vmatpush.msra.mxu0 %v5144
  %5190 = vmatpush.msra.mxu0 %v5143
  %5191 = vmatpush.msra.mxu0 %v5142
  %5192 = vmatpush.msra.mxu0 %v5141
  %5193 = vmatpush.msra.mxu0 %v5140
  %5194 = vmatpush.msra.mxu0 %v5139
  %5195 = vmatpush.msra.mxu0 %v5138
  %5196 = vmatpush.msra.mxu0 %v5137
  %5197 = vmatpush.msra.mxu0 %v5136
  %5198 = vmatpush.msra.mxu0 %v5135
  %5199 = vmatpush.msra.mxu0 %v5134
  %5200 = vmatpush.msra.mxu0 %v5133
  %5201 = vmatmul.f32.gmra.mxu0 %v5115
  %v5202 = vpop.f32.mrf.mxu0
  %v5203 = vadd.f32 %v5183, %v5202
  %5204 = vdwg.mxu0
  %5205 = vmatpush.msra.mxu0 %v5164
  %5206 = vmatpush.msra.mxu0 %v5163
  %5207 = vmatpush.msra.mxu0 %v5162
  %5208 = vmatpush.msra.mxu0 %v5161
  %5209 = vmatpush.msra.mxu0 %v5160
  %5210 = vmatpush.msra.mxu0 %v5159
  %5211 = vmatpush.msra.mxu0 %v5158
  %5212 = vmatpush.msra.mxu0 %v5157
  %5213 = vmatpush.msra.mxu0 %v5156
  %5214 = vmatpush.msra.mxu0 %v5155
  %5215 = vmatpush.msra.mxu0 %v5154
  %5216 = vmatpush.msra.mxu0 %v5153
  %5217 = vmatpush.msra.mxu0 %v5152
  %5218 = vmatpush.msra.mxu0 %v5151
  %5219 = vmatpush.msra.mxu0 %v5150
  %5220 = vmatpush.msra.mxu0 %v5149
  %5221 = vmatmul.f32.gmra.mxu0 %v5116
  %v5222 = vpop.f32.mrf.mxu0
  %v5223 = vadd.f32 %v5203, %v5222
  %5224 = vdwg.mxu0
  %v5225 = vmul.f32 %v5223, 0.03125
  %v5226 = vmul.f32 %v5225, %v5225
  %v5228 = vrot.slane %v5226, 7
  %v5230 = vsub.f32 %v5225, %v5228
  %v5231 = vld [vmem:[%s15] sm:$0x3]
  %v5232 = vadd.f32 %v5230, 1e-05
  %v5233 = vrsqrt.pop %v5232
  %v5234 = vmul.f32 %v5233, %v5232
  %v5235 = vmul.f32 %v5234, %v5233
  %v5236 = vmul.f32 0.5, %v5235
  %v5237 = vsub.f32 1.5, %v5236
  %v5238 = vmul.f32 %v5233, %v5237
  %vm5239 = vweird.f32 %v5232
  %vm5240 = vweird.f32 %v5233
  %vm5241 = vmor %vm5239, %vm5240
  %v5242 = vsel %vm5241, %v5233, %v5238
  %v5244 = vrot.slane %v5242, 1
  %v5246 = vmul.f32 %v5231, %v5244
  %v5247 = vmul.f32 %v5225, %v5246
  %v5249 = vrot.slane %v5247, 7
  %v5251 = vsub.f32 %v5231, %v5249
  %v5252 = vsel %vm857, %v5246, %v5251
  %v5253 = vld [vmem:[%s11] sm:$0xff]
  %v5254 = vld [vmem:[%s11 + $0x8] sm:$0xff]
  %v5255 = vld [vmem:[%s11 + $0x10] sm:$0xff]
  %v5256 = vld [vmem:[%s11 + $0x18] sm:$0xff]
  %v5257 = vld [vmem:[%s11 + $0x20] sm:$0xff]
  %v5258 = vld [vmem:[%s11 + $0x28] sm:$0xff]
  %v5259 = vld [vmem:[%s11 + $0x30] sm:$0xff]
  %v5260 = vld [vmem:[%s11 + $0x38] sm:$0xff]
  %v5261 = vld [vmem:[%s11 + $0x40] sm:$0xff]
  %v5262 = vld [vmem:[%s11 + $0x48] sm:$0xff]
  %v5263 = vld [vmem:[%s11 + $0x50] sm:$0xff]
  %v5264 = vld [vmem:[%s11 + $0x58] sm:$0xff]
  %v5265 = vld [vmem:[%s11 + $0x60] sm:$0xff]
  %v5266 = vld [vmem:[%s11 + $0x68] sm:$0xff]
  %v5267 = vld [vmem:[%s11 + $0x70] sm:$0xff]
  %v5268 = vld [vmem:[%s11 + $0x78] sm:$0xff]
  %v5269 = vld [vmem:[%s11 + $0x80] sm:$0xff]
  %v5270 = vld [vmem:[%s11 + $0x88] sm:$0xff]
  %v5271 = vld [vmem:[%s11 + $0x90] sm:$0xff]
  %v5272 = vld [vmem:[%s11 + $0x98] sm:$0xff]
  %v5273 = vld [vmem:[%s11 + $0xa0] sm:$0xff]
  %v5274 = vld [vmem:[%s11 + $0xa8] sm:$0xff]
  %v5275 = vld [vmem:[%s11 + $0xb0] sm:$0xff]
  %v5276 = vld [vmem:[%s11 + $0xb8] sm:$0xff]
  %v5278 = vsel %vm2912, %v5252, 0
  %5280 = vmatpush.msra.mxu0 0.0
  %5281 = vmatpush.msra.mxu0 0.0
  %5282 = vmatpush.msra.mxu0 0.0
  %5283 = vmatpush.msra.mxu0 0.0
  %5284 = vmatpush.msra.mxu0 0.0
  %5285 = vmatpush.msra.mxu0 0.0
  %5286 = vmatpush.msra.mxu0 0.0
  %5287 = vmatpush.msra.mxu0 0.0
  %5288 = vmatpush.msra.mxu0 %v5274
  %5289 = vmatpush.msra.mxu0 %v5271
  %5290 = vmatpush.msra.mxu0 %v5268
  %5291 = vmatpush.msra.mxu0 %v5265
  %5292 = vmatpush.msra.mxu0 %v5262
  %5293 = vmatpush.msra.mxu0 %v5259
  %5294 = vmatpush.msra.mxu0 %v5256
  %5295 = vmatpush.msra.mxu0 %v5253
  %5296 = vmatmul.f32.gmra.mxu0 %v5278
  %v5297 = vpop.f32.mrf.mxu0
  %v5298 = vadd.f32 0.0, %v5297
  %5299 = vdwg.mxu0
  %5300 = vmatpush.msra.mxu0 0.0
  %5301 = vmatpush.msra.mxu0 0.0
  %5302 = vmatpush.msra.mxu0 0.0
  %5303 = vmatpush.msra.mxu0 0.0
  %5304 = vmatpush.msra.mxu0 0.0
  %5305 = vmatpush.msra.mxu0 0.0
  %5306 = vmatpush.msra.mxu0 0.0
  %5307 = vmatpush.msra.mxu0 0.0
  %5308 = vmatpush.msra.mxu0 %v5275
  %5309 = vmatpush.msra.mxu0 %v5272
  %5310 = vmatpush.msra.mxu0 %v5269
  %5311 = vmatpush.msra.mxu0 %v5266
  %5312 = vmatpush.msra.mxu0 %v5263
  %5313 = vmatpush.msra.mxu0 %v5260
  %5314 = vmatpush.msra.mxu0 %v5257
  %5315 = vmatpush.msra.mxu0 %v5254
  %5316 = vmatmul.f32.gmra.mxu0 %v5278
  %v5317 = vpop.f32.mrf.mxu0
  %v5318 = vadd.f32 0.0, %v5317
  %5319 = vdwg.mxu0
  %5320 = vmatpush.msra.mxu0 0.0
  %5321 = vmatpush.msra.mxu0 0.0
  %5322 = vmatpush.msra.mxu0 0.0
  %5323 = vmatpush.msra.mxu0 0.0
  %5324 = vmatpush.msra.mxu0 0.0
  %5325 = vmatpush.msra.mxu0 0.0
  %5326 = vmatpush.msra.mxu0 0.0
  %5327 = vmatpush.msra.mxu0 0.0
  %5328 = vmatpush.msra.mxu0 %v5276
  %5329 = vmatpush.msra.mxu0 %v5273
  %5330 = vmatpush.msra.mxu0 %v5270
  %5331 = vmatpush.msra.mxu0 %v5267
  %5332 = vmatpush.msra.mxu0 %v5264
  %5333 = vmatpush.msra.mxu0 %v5261
  %5334 = vmatpush.msra.mxu0 %v5258
  %5335 = vmatpush.msra.mxu0 %v5255
  %5336 = vmatmul.f32.gmra.mxu0 %v5278
  %v5337 = vpop.f32.mrf.mxu0
  %v5338 = vadd.f32 0.0, %v5337
  %5339 = vdwg.mxu0
  %v5340 = vld [vmem:[%s19] sm:$0x3]
  %s5341 = scalar_lea.vmem %s19, 2
  %v5342 = vld [vmem:[%s5341] sm:$0x3]
  %v5343 = vperm.slane %v5298, 0
  %v5344 = vperm.slane %v5318, 0
  %v5345 = vperm.slane %v5338, 0
  %v5346 = vmul.f32 %v4446, %v5343
  %v5347 = vmul.f32 %v4447, %v5344
  %v5348 = vmul.f32 %v4448, %v5345
  %v5349 = vperm.slane %v5298, 1
  %v5350 = vperm.slane %v5318, 1
  %v5351 = vperm.slane %v5338, 1
  %v5352 = vadd.f32 %v5346, %v5349
  %v5353 = vadd.f32 %v5347, %v5350
  %v5354 = vadd.f32 %v5348, %v5351
  %vm5355 = vcmp.ge.f32.partialorder %v5352, 0.0
  %vm5356 = vcmp.ge.f32.partialorder %v5353, 0.0
  %vm5357 = vcmp.ge.f32.partialorder %v5354, 0.0
  %v5358 = vmul.f32 %v5352, 0.01
  %v5359 = vmul.f32 %v5353, 0.01
  %v5360 = vmul.f32 %v5354, 0.01
  %v5361 = vsel %vm5355, %v5352, %v5358
  %v5362 = vsel %vm5356, %v5353, %v5359
  %v5363 = vsel %vm5357, %v5354, %v5360
  %vm5364 = vcmask 31744
  %v5366 = vsel %vm5364, %v5340, 0
  %v5369 = vsel %vm5017, %v5361, 0
  %v5372 = vsel %vm5017, %v5362, 0
  %v5375 = vsel %vm5017, %v5363, 0
  %5377 = vmatpush.msra.mxu0 0.0
  %5378 = vmatpush.msra.mxu0 0.0
  %5379 = vmatpush.msra.mxu0 0.0
  %5380 = vmatpush.msra.mxu0 0.0
  %5381 = vmatpush.msra.mxu0 0.0
  %5382 = vmatpush.msra.mxu0 0.0
  %5383 = vmatpush.msra.mxu0 0.0
  %5384 = vmatpush.msra.mxu0 0.0
  %5385 = vmatpush.msra.mxu0 0.0
  %5386 = vmatpush.msra.mxu0 0.0
  %5387 = vmatpush.msra.mxu0 0.0
  %5388 = vmatpush.msra.mxu0 0.0
  %5389 = vmatpush.msra.mxu0 0.0
  %5390 = vmatpush.msra.mxu0 0.0
  %5391 = vmatpush.msra.mxu0 0.0
  %5392 = vmatpush.msra.mxu0 %v5369
  %5393 = vmatmul.f32.gmra.mxu0 %v5366
  %v5394 = vpop.f32.mrf.mxu0
  %v5395 = vadd.f32 0.0, %v5394
  %5396 = vdwg.mxu0
  %5397 = vmatpush.msra.mxu0 0.0
  %5398 = vmatpush.msra.mxu0 0.0
  %5399 = vmatpush.msra.mxu0 0.0
  %5400 = vmatpush.msra.mxu0 0.0
  %5401 = vmatpush.msra.mxu0 0.0
  %5402 = vmatpush.msra.mxu0 0.0
  %5403 = vmatpush.msra.mxu0 0.0
  %5404 = vmatpush.msra.mxu0 0.0
  %5405 = vmatpush.msra.mxu0 0.0
  %5406 = vmatpush.msra.mxu0 0.0
  %5407 = vmatpush.msra.mxu0 0.0
  %5408 = vmatpush.msra.mxu0 0.0
  %5409 = vmatpush.msra.mxu0 0.0
  %5410 = vmatpush.msra.mxu0 0.0
  %5411 = vmatpush.msra.mxu0 0.0
  %5412 = vmatpush.msra.mxu0 %v5372
  %5413 = vmatmul.f32.gmra.mxu0 %v5366
  %v5414 = vpop.f32.mrf.mxu0
  %v5415 = vadd.f32 0.0, %v5414
  %5416 = vdwg.mxu0
  %5417 = vmatpush.msra.mxu0 0.0
  %5418 = vmatpush.msra.mxu0 0.0
  %5419 = vmatpush.msra.mxu0 0.0
  %5420 = vmatpush.msra.mxu0 0.0
  %5421 = vmatpush.msra.mxu0 0.0
  %5422 = vmatpush.msra.mxu0 0.0
  %5423 = vmatpush.msra.mxu0 0.0
  %5424 = vmatpush.msra.mxu0 0.0
  %5425 = vmatpush.msra.mxu0 0.0
  %5426 = vmatpush.msra.mxu0 0.0
  %5427 = vmatpush.msra.mxu0 0.0
  %5428 = vmatpush.msra.mxu0 0.0
  %5429 = vmatpush.msra.mxu0 0.0
  %5430 = vmatpush.msra.mxu0 0.0
  %5431 = vmatpush.msra.mxu0 0.0
  %5432 = vmatpush.msra.mxu0 %v5375
  %5433 = vmatmul.f32.gmra.mxu0 %v5366
  %v5434 = vpop.f32.mrf.mxu0
  %v5435 = vadd.f32 0.0, %v5434
  %5436 = vdwg.mxu0
  %v5439 = vrot.slane %v5415, 4
  %v5440 = vsel %vm5017, %v5395, %v5439
  %s5442 = scalar_lea.vmem [#allocation4], 12
  %5443 = vst [vmem:[%s5442] sm:$0x33] %v5440
  %5444 = vst [vmem:[%s5442 + $0x8] sm:$0x3] %v5435
  %v5446 = vsel %vm5364, %v5342, 0
  %5448 = vmatpush.msra.mxu0 0.0
  %5449 = vmatpush.msra.mxu0 0.0
  %5450 = vmatpush.msra.mxu0 0.0
  %5451 = vmatpush.msra.mxu0 0.0
  %5452 = vmatpush.msra.mxu0 0.0
  %5453 = vmatpush.msra.mxu0 0.0
  %5454 = vmatpush.msra.mxu0 0.0
  %5455 = vmatpush.msra.mxu0 0.0
  %5456 = vmatpush.msra.mxu0 0.0
  %5457 = vmatpush.msra.mxu0 0.0
  %5458 = vmatpush.msra.mxu0 0.0
  %5459 = vmatpush.msra.mxu0 0.0
  %5460 = vmatpush.msra.mxu0 0.0
  %5461 = vmatpush.msra.mxu0 0.0
  %5462 = vmatpush.msra.mxu0 0.0
  %5463 = vmatpush.msra.mxu0 %v5369
  %5464 = vmatmul.f32.gmra.mxu0 %v5446
  %v5465 = vpop.f32.mrf.mxu0
  %v5466 = vadd.f32 0.0, %v5465
  %5467 = vdwg.mxu0
  %5468 = vmatpush.msra.mxu0 0.0
  %5469 = vmatpush.msra.mxu0 0.0
  %5470 = vmatpush.msra.mxu0 0.0
  %5471 = vmatpush.msra.mxu0 0.0
  %5472 = vmatpush.msra.mxu0 0.0
  %5473 = vmatpush.msra.mxu0 0.0
  %5474 = vmatpush.msra.mxu0 0.0
  %5475 = vmatpush.msra.mxu0 0.0
  %5476 = vmatpush.msra.mxu0 0.0
  %5477 = vmatpush.msra.mxu0 0.0
  %5478 = vmatpush.msra.mxu0 0.0
  %5479 = vmatpush.msra.mxu0 0.0
  %5480 = vmatpush.msra.mxu0 0.0
  %5481 = vmatpush.msra.mxu0 0.0
  %5482 = vmatpush.msra.mxu0 0.0
  %5483 = vmatpush.msra.mxu0 %v5372
  %5484 = vmatmul.f32.gmra.mxu0 %v5446
  %v5485 = vpop.f32.mrf.mxu0
  %v5486 = vadd.f32 0.0, %v5485
  %5487 = vdwg.mxu0
  %5488 = vmatpush.msra.mxu0 0.0
  %5489 = vmatpush.msra.mxu0 0.0
  %5490 = vmatpush.msra.mxu0 0.0
  %5491 = vmatpush.msra.mxu0 0.0
  %5492 = vmatpush.msra.mxu0 0.0
  %5493 = vmatpush.msra.mxu0 0.0
  %5494 = vmatpush.msra.mxu0 0.0
  %5495 = vmatpush.msra.mxu0 0.0
  %5496 = vmatpush.msra.mxu0 0.0
  %5497 = vmatpush.msra.mxu0 0.0
  %5498 = vmatpush.msra.mxu0 0.0
  %5499 = vmatpush.msra.mxu0 0.0
  %5500 = vmatpush.msra.mxu0 0.0
  %5501 = vmatpush.msra.mxu0 0.0
  %5502 = vmatpush.msra.mxu0 0.0
  %5503 = vmatpush.msra.mxu0 %v5375
  %5504 = vmatmul.f32.gmra.mxu0 %v5446
  %v5505 = vpop.f32.mrf.mxu0
  %v5506 = vadd.f32 0.0, %v5505
  %5507 = vdwg.mxu0
  %v5511 = vrot.slane %v5486, 4
  %v5512 = vsel %vm5017, %v5466, %v5511
  %v5513 = vrot.slane %v5512, 7
  %v5514 = vrot.slane %v5506, 7
  %5517 = vst [vmem:[#allocation4] sm:$0x66] %v5513
  %5518 = vst [vmem:[#allocation4 + $0x8] sm:$0x6] %v5514
  %v5519 = vmul.f32 %v5014, %v5343
  %v5520 = vmul.f32 %v5015, %v5344
  %v5521 = vmul.f32 %v5016, %v5345
  %v5522 = vadd.f32 %v5519, %v5349
  %v5523 = vadd.f32 %v5520, %v5350
  %v5524 = vadd.f32 %v5521, %v5351
  %vm5525 = vcmp.ge.f32.partialorder %v5522, 0.0
  %vm5526 = vcmp.ge.f32.partialorder %v5523, 0.0
  %vm5527 = vcmp.ge.f32.partialorder %v5524, 0.0
  %v5528 = vmul.f32 %v5522, 0.01
  %v5529 = vmul.f32 %v5523, 0.01
  %v5530 = vmul.f32 %v5524, 0.01
  %v5531 = vsel %vm5525, %v5522, %v5528
  %v5532 = vsel %vm5526, %v5523, %v5529
  %v5533 = vsel %vm5527, %v5524, %v5530
  %v5535 = vsel %vm5017, %v5531, 0
  %v5538 = vsel %vm5017, %v5532, 0
  %v5541 = vsel %vm5017, %v5533, 0
  %5543 = vmatpush.msra.mxu0 0.0
  %5544 = vmatpush.msra.mxu0 0.0
  %5545 = vmatpush.msra.mxu0 0.0
  %5546 = vmatpush.msra.mxu0 0.0
  %5547 = vmatpush.msra.mxu0 0.0
  %5548 = vmatpush.msra.mxu0 0.0
  %5549 = vmatpush.msra.mxu0 0.0
  %5550 = vmatpush.msra.mxu0 0.0
  %5551 = vmatpush.msra.mxu0 0.0
  %5552 = vmatpush.msra.mxu0 0.0
  %5553 = vmatpush.msra.mxu0 0.0
  %5554 = vmatpush.msra.mxu0 0.0
  %5555 = vmatpush.msra.mxu0 0.0
  %5556 = vmatpush.msra.mxu0 0.0
  %5557 = vmatpush.msra.mxu0 0.0
  %5558 = vmatpush.msra.mxu0 %v5535
  %5559 = vmatmul.f32.gmra.mxu0 %v5366
  %v5560 = vpop.f32.mrf.mxu0
  %v5561 = vadd.f32 0.0, %v5560
  %5562 = vdwg.mxu0
  %5563 = vmatpush.msra.mxu0 0.0
  %5564 = vmatpush.msra.mxu0 0.0
  %5565 = vmatpush.msra.mxu0 0.0
  %5566 = vmatpush.msra.mxu0 0.0
  %5567 = vmatpush.msra.mxu0 0.0
  %5568 = vmatpush.msra.mxu0 0.0
  %5569 = vmatpush.msra.mxu0 0.0
  %5570 = vmatpush.msra.mxu0 0.0
  %5571 = vmatpush.msra.mxu0 0.0
  %5572 = vmatpush.msra.mxu0 0.0
  %5573 = vmatpush.msra.mxu0 0.0
  %5574 = vmatpush.msra.mxu0 0.0
  %5575 = vmatpush.msra.mxu0 0.0
  %5576 = vmatpush.msra.mxu0 0.0
  %5577 = vmatpush.msra.mxu0 0.0
  %5578 = vmatpush.msra.mxu0 %v5538
  %5579 = vmatmul.f32.gmra.mxu0 %v5366
  %v5580 = vpop.f32.mrf.mxu0
  %v5581 = vadd.f32 0.0, %v5580
  %5582 = vdwg.mxu0
  %5583 = vmatpush.msra.mxu0 0.0
  %5584 = vmatpush.msra.mxu0 0.0
  %5585 = vmatpush.msra.mxu0 0.0
  %5586 = vmatpush.msra.mxu0 0.0
  %5587 = vmatpush.msra.mxu0 0.0
  %5588 = vmatpush.msra.mxu0 0.0
  %5589 = vmatpush.msra.mxu0 0.0
  %5590 = vmatpush.msra.mxu0 0.0
  %5591 = vmatpush.msra.mxu0 0.0
  %5592 = vmatpush.msra.mxu0 0.0
  %5593 = vmatpush.msra.mxu0 0.0
  %5594 = vmatpush.msra.mxu0 0.0
  %5595 = vmatpush.msra.mxu0 0.0
  %5596 = vmatpush.msra.mxu0 0.0
  %5597 = vmatpush.msra.mxu0 0.0
  %5598 = vmatpush.msra.mxu0 %v5541
  %5599 = vmatmul.f32.gmra.mxu0 %v5366
  %v5600 = vpop.f32.mrf.mxu0
  %v5601 = vadd.f32 0.0, %v5600
  %5602 = vdwg.mxu0
  %v5605 = vrot.slane %v5581, 4
  %v5606 = vsel %vm5017, %v5561, %v5605
  %s5608 = scalar_lea.vmem [#allocation4], 36
  %5609 = vst [vmem:[%s5608] sm:$0x33] %v5606
  %5610 = vst [vmem:[%s5608 + $0x8] sm:$0x3] %v5601
  %5611 = vmatpush.msra.mxu0 0.0
  %5612 = vmatpush.msra.mxu0 0.0
  %5613 = vmatpush.msra.mxu0 0.0
  %5614 = vmatpush.msra.mxu0 0.0
  %5615 = vmatpush.msra.mxu0 0.0
  %5616 = vmatpush.msra.mxu0 0.0
  %5617 = vmatpush.msra.mxu0 0.0
  %5618 = vmatpush.msra.mxu0 0.0
  %5619 = vmatpush.msra.mxu0 0.0
  %5620 = vmatpush.msra.mxu0 0.0
  %5621 = vmatpush.msra.mxu0 0.0
  %5622 = vmatpush.msra.mxu0 0.0
  %5623 = vmatpush.msra.mxu0 0.0
  %5624 = vmatpush.msra.mxu0 0.0
  %5625 = vmatpush.msra.mxu0 0.0
  %5626 = vmatpush.msra.mxu0 %v5535
  %5627 = vmatmul.f32.gmra.mxu0 %v5446
  %v5628 = vpop.f32.mrf.mxu0
  %v5629 = vadd.f32 0.0, %v5628
  %5630 = vdwg.mxu0
  %5631 = vmatpush.msra.mxu0 0.0
  %5632 = vmatpush.msra.mxu0 0.0
  %5633 = vmatpush.msra.mxu0 0.0
  %5634 = vmatpush.msra.mxu0 0.0
  %5635 = vmatpush.msra.mxu0 0.0
  %5636 = vmatpush.msra.mxu0 0.0
  %5637 = vmatpush.msra.mxu0 0.0
  %5638 = vmatpush.msra.mxu0 0.0
  %5639 = vmatpush.msra.mxu0 0.0
  %5640 = vmatpush.msra.mxu0 0.0
  %5641 = vmatpush.msra.mxu0 0.0
  %5642 = vmatpush.msra.mxu0 0.0
  %5643 = vmatpush.msra.mxu0 0.0
  %5644 = vmatpush.msra.mxu0 0.0
  %5645 = vmatpush.msra.mxu0 0.0
  %5646 = vmatpush.msra.mxu0 %v5538
  %5647 = vmatmul.f32.gmra.mxu0 %v5446
  %v5648 = vpop.f32.mrf.mxu0
  %v5649 = vadd.f32 0.0, %v5648
  %5650 = vdwg.mxu0
  %5651 = vmatpush.msra.mxu0 0.0
  %5652 = vmatpush.msra.mxu0 0.0
  %5653 = vmatpush.msra.mxu0 0.0
  %5654 = vmatpush.msra.mxu0 0.0
  %5655 = vmatpush.msra.mxu0 0.0
  %5656 = vmatpush.msra.mxu0 0.0
  %5657 = vmatpush.msra.mxu0 0.0
  %5658 = vmatpush.msra.mxu0 0.0
  %5659 = vmatpush.msra.mxu0 0.0
  %5660 = vmatpush.msra.mxu0 0.0
  %5661 = vmatpush.msra.mxu0 0.0
  %5662 = vmatpush.msra.mxu0 0.0
  %5663 = vmatpush.msra.mxu0 0.0
  %5664 = vmatpush.msra.mxu0 0.0
  %5665 = vmatpush.msra.mxu0 0.0
  %5666 = vmatpush.msra.mxu0 %v5541
  %5667 = vmatmul.f32.gmra.mxu0 %v5446
  %v5668 = vpop.f32.mrf.mxu0
  %v5669 = vadd.f32 0.0, %v5668
  %5670 = vdwg.mxu0
  %v5674 = vrot.slane %v5649, 4
  %v5675 = vsel %vm5017, %v5629, %v5674
  %v5676 = vrot.slane %v5675, 7
  %v5677 = vrot.slane %v5669, 7
  %s5680 = scalar_lea.vmem [#allocation4], 24
  %5681 = vst [vmem:[%s5680] sm:$0x66] %v5676
  %5682 = vst [vmem:[%s5680 + $0x8] sm:$0x6] %v5677
  %v5683 = vld [vmem:[%s4] sm:$0xff]
  %v5684 = vld [vmem:[%s4 + $0x8] sm:$0xff]
  %v5685 = vld [vmem:[%s4 + $0x10] sm:$0xff]
  %v5686 = vld [vmem:[%s4 + $0x18] sm:$0xff]
  %v5687 = vld [vmem:[%s4 + $0x20] sm:$0xff]
  %v5688 = vld [vmem:[%s4 + $0x28] sm:$0xff]
  %v5689 = vld [vmem:[%s4 + $0x30] sm:$0xff]
  %v5690 = vld [vmem:[%s4 + $0x38] sm:$0xff]
  %v5691 = vld [vmem:[%s4 + $0x40] sm:$0xff]
  %v5692 = vld [vmem:[%s4 + $0x48] sm:$0xff]
  %v5693 = vld [vmem:[%s4 + $0x50] sm:$0xff]
  %v5694 = vld [vmem:[%s4 + $0x58] sm:$0xff]
  %v5695 = vld [vmem:[%s4 + $0x60] sm:$0xff]
  %v5696 = vld [vmem:[%s4 + $0x68] sm:$0xff]
  %v5697 = vld [vmem:[%s4 + $0x70] sm:$0xff]
  %v5698 = vld [vmem:[%s4 + $0x78] sm:$0xff]
  %v5699 = vld [vmem:[%s4 + $0x80] sm:$0xff]
  %v5700 = vld [vmem:[%s4 + $0x88] sm:$0xff]
  %v5701 = vld [vmem:[%s4 + $0x90] sm:$0xff]
  %v5702 = vld [vmem:[%s4 + $0x98] sm:$0xff]
  %v5703 = vld [vmem:[%s4 + $0xa0] sm:$0xff]
  %v5704 = vld [vmem:[%s4 + $0xa8] sm:$0xff]
  %v5705 = vld [vmem:[%s4 + $0xb0] sm:$0xff]
  %v5706 = vld [vmem:[%s4 + $0xb8] sm:$0xff]
  %v5707 = vld [vmem:[%s4 + $0xc0] sm:$0xff]
  %v5708 = vld [vmem:[%s4 + $0xc8] sm:$0xff]
  %v5709 = vld [vmem:[%s4 + $0xd0] sm:$0xff]
  %v5710 = vld [vmem:[%s4 + $0xd8] sm:$0xff]
  %v5711 = vld [vmem:[%s4 + $0xe0] sm:$0xff]
  %v5712 = vld [vmem:[%s4 + $0xe8] sm:$0xff]
  %v5713 = vld [vmem:[%s4 + $0xf0] sm:$0xff]
  %v5714 = vld [vmem:[%s4 + $0xf8] sm:$0xff]
  %v5715 = vld [vmem:[%s4 + $0x100] sm:$0xff]
  %v5716 = vld [vmem:[%s4 + $0x108] sm:$0xff]
  %v5717 = vld [vmem:[%s4 + $0x110] sm:$0xff]
  %v5718 = vld [vmem:[%s4 + $0x118] sm:$0xff]
  %v5719 = vld [vmem:[%s4 + $0x120] sm:$0xff]
  %v5720 = vld [vmem:[%s4 + $0x128] sm:$0xff]
  %v5721 = vld [vmem:[%s4 + $0x130] sm:$0xff]
  %v5722 = vld [vmem:[%s4 + $0x138] sm:$0xff]
  %v5723 = vld [vmem:[%s4 + $0x140] sm:$0xff]
  %v5724 = vld [vmem:[%s4 + $0x148] sm:$0xff]
  %v5725 = vld [vmem:[%s4 + $0x150] sm:$0xff]
  %v5726 = vld [vmem:[%s4 + $0x158] sm:$0xff]
  %v5727 = vld [vmem:[%s4 + $0x160] sm:$0xff]
  %v5728 = vld [vmem:[%s4 + $0x168] sm:$0xff]
  %v5729 = vld [vmem:[%s4 + $0x170] sm:$0xff]
  %v5730 = vld [vmem:[%s4 + $0x178] sm:$0xff]
  %v5731 = vld [vmem:[%s4 + $0x180] sm:$0xff]
  %v5732 = vld [vmem:[%s4 + $0x188] sm:$0xff]
  %v5733 = vld [vmem:[%s4 + $0x190] sm:$0xff]
  %v5734 = vld [vmem:[%s4 + $0x198] sm:$0xff]
  %v5735 = vld [vmem:[%s4 + $0x1a0] sm:$0xff]
  %v5736 = vld [vmem:[%s4 + $0x1a8] sm:$0xff]
  %v5737 = vld [vmem:[%s4 + $0x1b0] sm:$0xff]
  %v5738 = vld [vmem:[%s4 + $0x1b8] sm:$0xff]
  %v5739 = vld [vmem:[%s4 + $0x1c0] sm:$0xff]
  %v5740 = vld [vmem:[%s4 + $0x1c8] sm:$0xff]
  %v5741 = vld [vmem:[%s4 + $0x1d0] sm:$0xff]
  %v5742 = vld [vmem:[%s4 + $0x1d8] sm:$0xff]
  %v5743 = vld [vmem:[%s4 + $0x1e0] sm:$0xff]
  %v5744 = vld [vmem:[%s4 + $0x1e8] sm:$0xff]
  %v5745 = vld [vmem:[%s4 + $0x1f0] sm:$0xff]
  %v5746 = vld [vmem:[%s4 + $0x1f8] sm:$0xff]
  %v5747 = vld [vmem:[%s4 + $0x200] sm:$0xff]
  %v5748 = vld [vmem:[%s4 + $0x208] sm:$0xff]
  %v5749 = vld [vmem:[%s4 + $0x210] sm:$0xff]
  %v5750 = vld [vmem:[%s4 + $0x218] sm:$0xff]
  %v5751 = vld [vmem:[%s4 + $0x220] sm:$0xff]
  %v5752 = vld [vmem:[%s4 + $0x228] sm:$0xff]
  %v5753 = vld [vmem:[%s4 + $0x230] sm:$0xff]
  %v5754 = vld [vmem:[%s4 + $0x238] sm:$0xff]
  %v5755 = vld [vmem:[%s4 + $0x240] sm:$0xff]
  %v5756 = vld [vmem:[%s4 + $0x248] sm:$0xff]
  %v5757 = vld [vmem:[%s4 + $0x250] sm:$0xff]
  %v5758 = vld [vmem:[%s4 + $0x258] sm:$0xff]
  %v5759 = vld [vmem:[%s4 + $0x260] sm:$0xff]
  %v5760 = vld [vmem:[%s4 + $0x268] sm:$0xff]
  %v5761 = vld [vmem:[%s4 + $0x270] sm:$0xff]
  %v5762 = vld [vmem:[%s4 + $0x278] sm:$0xff]
  %v5763 = vld [vmem:[%s4 + $0x280] sm:$0xff]
  %v5764 = vld [vmem:[%s4 + $0x288] sm:$0xff]
  %v5765 = vld [vmem:[%s4 + $0x290] sm:$0xff]
  %v5766 = vld [vmem:[%s4 + $0x298] sm:$0xff]
  %v5767 = vld [vmem:[%s4 + $0x2a0] sm:$0xff]
  %v5768 = vld [vmem:[%s4 + $0x2a8] sm:$0xff]
  %v5769 = vld [vmem:[%s4 + $0x2b0] sm:$0xff]
  %v5770 = vld [vmem:[%s4 + $0x2b8] sm:$0xff]
  %v5771 = vld [vmem:[%s4 + $0x2c0] sm:$0xff]
  %v5772 = vld [vmem:[%s4 + $0x2c8] sm:$0xff]
  %v5773 = vld [vmem:[%s4 + $0x2d0] sm:$0xff]
  %v5774 = vld [vmem:[%s4 + $0x2d8] sm:$0xff]
  %v5775 = vld [vmem:[%s4 + $0x2e0] sm:$0xff]
  %v5776 = vld [vmem:[%s4 + $0x2e8] sm:$0xff]
  %v5777 = vld [vmem:[%s4 + $0x2f0] sm:$0xff]
  %v5778 = vld [vmem:[%s4 + $0x2f8] sm:$0xff]
  %s5779 = scalar_lea.vmem %s4, 768
  %v5780 = vld [vmem:[%s5779] sm:$0xff]
  %v5781 = vld [vmem:[%s5779 + $0x8] sm:$0xff]
  %v5782 = vld [vmem:[%s5779 + $0x10] sm:$0xff]
  %v5783 = vld [vmem:[%s5779 + $0x18] sm:$0xff]
  %v5784 = vld [vmem:[%s5779 + $0x20] sm:$0xff]
  %v5785 = vld [vmem:[%s5779 + $0x28] sm:$0xff]
  %v5786 = vld [vmem:[%s5779 + $0x30] sm:$0xff]
  %v5787 = vld [vmem:[%s5779 + $0x38] sm:$0xff]
  %v5788 = vld [vmem:[%s5779 + $0x40] sm:$0xff]
  %v5789 = vld [vmem:[%s5779 + $0x48] sm:$0xff]
  %v5790 = vld [vmem:[%s5779 + $0x50] sm:$0xff]
  %v5791 = vld [vmem:[%s5779 + $0x58] sm:$0xff]
  %v5792 = vld [vmem:[%s5779 + $0x60] sm:$0xff]
  %v5793 = vld [vmem:[%s5779 + $0x68] sm:$0xff]
  %v5794 = vld [vmem:[%s5779 + $0x70] sm:$0xff]
  %v5795 = vld [vmem:[%s5779 + $0x78] sm:$0xff]
  %v5796 = vld [vmem:[%s5779 + $0x80] sm:$0xff]
  %v5797 = vld [vmem:[%s5779 + $0x88] sm:$0xff]
  %v5798 = vld [vmem:[%s5779 + $0x90] sm:$0xff]
  %v5799 = vld [vmem:[%s5779 + $0x98] sm:$0xff]
  %v5800 = vld [vmem:[%s5779 + $0xa0] sm:$0xff]
  %v5801 = vld [vmem:[%s5779 + $0xa8] sm:$0xff]
  %v5802 = vld [vmem:[%s5779 + $0xb0] sm:$0xff]
  %v5803 = vld [vmem:[%s5779 + $0xb8] sm:$0xff]
  %v5804 = vld [vmem:[%s5779 + $0xc0] sm:$0xff]
  %v5805 = vld [vmem:[%s5779 + $0xc8] sm:$0xff]
  %v5806 = vld [vmem:[%s5779 + $0xd0] sm:$0xff]
  %v5807 = vld [vmem:[%s5779 + $0xd8] sm:$0xff]
  %v5808 = vld [vmem:[%s5779 + $0xe0] sm:$0xff]
  %v5809 = vld [vmem:[%s5779 + $0xe8] sm:$0xff]
  %v5810 = vld [vmem:[%s5779 + $0xf0] sm:$0xff]
  %v5811 = vld [vmem:[%s5779 + $0xf8] sm:$0xff]
  %v5812 = vld [vmem:[%s5779 + $0x100] sm:$0xff]
  %v5813 = vld [vmem:[%s5779 + $0x108] sm:$0xff]
  %v5814 = vld [vmem:[%s5779 + $0x110] sm:$0xff]
  %v5815 = vld [vmem:[%s5779 + $0x118] sm:$0xff]
  %v5816 = vld [vmem:[%s5779 + $0x120] sm:$0xff]
  %v5817 = vld [vmem:[%s5779 + $0x128] sm:$0xff]
  %v5818 = vld [vmem:[%s5779 + $0x130] sm:$0xff]
  %v5819 = vld [vmem:[%s5779 + $0x138] sm:$0xff]
  %v5820 = vld [vmem:[%s5779 + $0x140] sm:$0xff]
  %v5821 = vld [vmem:[%s5779 + $0x148] sm:$0xff]
  %v5822 = vld [vmem:[%s5779 + $0x150] sm:$0xff]
  %v5823 = vld [vmem:[%s5779 + $0x158] sm:$0xff]
  %v5824 = vld [vmem:[%s5779 + $0x160] sm:$0xff]
  %v5825 = vld [vmem:[%s5779 + $0x168] sm:$0xff]
  %v5826 = vld [vmem:[%s5779 + $0x170] sm:$0xff]
  %v5827 = vld [vmem:[%s5779 + $0x178] sm:$0xff]
  %v5828 = vld [vmem:[%s5779 + $0x180] sm:$0xff]
  %v5829 = vld [vmem:[%s5779 + $0x188] sm:$0xff]
  %v5830 = vld [vmem:[%s5779 + $0x190] sm:$0xff]
  %v5831 = vld [vmem:[%s5779 + $0x198] sm:$0xff]
  %v5832 = vld [vmem:[%s5779 + $0x1a0] sm:$0xff]
  %v5833 = vld [vmem:[%s5779 + $0x1a8] sm:$0xff]
  %v5834 = vld [vmem:[%s5779 + $0x1b0] sm:$0xff]
  %v5835 = vld [vmem:[%s5779 + $0x1b8] sm:$0xff]
  %v5836 = vld [vmem:[%s5779 + $0x1c0] sm:$0xff]
  %v5837 = vld [vmem:[%s5779 + $0x1c8] sm:$0xff]
  %v5838 = vld [vmem:[%s5779 + $0x1d0] sm:$0xff]
  %v5839 = vld [vmem:[%s5779 + $0x1d8] sm:$0xff]
  %v5840 = vld [vmem:[%s5779 + $0x1e0] sm:$0xff]
  %v5841 = vld [vmem:[%s5779 + $0x1e8] sm:$0xff]
  %v5842 = vld [vmem:[%s5779 + $0x1f0] sm:$0xff]
  %v5843 = vld [vmem:[%s5779 + $0x1f8] sm:$0xff]
  %v5844 = vld [vmem:[%s5779 + $0x200] sm:$0xff]
  %v5845 = vld [vmem:[%s5779 + $0x208] sm:$0xff]
  %v5846 = vld [vmem:[%s5779 + $0x210] sm:$0xff]
  %v5847 = vld [vmem:[%s5779 + $0x218] sm:$0xff]
  %v5848 = vld [vmem:[%s5779 + $0x220] sm:$0xff]
  %v5849 = vld [vmem:[%s5779 + $0x228] sm:$0xff]
  %v5850 = vld [vmem:[%s5779 + $0x230] sm:$0xff]
  %v5851 = vld [vmem:[%s5779 + $0x238] sm:$0xff]
  %v5852 = vld [vmem:[%s5779 + $0x240] sm:$0xff]
  %v5853 = vld [vmem:[%s5779 + $0x248] sm:$0xff]
  %v5854 = vld [vmem:[%s5779 + $0x250] sm:$0xff]
  %v5855 = vld [vmem:[%s5779 + $0x258] sm:$0xff]
  %v5856 = vld [vmem:[%s5779 + $0x260] sm:$0xff]
  %v5857 = vld [vmem:[%s5779 + $0x268] sm:$0xff]
  %v5858 = vld [vmem:[%s5779 + $0x270] sm:$0xff]
  %v5859 = vld [vmem:[%s5779 + $0x278] sm:$0xff]
  %v5860 = vld [vmem:[%s5779 + $0x280] sm:$0xff]
  %v5861 = vld [vmem:[%s5779 + $0x288] sm:$0xff]
  %v5862 = vld [vmem:[%s5779 + $0x290] sm:$0xff]
  %v5863 = vld [vmem:[%s5779 + $0x298] sm:$0xff]
  %v5864 = vld [vmem:[%s5779 + $0x2a0] sm:$0xff]
  %v5865 = vld [vmem:[%s5779 + $0x2a8] sm:$0xff]
  %v5866 = vld [vmem:[%s5779 + $0x2b0] sm:$0xff]
  %v5867 = vld [vmem:[%s5779 + $0x2b8] sm:$0xff]
  %v5868 = vld [vmem:[%s5779 + $0x2c0] sm:$0xff]
  %v5869 = vld [vmem:[%s5779 + $0x2c8] sm:$0xff]
  %v5870 = vld [vmem:[%s5779 + $0x2d0] sm:$0xff]
  %v5871 = vld [vmem:[%s5779 + $0x2d8] sm:$0xff]
  %v5872 = vld [vmem:[%s5779 + $0x2e0] sm:$0xff]
  %v5873 = vld [vmem:[%s5779 + $0x2e8] sm:$0xff]
  %v5874 = vld [vmem:[%s5779 + $0x2f0] sm:$0xff]
  %v5875 = vld [vmem:[%s5779 + $0x2f8] sm:$0xff]
  %s5876 = scalar_lea.vmem %s4, 1536
  %v5877 = vld [vmem:[%s5876] sm:$0xff]
  %v5878 = vld [vmem:[%s5876 + $0x8] sm:$0xff]
  %v5879 = vld [vmem:[%s5876 + $0x10] sm:$0xff]
  %v5880 = vld [vmem:[%s5876 + $0x18] sm:$0xff]
  %v5881 = vld [vmem:[%s5876 + $0x20] sm:$0xff]
  %v5882 = vld [vmem:[%s5876 + $0x28] sm:$0xff]
  %v5883 = vld [vmem:[%s5876 + $0x30] sm:$0xff]
  %v5884 = vld [vmem:[%s5876 + $0x38] sm:$0xff]
  %v5885 = vld [vmem:[%s5876 + $0x40] sm:$0xff]
  %v5886 = vld [vmem:[%s5876 + $0x48] sm:$0xff]
  %v5887 = vld [vmem:[%s5876 + $0x50] sm:$0xff]
  %v5888 = vld [vmem:[%s5876 + $0x58] sm:$0xff]
  %v5889 = vld [vmem:[%s5876 + $0x60] sm:$0xff]
  %v5890 = vld [vmem:[%s5876 + $0x68] sm:$0xff]
  %v5891 = vld [vmem:[%s5876 + $0x70] sm:$0xff]
  %v5892 = vld [vmem:[%s5876 + $0x78] sm:$0xff]
  %v5893 = vld [vmem:[%s5876 + $0x80] sm:$0xff]
  %v5894 = vld [vmem:[%s5876 + $0x88] sm:$0xff]
  %v5895 = vld [vmem:[%s5876 + $0x90] sm:$0xff]
  %v5896 = vld [vmem:[%s5876 + $0x98] sm:$0xff]
  %v5897 = vld [vmem:[%s5876 + $0xa0] sm:$0xff]
  %v5898 = vld [vmem:[%s5876 + $0xa8] sm:$0xff]
  %v5899 = vld [vmem:[%s5876 + $0xb0] sm:$0xff]
  %v5900 = vld [vmem:[%s5876 + $0xb8] sm:$0xff]
  %v5901 = vld [vmem:[%s5876 + $0xc0] sm:$0xff]
  %v5902 = vld [vmem:[%s5876 + $0xc8] sm:$0xff]
  %v5903 = vld [vmem:[%s5876 + $0xd0] sm:$0xff]
  %v5904 = vld [vmem:[%s5876 + $0xd8] sm:$0xff]
  %v5905 = vld [vmem:[%s5876 + $0xe0] sm:$0xff]
  %v5906 = vld [vmem:[%s5876 + $0xe8] sm:$0xff]
  %v5907 = vld [vmem:[%s5876 + $0xf0] sm:$0xff]
  %v5908 = vld [vmem:[%s5876 + $0xf8] sm:$0xff]
  %v5909 = vld [vmem:[%s5876 + $0x100] sm:$0xff]
  %v5910 = vld [vmem:[%s5876 + $0x108] sm:$0xff]
  %v5911 = vld [vmem:[%s5876 + $0x110] sm:$0xff]
  %v5912 = vld [vmem:[%s5876 + $0x118] sm:$0xff]
  %v5913 = vld [vmem:[%s5876 + $0x120] sm:$0xff]
  %v5914 = vld [vmem:[%s5876 + $0x128] sm:$0xff]
  %v5915 = vld [vmem:[%s5876 + $0x130] sm:$0xff]
  %v5916 = vld [vmem:[%s5876 + $0x138] sm:$0xff]
  %v5917 = vld [vmem:[%s5876 + $0x140] sm:$0xff]
  %v5918 = vld [vmem:[%s5876 + $0x148] sm:$0xff]
  %v5919 = vld [vmem:[%s5876 + $0x150] sm:$0xff]
  %v5920 = vld [vmem:[%s5876 + $0x158] sm:$0xff]
  %v5921 = vld [vmem:[%s5876 + $0x160] sm:$0xff]
  %v5922 = vld [vmem:[%s5876 + $0x168] sm:$0xff]
  %v5923 = vld [vmem:[%s5876 + $0x170] sm:$0xff]
  %v5924 = vld [vmem:[%s5876 + $0x178] sm:$0xff]
  %v5925 = vld [vmem:[%s5876 + $0x180] sm:$0xff]
  %v5926 = vld [vmem:[%s5876 + $0x188] sm:$0xff]
  %v5927 = vld [vmem:[%s5876 + $0x190] sm:$0xff]
  %v5928 = vld [vmem:[%s5876 + $0x198] sm:$0xff]
  %v5929 = vld [vmem:[%s5876 + $0x1a0] sm:$0xff]
  %v5930 = vld [vmem:[%s5876 + $0x1a8] sm:$0xff]
  %v5931 = vld [vmem:[%s5876 + $0x1b0] sm:$0xff]
  %v5932 = vld [vmem:[%s5876 + $0x1b8] sm:$0xff]
  %v5933 = vld [vmem:[%s5876 + $0x1c0] sm:$0xff]
  %v5934 = vld [vmem:[%s5876 + $0x1c8] sm:$0xff]
  %v5935 = vld [vmem:[%s5876 + $0x1d0] sm:$0xff]
  %v5936 = vld [vmem:[%s5876 + $0x1d8] sm:$0xff]
  %v5937 = vld [vmem:[%s5876 + $0x1e0] sm:$0xff]
  %v5938 = vld [vmem:[%s5876 + $0x1e8] sm:$0xff]
  %v5939 = vld [vmem:[%s5876 + $0x1f0] sm:$0xff]
  %v5940 = vld [vmem:[%s5876 + $0x1f8] sm:$0xff]
  %v5941 = vld [vmem:[%s5876 + $0x200] sm:$0xff]
  %v5942 = vld [vmem:[%s5876 + $0x208] sm:$0xff]
  %v5943 = vld [vmem:[%s5876 + $0x210] sm:$0xff]
  %v5944 = vld [vmem:[%s5876 + $0x218] sm:$0xff]
  %v5945 = vld [vmem:[%s5876 + $0x220] sm:$0xff]
  %v5946 = vld [vmem:[%s5876 + $0x228] sm:$0xff]
  %v5947 = vld [vmem:[%s5876 + $0x230] sm:$0xff]
  %v5948 = vld [vmem:[%s5876 + $0x238] sm:$0xff]
  %v5949 = vld [vmem:[%s5876 + $0x240] sm:$0xff]
  %v5950 = vld [vmem:[%s5876 + $0x248] sm:$0xff]
  %v5951 = vld [vmem:[%s5876 + $0x250] sm:$0xff]
  %v5952 = vld [vmem:[%s5876 + $0x258] sm:$0xff]
  %v5953 = vld [vmem:[%s5876 + $0x260] sm:$0xff]
  %v5954 = vld [vmem:[%s5876 + $0x268] sm:$0xff]
  %v5955 = vld [vmem:[%s5876 + $0x270] sm:$0xff]
  %v5956 = vld [vmem:[%s5876 + $0x278] sm:$0xff]
  %v5957 = vld [vmem:[%s5876 + $0x280] sm:$0xff]
  %v5958 = vld [vmem:[%s5876 + $0x288] sm:$0xff]
  %v5959 = vld [vmem:[%s5876 + $0x290] sm:$0xff]
  %v5960 = vld [vmem:[%s5876 + $0x298] sm:$0xff]
  %v5961 = vld [vmem:[%s5876 + $0x2a0] sm:$0xff]
  %v5962 = vld [vmem:[%s5876 + $0x2a8] sm:$0xff]
  %v5963 = vld [vmem:[%s5876 + $0x2b0] sm:$0xff]
  %v5964 = vld [vmem:[%s5876 + $0x2b8] sm:$0xff]
  %v5965 = vld [vmem:[%s5876 + $0x2c0] sm:$0xff]
  %v5966 = vld [vmem:[%s5876 + $0x2c8] sm:$0xff]
  %v5967 = vld [vmem:[%s5876 + $0x2d0] sm:$0xff]
  %v5968 = vld [vmem:[%s5876 + $0x2d8] sm:$0xff]
  %v5969 = vld [vmem:[%s5876 + $0x2e0] sm:$0xff]
  %v5970 = vld [vmem:[%s5876 + $0x2e8] sm:$0xff]
  %v5971 = vld [vmem:[%s5876 + $0x2f0] sm:$0xff]
  %v5972 = vld [vmem:[%s5876 + $0x2f8] sm:$0xff]
  %v5973 = vld [vmem:[#allocation4] sm:$0x33]
  %v5974 = vld [vmem:[#allocation4 + $0x8] sm:$0x3]
  %v5975 = vld [vmem:[%s5442] sm:$0x33]
  %v5976 = vld [vmem:[%s5442 + $0x8] sm:$0x3]
  %v5977 = vld [vmem:[#allocation4] sm:$0x66]
  %v5978 = vld [vmem:[#allocation4 + $0x8] sm:$0x6]
  %5981 = vst [vmem:[#allocation1] ss:$2 sm:$0xff] %v5975
  %s5982 = scalar_lea.vmem [#allocation1], 16
  %5983 = vst [vmem:[%s5982] ss:$2 sm:$0xff] %v5976
  %v5984 = vld.sshfl [vmem:[#allocation1] sm:$0xff pattern:$0x75316420]
  %v5985 = vld.sshfl [vmem:[#allocation1 + $0x8] sm:$0xff pattern:$0x75316420]
  %v5986 = vld.sshfl [vmem:[#allocation1 + $0x10] sm:$0xff pattern:$0x75316420]
  %5990 = vmatpush.msra.mxu0 %v5810
  %5991 = vmatpush.msra.mxu0 %v5808
  %5992 = vmatpush.msra.mxu0 %v5806
  %5993 = vmatpush.msra.mxu0 %v5804
  %5994 = vmatpush.msra.mxu0 %v5802
  %5995 = vmatpush.msra.mxu0 %v5800
  %5996 = vmatpush.msra.mxu0 %v5798
  %5997 = vmatpush.msra.mxu0 %v5796
  %5998 = vmatpush.msra.mxu0 %v5794
  %5999 = vmatpush.msra.mxu0 %v5792
  %6000 = vmatpush.msra.mxu0 %v5790
  %6001 = vmatpush.msra.mxu0 %v5788
  %6002 = vmatpush.msra.mxu0 %v5786
  %6003 = vmatpush.msra.mxu0 %v5784
  %6004 = vmatpush.msra.mxu0 %v5782
  %6005 = vmatpush.msra.mxu0 %v5780
  %6006 = vmatmul.f32.gmra.mxu0 %v5984
  %v6007 = vpop.f32.mrf.mxu0
  %v6008 = vadd.f32 0.0, %v6007
  %6009 = vdwg.mxu0
  %6010 = vmatpush.msra.mxu0 %v5842
  %6011 = vmatpush.msra.mxu0 %v5840
  %6012 = vmatpush.msra.mxu0 %v5838
  %6013 = vmatpush.msra.mxu0 %v5836
  %6014 = vmatpush.msra.mxu0 %v5834
  %6015 = vmatpush.msra.mxu0 %v5832
  %6016 = vmatpush.msra.mxu0 %v5830
  %6017 = vmatpush.msra.mxu0 %v5828
  %6018 = vmatpush.msra.mxu0 %v5826
  %6019 = vmatpush.msra.mxu0 %v5824
  %6020 = vmatpush.msra.mxu0 %v5822
  %6021 = vmatpush.msra.mxu0 %v5820
  %6022 = vmatpush.msra.mxu0 %v5818
  %6023 = vmatpush.msra.mxu0 %v5816
  %6024 = vmatpush.msra.mxu0 %v5814
  %6025 = vmatpush.msra.mxu0 %v5812
  %6026 = vmatmul.f32.gmra.mxu0 %v5985
  %v6027 = vpop.f32.mrf.mxu0
  %v6028 = vadd.f32 %v6008, %v6027
  %6029 = vdwg.mxu0
  %6030 = vmatpush.msra.mxu0 %v5874
  %6031 = vmatpush.msra.mxu0 %v5872
  %6032 = vmatpush.msra.mxu0 %v5870
  %6033 = vmatpush.msra.mxu0 %v5868
  %6034 = vmatpush.msra.mxu0 %v5866
  %6035 = vmatpush.msra.mxu0 %v5864
  %6036 = vmatpush.msra.mxu0 %v5862
  %6037 = vmatpush.msra.mxu0 %v5860
  %6038 = vmatpush.msra.mxu0 %v5858
  %6039 = vmatpush.msra.mxu0 %v5856
  %6040 = vmatpush.msra.mxu0 %v5854
  %6041 = vmatpush.msra.mxu0 %v5852
  %6042 = vmatpush.msra.mxu0 %v5850
  %6043 = vmatpush.msra.mxu0 %v5848
  %6044 = vmatpush.msra.mxu0 %v5846
  %6045 = vmatpush.msra.mxu0 %v5844
  %6046 = vmatmul.f32.gmra.mxu0 %v5986
  %v6047 = vpop.f32.mrf.mxu0
  %v6048 = vadd.f32 %v6028, %v6047
  %6049 = vdwg.mxu0
  %6050 = vmatpush.msra.mxu0 %v5811
  %6051 = vmatpush.msra.mxu0 %v5809
  %6052 = vmatpush.msra.mxu0 %v5807
  %6053 = vmatpush.msra.mxu0 %v5805
  %6054 = vmatpush.msra.mxu0 %v5803
  %6055 = vmatpush.msra.mxu0 %v5801
  %6056 = vmatpush.msra.mxu0 %v5799
  %6057 = vmatpush.msra.mxu0 %v5797
  %6058 = vmatpush.msra.mxu0 %v5795
  %6059 = vmatpush.msra.mxu0 %v5793
  %6060 = vmatpush.msra.mxu0 %v5791
  %6061 = vmatpush.msra.mxu0 %v5789
  %6062 = vmatpush.msra.mxu0 %v5787
  %6063 = vmatpush.msra.mxu0 %v5785
  %6064 = vmatpush.msra.mxu0 %v5783
  %6065 = vmatpush.msra.mxu0 %v5781
  %6066 = vmatmul.f32.gmra.mxu0 %v5984
  %v6067 = vpop.f32.mrf.mxu0
  %v6068 = vadd.f32 0.0, %v6067
  %6069 = vdwg.mxu0
  %6070 = vmatpush.msra.mxu0 %v5843
  %6071 = vmatpush.msra.mxu0 %v5841
  %6072 = vmatpush.msra.mxu0 %v5839
  %6073 = vmatpush.msra.mxu0 %v5837
  %6074 = vmatpush.msra.mxu0 %v5835
  %6075 = vmatpush.msra.mxu0 %v5833
  %6076 = vmatpush.msra.mxu0 %v5831
  %6077 = vmatpush.msra.mxu0 %v5829
  %6078 = vmatpush.msra.mxu0 %v5827
  %6079 = vmatpush.msra.mxu0 %v5825
  %6080 = vmatpush.msra.mxu0 %v5823
  %6081 = vmatpush.msra.mxu0 %v5821
  %6082 = vmatpush.msra.mxu0 %v5819
  %6083 = vmatpush.msra.mxu0 %v5817
  %6084 = vmatpush.msra.mxu0 %v5815
  %6085 = vmatpush.msra.mxu0 %v5813
  %6086 = vmatmul.f32.gmra.mxu0 %v5985
  %v6087 = vpop.f32.mrf.mxu0
  %v6088 = vadd.f32 %v6068, %v6087
  %6089 = vdwg.mxu0
  %6090 = vmatpush.msra.mxu0 %v5875
  %6091 = vmatpush.msra.mxu0 %v5873
  %6092 = vmatpush.msra.mxu0 %v5871
  %6093 = vmatpush.msra.mxu0 %v5869
  %6094 = vmatpush.msra.mxu0 %v5867
  %6095 = vmatpush.msra.mxu0 %v5865
  %6096 = vmatpush.msra.mxu0 %v5863
  %6097 = vmatpush.msra.mxu0 %v5861
  %6098 = vmatpush.msra.mxu0 %v5859
  %6099 = vmatpush.msra.mxu0 %v5857
  %6100 = vmatpush.msra.mxu0 %v5855
  %6101 = vmatpush.msra.mxu0 %v5853
  %6102 = vmatpush.msra.mxu0 %v5851
  %6103 = vmatpush.msra.mxu0 %v5849
  %6104 = vmatpush.msra.mxu0 %v5847
  %6105 = vmatpush.msra.mxu0 %v5845
  %6106 = vmatmul.f32.gmra.mxu0 %v5986
  %v6107 = vpop.f32.mrf.mxu0
  %v6108 = vadd.f32 %v6088, %v6107
  %6109 = vdwg.mxu0
  %6112 = vst [vmem:[#allocation1] ss:$2 sm:$0xff] %v5973
  %s6113 = scalar_lea.vmem [#allocation1], 16
  %6114 = vst [vmem:[%s6113] ss:$2 sm:$0xff] %v5974
  %v6115 = vld.sshfl [vmem:[#allocation1] sm:$0xff pattern:$0x75316420]
  %v6116 = vld.sshfl [vmem:[#allocation1 + $0x8] sm:$0xff pattern:$0x75316420]
  %v6117 = vld.sshfl [vmem:[#allocation1 + $0x10] sm:$0xff pattern:$0x75316420]
  %6121 = vmatpush.msra.mxu0 %v5713
  %6122 = vmatpush.msra.mxu0 %v5711
  %6123 = vmatpush.msra.mxu0 %v5709
  %6124 = vmatpush.msra.mxu0 %v5707
  %6125 = vmatpush.msra.mxu0 %v5705
  %6126 = vmatpush.msra.mxu0 %v5703
  %6127 = vmatpush.msra.mxu0 %v5701
  %6128 = vmatpush.msra.mxu0 %v5699
  %6129 = vmatpush.msra.mxu0 %v5697
  %6130 = vmatpush.msra.mxu0 %v5695
  %6131 = vmatpush.msra.mxu0 %v5693
  %6132 = vmatpush.msra.mxu0 %v5691
  %6133 = vmatpush.msra.mxu0 %v5689
  %6134 = vmatpush.msra.mxu0 %v5687
  %6135 = vmatpush.msra.mxu0 %v5685
  %6136 = vmatpush.msra.mxu0 %v5683
  %6137 = vmatmul.f32.gmra.mxu0 %v6115
  %v6138 = vpop.f32.mrf.mxu0
  %v6139 = vadd.f32 %v6048, %v6138
  %6140 = vdwg.mxu0
  %6141 = vmatpush.msra.mxu0 %v5745
  %6142 = vmatpush.msra.mxu0 %v5743
  %6143 = vmatpush.msra.mxu0 %v5741
  %6144 = vmatpush.msra.mxu0 %v5739
  %6145 = vmatpush.msra.mxu0 %v5737
  %6146 = vmatpush.msra.mxu0 %v5735
  %6147 = vmatpush.msra.mxu0 %v5733
  %6148 = vmatpush.msra.mxu0 %v5731
  %6149 = vmatpush.msra.mxu0 %v5729
  %6150 = vmatpush.msra.mxu0 %v5727
  %6151 = vmatpush.msra.mxu0 %v5725
  %6152 = vmatpush.msra.mxu0 %v5723
  %6153 = vmatpush.msra.mxu0 %v5721
  %6154 = vmatpush.msra.mxu0 %v5719
  %6155 = vmatpush.msra.mxu0 %v5717
  %6156 = vmatpush.msra.mxu0 %v5715
  %6157 = vmatmul.f32.gmra.mxu0 %v6116
  %v6158 = vpop.f32.mrf.mxu0
  %v6159 = vadd.f32 %v6139, %v6158
  %6160 = vdwg.mxu0
  %6161 = vmatpush.msra.mxu0 %v5777
  %6162 = vmatpush.msra.mxu0 %v5775
  %6163 = vmatpush.msra.mxu0 %v5773
  %6164 = vmatpush.msra.mxu0 %v5771
  %6165 = vmatpush.msra.mxu0 %v5769
  %6166 = vmatpush.msra.mxu0 %v5767
  %6167 = vmatpush.msra.mxu0 %v5765
  %6168 = vmatpush.msra.mxu0 %v5763
  %6169 = vmatpush.msra.mxu0 %v5761
  %6170 = vmatpush.msra.mxu0 %v5759
  %6171 = vmatpush.msra.mxu0 %v5757
  %6172 = vmatpush.msra.mxu0 %v5755
  %6173 = vmatpush.msra.mxu0 %v5753
  %6174 = vmatpush.msra.mxu0 %v5751
  %6175 = vmatpush.msra.mxu0 %v5749
  %6176 = vmatpush.msra.mxu0 %v5747
  %6177 = vmatmul.f32.gmra.mxu0 %v6117
  %v6178 = vpop.f32.mrf.mxu0
  %v6179 = vadd.f32 %v6159, %v6178
  %6180 = vdwg.mxu0
  %6181 = vmatpush.msra.mxu0 %v5714
  %6182 = vmatpush.msra.mxu0 %v5712
  %6183 = vmatpush.msra.mxu0 %v5710
  %6184 = vmatpush.msra.mxu0 %v5708
  %6185 = vmatpush.msra.mxu0 %v5706
  %6186 = vmatpush.msra.mxu0 %v5704
  %6187 = vmatpush.msra.mxu0 %v5702
  %6188 = vmatpush.msra.mxu0 %v5700
  %6189 = vmatpush.msra.mxu0 %v5698
  %6190 = vmatpush.msra.mxu0 %v5696
  %6191 = vmatpush.msra.mxu0 %v5694
  %6192 = vmatpush.msra.mxu0 %v5692
  %6193 = vmatpush.msra.mxu0 %v5690
  %6194 = vmatpush.msra.mxu0 %v5688
  %6195 = vmatpush.msra.mxu0 %v5686
  %6196 = vmatpush.msra.mxu0 %v5684
  %6197 = vmatmul.f32.gmra.mxu0 %v6115
  %v6198 = vpop.f32.mrf.mxu0
  %v6199 = vadd.f32 %v6108, %v6198
  %6200 = vdwg.mxu0
  %6201 = vmatpush.msra.mxu0 %v5746
  %6202 = vmatpush.msra.mxu0 %v5744
  %6203 = vmatpush.msra.mxu0 %v5742
  %6204 = vmatpush.msra.mxu0 %v5740
  %6205 = vmatpush.msra.mxu0 %v5738
  %6206 = vmatpush.msra.mxu0 %v5736
  %6207 = vmatpush.msra.mxu0 %v5734
  %6208 = vmatpush.msra.mxu0 %v5732
  %6209 = vmatpush.msra.mxu0 %v5730
  %6210 = vmatpush.msra.mxu0 %v5728
  %6211 = vmatpush.msra.mxu0 %v5726
  %6212 = vmatpush.msra.mxu0 %v5724
  %6213 = vmatpush.msra.mxu0 %v5722
  %6214 = vmatpush.msra.mxu0 %v5720
  %6215 = vmatpush.msra.mxu0 %v5718
  %6216 = vmatpush.msra.mxu0 %v5716
  %6217 = vmatmul.f32.gmra.mxu0 %v6116
  %v6218 = vpop.f32.mrf.mxu0
  %v6219 = vadd.f32 %v6199, %v6218
  %6220 = vdwg.mxu0
  %6221 = vmatpush.msra.mxu0 %v5778
  %6222 = vmatpush.msra.mxu0 %v5776
  %6223 = vmatpush.msra.mxu0 %v5774
  %6224 = vmatpush.msra.mxu0 %v5772
  %6225 = vmatpush.msra.mxu0 %v5770
  %6226 = vmatpush.msra.mxu0 %v5768
  %6227 = vmatpush.msra.mxu0 %v5766
  %6228 = vmatpush.msra.mxu0 %v5764
  %6229 = vmatpush.msra.mxu0 %v5762
  %6230 = vmatpush.msra.mxu0 %v5760
  %6231 = vmatpush.msra.mxu0 %v5758
  %6232 = vmatpush.msra.mxu0 %v5756
  %6233 = vmatpush.msra.mxu0 %v5754
  %6234 = vmatpush.msra.mxu0 %v5752
  %6235 = vmatpush.msra.mxu0 %v5750
  %6236 = vmatpush.msra.mxu0 %v5748
  %6237 = vmatmul.f32.gmra.mxu0 %v6117
  %v6238 = vpop.f32.mrf.mxu0
  %v6239 = vadd.f32 %v6219, %v6238
  %6240 = vdwg.mxu0
  %6243 = vst [vmem:[#allocation1] ss:$2 sm:$0xff] %v5977
  %s6244 = scalar_lea.vmem [#allocation1], 16
  %6245 = vst [vmem:[%s6244] ss:$2 sm:$0xff] %v5978
  %v6246 = vld.sshfl [vmem:[#allocation1] sm:$0xff pattern:$0x75316420]
  %v6247 = vld.sshfl [vmem:[#allocation1 + $0x8] sm:$0xff pattern:$0x75316420]
  %v6248 = vld.sshfl [vmem:[#allocation1 + $0x10] sm:$0xff pattern:$0x75316420]
  %v6249 = vrot.slane %v6246, 1
  %v6250 = vrot.slane %v6247, 1
  %v6251 = vrot.slane %v6248, 1
  %6255 = vmatpush.msra.mxu0 %v5907
  %6256 = vmatpush.msra.mxu0 %v5905
  %6257 = vmatpush.msra.mxu0 %v5903
  %6258 = vmatpush.msra.mxu0 %v5901
  %6259 = vmatpush.msra.mxu0 %v5899
  %6260 = vmatpush.msra.mxu0 %v5897
  %6261 = vmatpush.msra.mxu0 %v5895
  %6262 = vmatpush.msra.mxu0 %v5893
  %6263 = vmatpush.msra.mxu0 %v5891
  %6264 = vmatpush.msra.mxu0 %v5889
  %6265 = vmatpush.msra.mxu0 %v5887
  %6266 = vmatpush.msra.mxu0 %v5885
  %6267 = vmatpush.msra.mxu0 %v5883
  %6268 = vmatpush.msra.mxu0 %v5881
  %6269 = vmatpush.msra.mxu0 %v5879
  %6270 = vmatpush.msra.mxu0 %v5877
  %6271 = vmatmul.f32.gmra.mxu0 %v6249
  %v6272 = vpop.f32.mrf.mxu0
  %v6273 = vadd.f32 0.0, %v6272
  %6274 = vdwg.mxu0
  %6275 = vmatpush.msra.mxu0 %v5939
  %6276 = vmatpush.msra.mxu0 %v5937
  %6277 = vmatpush.msra.mxu0 %v5935
  %6278 = vmatpush.msra.mxu0 %v5933
  %6279 = vmatpush.msra.mxu0 %v5931
  %6280 = vmatpush.msra.mxu0 %v5929
  %6281 = vmatpush.msra.mxu0 %v5927
  %6282 = vmatpush.msra.mxu0 %v5925
  %6283 = vmatpush.msra.mxu0 %v5923
  %6284 = vmatpush.msra.mxu0 %v5921
  %6285 = vmatpush.msra.mxu0 %v5919
  %6286 = vmatpush.msra.mxu0 %v5917
  %6287 = vmatpush.msra.mxu0 %v5915
  %6288 = vmatpush.msra.mxu0 %v5913
  %6289 = vmatpush.msra.mxu0 %v5911
  %6290 = vmatpush.msra.mxu0 %v5909
  %6291 = vmatmul.f32.gmra.mxu0 %v6250
  %v6292 = vpop.f32.mrf.mxu0
  %v6293 = vadd.f32 %v6273, %v6292
  %6294 = vdwg.mxu0
  %6295 = vmatpush.msra.mxu0 %v5971
  %6296 = vmatpush.msra.mxu0 %v5969
  %6297 = vmatpush.msra.mxu0 %v5967
  %6298 = vmatpush.msra.mxu0 %v5965
  %6299 = vmatpush.msra.mxu0 %v5963
  %6300 = vmatpush.msra.mxu0 %v5961
  %6301 = vmatpush.msra.mxu0 %v5959
  %6302 = vmatpush.msra.mxu0 %v5957
  %6303 = vmatpush.msra.mxu0 %v5955
  %6304 = vmatpush.msra.mxu0 %v5953
  %6305 = vmatpush.msra.mxu0 %v5951
  %6306 = vmatpush.msra.mxu0 %v5949
  %6307 = vmatpush.msra.mxu0 %v5947
  %6308 = vmatpush.msra.mxu0 %v5945
  %6309 = vmatpush.msra.mxu0 %v5943
  %6310 = vmatpush.msra.mxu0 %v5941
  %6311 = vmatmul.f32.gmra.mxu0 %v6251
  %v6312 = vpop.f32.mrf.mxu0
  %v6313 = vadd.f32 %v6293, %v6312
  %6314 = vdwg.mxu0
  %6315 = vmatpush.msra.mxu0 %v5908
  %6316 = vmatpush.msra.mxu0 %v5906
  %6317 = vmatpush.msra.mxu0 %v5904
  %6318 = vmatpush.msra.mxu0 %v5902
  %6319 = vmatpush.msra.mxu0 %v5900
  %6320 = vmatpush.msra.mxu0 %v5898
  %6321 = vmatpush.msra.mxu0 %v5896
  %6322 = vmatpush.msra.mxu0 %v5894
  %6323 = vmatpush.msra.mxu0 %v5892
  %6324 = vmatpush.msra.mxu0 %v5890
  %6325 = vmatpush.msra.mxu0 %v5888
  %6326 = vmatpush.msra.mxu0 %v5886
  %6327 = vmatpush.msra.mxu0 %v5884
  %6328 = vmatpush.msra.mxu0 %v5882
  %6329 = vmatpush.msra.mxu0 %v5880
  %6330 = vmatpush.msra.mxu0 %v5878
  %6331 = vmatmul.f32.gmra.mxu0 %v6249
  %v6332 = vpop.f32.mrf.mxu0
  %v6333 = vadd.f32 0.0, %v6332
  %6334 = vdwg.mxu0
  %6335 = vmatpush.msra.mxu0 %v5940
  %6336 = vmatpush.msra.mxu0 %v5938
  %6337 = vmatpush.msra.mxu0 %v5936
  %6338 = vmatpush.msra.mxu0 %v5934
  %6339 = vmatpush.msra.mxu0 %v5932
  %6340 = vmatpush.msra.mxu0 %v5930
  %6341 = vmatpush.msra.mxu0 %v5928
  %6342 = vmatpush.msra.mxu0 %v5926
  %6343 = vmatpush.msra.mxu0 %v5924
  %6344 = vmatpush.msra.mxu0 %v5922
  %6345 = vmatpush.msra.mxu0 %v5920
  %6346 = vmatpush.msra.mxu0 %v5918
  %6347 = vmatpush.msra.mxu0 %v5916
  %6348 = vmatpush.msra.mxu0 %v5914
  %6349 = vmatpush.msra.mxu0 %v5912
  %6350 = vmatpush.msra.mxu0 %v5910
  %6351 = vmatmul.f32.gmra.mxu0 %v6250
  %v6352 = vpop.f32.mrf.mxu0
  %v6353 = vadd.f32 %v6333, %v6352
  %6354 = vdwg.mxu0
  %6355 = vmatpush.msra.mxu0 %v5972
  %6356 = vmatpush.msra.mxu0 %v5970
  %6357 = vmatpush.msra.mxu0 %v5968
  %6358 = vmatpush.msra.mxu0 %v5966
  %6359 = vmatpush.msra.mxu0 %v5964
  %6360 = vmatpush.msra.mxu0 %v5962
  %6361 = vmatpush.msra.mxu0 %v5960
  %6362 = vmatpush.msra.mxu0 %v5958
  %6363 = vmatpush.msra.mxu0 %v5956
  %6364 = vmatpush.msra.mxu0 %v5954
  %6365 = vmatpush.msra.mxu0 %v5952
  %6366 = vmatpush.msra.mxu0 %v5950
  %6367 = vmatpush.msra.mxu0 %v5948
  %6368 = vmatpush.msra.mxu0 %v5946
  %6369 = vmatpush.msra.mxu0 %v5944
  %6370 = vmatpush.msra.mxu0 %v5942
  %6371 = vmatmul.f32.gmra.mxu0 %v6251
  %v6372 = vpop.f32.mrf.mxu0
  %v6373 = vadd.f32 %v6353, %v6372
  %6374 = vdwg.mxu0
  %v6375 = vadd.f32 %v6179, %v6313
  %v6376 = vadd.f32 %v6239, %v6373
  %v6377 = vld [vmem:[%s5680] sm:$0x33]
  %v6378 = vld [vmem:[%s5680 + $0x8] sm:$0x3]
  %v6379 = vld [vmem:[%s5608] sm:$0x33]
  %v6380 = vld [vmem:[%s5608 + $0x8] sm:$0x3]
  %v6381 = vld [vmem:[%s5680] sm:$0x66]
  %v6382 = vld [vmem:[%s5680 + $0x8] sm:$0x6]
  %6385 = vst [vmem:[#allocation1] ss:$2 sm:$0xff] %v6379
  %s6386 = scalar_lea.vmem [#allocation1], 16
  %6387 = vst [vmem:[%s6386] ss:$2 sm:$0xff] %v6380
  %v6388 = vld.sshfl [vmem:[#allocation1] sm:$0xff pattern:$0x75316420]
  %v6389 = vld.sshfl [vmem:[#allocation1 + $0x8] sm:$0xff pattern:$0x75316420]
  %v6390 = vld.sshfl [vmem:[#allocation1 + $0x10] sm:$0xff pattern:$0x75316420]
  %6394 = vmatpush.msra.mxu0 %v5810
  %6395 = vmatpush.msra.mxu0 %v5808
  %6396 = vmatpush.msra.mxu0 %v5806
  %6397 = vmatpush.msra.mxu0 %v5804
  %6398 = vmatpush.msra.mxu0 %v5802
  %6399 = vmatpush.msra.mxu0 %v5800
  %6400 = vmatpush.msra.mxu0 %v5798
  %6401 = vmatpush.msra.mxu0 %v5796
  %6402 = vmatpush.msra.mxu0 %v5794
  %6403 = vmatpush.msra.mxu0 %v5792
  %6404 = vmatpush.msra.mxu0 %v5790
  %6405 = vmatpush.msra.mxu0 %v5788
  %6406 = vmatpush.msra.mxu0 %v5786
  %6407 = vmatpush.msra.mxu0 %v5784
  %6408 = vmatpush.msra.mxu0 %v5782
  %6409 = vmatpush.msra.mxu0 %v5780
  %6410 = vmatmul.f32.gmra.mxu0 %v6388
  %v6411 = vpop.f32.mrf.mxu0
  %v6412 = vadd.f32 0.0, %v6411
  %6413 = vdwg.mxu0
  %6414 = vmatpush.msra.mxu0 %v5842
  %6415 = vmatpush.msra.mxu0 %v5840
  %6416 = vmatpush.msra.mxu0 %v5838
  %6417 = vmatpush.msra.mxu0 %v5836
  %6418 = vmatpush.msra.mxu0 %v5834
  %6419 = vmatpush.msra.mxu0 %v5832
  %6420 = vmatpush.msra.mxu0 %v5830
  %6421 = vmatpush.msra.mxu0 %v5828
  %6422 = vmatpush.msra.mxu0 %v5826
  %6423 = vmatpush.msra.mxu0 %v5824
  %6424 = vmatpush.msra.mxu0 %v5822
  %6425 = vmatpush.msra.mxu0 %v5820
  %6426 = vmatpush.msra.mxu0 %v5818
  %6427 = vmatpush.msra.mxu0 %v5816
  %6428 = vmatpush.msra.mxu0 %v5814
  %6429 = vmatpush.msra.mxu0 %v5812
  %6430 = vmatmul.f32.gmra.mxu0 %v6389
  %v6431 = vpop.f32.mrf.mxu0
  %v6432 = vadd.f32 %v6412, %v6431
  %6433 = vdwg.mxu0
  %6434 = vmatpush.msra.mxu0 %v5874
  %6435 = vmatpush.msra.mxu0 %v5872
  %6436 = vmatpush.msra.mxu0 %v5870
  %6437 = vmatpush.msra.mxu0 %v5868
  %6438 = vmatpush.msra.mxu0 %v5866
  %6439 = vmatpush.msra.mxu0 %v5864
  %6440 = vmatpush.msra.mxu0 %v5862
  %6441 = vmatpush.msra.mxu0 %v5860
  %6442 = vmatpush.msra.mxu0 %v5858
  %6443 = vmatpush.msra.mxu0 %v5856
  %6444 = vmatpush.msra.mxu0 %v5854
  %6445 = vmatpush.msra.mxu0 %v5852
  %6446 = vmatpush.msra.mxu0 %v5850
  %6447 = vmatpush.msra.mxu0 %v5848
  %6448 = vmatpush.msra.mxu0 %v5846
  %6449 = vmatpush.msra.mxu0 %v5844
  %6450 = vmatmul.f32.gmra.mxu0 %v6390
  %v6451 = vpop.f32.mrf.mxu0
  %v6452 = vadd.f32 %v6432, %v6451
  %6453 = vdwg.mxu0
  %6454 = vmatpush.msra.mxu0 %v5811
  %6455 = vmatpush.msra.mxu0 %v5809
  %6456 = vmatpush.msra.mxu0 %v5807
  %6457 = vmatpush.msra.mxu0 %v5805
  %6458 = vmatpush.msra.mxu0 %v5803
  %6459 = vmatpush.msra.mxu0 %v5801
  %6460 = vmatpush.msra.mxu0 %v5799
  %6461 = vmatpush.msra.mxu0 %v5797
  %6462 = vmatpush.msra.mxu0 %v5795
  %6463 = vmatpush.msra.mxu0 %v5793
  %6464 = vmatpush.msra.mxu0 %v5791
  %6465 = vmatpush.msra.mxu0 %v5789
  %6466 = vmatpush.msra.mxu0 %v5787
  %6467 = vmatpush.msra.mxu0 %v5785
  %6468 = vmatpush.msra.mxu0 %v5783
  %6469 = vmatpush.msra.mxu0 %v5781
  %6470 = vmatmul.f32.gmra.mxu0 %v6388
  %v6471 = vpop.f32.mrf.mxu0
  %v6472 = vadd.f32 0.0, %v6471
  %6473 = vdwg.mxu0
  %6474 = vmatpush.msra.mxu0 %v5843
  %6475 = vmatpush.msra.mxu0 %v5841
  %6476 = vmatpush.msra.mxu0 %v5839
  %6477 = vmatpush.msra.mxu0 %v5837
  %6478 = vmatpush.msra.mxu0 %v5835
  %6479 = vmatpush.msra.mxu0 %v5833
  %6480 = vmatpush.msra.mxu0 %v5831
  %6481 = vmatpush.msra.mxu0 %v5829
  %6482 = vmatpush.msra.mxu0 %v5827
  %6483 = vmatpush.msra.mxu0 %v5825
  %6484 = vmatpush.msra.mxu0 %v5823
  %6485 = vmatpush.msra.mxu0 %v5821
  %6486 = vmatpush.msra.mxu0 %v5819
  %6487 = vmatpush.msra.mxu0 %v5817
  %6488 = vmatpush.msra.mxu0 %v5815
  %6489 = vmatpush.msra.mxu0 %v5813
  %6490 = vmatmul.f32.gmra.mxu0 %v6389
  %v6491 = vpop.f32.mrf.mxu0
  %v6492 = vadd.f32 %v6472, %v6491
  %6493 = vdwg.mxu0
  %6494 = vmatpush.msra.mxu0 %v5875
  %6495 = vmatpush.msra.mxu0 %v5873
  %6496 = vmatpush.msra.mxu0 %v5871
  %6497 = vmatpush.msra.mxu0 %v5869
  %6498 = vmatpush.msra.mxu0 %v5867
  %6499 = vmatpush.msra.mxu0 %v5865
  %6500 = vmatpush.msra.mxu0 %v5863
  %6501 = vmatpush.msra.mxu0 %v5861
  %6502 = vmatpush.msra.mxu0 %v5859
  %6503 = vmatpush.msra.mxu0 %v5857
  %6504 = vmatpush.msra.mxu0 %v5855
  %6505 = vmatpush.msra.mxu0 %v5853
  %6506 = vmatpush.msra.mxu0 %v5851
  %6507 = vmatpush.msra.mxu0 %v5849
  %6508 = vmatpush.msra.mxu0 %v5847
  %6509 = vmatpush.msra.mxu0 %v5845
  %6510 = vmatmul.f32.gmra.mxu0 %v6390
  %v6511 = vpop.f32.mrf.mxu0
  %v6512 = vadd.f32 %v6492, %v6511
  %6513 = vdwg.mxu0
  %6516 = vst [vmem:[#allocation1] ss:$2 sm:$0xff] %v6377
  %s6517 = scalar_lea.vmem [#allocation1], 16
  %6518 = vst [vmem:[%s6517] ss:$2 sm:$0xff] %v6378
  %v6519 = vld.sshfl [vmem:[#allocation1] sm:$0xff pattern:$0x75316420]
  %v6520 = vld.sshfl [vmem:[#allocation1 + $0x8] sm:$0xff pattern:$0x75316420]
  %v6521 = vld.sshfl [vmem:[#allocation1 + $0x10] sm:$0xff pattern:$0x75316420]
  %6525 = vmatpush.msra.mxu0 %v5713
  %6526 = vmatpush.msra.mxu0 %v5711
  %6527 = vmatpush.msra.mxu0 %v5709
  %6528 = vmatpush.msra.mxu0 %v5707
  %6529 = vmatpush.msra.mxu0 %v5705
  %6530 = vmatpush.msra.mxu0 %v5703
  %6531 = vmatpush.msra.mxu0 %v5701
  %6532 = vmatpush.msra.mxu0 %v5699
  %6533 = vmatpush.msra.mxu0 %v5697
  %6534 = vmatpush.msra.mxu0 %v5695
  %6535 = vmatpush.msra.mxu0 %v5693
  %6536 = vmatpush.msra.mxu0 %v5691
  %6537 = vmatpush.msra.mxu0 %v5689
  %6538 = vmatpush.msra.mxu0 %v5687
  %6539 = vmatpush.msra.mxu0 %v5685
  %6540 = vmatpush.msra.mxu0 %v5683
  %6541 = vmatmul.f32.gmra.mxu0 %v6519
  %v6542 = vpop.f32.mrf.mxu0
  %v6543 = vadd.f32 %v6452, %v6542
  %6544 = vdwg.mxu0
  %6545 = vmatpush.msra.mxu0 %v5745
  %6546 = vmatpush.msra.mxu0 %v5743
  %6547 = vmatpush.msra.mxu0 %v5741
  %6548 = vmatpush.msra.mxu0 %v5739
  %6549 = vmatpush.msra.mxu0 %v5737
  %6550 = vmatpush.msra.mxu0 %v5735
  %6551 = vmatpush.msra.mxu0 %v5733
  %6552 = vmatpush.msra.mxu0 %v5731
  %6553 = vmatpush.msra.mxu0 %v5729
  %6554 = vmatpush.msra.mxu0 %v5727
  %6555 = vmatpush.msra.mxu0 %v5725
  %6556 = vmatpush.msra.mxu0 %v5723
  %6557 = vmatpush.msra.mxu0 %v5721
  %6558 = vmatpush.msra.mxu0 %v5719
  %6559 = vmatpush.msra.mxu0 %v5717
  %6560 = vmatpush.msra.mxu0 %v5715
  %6561 = vmatmul.f32.gmra.mxu0 %v6520
  %v6562 = vpop.f32.mrf.mxu0
  %v6563 = vadd.f32 %v6543, %v6562
  %6564 = vdwg.mxu0
  %6565 = vmatpush.msra.mxu0 %v5777
  %6566 = vmatpush.msra.mxu0 %v5775
  %6567 = vmatpush.msra.mxu0 %v5773
  %6568 = vmatpush.msra.mxu0 %v5771
  %6569 = vmatpush.msra.mxu0 %v5769
  %6570 = vmatpush.msra.mxu0 %v5767
  %6571 = vmatpush.msra.mxu0 %v5765
  %6572 = vmatpush.msra.mxu0 %v5763
  %6573 = vmatpush.msra.mxu0 %v5761
  %6574 = vmatpush.msra.mxu0 %v5759
  %6575 = vmatpush.msra.mxu0 %v5757
  %6576 = vmatpush.msra.mxu0 %v5755
  %6577 = vmatpush.msra.mxu0 %v5753
  %6578 = vmatpush.msra.mxu0 %v5751
  %6579 = vmatpush.msra.mxu0 %v5749
  %6580 = vmatpush.msra.mxu0 %v5747
  %6581 = vmatmul.f32.gmra.mxu0 %v6521
  %v6582 = vpop.f32.mrf.mxu0
  %v6583 = vadd.f32 %v6563, %v6582
  %6584 = vdwg.mxu0
  %6585 = vmatpush.msra.mxu0 %v5714
  %6586 = vmatpush.msra.mxu0 %v5712
  %6587 = vmatpush.msra.mxu0 %v5710
  %6588 = vmatpush.msra.mxu0 %v5708
  %6589 = vmatpush.msra.mxu0 %v5706
  %6590 = vmatpush.msra.mxu0 %v5704
  %6591 = vmatpush.msra.mxu0 %v5702
  %6592 = vmatpush.msra.mxu0 %v5700
  %6593 = vmatpush.msra.mxu0 %v5698
  %6594 = vmatpush.msra.mxu0 %v5696
  %6595 = vmatpush.msra.mxu0 %v5694
  %6596 = vmatpush.msra.mxu0 %v5692
  %6597 = vmatpush.msra.mxu0 %v5690
  %6598 = vmatpush.msra.mxu0 %v5688
  %6599 = vmatpush.msra.mxu0 %v5686
  %6600 = vmatpush.msra.mxu0 %v5684
  %6601 = vmatmul.f32.gmra.mxu0 %v6519
  %v6602 = vpop.f32.mrf.mxu0
  %v6603 = vadd.f32 %v6512, %v6602
  %6604 = vdwg.mxu0
  %6605 = vmatpush.msra.mxu0 %v5746
  %6606 = vmatpush.msra.mxu0 %v5744
  %6607 = vmatpush.msra.mxu0 %v5742
  %6608 = vmatpush.msra.mxu0 %v5740
  %6609 = vmatpush.msra.mxu0 %v5738
  %6610 = vmatpush.msra.mxu0 %v5736
  %6611 = vmatpush.msra.mxu0 %v5734
  %6612 = vmatpush.msra.mxu0 %v5732
  %6613 = vmatpush.msra.mxu0 %v5730
  %6614 = vmatpush.msra.mxu0 %v5728
  %6615 = vmatpush.msra.mxu0 %v5726
  %6616 = vmatpush.msra.mxu0 %v5724
  %6617 = vmatpush.msra.mxu0 %v5722
  %6618 = vmatpush.msra.mxu0 %v5720
  %6619 = vmatpush.msra.mxu0 %v5718
  %6620 = vmatpush.msra.mxu0 %v5716
  %6621 = vmatmul.f32.gmra.mxu0 %v6520
  %v6622 = vpop.f32.mrf.mxu0
  %v6623 = vadd.f32 %v6603, %v6622
  %6624 = vdwg.mxu0
  %6625 = vmatpush.msra.mxu0 %v5778
  %6626 = vmatpush.msra.mxu0 %v5776
  %6627 = vmatpush.msra.mxu0 %v5774
  %6628 = vmatpush.msra.mxu0 %v5772
  %6629 = vmatpush.msra.mxu0 %v5770
  %6630 = vmatpush.msra.mxu0 %v5768
  %6631 = vmatpush.msra.mxu0 %v5766
  %6632 = vmatpush.msra.mxu0 %v5764
  %6633 = vmatpush.msra.mxu0 %v5762
  %6634 = vmatpush.msra.mxu0 %v5760
  %6635 = vmatpush.msra.mxu0 %v5758
  %6636 = vmatpush.msra.mxu0 %v5756
  %6637 = vmatpush.msra.mxu0 %v5754
  %6638 = vmatpush.msra.mxu0 %v5752
  %6639 = vmatpush.msra.mxu0 %v5750
  %6640 = vmatpush.msra.mxu0 %v5748
  %6641 = vmatmul.f32.gmra.mxu0 %v6521
  %v6642 = vpop.f32.mrf.mxu0
  %v6643 = vadd.f32 %v6623, %v6642
  %6644 = vdwg.mxu0
  %6647 = vst [vmem:[#allocation1] ss:$2 sm:$0xff] %v6381
  %s6648 = scalar_lea.vmem [#allocation1], 16
  %6649 = vst [vmem:[%s6648] ss:$2 sm:$0xff] %v6382
  %v6650 = vld.sshfl [vmem:[#allocation1] sm:$0xff pattern:$0x75316420]
  %v6651 = vld.sshfl [vmem:[#allocation1 + $0x8] sm:$0xff pattern:$0x75316420]
  %v6652 = vld.sshfl [vmem:[#allocation1 + $0x10] sm:$0xff pattern:$0x75316420]
  %v6653 = vrot.slane %v6650, 1
  %v6654 = vrot.slane %v6651, 1
  %v6655 = vrot.slane %v6652, 1
  %6659 = vmatpush.msra.mxu0 %v5907
  %6660 = vmatpush.msra.mxu0 %v5905
  %6661 = vmatpush.msra.mxu0 %v5903
  %6662 = vmatpush.msra.mxu0 %v5901
  %6663 = vmatpush.msra.mxu0 %v5899
  %6664 = vmatpush.msra.mxu0 %v5897
  %6665 = vmatpush.msra.mxu0 %v5895
  %6666 = vmatpush.msra.mxu0 %v5893
  %6667 = vmatpush.msra.mxu0 %v5891
  %6668 = vmatpush.msra.mxu0 %v5889
  %6669 = vmatpush.msra.mxu0 %v5887
  %6670 = vmatpush.msra.mxu0 %v5885
  %6671 = vmatpush.msra.mxu0 %v5883
  %6672 = vmatpush.msra.mxu0 %v5881
  %6673 = vmatpush.msra.mxu0 %v5879
  %6674 = vmatpush.msra.mxu0 %v5877
  %6675 = vmatmul.f32.gmra.mxu0 %v6653
  %v6676 = vpop.f32.mrf.mxu0
  %v6677 = vadd.f32 0.0, %v6676
  %6678 = vdwg.mxu0
  %6679 = vmatpush.msra.mxu0 %v5939
  %6680 = vmatpush.msra.mxu0 %v5937
  %6681 = vmatpush.msra.mxu0 %v5935
  %6682 = vmatpush.msra.mxu0 %v5933
  %6683 = vmatpush.msra.mxu0 %v5931
  %6684 = vmatpush.msra.mxu0 %v5929
  %6685 = vmatpush.msra.mxu0 %v5927
  %6686 = vmatpush.msra.mxu0 %v5925
  %6687 = vmatpush.msra.mxu0 %v5923
  %6688 = vmatpush.msra.mxu0 %v5921
  %6689 = vmatpush.msra.mxu0 %v5919
  %6690 = vmatpush.msra.mxu0 %v5917
  %6691 = vmatpush.msra.mxu0 %v5915
  %6692 = vmatpush.msra.mxu0 %v5913
  %6693 = vmatpush.msra.mxu0 %v5911
  %6694 = vmatpush.msra.mxu0 %v5909
  %6695 = vmatmul.f32.gmra.mxu0 %v6654
  %v6696 = vpop.f32.mrf.mxu0
  %v6697 = vadd.f32 %v6677, %v6696
  %6698 = vdwg.mxu0
  %6699 = vmatpush.msra.mxu0 %v5971
  %6700 = vmatpush.msra.mxu0 %v5969
  %6701 = vmatpush.msra.mxu0 %v5967
  %6702 = vmatpush.msra.mxu0 %v5965
  %6703 = vmatpush.msra.mxu0 %v5963
  %6704 = vmatpush.msra.mxu0 %v5961
  %6705 = vmatpush.msra.mxu0 %v5959
  %6706 = vmatpush.msra.mxu0 %v5957
  %6707 = vmatpush.msra.mxu0 %v5955
  %6708 = vmatpush.msra.mxu0 %v5953
  %6709 = vmatpush.msra.mxu0 %v5951
  %6710 = vmatpush.msra.mxu0 %v5949
  %6711 = vmatpush.msra.mxu0 %v5947
  %6712 = vmatpush.msra.mxu0 %v5945
  %6713 = vmatpush.msra.mxu0 %v5943
  %6714 = vmatpush.msra.mxu0 %v5941
  %6715 = vmatmul.f32.gmra.mxu0 %v6655
  %v6716 = vpop.f32.mrf.mxu0
  %v6717 = vadd.f32 %v6697, %v6716
  %6718 = vdwg.mxu0
  %6719 = vmatpush.msra.mxu0 %v5908
  %6720 = vmatpush.msra.mxu0 %v5906
  %6721 = vmatpush.msra.mxu0 %v5904
  %6722 = vmatpush.msra.mxu0 %v5902
  %6723 = vmatpush.msra.mxu0 %v5900
  %6724 = vmatpush.msra.mxu0 %v5898
  %6725 = vmatpush.msra.mxu0 %v5896
  %6726 = vmatpush.msra.mxu0 %v5894
  %6727 = vmatpush.msra.mxu0 %v5892
  %6728 = vmatpush.msra.mxu0 %v5890
  %6729 = vmatpush.msra.mxu0 %v5888
  %6730 = vmatpush.msra.mxu0 %v5886
  %6731 = vmatpush.msra.mxu0 %v5884
  %6732 = vmatpush.msra.mxu0 %v5882
  %6733 = vmatpush.msra.mxu0 %v5880
  %6734 = vmatpush.msra.mxu0 %v5878
  %6735 = vmatmul.f32.gmra.mxu0 %v6653
  %v6736 = vpop.f32.mrf.mxu0
  %v6737 = vadd.f32 0.0, %v6736
  %6738 = vdwg.mxu0
  %6739 = vmatpush.msra.mxu0 %v5940
  %6740 = vmatpush.msra.mxu0 %v5938
  %6741 = vmatpush.msra.mxu0 %v5936
  %6742 = vmatpush.msra.mxu0 %v5934
  %6743 = vmatpush.msra.mxu0 %v5932
  %6744 = vmatpush.msra.mxu0 %v5930
  %6745 = vmatpush.msra.mxu0 %v5928
  %6746 = vmatpush.msra.mxu0 %v5926
  %6747 = vmatpush.msra.mxu0 %v5924
  %6748 = vmatpush.msra.mxu0 %v5922
  %6749 = vmatpush.msra.mxu0 %v5920
  %6750 = vmatpush.msra.mxu0 %v5918
  %6751 = vmatpush.msra.mxu0 %v5916
  %6752 = vmatpush.msra.mxu0 %v5914
  %6753 = vmatpush.msra.mxu0 %v5912
  %6754 = vmatpush.msra.mxu0 %v5910
  %6755 = vmatmul.f32.gmra.mxu0 %v6654
  %v6756 = vpop.f32.mrf.mxu0
  %v6757 = vadd.f32 %v6737, %v6756
  %6758 = vdwg.mxu0
  %6759 = vmatpush.msra.mxu0 %v5972
  %6760 = vmatpush.msra.mxu0 %v5970
  %6761 = vmatpush.msra.mxu0 %v5968
  %6762 = vmatpush.msra.mxu0 %v5966
  %6763 = vmatpush.msra.mxu0 %v5964
  %6764 = vmatpush.msra.mxu0 %v5962
  %6765 = vmatpush.msra.mxu0 %v5960
  %6766 = vmatpush.msra.mxu0 %v5958
  %6767 = vmatpush.msra.mxu0 %v5956
  %6768 = vmatpush.msra.mxu0 %v5954
  %6769 = vmatpush.msra.mxu0 %v5952
  %6770 = vmatpush.msra.mxu0 %v5950
  %6771 = vmatpush.msra.mxu0 %v5948
  %6772 = vmatpush.msra.mxu0 %v5946
  %6773 = vmatpush.msra.mxu0 %v5944
  %6774 = vmatpush.msra.mxu0 %v5942
  %6775 = vmatmul.f32.gmra.mxu0 %v6655
  %v6776 = vpop.f32.mrf.mxu0
  %v6777 = vadd.f32 %v6757, %v6776
  %6778 = vdwg.mxu0
  %v6779 = vadd.f32 %v6583, %v6717
  %v6780 = vadd.f32 %v6643, %v6777
  %vm6781 = vcmask 1041408
  %v6782 = vsel %vm6781, %v6375, 0.0
  %v6783 = vrot.slane %v6782, 4
  %v6784 = vadd.f32 %v6782, %v6783
  %v6785 = vrot.slane %v6784, 2
  %v6786 = vadd.f32 %v6784, %v6785
  %v6787 = vrot.slane %v6786, 1
  %v6788 = vadd.f32 %v6786, %v6787
  %v6789 = vsel %vm6781, %v6376, 0.0
  %v6790 = vrot.slane %v6789, 4
  %v6791 = vadd.f32 %v6789, %v6790
  %v6792 = vrot.slane %v6791, 2
  %v6793 = vadd.f32 %v6791, %v6792
  %v6794 = vrot.slane %v6793, 1
  %v6795 = vadd.f32 %v6793, %v6794
  %v6796 = vmul.f32 %v6375, %v6375
  %v6797 = vmul.f32 %v6376, %v6376
  %v6798 = vsel %vm6781, %v6796, 0.0
  %v6799 = vrot.slane %v6798, 4
  %v6800 = vadd.f32 %v6798, %v6799
  %v6801 = vrot.slane %v6800, 2
  %v6802 = vadd.f32 %v6800, %v6801
  %v6803 = vrot.slane %v6802, 1
  %v6804 = vadd.f32 %v6802, %v6803
  %v6805 = vsel %vm6781, %v6797, 0.0
  %v6806 = vrot.slane %v6805, 4
  %v6807 = vadd.f32 %v6805, %v6806
  %v6808 = vrot.slane %v6807, 2
  %v6809 = vadd.f32 %v6807, %v6808
  %v6810 = vrot.slane %v6809, 1
  %v6811 = vadd.f32 %v6809, %v6810
  %v6812 = vsel %vm6781, %v6779, 0.0
  %v6813 = vrot.slane %v6812, 4
  %v6814 = vadd.f32 %v6812, %v6813
  %v6815 = vrot.slane %v6814, 2
  %v6816 = vadd.f32 %v6814, %v6815
  %v6817 = vrot.slane %v6816, 1
  %v6818 = vadd.f32 %v6816, %v6817
  %v6819 = vsel %vm6781, %v6780, 0.0
  %v6820 = vrot.slane %v6819, 4
  %v6821 = vadd.f32 %v6819, %v6820
  %v6822 = vrot.slane %v6821, 2
  %v6823 = vadd.f32 %v6821, %v6822
  %v6824 = vrot.slane %v6823, 1
  %v6825 = vadd.f32 %v6823, %v6824
  %v6826 = vadd.f32 %v6788, %v6818
  %v6827 = vadd.f32 %v6795, %v6825
  %v6828 = vmul.f32 %v6779, %v6779
  %v6829 = vmul.f32 %v6780, %v6780
  %v6830 = vsel %vm6781, %v6828, 0.0
  %v6831 = vrot.slane %v6830, 4
  %v6832 = vadd.f32 %v6830, %v6831
  %v6833 = vrot.slane %v6832, 2
  %v6834 = vadd.f32 %v6832, %v6833
  %v6835 = vrot.slane %v6834, 1
  %v6836 = vadd.f32 %v6834, %v6835
  %v6837 = vsel %vm6781, %v6829, 0.0
  %v6838 = vrot.slane %v6837, 4
  %v6839 = vadd.f32 %v6837, %v6838
  %v6840 = vrot.slane %v6839, 2
  %v6841 = vadd.f32 %v6839, %v6840
  %v6842 = vrot.slane %v6841, 1
  %v6843 = vadd.f32 %v6841, %v6842
  %v6844 = vadd.f32 %v6804, %v6836
  %v6845 = vadd.f32 %v6811, %v6843
  %v6846 = vsel %vm857, %v6826, %v6844
  %v6847 = vsel %vm857, %v6827, %v6845
  %v6848 = vld [vmem:[%s8] sm:$0xff]
  %v6849 = vld [vmem:[%s8 + $0x8] sm:$0xff]
  %v6850 = vld [vmem:[%s8 + $0x10] sm:$0xff]
  %v6851 = vld [vmem:[%s8 + $0x18] sm:$0xff]
  %v6852 = vld [vmem:[%s8 + $0x20] sm:$0xff]
  %v6853 = vld [vmem:[%s8 + $0x28] sm:$0xff]
  %v6854 = vld [vmem:[%s8 + $0x30] sm:$0xff]
  %v6855 = vld [vmem:[%s8 + $0x38] sm:$0xff]
  %v6856 = vld [vmem:[%s8 + $0x40] sm:$0xff]
  %v6857 = vld [vmem:[%s8 + $0x48] sm:$0xff]
  %v6858 = vld [vmem:[%s8 + $0x50] sm:$0xff]
  %v6859 = vld [vmem:[%s8 + $0x58] sm:$0xff]
  %v6860 = vld [vmem:[%s8 + $0x60] sm:$0xff]
  %v6861 = vld [vmem:[%s8 + $0x68] sm:$0xff]
  %v6862 = vld [vmem:[%s8 + $0x70] sm:$0xff]
  %v6863 = vld [vmem:[%s8 + $0x78] sm:$0xff]
  %v6864 = vld [vmem:[%s8 + $0x80] sm:$0xff]
  %v6865 = vld [vmem:[%s8 + $0x88] sm:$0xff]
  %v6866 = vld [vmem:[%s8 + $0x90] sm:$0xff]
  %v6867 = vld [vmem:[%s8 + $0x98] sm:$0xff]
  %v6868 = vld [vmem:[%s8 + $0xa0] sm:$0xff]
  %v6869 = vld [vmem:[%s8 + $0xa8] sm:$0xff]
  %v6870 = vld [vmem:[%s8 + $0xb0] sm:$0xff]
  %v6871 = vld [vmem:[%s8 + $0xb8] sm:$0xff]
  %v6872 = vld [vmem:[%s8 + $0xc0] sm:$0xff]
  %v6873 = vld [vmem:[%s8 + $0xc8] sm:$0xff]
  %v6874 = vld [vmem:[%s8 + $0xd0] sm:$0xff]
  %v6875 = vld [vmem:[%s8 + $0xd8] sm:$0xff]
  %v6876 = vld [vmem:[%s8 + $0xe0] sm:$0xff]
  %v6877 = vld [vmem:[%s8 + $0xe8] sm:$0xff]
  %v6878 = vld [vmem:[%s8 + $0xf0] sm:$0xff]
  %v6879 = vld [vmem:[%s8 + $0xf8] sm:$0xff]
  %6880 = vmatpush.msra.mxu0 %v6863
  %6881 = vmatpush.msra.mxu0 %v6862
  %6882 = vmatpush.msra.mxu0 %v6861
  %6883 = vmatpush.msra.mxu0 %v6860
  %6884 = vmatpush.msra.mxu0 %v6859
  %6885 = vmatpush.msra.mxu0 %v6858
  %6886 = vmatpush.msra.mxu0 %v6857
  %6887 = vmatpush.msra.mxu0 %v6856
  %6888 = vmatpush.msra.mxu0 %v6855
  %6889 = vmatpush.msra.mxu0 %v6854
  %6890 = vmatpush.msra.mxu0 %v6853
  %6891 = vmatpush.msra.mxu0 %v6852
  %6892 = vmatpush.msra.mxu0 %v6851
  %6893 = vmatpush.msra.mxu0 %v6850
  %6894 = vmatpush.msra.mxu0 %v6849
  %6895 = vmatpush.msra.mxu0 %v6848
  %6896 = vmatmul.f32.gmra.mxu0 %v6846
  %v6897 = vpop.f32.mrf.mxu0
  %v6898 = vadd.f32 0.0, %v6897
  %6899 = vdwg.mxu0
  %6900 = vmatpush.msra.mxu0 %v6879
  %6901 = vmatpush.msra.mxu0 %v6878
  %6902 = vmatpush.msra.mxu0 %v6877
  %6903 = vmatpush.msra.mxu0 %v6876
  %6904 = vmatpush.msra.mxu0 %v6875
  %6905 = vmatpush.msra.mxu0 %v6874
  %6906 = vmatpush.msra.mxu0 %v6873
  %6907 = vmatpush.msra.mxu0 %v6872
  %6908 = vmatpush.msra.mxu0 %v6871
  %6909 = vmatpush.msra.mxu0 %v6870
  %6910 = vmatpush.msra.mxu0 %v6869
  %6911 = vmatpush.msra.mxu0 %v6868
  %6912 = vmatpush.msra.mxu0 %v6867
  %6913 = vmatpush.msra.mxu0 %v6866
  %6914 = vmatpush.msra.mxu0 %v6865
  %6915 = vmatpush.msra.mxu0 %v6864
  %6916 = vmatmul.f32.gmra.mxu0 %v6847
  %v6917 = vpop.f32.mrf.mxu0
  %v6918 = vadd.f32 %v6898, %v6917
  %6919 = vdwg.mxu0
  %v6920 = vmul.f32 %v6918, 0.125
  %v6921 = vmul.f32 %v6920, %v6920
  %v6923 = vrot.slane %v6921, 7
  %v6925 = vsub.f32 %v6920, %v6923
  %v6926 = vld [vmem:[%s16] sm:$0x3]
  %v6927 = vadd.f32 %v6925, 1e-05
  %v6928 = vrsqrt.pop %v6927
  %v6929 = vmul.f32 %v6928, %v6927
  %v6930 = vmul.f32 %v6929, %v6928
  %v6931 = vmul.f32 0.5, %v6930
  %v6932 = vsub.f32 1.5, %v6931
  %v6933 = vmul.f32 %v6928, %v6932
  %vm6934 = vweird.f32 %v6927
  %vm6935 = vweird.f32 %v6928
  %vm6936 = vmor %vm6934, %vm6935
  %v6937 = vsel %vm6936, %v6928, %v6933
  %v6939 = vrot.slane %v6937, 1
  %v6941 = vmul.f32 %v6926, %v6939
  %v6942 = vmul.f32 %v6920, %v6941
  %v6944 = vrot.slane %v6942, 7
  %v6946 = vsub.f32 %v6926, %v6944
  %v6947 = vsel %vm857, %v6941, %v6946
  %v6948 = vld [vmem:[%s12] sm:$0xff]
  %v6949 = vld [vmem:[%s12 + $0x8] sm:$0xff]
  %v6950 = vld [vmem:[%s12 + $0x10] sm:$0xff]
  %v6951 = vld [vmem:[%s12 + $0x18] sm:$0xff]
  %v6952 = vld [vmem:[%s12 + $0x20] sm:$0xff]
  %v6953 = vld [vmem:[%s12 + $0x28] sm:$0xff]
  %v6954 = vld [vmem:[%s12 + $0x30] sm:$0xff]
  %v6955 = vld [vmem:[%s12 + $0x38] sm:$0xff]
  %v6956 = vld [vmem:[%s12 + $0x40] sm:$0xff]
  %v6957 = vld [vmem:[%s12 + $0x48] sm:$0xff]
  %v6958 = vld [vmem:[%s12 + $0x50] sm:$0xff]
  %v6959 = vld [vmem:[%s12 + $0x58] sm:$0xff]
  %v6960 = vld [vmem:[%s12 + $0x60] sm:$0xff]
  %v6961 = vld [vmem:[%s12 + $0x68] sm:$0xff]
  %v6962 = vld [vmem:[%s12 + $0x70] sm:$0xff]
  %v6963 = vld [vmem:[%s12 + $0x78] sm:$0xff]
  %v6964 = vld [vmem:[%s12 + $0x80] sm:$0xff]
  %v6965 = vld [vmem:[%s12 + $0x88] sm:$0xff]
  %v6966 = vld [vmem:[%s12 + $0x90] sm:$0xff]
  %v6967 = vld [vmem:[%s12 + $0x98] sm:$0xff]
  %v6968 = vld [vmem:[%s12 + $0xa0] sm:$0xff]
  %v6969 = vld [vmem:[%s12 + $0xa8] sm:$0xff]
  %v6970 = vld [vmem:[%s12 + $0xb0] sm:$0xff]
  %v6971 = vld [vmem:[%s12 + $0xb8] sm:$0xff]
  %v6972 = vld [vmem:[%s12 + $0xc0] sm:$0xff]
  %v6973 = vld [vmem:[%s12 + $0xc8] sm:$0xff]
  %v6974 = vld [vmem:[%s12 + $0xd0] sm:$0xff]
  %v6975 = vld [vmem:[%s12 + $0xd8] sm:$0xff]
  %v6976 = vld [vmem:[%s12 + $0xe0] sm:$0xff]
  %v6977 = vld [vmem:[%s12 + $0xe8] sm:$0xff]
  %v6978 = vld [vmem:[%s12 + $0xf0] sm:$0xff]
  %v6979 = vld [vmem:[%s12 + $0xf8] sm:$0xff]
  %6980 = vmatpush.msra.mxu0 %v6978
  %6981 = vmatpush.msra.mxu0 %v6976
  %6982 = vmatpush.msra.mxu0 %v6974
  %6983 = vmatpush.msra.mxu0 %v6972
  %6984 = vmatpush.msra.mxu0 %v6970
  %6985 = vmatpush.msra.mxu0 %v6968
  %6986 = vmatpush.msra.mxu0 %v6966
  %6987 = vmatpush.msra.mxu0 %v6964
  %6988 = vmatpush.msra.mxu0 %v6962
  %6989 = vmatpush.msra.mxu0 %v6960
  %6990 = vmatpush.msra.mxu0 %v6958
  %6991 = vmatpush.msra.mxu0 %v6956
  %6992 = vmatpush.msra.mxu0 %v6954
  %6993 = vmatpush.msra.mxu0 %v6952
  %6994 = vmatpush.msra.mxu0 %v6950
  %6995 = vmatpush.msra.mxu0 %v6948
  %6996 = vmatmul.f32.gmra.mxu0 %v6947
  %v6997 = vpop.f32.mrf.mxu0
  %v6998 = vadd.f32 0.0, %v6997
  %6999 = vdwg.mxu0
  %7000 = vmatpush.msra.mxu0 %v6979
  %7001 = vmatpush.msra.mxu0 %v6977
  %7002 = vmatpush.msra.mxu0 %v6975
  %7003 = vmatpush.msra.mxu0 %v6973
  %7004 = vmatpush.msra.mxu0 %v6971
  %7005 = vmatpush.msra.mxu0 %v6969
  %7006 = vmatpush.msra.mxu0 %v6967
  %7007 = vmatpush.msra.mxu0 %v6965
  %7008 = vmatpush.msra.mxu0 %v6963
  %7009 = vmatpush.msra.mxu0 %v6961
  %7010 = vmatpush.msra.mxu0 %v6959
  %7011 = vmatpush.msra.mxu0 %v6957
  %7012 = vmatpush.msra.mxu0 %v6955
  %7013 = vmatpush.msra.mxu0 %v6953
  %7014 = vmatpush.msra.mxu0 %v6951
  %7015 = vmatpush.msra.mxu0 %v6949
  %7016 = vmatmul.f32.gmra.mxu0 %v6947
  %v7017 = vpop.f32.mrf.mxu0
  %v7018 = vadd.f32 0.0, %v7017
  %7019 = vdwg.mxu0
  %v7020 = vperm.slane %v6998, 0
  %v7021 = vperm.slane %v7018, 0
  %v7022 = vmul.f32 %v6375, %v7020
  %v7023 = vmul.f32 %v6376, %v7021
  %v7024 = vperm.slane %v6998, 1
  %v7025 = vperm.slane %v7018, 1
  %v7026 = vadd.f32 %v7022, %v7024
  %v7027 = vadd.f32 %v7023, %v7025
  %vm7028 = vcmp.ge.f32.partialorder %v7026, 0.0
  %vm7029 = vcmp.ge.f32.partialorder %v7027, 0.0
  %v7030 = vmul.f32 %v7026, 0.01
  %v7031 = vmul.f32 %v7027, 0.01
  %v7032 = vsel %vm7028, %v7026, %v7030
  %v7033 = vsel %vm7029, %v7027, %v7031
  %7035 = vst [vmem:[#allocation1] ss:$4 sm:$0xff] %v120
  %v7036 = vld.sshfl [vmem:[#allocation1] sm:$0xff pattern:$0x73625140]
  %v7037 = vld.sshfl [vmem:[#allocation1 + $0x8] sm:$0xff pattern:$0x73625140]
  %v7040 = vmul.f32 %v7032, %v7036
  %v7041 = vmul.f32 %v7033, %v7037
  %v7042 = vsel %vm6781, %v7040, 0.0
  %v7043 = vsel %vm6781, %v7041, 0.0
  %v7044 = vadd.f32 %v7042, %v7043
  %7045 = vadd.xlane.f32.xlu0 %v7044
  %v7046 = vpop.xlane.xlu0 %7045
  %v7047 = vsel %vm6781, %v7046, 0.0
  %v7048 = vrot.slane %v7047, 4
  %v7049 = vadd.f32 %v7047, %v7048
  %v7050 = vrot.slane %v7049, 2
  %v7051 = vadd.f32 %v7049, %v7050
  %v7052 = vrot.slane %v7051, 1
  %v7053 = vadd.f32 %v7051, %v7052
  %v7054 = vadd.f32 %v7053, %v121
  %vm7055 = vcmask 0
  %7056 = vst.msk [vmem:[%s22] sm:$0x1] %vm7055, %v7054
  %v7057 = vmul.f32 %v6779, %v7020
  %v7058 = vmul.f32 %v6780, %v7021
  %v7059 = vadd.f32 %v7057, %v7024
  %v7060 = vadd.f32 %v7058, %v7025
  %vm7061 = vcmp.ge.f32.partialorder %v7059, 0.0
  %vm7062 = vcmp.ge.f32.partialorder %v7060, 0.0
  %v7063 = vmul.f32 %v7059, 0.01
  %v7064 = vmul.f32 %v7060, 0.01
  %v7065 = vsel %vm7061, %v7059, %v7063
  %v7066 = vsel %vm7062, %v7060, %v7064
  %7067 = vst [vmem:[#allocation1] ss:$4 sm:$0xff] %v120
  %v7068 = vld.sshfl [vmem:[#allocation1] sm:$0xff pattern:$0x73625140]
  %v7069 = vld.sshfl [vmem:[#allocation1 + $0x8] sm:$0xff pattern:$0x73625140]
  %v7072 = vmul.f32 %v7065, %v7068
  %v7073 = vmul.f32 %v7066, %v7069
  %v7074 = vsel %vm6781, %v7072, 0.0
  %v7075 = vsel %vm6781, %v7073, 0.0
  %v7076 = vadd.f32 %v7074, %v7075
  %7077 = vadd.xlane.f32.xlu0 %v7076
  %v7078 = vpop.xlane.xlu0 %7077
  %v7079 = vsel %vm6781, %v7078, 0.0
  %v7080 = vrot.slane %v7079, 4
  %v7081 = vadd.f32 %v7079, %v7080
  %v7082 = vrot.slane %v7081, 2
  %v7083 = vadd.f32 %v7081, %v7082
  %v7084 = vrot.slane %v7083, 1
  %v7085 = vadd.f32 %v7083, %v7084
  %v7086 = vadd.f32 %v7085, %v121
  %7087 = vst.msk [vmem:[%s22 + $0x1] sm:$0x1] %vm7055, %v7086
  // Predicated region
  $region90: #{forward.1} parent=0 // pred_check
    _
  $region91: #{forward.1} parent=0 // pred_check_branch
    %7089 = sbr.rel (0) target = $region93
  $region92: #{forward.1} parent=0 // pred_region
    _
  $region93: #{forward.1} parent=0 // pred_fallthru
    _
  // Predicated region
  $region94: #{forward.1} parent=0 // pred_check
    _
  $region95: #{forward.1} parent=0 // pred_check_branch
    %7091 = sbr.rel (0) target = $region97
  $region96: #{forward.1} parent=0 // pred_region
    _
  $region97: #{forward.1} parent=0 // pred_fallthru
    _

</llo_original>
